<compile_context>
chip_gen: v7x
topology: tpu7x:2x2x1
jax: 0.10.0
libtpu: 0.0.40
codegen_flags: <defaults>
</compile_context>

<pallas_src>
import functools

import jax
import jax.numpy as jnp
import numpy as np
from jax import lax
from jax.experimental import pallas as pl
from jax.experimental.pallas import tpu as pltpu


def _aspp_kernel(rates, W, pad, TH,
                 xp_ref, w1_ref, w3_ref, wproj_ref,
                 bb_ref, pb_ref, pool_ref,
                 o_ref, x9_ref):
    """One (batch, row-tile) grid point.

    xp_ref    : (1, H+2p, W+2p, Cin) bf16 zero-padded input (full image resident).
    w1_ref    : (Cin, Cout) bf16, BN scale pre-folded.
    w3_ref    : (R, 9*Cin, Cout) bf16, taps packed along K, BN scale pre-folded.
    wproj_ref : ((R+1)*Cout, Cout) bf16 projection weights (pool slice handled
                in the wrapper), proj-BN scale pre-folded.
    bb_ref    : (R+1, Cout) f32 folded-BN biases for the non-pooling branches.
    pb_ref    : (1, Cout)   f32 folded projection-BN bias.
    pool_ref  : (1, 1, Cout) f32 projected pooling-branch contribution (constant).
    x9_ref    : (TH*W, 9*Cin) bf16 VMEM scratch used to pack the 9 taps per rate.
    """
    Cin = xp_ref.shape[-1]
    Cout = w1_ref.shape[-1]
    M = TH * W

    row0 = pl.multiple_of(pl.program_id(1) * TH, TH)   # first output row of this tile

    bb = bb_ref[...]                                    # (R+1, Cout) f32

    # Center window of the padded input for this row tile (bf16).
    x_c = xp_ref[0, pl.ds(row0 + pad, TH), pl.ds(pad, W), :].reshape(M, Cin)

    # --- branch 0: 1x1 conv (+folded BN) + bias + ReLU, projection fused -----
    b0 = jnp.dot(x_c, w1_ref[...], preferred_element_type=jnp.float32)
    b0 = jnp.maximum(b0 + bb[0:1, :], 0.0)                              # f32 epilogue
    proj = jnp.dot(b0.astype(jnp.bfloat16), wproj_ref[0:Cout, :],
                   preferred_element_type=jnp.float32)

    # --- dilated 3x3 branches: 9 taps packed along K, ONE matmul per rate ----
    for i, r in enumerate(rates):
        for k in range(9):
            ky, kx = divmod(k, 3)
            oy = row0 + pad - r + r * ky        # dynamic (row tile), always in-bounds
            ox = pad - r + r * kx               # static
            x9_ref[:, k * Cin:(k + 1) * Cin] = (
                xp_ref[0, pl.ds(oy, TH), pl.ds(ox, W), :].reshape(M, Cin))
        acc = jnp.dot(x9_ref[...], w3_ref[i], preferred_element_type=jnp.float32)
        bi = jnp.maximum(acc + bb[1 + i:2 + i, :], 0.0)
        proj = proj + jnp.dot(bi.astype(jnp.bfloat16),
                              wproj_ref[(1 + i) * Cout:(2 + i) * Cout, :],
                              preferred_element_type=jnp.float32)

    # --- pooling-branch contribution (precomputed, spatially constant) -------
    # Bilinear upsample of the 1x1 pooled map == broadcast add.
    pool_vec = pool_ref[0]                               # (1, Cout) f32
    proj = jnp.maximum(proj + pool_vec + pb_ref[...], 0.0)

    # NOTE: at production Cout (256) the last axis is already lane-dense; at the
    # tiny test Cout=8 a lane-dense re-layout would cost more than it saves.
    o_ref[...] = proj.reshape(1, TH, W, Cout)


def aspp_forward(x_nhwc, params, rates, row_tile=8):
    B, H, W, Cin = x_nhwc.shape
    Cout = params["w1"].shape[-1]
    R = len(rates)
    nb = R + 2
    pad = max(rates)
    TH = row_tile if (H % row_tile == 0) else H
    T = H // TH

    s = params["bn_scale"].astype(jnp.float32)           # (nb, Cout)
    b = params["bn_bias"].astype(jnp.float32)            # (nb, Cout)
    ps = params["proj_scale"].astype(jnp.float32)        # (1, Cout)
    pb = params["proj_bias"].astype(jnp.float32)         # (1, Cout)

    # Fold BN scales into conv weights (one-time weight transform, eval mode),
    # then cast matmul operands to bf16.  Biases stay f32 for the epilogues.
    w1 = (params["w1"] * s[0][None, :]).astype(jnp.bfloat16)                 # (Cin, Cout)
    w3 = (params["w3"] * s[1:nb - 1][:, None, None, :]
          ).reshape(R, 9 * Cin, Cout).astype(jnp.bfloat16)                   # (R, 9*Cin, Cout)
    wp = (params["wp"] * s[nb - 1][None, :]).astype(jnp.bfloat16)            # (Cin, Cout)
    wproj = (params["wproj"] * ps).astype(jnp.bfloat16)                      # (nb*Cout, Cout)
    bb = b[:nb - 1]                                                          # (R+1, Cout)

    # TODO(synk): do the zero-padding in-kernel (masked border taps) to avoid the
    # extra padded-copy HBM traffic at production sizes.
    xp = jnp.pad(x_nhwc, ((0, 0), (pad, pad), (pad, pad), (0, 0))).astype(jnp.bfloat16)
    Hp, Wp = H + 2 * pad, W + 2 * pad

    # Pooling branch: global avg pool -> 1x1 conv -> BN -> ReLU -> project.
    # Spatially constant -> compute its projected (B, Cout) contribution ONCE
    # here instead of redundantly per row tile inside the kernel.
    m = jnp.mean(x_nhwc.astype(jnp.bfloat16).astype(jnp.float32), axis=(1, 2))  # (B, Cin)
    pp = jnp.dot(m.astype(jnp.bfloat16), wp, preferred_element_type=jnp.float32)
    pp = jnp.maximum(pp + b[nb - 1][None, :], 0.0)                               # (B, Cout)
    pool_c = jnp.dot(pp.astype(jnp.bfloat16), wproj[(nb - 1) * Cout:, :],
                     preferred_element_type=jnp.float32)                         # (B, Cout)
    pool_c = pool_c.reshape(B, 1, Cout)

    wproj_k = wproj[:(nb - 1) * Cout, :]                 # kernel-side projection slice

    kernel = functools.partial(_aspp_kernel, tuple(rates), W, pad, TH)

    def const_spec(shape, single_buffer):
        # Constant index_map -> block never changes; single-buffer it if possible.
        idx = lambda bi, t, _n=len(shape): (0,) * _n
        if single_buffer:
            return pl.BlockSpec(shape, idx, pipeline_mode=pl.Buffered(1))
        return pl.BlockSpec(shape, idx)

    def build(single_buffer_weights):
        in_specs = [
            pl.BlockSpec((1, Hp, Wp, Cin), lambda bi, t: (bi, 0, 0, 0)),
            const_spec((Cin, Cout), single_buffer_weights),
            const_spec((R, 9 * Cin, Cout), single_buffer_weights),
            const_spec(((nb - 1) * Cout, Cout), single_buffer_weights),
            const_spec((nb - 1, Cout), single_buffer_weights),
            const_spec((1, Cout), single_buffer_weights),
            pl.BlockSpec((1, 1, Cout), lambda bi, t: (bi, 0, 0)),
        ]
        return pl.pallas_call(
            kernel,
            out_shape=jax.ShapeDtypeStruct((B, H, W, Cout), jnp.float32),
            grid=(B, T),
            in_specs=in_specs,
            out_specs=pl.BlockSpec((1, TH, W, Cout), lambda bi, t: (bi, t, 0, 0)),
            scratch_shapes=[pltpu.VMEM((TH * W, 9 * Cin), jnp.bfloat16)],
            compiler_params=pltpu.CompilerParams(
                dimension_semantics=("parallel", "parallel"),
                vmem_limit_bytes=48 * 1024 * 1024),
        )(xp, w1, w3, wproj_k, bb, pb, pool_c)

    try:
        return jax.block_until_ready(build(True))
    except Exception:
        # Graceful degradation if pipeline_mode=pl.Buffered(1) is not supported
        # on this jax/libtpu build: fall back to default double-buffered weights.
        return build(False)


# ----------------------------- parameter setup -------------------------------
def make_params(key, Cin, Cout, rates, eps=1e-5):
    R = len(rates)
    nb = R + 2
    Ctot = nb * Cout
    ks = jax.random.split(key, 16)

    def bn_fold(kg, kb, km, kv, n):
        gamma = 1.0 + 0.1 * jax.random.normal(kg, (n, Cout), jnp.float32)
        beta = 0.1 * jax.random.normal(kb, (n, Cout), jnp.float32)
        rmean = 0.1 * jax.random.normal(km, (n, Cout), jnp.float32)
        rvar = 0.5 + jax.random.uniform(kv, (n, Cout), jnp.float32)
        scale = gamma / jnp.sqrt(rvar + eps)
        bias = beta - rmean * scale
        return scale, bias

    w1 = 0.1 * jax.random.normal(ks[0], (Cin, Cout), jnp.float32)
    w3 = 0.1 * jax.random.normal(ks[1], (R, 9, Cin, Cout), jnp.float32)
    wp = 0.1 * jax.random.normal(ks[2], (Cin, Cout), jnp.float32)
    wproj = 0.1 * jax.random.normal(ks[3], (Ctot, Cout), jnp.float32)

    bn_scale, bn_bias = bn_fold(ks[4], ks[5], ks[6], ks[7], nb)
    ps, pbias = bn_fold(ks[8], ks[9], ks[10], ks[11], 1)

    return dict(w1=w1, w3=w3, wp=wp, wproj=wproj,
                bn_scale=bn_scale, bn_bias=bn_bias,
                proj_scale=ps, proj_bias=pbias)


# ----------------------------- pure-JAX reference -----------------------------
def ref_forward(x_nhwc, params, rates):
    """f32 reference; branch activations quantized to bf16 to mirror the kernel."""
    B, H, W, Cin = x_nhwc.shape
    Cout = params["w1"].shape[-1]
    s, b = params["bn_scale"], params["bn_bias"]
    q = lambda a: a.astype(jnp.bfloat16).astype(jnp.float32)

    outs = []
    b0 = jnp.einsum("bhwc,co->bhwo", x_nhwc, params["w1"])
    outs.append(q(jnp.maximum(b0 * s[0] + b[0], 0.0)))

    for i, r in enumerate(rates):
        w_hwio = params["w3"][i].reshape(3, 3, Cin, Cout)
        conv = lax.conv_general_dilated(
            x_nhwc, w_hwio, window_strides=(1, 1),
            padding=((r, r), (r, r)), rhs_dilation=(r, r),
            dimension_numbers=("NHWC", "HWIO", "NHWC"))
        outs.append(q(jnp.maximum(conv * s[1 + i] + b[1 + i], 0.0)))

    m = jnp.mean(x_nhwc, axis=(1, 2))                                  # (B, Cin)
    p = q(jnp.maximum(m @ params["wp"] * s[-1] + b[-1], 0.0))          # (B, Cout)
    outs.append(jnp.broadcast_to(p[:, None, None, :], (B, H, W, Cout)))

    cat = jnp.concatenate(outs, axis=-1)
    proj = jnp.einsum("bhwc,co->bhwo", cat, params["wproj"])
    return jnp.maximum(proj * params["proj_scale"][0] + params["proj_bias"][0], 0.0)


if __name__ == "__main__":
    B, Cin, H, W = 2, 4, 16, 16
    Cout = 8
    rates = (2, 4)

    key = jax.random.PRNGKey(0)
    kx, kp = jax.random.split(key)
    # Input constructed NCHW (PyTorch convention), transposed to NHWC for the kernel.
    x_nchw = jax.random.normal(kx, (B, Cin, H, W), jnp.float32)
    x_nhwc = jnp.transpose(x_nchw, (0, 2, 3, 1))

    params = make_params(kp, Cin, Cout, rates)

    out = aspp_forward(x_nhwc, params, rates)
    out = jax.block_until_ready(out)

    # Reference consumes the same bf16-quantized operands the kernel uses.
    q = lambda a: a.astype(jnp.bfloat16).astype(jnp.float32)
    params_q = dict(params)
    for name in ("w1", "w3", "wp", "wproj"):
        params_q[name] = q(params[name])
    ref = jax.block_until_ready(ref_forward(q(x_nhwc), params_q, rates))

    np.testing.assert_allclose(np.asarray(out), np.asarray(ref), rtol=2e-2, atol=2e-2)
    assert out.shape == (B, H, W, Cout)
    print("KERNEL_OK")
</pallas_src>

<mosaic_0001>
module attributes {stable_mosaic.version = 11 : i64} {
  func.func @_aspp_kernel(%arg0: i32, %arg1: i32, %arg2: memref<1x24x24x4xbf16, #tpu.memory_space<vmem>>, %arg3: memref<4x8xbf16, #tpu.memory_space<vmem>>, %arg4: memref<2x36x8xbf16, #tpu.memory_space<vmem>>, %arg5: memref<24x8xbf16, #tpu.memory_space<vmem>>, %arg6: memref<3x8xf32, #tpu.memory_space<vmem>>, %arg7: memref<1x8xf32, #tpu.memory_space<vmem>>, %arg8: memref<1x1x8xf32, #tpu.memory_space<vmem>>, %arg9: memref<1x8x16x8xf32, #tpu.memory_space<vmem>>, %arg10: memref<128x36xbf16, #tpu.memory_space<vmem>>) attributes {dimension_semantics = [#tpu.dimension_semantics<parallel>, #tpu.dimension_semantics<parallel>], iteration_bounds = array<i64: 2, 2>, scalar_prefetch = 0 : i64, scratch_operands = 1 : i64, tpu.core_type = #tpu.core_type<tc>, window_params = [{transform_indices = @transform_0, window_bounds = array<i64: 1, 24, 24, 4>}, {pipeline_mode = #tpu.pipeline_mode<synchronous>, transform_indices = @transform_1, window_bounds = array<i64: 4, 8>}, {pipeline_mode = #tpu.pipeline_mode<synchronous>, transform_indices = @transform_2, window_bounds = array<i64: 2, 36, 8>}, {pipeline_mode = #tpu.pipeline_mode<synchronous>, transform_indices = @transform_3, window_bounds = array<i64: 24, 8>}, {pipeline_mode = #tpu.pipeline_mode<synchronous>, transform_indices = @transform_4, window_bounds = array<i64: 3, 8>}, {pipeline_mode = #tpu.pipeline_mode<synchronous>, transform_indices = @transform_5, window_bounds = array<i64: 1, 8>}, {transform_indices = @transform_6, window_bounds = array<i64: 1, 1, 8>}, {transform_indices = @transform_7, window_bounds = array<i64: 1, 8, 16, 8>}]} {
    %c8_i32 = arith.constant 8 : i32
    %0 = arith.muli %arg1, %c8_i32 : i32
    %1 = tpu.assume_multiple %0, 8 : i32
    %c0 = arith.constant 0 : index
    %c0_0 = arith.constant 0 : index
    %2 = vector.load %arg6[%c0, %c0_0] : memref<3x8xf32, #tpu.memory_space<vmem>>, vector<3x8xf32>
    %c4_i32 = arith.constant 4 : i32
    %3 = arith.addi %1, %c4_i32 : i32
    %c0_1 = arith.constant 0 : index
    %4 = arith.index_cast %3 : i32 to index
    %c4 = arith.constant 4 : index
    %c0_2 = arith.constant 0 : index
    %5 = vector.load %arg2[%c0_1, %4, %c4, %c0_2] : memref<1x24x24x4xbf16, #tpu.memory_space<vmem>>, vector<1x8x16x4xbf16>
    %6 = vector.shape_cast %5 : vector<1x8x16x4xbf16> to vector<8x16x4xbf16>
    %7 = vector.shape_cast %6 : vector<8x16x4xbf16> to vector<128x4xbf16>
    %c0_3 = arith.constant 0 : index
    %c0_4 = arith.constant 0 : index
    %8 = vector.load %arg3[%c0_3, %c0_4] : memref<4x8xbf16, #tpu.memory_space<vmem>>, vector<4x8xbf16>
    %cst = arith.constant dense<0.000000e+00> : vector<128x8xf32>
    %9 = tpu.matmul %7, %8, %cst {dimension_numbers = #tpu.dot_dimension_numbers<[1], [0], [0], [1], [0, 0, 1, 1], [], []>} : vector<128x4xbf16>, vector<4x8xbf16>, vector<128x8xf32> -> vector<128x8xf32>
    %10 = vector.extract_strided_slice %2 {offsets = [0, 0], sizes = [1, 8], strides = [1, 1]} : vector<3x8xf32> to vector<1x8xf32>
    %11 = vector.broadcast %10 : vector<1x8xf32> to vector<128x8xf32>
    %12 = arith.addf %9, %11 : vector<128x8xf32>
    %cst_5 = arith.constant 0.000000e+00 : f32
    %13 = vector.broadcast %cst_5 : f32 to vector<128x8xf32>
    %14 = arith.maximumf %12, %13 : vector<128x8xf32>
    %15 = arith.truncf %14 : vector<128x8xf32> to vector<128x8xbf16>
    %c0_6 = arith.constant 0 : index
    %c0_7 = arith.constant 0 : index
    %16 = vector.load %arg5[%c0_6, %c0_7] : memref<24x8xbf16, #tpu.memory_space<vmem>>, vector<8x8xbf16>
    %cst_8 = arith.constant dense<0.000000e+00> : vector<128x8xf32>
    %17 = tpu.matmul %15, %16, %cst_8 {dimension_numbers = #tpu.dot_dimension_numbers<[1], [0], [0], [1], [0, 0, 1, 1], [], []>} : vector<128x8xbf16>, vector<8x8xbf16>, vector<128x8xf32> -> vector<128x8xf32>
    %c4_i32_9 = arith.constant 4 : i32
    %18 = arith.addi %1, %c4_i32_9 : i32
    %c2_i32 = arith.constant 2 : i32
    %19 = arith.subi %18, %c2_i32 : i32
    %c0_i32 = arith.constant 0 : i32
    %20 = arith.addi %19, %c0_i32 : i32
    %c0_10 = arith.constant 0 : index
    %21 = arith.index_cast %20 : i32 to index
    %c2 = arith.constant 2 : index
    %c0_11 = arith.constant 0 : index
    %22 = vector.load %arg2[%c0_10, %21, %c2, %c0_11] : memref<1x24x24x4xbf16, #tpu.memory_space<vmem>>, vector<1x8x16x4xbf16>
    %23 = vector.shape_cast %22 : vector<1x8x16x4xbf16> to vector<8x16x4xbf16>
    %24 = vector.shape_cast %23 : vector<8x16x4xbf16> to vector<128x4xbf16>
    %c0_12 = arith.constant 0 : index
    %c0_13 = arith.constant 0 : index
    %25 = vector.load %arg10[%c0_12, %c0_13] : memref<128x36xbf16, #tpu.memory_space<vmem>>, vector<128x4xbf16>
    tpu.vector_store %arg10[%c0_12, %c0_13], %24 {strides = array<i32>} : memref<128x36xbf16, #tpu.memory_space<vmem>>, vector<128x4xbf16>,
    %c4_i32_14 = arith.constant 4 : i32
    %26 = arith.addi %1, %c4_i32_14 : i32
    %c2_i32_15 = arith.constant 2 : i32
    %27 = arith.subi %26, %c2_i32_15 : i32
    %c0_i32_16 = arith.constant 0 : i32
    %28 = arith.addi %27, %c0_i32_16 : i32
    %c0_17 = arith.constant 0 : index
    %29 = arith.index_cast %28 : i32 to index
    %c4_18 = arith.constant 4 : index
    %c0_19 = arith.constant 0 : index
    %30 = vector.load %arg2[%c0_17, %29, %c4_18, %c0_19] : memref<1x24x24x4xbf16, #tpu.memory_space<vmem>>, vector<1x8x16x4xbf16>
    %31 = vector.shape_cast %30 : vector<1x8x16x4xbf16> to vector<8x16x4xbf16>
    %32 = vector.shape_cast %31 : vector<8x16x4xbf16> to vector<128x4xbf16>
    %c0_20 = arith.constant 0 : index
    %c4_21 = arith.constant 4 : index
    %33 = vector.load %arg10[%c0_20, %c4_21] : memref<128x36xbf16, #tpu.memory_space<vmem>>, vector<128x4xbf16>
    tpu.vector_store %arg10[%c0_20, %c4_21], %32 {strides = array<i32>} : memref<128x36xbf16, #tpu.memory_space<vmem>>, vector<128x4xbf16>,
    %c4_i32_22 = arith.constant 4 : i32
    %34 = arith.addi %1, %c4_i32_22 : i32
    %c2_i32_23 = arith.constant 2 : i32
    %35 = arith.subi %34, %c2_i32_23 : i32
    %c0_i32_24 = arith.constant 0 : i32
    %36 = arith.addi %35, %c0_i32_24 : i32
    %c0_25 = arith.constant 0 : index
    %37 = arith.index_cast %36 : i32 to index
    %c6 = arith.constant 6 : index
    %c0_26 = arith.constant 0 : index
    %38 = vector.load %arg2[%c0_25, %37, %c6, %c0_26] : memref<1x24x24x4xbf16, #tpu.memory_space<vmem>>, vector<1x8x16x4xbf16>
    %39 = vector.shape_cast %38 : vector<1x8x16x4xbf16> to vector<8x16x4xbf16>
    %40 = vector.shape_cast %39 : vector<8x16x4xbf16> to vector<128x4xbf16>
    %c0_27 = arith.constant 0 : index
    %c8 = arith.constant 8 : index
    %41 = vector.load %arg10[%c0_27, %c8] : memref<128x36xbf16, #tpu.memory_space<vmem>>, vector<128x4xbf16>
    tpu.vector_store %arg10[%c0_27, %c8], %40 {strides = array<i32>} : memref<128x36xbf16, #tpu.memory_space<vmem>>, vector<128x4xbf16>,
    %c4_i32_28 = arith.constant 4 : i32
    %42 = arith.addi %1, %c4_i32_28 : i32
    %c2_i32_29 = arith.constant 2 : i32
    %43 = arith.subi %42, %c2_i32_29 : i32
    %c2_i32_30 = arith.constant 2 : i32
    %44 = arith.addi %43, %c2_i32_30 : i32
    %c0_31 = arith.constant 0 : index
    %45 = arith.index_cast %44 : i32 to index
    %c2_32 = arith.constant 2 : index
    %c0_33 = arith.constant 0 : index
    %46 = vector.load %arg2[%c0_31, %45, %c2_32, %c0_33] : memref<1x24x24x4xbf16, #tpu.memory_space<vmem>>, vector<1x8x16x4xbf16>
    %47 = vector.shape_cast %46 : vector<1x8x16x4xbf16> to vector<8x16x4xbf16>
    %48 = vector.shape_cast %47 : vector<8x16x4xbf16> to vector<128x4xbf16>
    %c0_34 = arith.constant 0 : index
    %c12 = arith.constant 12 : index
    %49 = vector.load %arg10[%c0_34, %c12] : memref<128x36xbf16, #tpu.memory_space<vmem>>, vector<128x4xbf16>
    tpu.vector_store %arg10[%c0_34, %c12], %48 {strides = array<i32>} : memref<128x36xbf16, #tpu.memory_space<vmem>>, vector<128x4xbf16>,
    %c4_i32_35 = arith.constant 4 : i32
    %50 = arith.addi %1, %c4_i32_35 : i32
    %c2_i32_36 = arith.constant 2 : i32
    %51 = arith.subi %50, %c2_i32_36 : i32
    %c2_i32_37 = arith.constant 2 : i32
    %52 = arith.addi %51, %c2_i32_37 : i32
    %c0_38 = arith.constant 0 : index
    %53 = arith.index_cast %52 : i32 to index
    %c4_39 = arith.constant 4 : index
    %c0_40 = arith.constant 0 : index
    %54 = vector.load %arg2[%c0_38, %53, %c4_39, %c0_40] : memref<1x24x24x4xbf16, #tpu.memory_space<vmem>>, vector<1x8x16x4xbf16>
    %55 = vector.shape_cast %54 : vector<1x8x16x4xbf16> to vector<8x16x4xbf16>
    %56 = vector.shape_cast %55 : vector<8x16x4xbf16> to vector<128x4xbf16>
    %c0_41 = arith.constant 0 : index
    %c16 = arith.constant 16 : index
    %57 = vector.load %arg10[%c0_41, %c16] : memref<128x36xbf16, #tpu.memory_space<vmem>>, vector<128x4xbf16>
    tpu.vector_store %arg10[%c0_41, %c16], %56 {strides = array<i32>} : memref<128x36xbf16, #tpu.memory_space<vmem>>, vector<128x4xbf16>,
    %c4_i32_42 = arith.constant 4 : i32
    %58 = arith.addi %1, %c4_i32_42 : i32
    %c2_i32_43 = arith.constant 2 : i32
    %59 = arith.subi %58, %c2_i32_43 : i32
    %c2_i32_44 = arith.constant 2 : i32
    %60 = arith.addi %59, %c2_i32_44 : i32
    %c0_45 = arith.constant 0 : index
    %61 = arith.index_cast %60 : i32 to index
    %c6_46 = arith.constant 6 : index
    %c0_47 = arith.constant 0 : index
    %62 = vector.load %arg2[%c0_45, %61, %c6_46, %c0_47] : memref<1x24x24x4xbf16, #tpu.memory_space<vmem>>, vector<1x8x16x4xbf16>
    %63 = vector.shape_cast %62 : vector<1x8x16x4xbf16> to vector<8x16x4xbf16>
    %64 = vector.shape_cast %63 : vector<8x16x4xbf16> to vector<128x4xbf16>
    %c0_48 = arith.constant 0 : index
    %c20 = arith.constant 20 : index
    %65 = vector.load %arg10[%c0_48, %c20] : memref<128x36xbf16, #tpu.memory_space<vmem>>, vector<128x4xbf16>
    tpu.vector_store %arg10[%c0_48, %c20], %64 {strides = array<i32>} : memref<128x36xbf16, #tpu.memory_space<vmem>>, vector<128x4xbf16>,
    %c4_i32_49 = arith.constant 4 : i32
    %66 = arith.addi %1, %c4_i32_49 : i32
    %c2_i32_50 = arith.constant 2 : i32
    %67 = arith.subi %66, %c2_i32_50 : i32
    %c4_i32_51 = arith.constant 4 : i32
    %68 = arith.addi %67, %c4_i32_51 : i32
    %c0_52 = arith.constant 0 : index
    %69 = arith.index_cast %68 : i32 to index
    %c2_53 = arith.constant 2 : index
    %c0_54 = arith.constant 0 : index
    %70 = vector.load %arg2[%c0_52, %69, %c2_53, %c0_54] : memref<1x24x24x4xbf16, #tpu.memory_space<vmem>>, vector<1x8x16x4xbf16>
    %71 = vector.shape_cast %70 : vector<1x8x16x4xbf16> to vector<8x16x4xbf16>
    %72 = vector.shape_cast %71 : vector<8x16x4xbf16> to vector<128x4xbf16>
    %c0_55 = arith.constant 0 : index
    %c24 = arith.constant 24 : index
    %73 = vector.load %arg10[%c0_55, %c24] : memref<128x36xbf16, #tpu.memory_space<vmem>>, vector<128x4xbf16>
    tpu.vector_store %arg10[%c0_55, %c24], %72 {strides = array<i32>} : memref<128x36xbf16, #tpu.memory_space<vmem>>, vector<128x4xbf16>,
    %c4_i32_56 = arith.constant 4 : i32
    %74 = arith.addi %1, %c4_i32_56 : i32
    %c2_i32_57 = arith.constant 2 : i32
    %75 = arith.subi %74, %c2_i32_57 : i32
    %c4_i32_58 = arith.constant 4 : i32
    %76 = arith.addi %75, %c4_i32_58 : i32
    %c0_59 = arith.constant 0 : index
    %77 = arith.index_cast %76 : i32 to index
    %c4_60 = arith.constant 4 : index
    %c0_61 = arith.constant 0 : index
    %78 = vector.load %arg2[%c0_59, %77, %c4_60, %c0_61] : memref<1x24x24x4xbf16, #tpu.memory_space<vmem>>, vector<1x8x16x4xbf16>
    %79 = vector.shape_cast %78 : vector<1x8x16x4xbf16> to vector<8x16x4xbf16>
    %80 = vector.shape_cast %79 : vector<8x16x4xbf16> to vector<128x4xbf16>
    %c0_62 = arith.constant 0 : index
    %c28 = arith.constant 28 : index
    %81 = vector.load %arg10[%c0_62, %c28] : memref<128x36xbf16, #tpu.memory_space<vmem>>, vector<128x4xbf16>
    tpu.vector_store %arg10[%c0_62, %c28], %80 {strides = array<i32>} : memref<128x36xbf16, #tpu.memory_space<vmem>>, vector<128x4xbf16>,
    %c4_i32_63 = arith.constant 4 : i32
    %82 = arith.addi %1, %c4_i32_63 : i32
    %c2_i32_64 = arith.constant 2 : i32
    %83 = arith.subi %82, %c2_i32_64 : i32
    %c4_i32_65 = arith.constant 4 : i32
    %84 = arith.addi %83, %c4_i32_65 : i32
    %c0_66 = arith.constant 0 : index
    %85 = arith.index_cast %84 : i32 to index
    %c6_67 = arith.constant 6 : index
    %c0_68 = arith.constant 0 : index
    %86 = vector.load %arg2[%c0_66, %85, %c6_67, %c0_68] : memref<1x24x24x4xbf16, #tpu.memory_space<vmem>>, vector<1x8x16x4xbf16>
    %87 = vector.shape_cast %86 : vector<1x8x16x4xbf16> to vector<8x16x4xbf16>
    %88 = vector.shape_cast %87 : vector<8x16x4xbf16> to vector<128x4xbf16>
    %c0_69 = arith.constant 0 : index
    %c32 = arith.constant 32 : index
    %89 = vector.load %arg10[%c0_69, %c32] : memref<128x36xbf16, #tpu.memory_space<vmem>>, vector<128x4xbf16>
    tpu.vector_store %arg10[%c0_69, %c32], %88 {strides = array<i32>} : memref<128x36xbf16, #tpu.memory_space<vmem>>, vector<128x4xbf16>,
    %c0_70 = arith.constant 0 : index
    %c0_71 = arith.constant 0 : index
    %90 = vector.load %arg10[%c0_70, %c0_71] : memref<128x36xbf16, #tpu.memory_space<vmem>>, vector<128x36xbf16>
    %c0_72 = arith.constant 0 : index
    %c0_73 = arith.constant 0 : index
    %c0_74 = arith.constant 0 : index
    %91 = vector.load %arg4[%c0_72, %c0_73, %c0_74] : memref<2x36x8xbf16, #tpu.memory_space<vmem>>, vector<1x36x8xbf16>
    %92 = vector.shape_cast %91 : vector<1x36x8xbf16> to vector<36x8xbf16>
    %cst_75 = arith.constant dense<0.000000e+00> : vector<128x8xf32>
    %93 = tpu.matmul %90, %92, %cst_75 {dimension_numbers = #tpu.dot_dimension_numbers<[1], [0], [0], [1], [0, 0, 1, 1], [], []>} : vector<128x36xbf16>, vector<36x8xbf16>, vector<128x8xf32> -> vector<128x8xf32>
    %94 = vector.extract_strided_slice %2 {offsets = [1, 0], sizes = [1, 8], strides = [1, 1]} : vector<3x8xf32> to vector<1x8xf32>
    %95 = vector.broadcast %94 : vector<1x8xf32> to vector<128x8xf32>
    %96 = arith.addf %93, %95 : vector<128x8xf32>
    %cst_76 = arith.constant 0.000000e+00 : f32
    %97 = vector.broadcast %cst_76 : f32 to vector<128x8xf32>
    %98 = arith.maximumf %96, %97 : vector<128x8xf32>
    %99 = arith.truncf %98 : vector<128x8xf32> to vector<128x8xbf16>
    %c8_77 = arith.constant 8 : index
    %c0_78 = arith.constant 0 : index
    %100 = vector.load %arg5[%c8_77, %c0_78] : memref<24x8xbf16, #tpu.memory_space<vmem>>, vector<8x8xbf16>
    %cst_79 = arith.constant dense<0.000000e+00> : vector<128x8xf32>
    %101 = tpu.matmul %99, %100, %cst_79 {dimension_numbers = #tpu.dot_dimension_numbers<[1], [0], [0], [1], [0, 0, 1, 1], [], []>} : vector<128x8xbf16>, vector<8x8xbf16>, vector<128x8xf32> -> vector<128x8xf32>
    %102 = arith.addf %17, %101 : vector<128x8xf32>
    %c4_i32_80 = arith.constant 4 : i32
    %103 = arith.addi %1, %c4_i32_80 : i32
    %c4_i32_81 = arith.constant 4 : i32
    %104 = arith.subi %103, %c4_i32_81 : i32
    %c0_i32_82 = arith.constant 0 : i32
    %105 = arith.addi %104, %c0_i32_82 : i32
    %c0_83 = arith.constant 0 : index
    %106 = arith.index_cast %105 : i32 to index
    %c0_84 = arith.constant 0 : index
    %c0_85 = arith.constant 0 : index
    %107 = vector.load %arg2[%c0_83, %106, %c0_84, %c0_85] : memref<1x24x24x4xbf16, #tpu.memory_space<vmem>>, vector<1x8x16x4xbf16>
    %108 = vector.shape_cast %107 : vector<1x8x16x4xbf16> to vector<8x16x4xbf16>
    %109 = vector.shape_cast %108 : vector<8x16x4xbf16> to vector<128x4xbf16>
    %c0_86 = arith.constant 0 : index
    %c0_87 = arith.constant 0 : index
    %110 = vector.load %arg10[%c0_86, %c0_87] : memref<128x36xbf16, #tpu.memory_space<vmem>>, vector<128x4xbf16>
    tpu.vector_store %arg10[%c0_86, %c0_87], %109 {strides = array<i32>} : memref<128x36xbf16, #tpu.memory_space<vmem>>, vector<128x4xbf16>,
    %c4_i32_88 = arith.constant 4 : i32
    %111 = arith.addi %1, %c4_i32_88 : i32
    %c4_i32_89 = arith.constant 4 : i32
    %112 = arith.subi %111, %c4_i32_89 : i32
    %c0_i32_90 = arith.constant 0 : i32
    %113 = arith.addi %112, %c0_i32_90 : i32
    %c0_91 = arith.constant 0 : index
    %114 = arith.index_cast %113 : i32 to index
    %c4_92 = arith.constant 4 : index
    %c0_93 = arith.constant 0 : index
    %115 = vector.load %arg2[%c0_91, %114, %c4_92, %c0_93] : memref<1x24x24x4xbf16, #tpu.memory_space<vmem>>, vector<1x8x16x4xbf16>
    %116 = vector.shape_cast %115 : vector<1x8x16x4xbf16> to vector<8x16x4xbf16>
    %117 = vector.shape_cast %116 : vector<8x16x4xbf16> to vector<128x4xbf16>
    %c0_94 = arith.constant 0 : index
    %c4_95 = arith.constant 4 : index
    %118 = vector.load %arg10[%c0_94, %c4_95] : memref<128x36xbf16, #tpu.memory_space<vmem>>, vector<128x4xbf16>
    tpu.vector_store %arg10[%c0_94, %c4_95], %117 {strides = array<i32>} : memref<128x36xbf16, #tpu.memory_space<vmem>>, vector<128x4xbf16>,
    %c4_i32_96 = arith.constant 4 : i32
    %119 = arith.addi %1, %c4_i32_96 : i32
    %c4_i32_97 = arith.constant 4 : i32
    %120 = arith.subi %119, %c4_i32_97 : i32
    %c0_i32_98 = arith.constant 0 : i32
    %121 = arith.addi %120, %c0_i32_98 : i32
    %c0_99 = arith.constant 0 : index
    %122 = arith.index_cast %121 : i32 to index
    %c8_100 = arith.constant 8 : index
    %c0_101 = arith.constant 0 : index
    %123 = vector.load %arg2[%c0_99, %122, %c8_100, %c0_101] : memref<1x24x24x4xbf16, #tpu.memory_space<vmem>>, vector<1x8x16x4xbf16>
    %124 = vector.shape_cast %123 : vector<1x8x16x4xbf16> to vector<8x16x4xbf16>
    %125 = vector.shape_cast %124 : vector<8x16x4xbf16> to vector<128x4xbf16>
    %c0_102 = arith.constant 0 : index
    %c8_103 = arith.constant 8 : index
    %126 = vector.load %arg10[%c0_102, %c8_103] : memref<128x36xbf16, #tpu.memory_space<vmem>>, vector<128x4xbf16>
    tpu.vector_store %arg10[%c0_102, %c8_103], %125 {strides = array<i32>} : memref<128x36xbf16, #tpu.memory_space<vmem>>, vector<128x4xbf16>,
    %c4_i32_104 = arith.constant 4 : i32
    %127 = arith.addi %1, %c4_i32_104 : i32
    %c4_i32_105 = arith.constant 4 : i32
    %128 = arith.subi %127, %c4_i32_105 : i32
    %c4_i32_106 = arith.constant 4 : i32
    %129 = arith.addi %128, %c4_i32_106 : i32
    %c0_107 = arith.constant 0 : index
    %130 = arith.index_cast %129 : i32 to index
    %c0_108 = arith.constant 0 : index
    %c0_109 = arith.constant 0 : index
    %131 = vector.load %arg2[%c0_107, %130, %c0_108, %c0_109] : memref<1x24x24x4xbf16, #tpu.memory_space<vmem>>, vector<1x8x16x4xbf16>
    %132 = vector.shape_cast %131 : vector<1x8x16x4xbf16> to vector<8x16x4xbf16>
    %133 = vector.shape_cast %132 : vector<8x16x4xbf16> to vector<128x4xbf16>
    %c0_110 = arith.constant 0 : index
    %c12_111 = arith.constant 12 : index
    %134 = vector.load %arg10[%c0_110, %c12_111] : memref<128x36xbf16, #tpu.memory_space<vmem>>, vector<128x4xbf16>
    tpu.vector_store %arg10[%c0_110, %c12_111], %133 {strides = array<i32>} : memref<128x36xbf16, #tpu.memory_space<vmem>>, vector<128x4xbf16>,
    %c4_i32_112 = arith.constant 4 : i32
    %135 = arith.addi %1, %c4_i32_112 : i32
    %c4_i32_113 = arith.constant 4 : i32
    %136 = arith.subi %135, %c4_i32_113 : i32
    %c4_i32_114 = arith.constant 4 : i32
    %137 = arith.addi %136, %c4_i32_114 : i32
    %c0_115 = arith.constant 0 : index
    %138 = arith.index_cast %137 : i32 to index
    %c4_116 = arith.constant 4 : index
    %c0_117 = arith.constant 0 : index
    %139 = vector.load %arg2[%c0_115, %138, %c4_116, %c0_117] : memref<1x24x24x4xbf16, #tpu.memory_space<vmem>>, vector<1x8x16x4xbf16>
    %140 = vector.shape_cast %139 : vector<1x8x16x4xbf16> to vector<8x16x4xbf16>
    %141 = vector.shape_cast %140 : vector<8x16x4xbf16> to vector<128x4xbf16>
    %c0_118 = arith.constant 0 : index
    %c16_119 = arith.constant 16 : index
    %142 = vector.load %arg10[%c0_118, %c16_119] : memref<128x36xbf16, #tpu.memory_space<vmem>>, vector<128x4xbf16>
    tpu.vector_store %arg10[%c0_118, %c16_119], %141 {strides = array<i32>} : memref<128x36xbf16, #tpu.memory_space<vmem>>, vector<128x4xbf16>,
    %c4_i32_120 = arith.constant 4 : i32
    %143 = arith.addi %1, %c4_i32_120 : i32
    %c4_i32_121 = arith.constant 4 : i32
    %144 = arith.subi %143, %c4_i32_121 : i32
    %c4_i32_122 = arith.constant 4 : i32
    %145 = arith.addi %144, %c4_i32_122 : i32
    %c0_123 = arith.constant 0 : index
    %146 = arith.index_cast %145 : i32 to index
    %c8_124 = arith.constant 8 : index
    %c0_125 = arith.constant 0 : index
    %147 = vector.load %arg2[%c0_123, %146, %c8_124, %c0_125] : memref<1x24x24x4xbf16, #tpu.memory_space<vmem>>, vector<1x8x16x4xbf16>
    %148 = vector.shape_cast %147 : vector<1x8x16x4xbf16> to vector<8x16x4xbf16>
    %149 = vector.shape_cast %148 : vector<8x16x4xbf16> to vector<128x4xbf16>
    %c0_126 = arith.constant 0 : index
    %c20_127 = arith.constant 20 : index
    %150 = vector.load %arg10[%c0_126, %c20_127] : memref<128x36xbf16, #tpu.memory_space<vmem>>, vector<128x4xbf16>
    tpu.vector_store %arg10[%c0_126, %c20_127], %149 {strides = array<i32>} : memref<128x36xbf16, #tpu.memory_space<vmem>>, vector<128x4xbf16>,
    %c4_i32_128 = arith.constant 4 : i32
    %151 = arith.addi %1, %c4_i32_128 : i32
    %c4_i32_129 = arith.constant 4 : i32
    %152 = arith.subi %151, %c4_i32_129 : i32
    %c8_i32_130 = arith.constant 8 : i32
    %153 = arith.addi %152, %c8_i32_130 : i32
    %c0_131 = arith.constant 0 : index
    %154 = arith.index_cast %153 : i32 to index
    %c0_132 = arith.constant 0 : index
    %c0_133 = arith.constant 0 : index
    %155 = vector.load %arg2[%c0_131, %154, %c0_132, %c0_133] : memref<1x24x24x4xbf16, #tpu.memory_space<vmem>>, vector<1x8x16x4xbf16>
    %156 = vector.shape_cast %155 : vector<1x8x16x4xbf16> to vector<8x16x4xbf16>
    %157 = vector.shape_cast %156 : vector<8x16x4xbf16> to vector<128x4xbf16>
    %c0_134 = arith.constant 0 : index
    %c24_135 = arith.constant 24 : index
    %158 = vector.load %arg10[%c0_134, %c24_135] : memref<128x36xbf16, #tpu.memory_space<vmem>>, vector<128x4xbf16>
    tpu.vector_store %arg10[%c0_134, %c24_135], %157 {strides = array<i32>} : memref<128x36xbf16, #tpu.memory_space<vmem>>, vector<128x4xbf16>,
    %c4_i32_136 = arith.constant 4 : i32
    %159 = arith.addi %1, %c4_i32_136 : i32
    %c4_i32_137 = arith.constant 4 : i32
    %160 = arith.subi %159, %c4_i32_137 : i32
    %c8_i32_138 = arith.constant 8 : i32
    %161 = arith.addi %160, %c8_i32_138 : i32
    %c0_139 = arith.constant 0 : index
    %162 = arith.index_cast %161 : i32 to index
    %c4_140 = arith.constant 4 : index
    %c0_141 = arith.constant 0 : index
    %163 = vector.load %arg2[%c0_139, %162, %c4_140, %c0_141] : memref<1x24x24x4xbf16, #tpu.memory_space<vmem>>, vector<1x8x16x4xbf16>
    %164 = vector.shape_cast %163 : vector<1x8x16x4xbf16> to vector<8x16x4xbf16>
    %165 = vector.shape_cast %164 : vector<8x16x4xbf16> to vector<128x4xbf16>
    %c0_142 = arith.constant 0 : index
    %c28_143 = arith.constant 28 : index
    %166 = vector.load %arg10[%c0_142, %c28_143] : memref<128x36xbf16, #tpu.memory_space<vmem>>, vector<128x4xbf16>
    tpu.vector_store %arg10[%c0_142, %c28_143], %165 {strides = array<i32>} : memref<128x36xbf16, #tpu.memory_space<vmem>>, vector<128x4xbf16>,
    %c4_i32_144 = arith.constant 4 : i32
    %167 = arith.addi %1, %c4_i32_144 : i32
    %c4_i32_145 = arith.constant 4 : i32
    %168 = arith.subi %167, %c4_i32_145 : i32
    %c8_i32_146 = arith.constant 8 : i32
    %169 = arith.addi %168, %c8_i32_146 : i32
    %c0_147 = arith.constant 0 : index
    %170 = arith.index_cast %169 : i32 to index
    %c8_148 = arith.constant 8 : index
    %c0_149 = arith.constant 0 : index
    %171 = vector.load %arg2[%c0_147, %170, %c8_148, %c0_149] : memref<1x24x24x4xbf16, #tpu.memory_space<vmem>>, vector<1x8x16x4xbf16>
    %172 = vector.shape_cast %171 : vector<1x8x16x4xbf16> to vector<8x16x4xbf16>
    %173 = vector.shape_cast %172 : vector<8x16x4xbf16> to vector<128x4xbf16>
    %c0_150 = arith.constant 0 : index
    %c32_151 = arith.constant 32 : index
    %174 = vector.load %arg10[%c0_150, %c32_151] : memref<128x36xbf16, #tpu.memory_space<vmem>>, vector<128x4xbf16>
    tpu.vector_store %arg10[%c0_150, %c32_151], %173 {strides = array<i32>} : memref<128x36xbf16, #tpu.memory_space<vmem>>, vector<128x4xbf16>,
    %c0_152 = arith.constant 0 : index
    %c0_153 = arith.constant 0 : index
    %175 = vector.load %arg10[%c0_152, %c0_153] : memref<128x36xbf16, #tpu.memory_space<vmem>>, vector<128x36xbf16>
    %c1 = arith.constant 1 : index
    %c0_154 = arith.constant 0 : index
    %c0_155 = arith.constant 0 : index
    %176 = vector.load %arg4[%c1, %c0_154, %c0_155] : memref<2x36x8xbf16, #tpu.memory_space<vmem>>, vector<1x36x8xbf16>
    %177 = vector.shape_cast %176 : vector<1x36x8xbf16> to vector<36x8xbf16>
    %cst_156 = arith.constant dense<0.000000e+00> : vector<128x8xf32>
    %178 = tpu.matmul %175, %177, %cst_156 {dimension_numbers = #tpu.dot_dimension_numbers<[1], [0], [0], [1], [0, 0, 1, 1], [], []>} : vector<128x36xbf16>, vector<36x8xbf16>, vector<128x8xf32> -> vector<128x8xf32>
    %179 = vector.extract_strided_slice %2 {offsets = [2, 0], sizes = [1, 8], strides = [1, 1]} : vector<3x8xf32> to vector<1x8xf32>
    %180 = vector.broadcast %179 : vector<1x8xf32> to vector<128x8xf32>
    %181 = arith.addf %178, %180 : vector<128x8xf32>
    %cst_157 = arith.constant 0.000000e+00 : f32
    %182 = vector.broadcast %cst_157 : f32 to vector<128x8xf32>
    %183 = arith.maximumf %181, %182 : vector<128x8xf32>
    %184 = arith.truncf %183 : vector<128x8xf32> to vector<128x8xbf16>
    %c16_158 = arith.constant 16 : index
    %c0_159 = arith.constant 0 : index
    %185 = vector.load %arg5[%c16_158, %c0_159] : memref<24x8xbf16, #tpu.memory_space<vmem>>, vector<8x8xbf16>
    %cst_160 = arith.constant dense<0.000000e+00> : vector<128x8xf32>
    %186 = tpu.matmul %184, %185, %cst_160 {dimension_numbers = #tpu.dot_dimension_numbers<[1], [0], [0], [1], [0, 0, 1, 1], [], []>} : vector<128x8xbf16>, vector<8x8xbf16>, vector<128x8xf32> -> vector<128x8xf32>
    %187 = arith.addf %102, %186 : vector<128x8xf32>
    %c0_161 = arith.constant 0 : index
    %c0_162 = arith.constant 0 : index
    %c0_163 = arith.constant 0 : index
    %188 = vector.load %arg8[%c0_161, %c0_162, %c0_163] : memref<1x1x8xf32, #tpu.memory_space<vmem>>, vector<1x1x8xf32>
    %189 = vector.shape_cast %188 : vector<1x1x8xf32> to vector<1x8xf32>
    %190 = vector.broadcast %189 : vector<1x8xf32> to vector<128x8xf32>
    %191 = arith.addf %187, %190 : vector<128x8xf32>
    %c0_164 = arith.constant 0 : index
    %c0_165 = arith.constant 0 : index
    %192 = vector.load %arg7[%c0_164, %c0_165] : memref<1x8xf32, #tpu.memory_space<vmem>>, vector<1x8xf32>
    %193 = vector.broadcast %192 : vector<1x8xf32> to vector<128x8xf32>
    %194 = arith.addf %191, %193 : vector<128x8xf32>
    %cst_166 = arith.constant 0.000000e+00 : f32
    %195 = vector.broadcast %cst_166 : f32 to vector<128x8xf32>
    %196 = arith.maximumf %194, %195 : vector<128x8xf32>
    %197 = vector.shape_cast %196 : vector<128x8xf32> to vector<1x8x16x8xf32>
    %c0_167 = arith.constant 0 : index
    %c0_168 = arith.constant 0 : index
    %c0_169 = arith.constant 0 : index
    %c0_170 = arith.constant 0 : index
    %198 = vector.load %arg9[%c0_167, %c0_168, %c0_169, %c0_170] : memref<1x8x16x8xf32, #tpu.memory_space<vmem>>, vector<1x8x16x8xf32>
    tpu.vector_store %arg9[%c0_167, %c0_168, %c0_169, %c0_170], %197 {strides = array<i32>} : memref<1x8x16x8xf32, #tpu.memory_space<vmem>>, vector<1x8x16x8xf32>,
    return
  }
  func.func @transform_0(%arg0: i32, %arg1: i32) -> (i32, i32, i32, i32) {
    %c0_i32 = arith.constant 0 : i32
    %c0_i32_0 = arith.constant 0 : i32
    %c0_i32_1 = arith.constant 0 : i32
    %c0_i32_2 = arith.constant 0 : i32
    return %arg0, %c0_i32, %c0_i32_0, %c0_i32_1 : i32, i32, i32, i32
  }
  func.func @transform_1(%arg0: i32, %arg1: i32) -> (i32, i32) {
    %c0_i32 = arith.constant 0 : i32
    %c0_i32_0 = arith.constant 0 : i32
    %c0_i32_1 = arith.constant 0 : i32
    return %c0_i32, %c0_i32_0 : i32, i32
  }
  func.func @transform_2(%arg0: i32, %arg1: i32) -> (i32, i32, i32) {
    %c0_i32 = arith.constant 0 : i32
    %c0_i32_0 = arith.constant 0 : i32
    %c0_i32_1 = arith.constant 0 : i32
    %c0_i32_2 = arith.constant 0 : i32
    return %c0_i32, %c0_i32_0, %c0_i32_1 : i32, i32, i32
  }
  func.func @transform_3(%arg0: i32, %arg1: i32) -> (i32, i32) {
    %c0_i32 = arith.constant 0 : i32
    %c0_i32_0 = arith.constant 0 : i32
    %c0_i32_1 = arith.constant 0 : i32
    return %c0_i32, %c0_i32_0 : i32, i32
  }
  func.func @transform_4(%arg0: i32, %arg1: i32) -> (i32, i32) {
    %c0_i32 = arith.constant 0 : i32
    %c0_i32_0 = arith.constant 0 : i32
    %c0_i32_1 = arith.constant 0 : i32
    return %c0_i32, %c0_i32_0 : i32, i32
  }
  func.func @transform_5(%arg0: i32, %arg1: i32) -> (i32, i32) {
    %c0_i32 = arith.constant 0 : i32
    %c0_i32_0 = arith.constant 0 : i32
    %c0_i32_1 = arith.constant 0 : i32
    return %c0_i32, %c0_i32_0 : i32, i32
  }
  func.func @transform_6(%arg0: i32, %arg1: i32) -> (i32, i32, i32) {
    %c0_i32 = arith.constant 0 : i32
    %c0_i32_0 = arith.constant 0 : i32
    %c0_i32_1 = arith.constant 0 : i32
    return %arg0, %c0_i32, %c0_i32_0 : i32, i32, i32
  }
  func.func @transform_7(%arg0: i32, %arg1: i32) -> (i32, i32, i32, i32) {
    %c0_i32 = arith.constant 0 : i32
    %c0_i32_0 = arith.constant 0 : i32
    %c0_i32_1 = arith.constant 0 : i32
    return %arg0, %arg1, %c0_i32, %c0_i32_0 : i32, i32, i32, i32
  }
}

module attributes {stable_mosaic.version = 11 : i64} {
  func.func @_aspp_kernel(%arg0: i32, %arg1: i32, %arg2: memref<1x24x24x4xbf16, #tpu.memory_space<vmem>>, %arg3: memref<4x8xbf16, #tpu.memory_space<vmem>>, %arg4: memref<2x36x8xbf16, #tpu.memory_space<vmem>>, %arg5: memref<24x8xbf16, #tpu.memory_space<vmem>>, %arg6: memref<3x8xf32, #tpu.memory_space<vmem>>, %arg7: memref<1x8xf32, #tpu.memory_space<vmem>>, %arg8: memref<1x1x8xf32, #tpu.memory_space<vmem>>, %arg9: memref<1x8x16x8xf32, #tpu.memory_space<vmem>>, %arg10: memref<128x36xbf16, #tpu.memory_space<vmem>>) attributes {dimension_semantics = [#tpu.dimension_semantics<parallel>, #tpu.dimension_semantics<parallel>], iteration_bounds = array<i64: 2, 2>, scalar_prefetch = 0 : i64, scratch_operands = 1 : i64, tpu.core_type = #tpu.core_type<tc>, window_params = [{transform_indices = @transform_0, window_bounds = array<i64: 1, 24, 24, 4>}, {pipeline_mode = #tpu.pipeline_mode<synchronous>, transform_indices = @transform_1, window_bounds = array<i64: 4, 8>}, {pipeline_mode = #tpu.pipeline_mode<synchronous>, transform_indices = @transform_2, window_bounds = array<i64: 2, 36, 8>}, {pipeline_mode = #tpu.pipeline_mode<synchronous>, transform_indices = @transform_3, window_bounds = array<i64: 24, 8>}, {pipeline_mode = #tpu.pipeline_mode<synchronous>, transform_indices = @transform_4, window_bounds = array<i64: 3, 8>}, {pipeline_mode = #tpu.pipeline_mode<synchronous>, transform_indices = @transform_5, window_bounds = array<i64: 1, 8>}, {transform_indices = @transform_6, window_bounds = array<i64: 1, 1, 8>}, {transform_indices = @transform_7, window_bounds = array<i64: 1, 8, 16, 8>}]} {
    %c8_i32 = arith.constant 8 : i32
    %0 = arith.muli %arg1, %c8_i32 : i32
    %1 = tpu.assume_multiple %0, 8 : i32
    %c0 = arith.constant 0 : index
    %c0_0 = arith.constant 0 : index
    %2 = vector.load %arg6[%c0, %c0_0] : memref<3x8xf32, #tpu.memory_space<vmem>>, vector<3x8xf32>
    %c4_i32 = arith.constant 4 : i32
    %3 = arith.addi %1, %c4_i32 : i32
    %c0_1 = arith.constant 0 : index
    %4 = arith.index_cast %3 : i32 to index
    %c4 = arith.constant 4 : index
    %c0_2 = arith.constant 0 : index
    %5 = vector.load %arg2[%c0_1, %4, %c4, %c0_2] : memref<1x24x24x4xbf16, #tpu.memory_space<vmem>>, vector<1x8x16x4xbf16>
    %6 = vector.shape_cast %5 : vector<1x8x16x4xbf16> to vector<8x16x4xbf16>
    %7 = vector.shape_cast %6 : vector<8x16x4xbf16> to vector<128x4xbf16>
    %c0_3 = arith.constant 0 : index
    %c0_4 = arith.constant 0 : index
    %8 = vector.load %arg3[%c0_3, %c0_4] : memref<4x8xbf16, #tpu.memory_space<vmem>>, vector<4x8xbf16>
    %cst = arith.constant dense<0.000000e+00> : vector<128x8xf32>
    %9 = tpu.matmul %7, %8, %cst {dimension_numbers = #tpu.dot_dimension_numbers<[1], [0], [0], [1], [0, 0, 1, 1], [], []>} : vector<128x4xbf16>, vector<4x8xbf16>, vector<128x8xf32> -> vector<128x8xf32>
    %10 = vector.extract_strided_slice %2 {offsets = [0, 0], sizes = [1, 8], strides = [1, 1]} : vector<3x8xf32> to vector<1x8xf32>
    %11 = vector.broadcast %10 : vector<1x8xf32> to vector<128x8xf32>
    %12 = arith.addf %9, %11 : vector<128x8xf32>
    %cst_5 = arith.constant 0.000000e+00 : f32
    %13 = vector.broadcast %cst_5 : f32 to vector<128x8xf32>
    %14 = arith.maximumf %12, %13 : vector<128x8xf32>
    %15 = arith.truncf %14 : vector<128x8xf32> to vector<128x8xbf16>
    %c0_6 = arith.constant 0 : index
    %c0_7 = arith.constant 0 : index
    %16 = vector.load %arg5[%c0_6, %c0_7] : memref<24x8xbf16, #tpu.memory_space<vmem>>, vector<8x8xbf16>
    %cst_8 = arith.constant dense<0.000000e+00> : vector<128x8xf32>
    %17 = tpu.matmul %15, %16, %cst_8 {dimension_numbers = #tpu.dot_dimension_numbers<[1], [0], [0], [1], [0, 0, 1, 1], [], []>} : vector<128x8xbf16>, vector<8x8xbf16>, vector<128x8xf32> -> vector<128x8xf32>
    %c4_i32_9 = arith.constant 4 : i32
    %18 = arith.addi %1, %c4_i32_9 : i32
    %c2_i32 = arith.constant 2 : i32
    %19 = arith.subi %18, %c2_i32 : i32
    %c0_i32 = arith.constant 0 : i32
    %20 = arith.addi %19, %c0_i32 : i32
    %c0_10 = arith.constant 0 : index
    %21 = arith.index_cast %20 : i32 to index
    %c2 = arith.constant 2 : index
    %c0_11 = arith.constant 0 : index
    %22 = vector.load %arg2[%c0_10, %21, %c2, %c0_11] : memref<1x24x24x4xbf16, #tpu.memory_space<vmem>>, vector<1x8x16x4xbf16>
    %23 = vector.shape_cast %22 : vector<1x8x16x4xbf16> to vector<8x16x4xbf16>
    %24 = vector.shape_cast %23 : vector<8x16x4xbf16> to vector<128x4xbf16>
    %c0_12 = arith.constant 0 : index
    %c0_13 = arith.constant 0 : index
    %25 = vector.load %arg10[%c0_12, %c0_13] : memref<128x36xbf16, #tpu.memory_space<vmem>>, vector<128x4xbf16>
    tpu.vector_store %arg10[%c0_12, %c0_13], %24 {strides = array<i32>} : memref<128x36xbf16, #tpu.memory_space<vmem>>, vector<128x4xbf16>,
    %c4_i32_14 = arith.constant 4 : i32
    %26 = arith.addi %1, %c4_i32_14 : i32
    %c2_i32_15 = arith.constant 2 : i32
    %27 = arith.subi %26, %c2_i32_15 : i32
    %c0_i32_16 = arith.constant 0 : i32
    %28 = arith.addi %27, %c0_i32_16 : i32
    %c0_17 = arith.constant 0 : index
    %29 = arith.index_cast %28 : i32 to index
    %c4_18 = arith.constant 4 : index
    %c0_19 = arith.constant 0 : index
    %30 = vector.load %arg2[%c0_17, %29, %c4_18, %c0_19] : memref<1x24x24x4xbf16, #tpu.memory_space<vmem>>, vector<1x8x16x4xbf16>
    %31 = vector.shape_cast %30 : vector<1x8x16x4xbf16> to vector<8x16x4xbf16>
    %32 = vector.shape_cast %31 : vector<8x16x4xbf16> to vector<128x4xbf16>
    %c0_20 = arith.constant 0 : index
    %c4_21 = arith.constant 4 : index
    %33 = vector.load %arg10[%c0_20, %c4_21] : memref<128x36xbf16, #tpu.memory_space<vmem>>, vector<128x4xbf16>
    tpu.vector_store %arg10[%c0_20, %c4_21], %32 {strides = array<i32>} : memref<128x36xbf16, #tpu.memory_space<vmem>>, vector<128x4xbf16>,
    %c4_i32_22 = arith.constant 4 : i32
    %34 = arith.addi %1, %c4_i32_22 : i32
    %c2_i32_23 = arith.constant 2 : i32
    %35 = arith.subi %34, %c2_i32_23 : i32
    %c0_i32_24 = arith.constant 0 : i32
    %36 = arith.addi %35, %c0_i32_24 : i32
    %c0_25 = arith.constant 0 : index
    %37 = arith.index_cast %36 : i32 to index
    %c6 = arith.constant 6 : index
    %c0_26 = arith.constant 0 : index
    %38 = vector.load %arg2[%c0_25, %37, %c6, %c0_26] : memref<1x24x24x4xbf16, #tpu.memory_space<vmem>>, vector<1x8x16x4xbf16>
    %39 = vector.shape_cast %38 : vector<1x8x16x4xbf16> to vector<8x16x4xbf16>
    %40 = vector.shape_cast %39 : vector<8x16x4xbf16> to vector<128x4xbf16>
    %c0_27 = arith.constant 0 : index
    %c8 = arith.constant 8 : index
    %41 = vector.load %arg10[%c0_27, %c8] : memref<128x36xbf16, #tpu.memory_space<vmem>>, vector<128x4xbf16>
    tpu.vector_store %arg10[%c0_27, %c8], %40 {strides = array<i32>} : memref<128x36xbf16, #tpu.memory_space<vmem>>, vector<128x4xbf16>,
    %c4_i32_28 = arith.constant 4 : i32
    %42 = arith.addi %1, %c4_i32_28 : i32
    %c2_i32_29 = arith.constant 2 : i32
    %43 = arith.subi %42, %c2_i32_29 : i32
    %c2_i32_30 = arith.constant 2 : i32
    %44 = arith.addi %43, %c2_i32_30 : i32
    %c0_31 = arith.constant 0 : index
    %45 = arith.index_cast %44 : i32 to index
    %c2_32 = arith.constant 2 : index
    %c0_33 = arith.constant 0 : index
    %46 = vector.load %arg2[%c0_31, %45, %c2_32, %c0_33] : memref<1x24x24x4xbf16, #tpu.memory_space<vmem>>, vector<1x8x16x4xbf16>
    %47 = vector.shape_cast %46 : vector<1x8x16x4xbf16> to vector<8x16x4xbf16>
    %48 = vector.shape_cast %47 : vector<8x16x4xbf16> to vector<128x4xbf16>
    %c0_34 = arith.constant 0 : index
    %c12 = arith.constant 12 : index
    %49 = vector.load %arg10[%c0_34, %c12] : memref<128x36xbf16, #tpu.memory_space<vmem>>, vector<128x4xbf16>
    tpu.vector_store %arg10[%c0_34, %c12], %48 {strides = array<i32>} : memref<128x36xbf16, #tpu.memory_space<vmem>>, vector<128x4xbf16>,
    %c4_i32_35 = arith.constant 4 : i32
    %50 = arith.addi %1, %c4_i32_35 : i32
    %c2_i32_36 = arith.constant 2 : i32
    %51 = arith.subi %50, %c2_i32_36 : i32
    %c2_i32_37 = arith.constant 2 : i32
    %52 = arith.addi %51, %c2_i32_37 : i32
    %c0_38 = arith.constant 0 : index
    %53 = arith.index_cast %52 : i32 to index
    %c4_39 = arith.constant 4 : index
    %c0_40 = arith.constant 0 : index
    %54 = vector.load %arg2[%c0_38, %53, %c4_39, %c0_40] : memref<1x24x24x4xbf16, #tpu.memory_space<vmem>>, vector<1x8x16x4xbf16>
    %55 = vector.shape_cast %54 : vector<1x8x16x4xbf16> to vector<8x16x4xbf16>
    %56 = vector.shape_cast %55 : vector<8x16x4xbf16> to vector<128x4xbf16>
    %c0_41 = arith.constant 0 : index
    %c16 = arith.constant 16 : index
    %57 = vector.load %arg10[%c0_41, %c16] : memref<128x36xbf16, #tpu.memory_space<vmem>>, vector<128x4xbf16>
    tpu.vector_store %arg10[%c0_41, %c16], %56 {strides = array<i32>} : memref<128x36xbf16, #tpu.memory_space<vmem>>, vector<128x4xbf16>,
    %c4_i32_42 = arith.constant 4 : i32
    %58 = arith.addi %1, %c4_i32_42 : i32
    %c2_i32_43 = arith.constant 2 : i32
    %59 = arith.subi %58, %c2_i32_43 : i32
    %c2_i32_44 = arith.constant 2 : i32
    %60 = arith.addi %59, %c2_i32_44 : i32
    %c0_45 = arith.constant 0 : index
    %61 = arith.index_cast %60 : i32 to index
    %c6_46 = arith.constant 6 : index
    %c0_47 = arith.constant 0 : index
    %62 = vector.load %arg2[%c0_45, %61, %c6_46, %c0_47] : memref<1x24x24x4xbf16, #tpu.memory_space<vmem>>, vector<1x8x16x4xbf16>
    %63 = vector.shape_cast %62 : vector<1x8x16x4xbf16> to vector<8x16x4xbf16>
    %64 = vector.shape_cast %63 : vector<8x16x4xbf16> to vector<128x4xbf16>
    %c0_48 = arith.constant 0 : index
    %c20 = arith.constant 20 : index
    %65 = vector.load %arg10[%c0_48, %c20] : memref<128x36xbf16, #tpu.memory_space<vmem>>, vector<128x4xbf16>
    tpu.vector_store %arg10[%c0_48, %c20], %64 {strides = array<i32>} : memref<128x36xbf16, #tpu.memory_space<vmem>>, vector<128x4xbf16>,
    %c4_i32_49 = arith.constant 4 : i32
    %66 = arith.addi %1, %c4_i32_49 : i32
    %c2_i32_50 = arith.constant 2 : i32
    %67 = arith.subi %66, %c2_i32_50 : i32
    %c4_i32_51 = arith.constant 4 : i32
    %68 = arith.addi %67, %c4_i32_51 : i32
    %c0_52 = arith.constant 0 : index
    %69 = arith.index_cast %68 : i32 to index
    %c2_53 = arith.constant 2 : index
    %c0_54 = arith.constant 0 : index
    %70 = vector.load %arg2[%c0_52, %69, %c2_53, %c0_54] : memref<1x24x24x4xbf16, #tpu.memory_space<vmem>>, vector<1x8x16x4xbf16>
    %71 = vector.shape_cast %70 : vector<1x8x16x4xbf16> to vector<8x16x4xbf16>
    %72 = vector.shape_cast %71 : vector<8x16x4xbf16> to vector<128x4xbf16>
    %c0_55 = arith.constant 0 : index
    %c24 = arith.constant 24 : index
    %73 = vector.load %arg10[%c0_55, %c24] : memref<128x36xbf16, #tpu.memory_space<vmem>>, vector<128x4xbf16>
    tpu.vector_store %arg10[%c0_55, %c24], %72 {strides = array<i32>} : memref<128x36xbf16, #tpu.memory_space<vmem>>, vector<128x4xbf16>,
    %c4_i32_56 = arith.constant 4 : i32
    %74 = arith.addi %1, %c4_i32_56 : i32
    %c2_i32_57 = arith.constant 2 : i32
    %75 = arith.subi %74, %c2_i32_57 : i32
    %c4_i32_58 = arith.constant 4 : i32
    %76 = arith.addi %75, %c4_i32_58 : i32
    %c0_59 = arith.constant 0 : index
    %77 = arith.index_cast %76 : i32 to index
    %c4_60 = arith.constant 4 : index
    %c0_61 = arith.constant 0 : index
    %78 = vector.load %arg2[%c0_59, %77, %c4_60, %c0_61] : memref<1x24x24x4xbf16, #tpu.memory_space<vmem>>, vector<1x8x16x4xbf16>
    %79 = vector.shape_cast %78 : vector<1x8x16x4xbf16> to vector<8x16x4xbf16>
    %80 = vector.shape_cast %79 : vector<8x16x4xbf16> to vector<128x4xbf16>
    %c0_62 = arith.constant 0 : index
    %c28 = arith.constant 28 : index
    %81 = vector.load %arg10[%c0_62, %c28] : memref<128x36xbf16, #tpu.memory_space<vmem>>, vector<128x4xbf16>
    tpu.vector_store %arg10[%c0_62, %c28], %80 {strides = array<i32>} : memref<128x36xbf16, #tpu.memory_space<vmem>>, vector<128x4xbf16>,
    %c4_i32_63 = arith.constant 4 : i32
    %82 = arith.addi %1, %c4_i32_63 : i32
    %c2_i32_64 = arith.constant 2 : i32
    %83 = arith.subi %82, %c2_i32_64 : i32
    %c4_i32_65 = arith.constant 4 : i32
    %84 = arith.addi %83, %c4_i32_65 : i32
    %c0_66 = arith.constant 0 : index
    %85 = arith.index_cast %84 : i32 to index
    %c6_67 = arith.constant 6 : index
    %c0_68 = arith.constant 0 : index
    %86 = vector.load %arg2[%c0_66, %85, %c6_67, %c0_68] : memref<1x24x24x4xbf16, #tpu.memory_space<vmem>>, vector<1x8x16x4xbf16>
    %87 = vector.shape_cast %86 : vector<1x8x16x4xbf16> to vector<8x16x4xbf16>
    %88 = vector.shape_cast %87 : vector<8x16x4xbf16> to vector<128x4xbf16>
    %c0_69 = arith.constant 0 : index
    %c32 = arith.constant 32 : index
    %89 = vector.load %arg10[%c0_69, %c32] : memref<128x36xbf16, #tpu.memory_space<vmem>>, vector<128x4xbf16>
    tpu.vector_store %arg10[%c0_69, %c32], %88 {strides = array<i32>} : memref<128x36xbf16, #tpu.memory_space<vmem>>, vector<128x4xbf16>,
    %c0_70 = arith.constant 0 : index
    %c0_71 = arith.constant 0 : index
    %90 = vector.load %arg10[%c0_70, %c0_71] : memref<128x36xbf16, #tpu.memory_space<vmem>>, vector<128x36xbf16>
    %c0_72 = arith.constant 0 : index
    %c0_73 = arith.constant 0 : index
    %c0_74 = arith.constant 0 : index
    %91 = vector.load %arg4[%c0_72, %c0_73, %c0_74] : memref<2x36x8xbf16, #tpu.memory_space<vmem>>, vector<1x36x8xbf16>
    %92 = vector.shape_cast %91 : vector<1x36x8xbf16> to vector<36x8xbf16>
    %cst_75 = arith.constant dense<0.000000e+00> : vector<128x8xf32>
    %93 = tpu.matmul %90, %92, %cst_75 {dimension_numbers = #tpu.dot_dimension_numbers<[1], [0], [0], [1], [0, 0, 1, 1], [], []>} : vector<128x36xbf16>, vector<36x8xbf16>, vector<128x8xf32> -> vector<128x8xf32>
    %94 = vector.extract_strided_slice %2 {offsets = [1, 0], sizes = [1, 8], strides = [1, 1]} : vector<3x8xf32> to vector<1x8xf32>
    %95 = vector.broadcast %94 : vector<1x8xf32> to vector<128x8xf32>
    %96 = arith.addf %93, %95 : vector<128x8xf32>
    %cst_76 = arith.constant 0.000000e+00 : f32
    %97 = vector.broadcast %cst_76 : f32 to vector<128x8xf32>
    %98 = arith.maximumf %96, %97 : vector<128x8xf32>
    %99 = arith.truncf %98 : vector<128x8xf32> to vector<128x8xbf16>
    %c8_77 = arith.constant 8 : index
    %c0_78 = arith.constant 0 : index
    %100 = vector.load %arg5[%c8_77, %c0_78] : memref<24x8xbf16, #tpu.memory_space<vmem>>, vector<8x8xbf16>
    %cst_79 = arith.constant dense<0.000000e+00> : vector<128x8xf32>
    %101 = tpu.matmul %99, %100, %cst_79 {dimension_numbers = #tpu.dot_dimension_numbers<[1], [0], [0], [1], [0, 0, 1, 1], [], []>} : vector<128x8xbf16>, vector<8x8xbf16>, vector<128x8xf32> -> vector<128x8xf32>
    %102 = arith.addf %17, %101 : vector<128x8xf32>
    %c4_i32_80 = arith.constant 4 : i32
    %103 = arith.addi %1, %c4_i32_80 : i32
    %c4_i32_81 = arith.constant 4 : i32
    %104 = arith.subi %103, %c4_i32_81 : i32
    %c0_i32_82 = arith.constant 0 : i32
    %105 = arith.addi %104, %c0_i32_82 : i32
    %c0_83 = arith.constant 0 : index
    %106 = arith.index_cast %105 : i32 to index
    %c0_84 = arith.constant 0 : index
    %c0_85 = arith.constant 0 : index
    %107 = vector.load %arg2[%c0_83, %106, %c0_84, %c0_85] : memref<1x24x24x4xbf16, #tpu.memory_space<vmem>>, vector<1x8x16x4xbf16>
    %108 = vector.shape_cast %107 : vector<1x8x16x4xbf16> to vector<8x16x4xbf16>
    %109 = vector.shape_cast %108 : vector<8x16x4xbf16> to vector<128x4xbf16>
    %c0_86 = arith.constant 0 : index
    %c0_87 = arith.constant 0 : index
    %110 = vector.load %arg10[%c0_86, %c0_87] : memref<128x36xbf16, #tpu.memory_space<vmem>>, vector<128x4xbf16>
    tpu.vector_store %arg10[%c0_86, %c0_87], %109 {strides = array<i32>} : memref<128x36xbf16, #tpu.memory_space<vmem>>, vector<128x4xbf16>,
    %c4_i32_88 = arith.constant 4 : i32
    %111 = arith.addi %1, %c4_i32_88 : i32
    %c4_i32_89 = arith.constant 4 : i32
    %112 = arith.subi %111, %c4_i32_89 : i32
    %c0_i32_90 = arith.constant 0 : i32
    %113 = arith.addi %112, %c0_i32_90 : i32
    %c0_91 = arith.constant 0 : index
    %114 = arith.index_cast %113 : i32 to index
    %c4_92 = arith.constant 4 : index
    %c0_93 = arith.constant 0 : index
    %115 = vector.load %arg2[%c0_91, %114, %c4_92, %c0_93] : memref<1x24x24x4xbf16, #tpu.memory_space<vmem>>, vector<1x8x16x4xbf16>
    %116 = vector.shape_cast %115 : vector<1x8x16x4xbf16> to vector<8x16x4xbf16>
    %117 = vector.shape_cast %116 : vector<8x16x4xbf16> to vector<128x4xbf16>
    %c0_94 = arith.constant 0 : index
    %c4_95 = arith.constant 4 : index
    %118 = vector.load %arg10[%c0_94, %c4_95] : memref<128x36xbf16, #tpu.memory_space<vmem>>, vector<128x4xbf16>
    tpu.vector_store %arg10[%c0_94, %c4_95], %117 {strides = array<i32>} : memref<128x36xbf16, #tpu.memory_space<vmem>>, vector<128x4xbf16>,
    %c4_i32_96 = arith.constant 4 : i32
    %119 = arith.addi %1, %c4_i32_96 : i32
    %c4_i32_97 = arith.constant 4 : i32
    %120 = arith.subi %119, %c4_i32_97 : i32
    %c0_i32_98 = arith.constant 0 : i32
    %121 = arith.addi %120, %c0_i32_98 : i32
    %c0_99 = arith.constant 0 : index
    %122 = arith.index_cast %121 : i32 to index
    %c8_100 = arith.constant 8 : index
    %c0_101 = arith.constant 0 : index
    %123 = vector.load %arg2[%c0_99, %122, %c8_100, %c0_101] : memref<1x24x24x4xbf16, #tpu.memory_space<vmem>>, vector<1x8x16x4xbf16>
    %124 = vector.shape_cast %123 : vector<1x8x16x4xbf16> to vector<8x16x4xbf16>
    %125 = vector.shape_cast %124 : vector<8x16x4xbf16> to vector<128x4xbf16>
    %c0_102 = arith.constant 0 : index
    %c8_103 = arith.constant 8 : index
    %126 = vector.load %arg10[%c0_102, %c8_103] : memref<128x36xbf16, #tpu.memory_space<vmem>>, vector<128x4xbf16>
    tpu.vector_store %arg10[%c0_102, %c8_103], %125 {strides = array<i32>} : memref<128x36xbf16, #tpu.memory_space<vmem>>, vector<128x4xbf16>,
    %c4_i32_104 = arith.constant 4 : i32
    %127 = arith.addi %1, %c4_i32_104 : i32
    %c4_i32_105 = arith.constant 4 : i32
    %128 = arith.subi %127, %c4_i32_105 : i32
    %c4_i32_106 = arith.constant 4 : i32
    %129 = arith.addi %128, %c4_i32_106 : i32
    %c0_107 = arith.constant 0 : index
    %130 = arith.index_cast %129 : i32 to index
    %c0_108 = arith.constant 0 : index
    %c0_109 = arith.constant 0 : index
    %131 = vector.load %arg2[%c0_107, %130, %c0_108, %c0_109] : memref<1x24x24x4xbf16, #tpu.memory_space<vmem>>, vector<1x8x16x4xbf16>
    %132 = vector.shape_cast %131 : vector<1x8x16x4xbf16> to vector<8x16x4xbf16>
    %133 = vector.shape_cast %132 : vector<8x16x4xbf16> to vector<128x4xbf16>
    %c0_110 = arith.constant 0 : index
    %c12_111 = arith.constant 12 : index
    %134 = vector.load %arg10[%c0_110, %c12_111] : memref<128x36xbf16, #tpu.memory_space<vmem>>, vector<128x4xbf16>
    tpu.vector_store %arg10[%c0_110, %c12_111], %133 {strides = array<i32>} : memref<128x36xbf16, #tpu.memory_space<vmem>>, vector<128x4xbf16>,
    %c4_i32_112 = arith.constant 4 : i32
    %135 = arith.addi %1, %c4_i32_112 : i32
    %c4_i32_113 = arith.constant 4 : i32
    %136 = arith.subi %135, %c4_i32_113 : i32
    %c4_i32_114 = arith.constant 4 : i32
    %137 = arith.addi %136, %c4_i32_114 : i32
    %c0_115 = arith.constant 0 : index
    %138 = arith.index_cast %137 : i32 to index
    %c4_116 = arith.constant 4 : index
    %c0_117 = arith.constant 0 : index
    %139 = vector.load %arg2[%c0_115, %138, %c4_116, %c0_117] : memref<1x24x24x4xbf16, #tpu.memory_space<vmem>>, vector<1x8x16x4xbf16>
    %140 = vector.shape_cast %139 : vector<1x8x16x4xbf16> to vector<8x16x4xbf16>
    %141 = vector.shape_cast %140 : vector<8x16x4xbf16> to vector<128x4xbf16>
    %c0_118 = arith.constant 0 : index
    %c16_119 = arith.constant 16 : index
    %142 = vector.load %arg10[%c0_118, %c16_119] : memref<128x36xbf16, #tpu.memory_space<vmem>>, vector<128x4xbf16>
    tpu.vector_store %arg10[%c0_118, %c16_119], %141 {strides = array<i32>} : memref<128x36xbf16, #tpu.memory_space<vmem>>, vector<128x4xbf16>,
    %c4_i32_120 = arith.constant 4 : i32
    %143 = arith.addi %1, %c4_i32_120 : i32
    %c4_i32_121 = arith.constant 4 : i32
    %144 = arith.subi %143, %c4_i32_121 : i32
    %c4_i32_122 = arith.constant 4 : i32
    %145 = arith.addi %144, %c4_i32_122 : i32
    %c0_123 = arith.constant 0 : index
    %146 = arith.index_cast %145 : i32 to index
    %c8_124 = arith.constant 8 : index
    %c0_125 = arith.constant 0 : index
    %147 = vector.load %arg2[%c0_123, %146, %c8_124, %c0_125] : memref<1x24x24x4xbf16, #tpu.memory_space<vmem>>, vector<1x8x16x4xbf16>
    %148 = vector.shape_cast %147 : vector<1x8x16x4xbf16> to vector<8x16x4xbf16>
    %149 = vector.shape_cast %148 : vector<8x16x4xbf16> to vector<128x4xbf16>
    %c0_126 = arith.constant 0 : index
    %c20_127 = arith.constant 20 : index
    %150 = vector.load %arg10[%c0_126, %c20_127] : memref<128x36xbf16, #tpu.memory_space<vmem>>, vector<128x4xbf16>
    tpu.vector_store %arg10[%c0_126, %c20_127], %149 {strides = array<i32>} : memref<128x36xbf16, #tpu.memory_space<vmem>>, vector<128x4xbf16>,
    %c4_i32_128 = arith.constant 4 : i32
    %151 = arith.addi %1, %c4_i32_128 : i32
    %c4_i32_129 = arith.constant 4 : i32
    %152 = arith.subi %151, %c4_i32_129 : i32
    %c8_i32_130 = arith.constant 8 : i32
    %153 = arith.addi %152, %c8_i32_130 : i32
    %c0_131 = arith.constant 0 : index
    %154 = arith.index_cast %153 : i32 to index
    %c0_132 = arith.constant 0 : index
    %c0_133 = arith.constant 0 : index
    %155 = vector.load %arg2[%c0_131, %154, %c0_132, %c0_133] : memref<1x24x24x4xbf16, #tpu.memory_space<vmem>>, vector<1x8x16x4xbf16>
    %156 = vector.shape_cast %155 : vector<1x8x16x4xbf16> to vector<8x16x4xbf16>
    %157 = vector.shape_cast %156 : vector<8x16x4xbf16> to vector<128x4xbf16>
    %c0_134 = arith.constant 0 : index
    %c24_135 = arith.constant 24 : index
    %158 = vector.load %arg10[%c0_134, %c24_135] : memref<128x36xbf16, #tpu.memory_space<vmem>>, vector<128x4xbf16>
    tpu.vector_store %arg10[%c0_134, %c24_135], %157 {strides = array<i32>} : memref<128x36xbf16, #tpu.memory_space<vmem>>, vector<128x4xbf16>,
    %c4_i32_136 = arith.constant 4 : i32
    %159 = arith.addi %1, %c4_i32_136 : i32
    %c4_i32_137 = arith.constant 4 : i32
    %160 = arith.subi %159, %c4_i32_137 : i32
    %c8_i32_138 = arith.constant 8 : i32
    %161 = arith.addi %160, %c8_i32_138 : i32
    %c0_139 = arith.constant 0 : index
    %162 = arith.index_cast %161 : i32 to index
    %c4_140 = arith.constant 4 : index
    %c0_141 = arith.constant 0 : index
    %163 = vector.load %arg2[%c0_139, %162, %c4_140, %c0_141] : memref<1x24x24x4xbf16, #tpu.memory_space<vmem>>, vector<1x8x16x4xbf16>
    %164 = vector.shape_cast %163 : vector<1x8x16x4xbf16> to vector<8x16x4xbf16>
    %165 = vector.shape_cast %164 : vector<8x16x4xbf16> to vector<128x4xbf16>
    %c0_142 = arith.constant 0 : index
    %c28_143 = arith.constant 28 : index
    %166 = vector.load %arg10[%c0_142, %c28_143] : memref<128x36xbf16, #tpu.memory_space<vmem>>, vector<128x4xbf16>
    tpu.vector_store %arg10[%c0_142, %c28_143], %165 {strides = array<i32>} : memref<128x36xbf16, #tpu.memory_space<vmem>>, vector<128x4xbf16>,
    %c4_i32_144 = arith.constant 4 : i32
    %167 = arith.addi %1, %c4_i32_144 : i32
    %c4_i32_145 = arith.constant 4 : i32
    %168 = arith.subi %167, %c4_i32_145 : i32
    %c8_i32_146 = arith.constant 8 : i32
    %169 = arith.addi %168, %c8_i32_146 : i32
    %c0_147 = arith.constant 0 : index
    %170 = arith.index_cast %169 : i32 to index
    %c8_148 = arith.constant 8 : index
    %c0_149 = arith.constant 0 : index
    %171 = vector.load %arg2[%c0_147, %170, %c8_148, %c0_149] : memref<1x24x24x4xbf16, #tpu.memory_space<vmem>>, vector<1x8x16x4xbf16>
    %172 = vector.shape_cast %171 : vector<1x8x16x4xbf16> to vector<8x16x4xbf16>
    %173 = vector.shape_cast %172 : vector<8x16x4xbf16> to vector<128x4xbf16>
    %c0_150 = arith.constant 0 : index
    %c32_151 = arith.constant 32 : index
    %174 = vector.load %arg10[%c0_150, %c32_151] : memref<128x36xbf16, #tpu.memory_space<vmem>>, vector<128x4xbf16>
    tpu.vector_store %arg10[%c0_150, %c32_151], %173 {strides = array<i32>} : memref<128x36xbf16, #tpu.memory_space<vmem>>, vector<128x4xbf16>,
    %c0_152 = arith.constant 0 : index
    %c0_153 = arith.constant 0 : index
    %175 = vector.load %arg10[%c0_152, %c0_153] : memref<128x36xbf16, #tpu.memory_space<vmem>>, vector<128x36xbf16>
    %c1 = arith.constant 1 : index
    %c0_154 = arith.constant 0 : index
    %c0_155 = arith.constant 0 : index
    %176 = vector.load %arg4[%c1, %c0_154, %c0_155] : memref<2x36x8xbf16, #tpu.memory_space<vmem>>, vector<1x36x8xbf16>
    %177 = vector.shape_cast %176 : vector<1x36x8xbf16> to vector<36x8xbf16>
    %cst_156 = arith.constant dense<0.000000e+00> : vector<128x8xf32>
    %178 = tpu.matmul %175, %177, %cst_156 {dimension_numbers = #tpu.dot_dimension_numbers<[1], [0], [0], [1], [0, 0, 1, 1], [], []>} : vector<128x36xbf16>, vector<36x8xbf16>, vector<128x8xf32> -> vector<128x8xf32>
    %179 = vector.extract_strided_slice %2 {offsets = [2, 0], sizes = [1, 8], strides = [1, 1]} : vector<3x8xf32> to vector<1x8xf32>
    %180 = vector.broadcast %179 : vector<1x8xf32> to vector<128x8xf32>
    %181 = arith.addf %178, %180 : vector<128x8xf32>
    %cst_157 = arith.constant 0.000000e+00 : f32
    %182 = vector.broadcast %cst_157 : f32 to vector<128x8xf32>
    %183 = arith.maximumf %181, %182 : vector<128x8xf32>
    %184 = arith.truncf %183 : vector<128x8xf32> to vector<128x8xbf16>
    %c16_158 = arith.constant 16 : index
    %c0_159 = arith.constant 0 : index
    %185 = vector.load %arg5[%c16_158, %c0_159] : memref<24x8xbf16, #tpu.memory_space<vmem>>, vector<8x8xbf16>
    %cst_160 = arith.constant dense<0.000000e+00> : vector<128x8xf32>
    %186 = tpu.matmul %184, %185, %cst_160 {dimension_numbers = #tpu.dot_dimension_numbers<[1], [0], [0], [1], [0, 0, 1, 1], [], []>} : vector<128x8xbf16>, vector<8x8xbf16>, vector<128x8xf32> -> vector<128x8xf32>
    %187 = arith.addf %102, %186 : vector<128x8xf32>
    %c0_161 = arith.constant 0 : index
    %c0_162 = arith.constant 0 : index
    %c0_163 = arith.constant 0 : index
    %188 = vector.load %arg8[%c0_161, %c0_162, %c0_163] : memref<1x1x8xf32, #tpu.memory_space<vmem>>, vector<1x1x8xf32>
    %189 = vector.shape_cast %188 : vector<1x1x8xf32> to vector<1x8xf32>
    %190 = vector.broadcast %189 : vector<1x8xf32> to vector<128x8xf32>
    %191 = arith.addf %187, %190 : vector<128x8xf32>
    %c0_164 = arith.constant 0 : index
    %c0_165 = arith.constant 0 : index
    %192 = vector.load %arg7[%c0_164, %c0_165] : memref<1x8xf32, #tpu.memory_space<vmem>>, vector<1x8xf32>
    %193 = vector.broadcast %192 : vector<1x8xf32> to vector<128x8xf32>
    %194 = arith.addf %191, %193 : vector<128x8xf32>
    %cst_166 = arith.constant 0.000000e+00 : f32
    %195 = vector.broadcast %cst_166 : f32 to vector<128x8xf32>
    %196 = arith.maximumf %194, %195 : vector<128x8xf32>
    %197 = vector.shape_cast %196 : vector<128x8xf32> to vector<1x8x16x8xf32>
    %c0_167 = arith.constant 0 : index
    %c0_168 = arith.constant 0 : index
    %c0_169 = arith.constant 0 : index
    %c0_170 = arith.constant 0 : index
    %198 = vector.load %arg9[%c0_167, %c0_168, %c0_169, %c0_170] : memref<1x8x16x8xf32, #tpu.memory_space<vmem>>, vector<1x8x16x8xf32>
    tpu.vector_store %arg9[%c0_167, %c0_168, %c0_169, %c0_170], %197 {strides = array<i32>} : memref<1x8x16x8xf32, #tpu.memory_space<vmem>>, vector<1x8x16x8xf32>,
    return
  }
  func.func @transform_0(%arg0: i32, %arg1: i32) -> (i32, i32, i32, i32) {
    %c0_i32 = arith.constant 0 : i32
    %c0_i32_0 = arith.constant 0 : i32
    %c0_i32_1 = arith.constant 0 : i32
    %c0_i32_2 = arith.constant 0 : i32
    return %arg0, %c0_i32, %c0_i32_0, %c0_i32_1 : i32, i32, i32, i32
  }
  func.func @transform_1(%arg0: i32, %arg1: i32) -> (i32, i32) {
    %c0_i32 = arith.constant 0 : i32
    %c0_i32_0 = arith.constant 0 : i32
    %c0_i32_1 = arith.constant 0 : i32
    return %c0_i32, %c0_i32_0 : i32, i32
  }
  func.func @transform_2(%arg0: i32, %arg1: i32) -> (i32, i32, i32) {
    %c0_i32 = arith.constant 0 : i32
    %c0_i32_0 = arith.constant 0 : i32
    %c0_i32_1 = arith.constant 0 : i32
    %c0_i32_2 = arith.constant 0 : i32
    return %c0_i32, %c0_i32_0, %c0_i32_1 : i32, i32, i32
  }
  func.func @transform_3(%arg0: i32, %arg1: i32) -> (i32, i32) {
    %c0_i32 = arith.constant 0 : i32
    %c0_i32_0 = arith.constant 0 : i32
    %c0_i32_1 = arith.constant 0 : i32
    return %c0_i32, %c0_i32_0 : i32, i32
  }
  func.func @transform_4(%arg0: i32, %arg1: i32) -> (i32, i32) {
    %c0_i32 = arith.constant 0 : i32
    %c0_i32_0 = arith.constant 0 : i32
    %c0_i32_1 = arith.constant 0 : i32
    return %c0_i32, %c0_i32_0 : i32, i32
  }
  func.func @transform_5(%arg0: i32, %arg1: i32) -> (i32, i32) {
    %c0_i32 = arith.constant 0 : i32
    %c0_i32_0 = arith.constant 0 : i32
    %c0_i32_1 = arith.constant 0 : i32
    return %c0_i32, %c0_i32_0 : i32, i32
  }
  func.func @transform_6(%arg0: i32, %arg1: i32) -> (i32, i32, i32) {
    %c0_i32 = arith.constant 0 : i32
    %c0_i32_0 = arith.constant 0 : i32
    %c0_i32_1 = arith.constant 0 : i32
    return %arg0, %c0_i32, %c0_i32_0 : i32, i32, i32
  }
  func.func @transform_7(%arg0: i32, %arg1: i32) -> (i32, i32, i32, i32) {
    %c0_i32 = arith.constant 0 : i32
    %c0_i32_0 = arith.constant 0 : i32
    %c0_i32_1 = arith.constant 0 : i32
    return %arg0, %arg1, %c0_i32, %c0_i32_0 : i32, i32, i32, i32
  }
}

</mosaic_0001>

<llo_original>
// kernel: tpu_custom_call.1
$region0: #{tpu_custom_call.1}
  #allocation0 [shape = 'u32[]', space=smem, size = 0x4, offset = 0x4, fixed_abs, tag = 'smem constant byte address 0x4 - core index']
  #allocation1 [shape = 'u32[144,128]{1,0:T(1,128)}', space=vmem, size = 0x12000, scoped, tag = 'internal scratch']
  #allocation2 [shape = 'bf16[128,36]{1,0:T(16,128)(2,1)}', space=vmem, size = 0x8000, scoped, tag = 'scratch operand']
  %s0 = inlined_call_operand.vmem [shape: bf16[2,24,24,4], index: 0, kind: input, shape index: {}]
  %s1 = inlined_call_operand.vmem [shape: bf16[4,8], index: 1, kind: input, shape index: {}]
  %s2 = inlined_call_operand.vmem [shape: bf16[2,36,8], index: 2, kind: input, shape index: {}]
  %s3 = inlined_call_operand.vmem [shape: bf16[24,8], index: 3, kind: input, shape index: {}]
  %s4 = inlined_call_operand.vmem [shape: f32[3,8], index: 4, kind: input, shape index: {}]
  %s5 = inlined_call_operand.vmem [shape: f32[1,8], index: 5, kind: input, shape index: {}]
  %s6 = inlined_call_operand.vmem [shape: f32[2,1,8], index: 6, kind: input, shape index: {}]
  %s7 = inlined_call_operand.vmem [shape: f32[2,16,16,8], index: 7, kind: output, shape index: {}]
  %s8 = sld [smem:[#allocation0]]
  $region61: #{tpu_custom_call.1} parent=0
    _
  %s10 = ssub.s32 1, %s8
  %s11 = scalar_select 0, %s10, %s8
  loop: start=0, step=1, limit=6
  $region2: #{tpu_custom_call.1} parent=0 // loop_pre_header
    _
  $region3: #{tpu_custom_call.1} parent=0 // loop_header
    %s13 = sphi 0, %s17
    %p14 = scmp.ge.s32.totalorder %s13, 6
    %s20 = sphi 0, %s32
    %s21 = sphi 0, %s28
    %s22 = sphi 0, %s20
    %s23 = sphi 0, %s21
    %s24 = sphi 0, %s22
    %s25 = sphi 0, %s23
    %s35 = sphi 0, %s37
    %s38 = sphi 0, %s35
    %s39 = sphi 0, %s38
    %s55 = sphi 0, %s39
    %s59 = sphi 0, %s59
    %s61 = sphi 0, %s59
    %s62 = sphi 0, %s61
    %s76 = sphi 0, %s62
    %s80 = sphi 0, %s80
    %s82 = sphi 0, %s80
    %s83 = sphi 0, %s82
    %s97 = sphi 0, %s83
    %s101 = sphi 0, %s101
    %s103 = sphi 0, %s101
    %s104 = sphi 0, %s103
    %s118 = sphi 0, %s104
    %s122 = sphi 0, %s122
    %s124 = sphi 0, %s122
    %s125 = sphi 0, %s124
    %s139 = sphi 0, %s125
    %s143 = sphi 0, %s143
    %s145 = sphi 0, %s143
    %s146 = sphi 0, %s145
    %s160 = sphi 0, %s146
    %s166 = sphi 0, %s168
    %s169 = sphi 0, %s166
    %s170 = sphi 0, %s169
    %s186 = sphi 0, %s170
    %s194 = sphi 0, %s196
    %s197 = sphi 0, %s194
    %s198 = sphi 0, %s197
    %s214 = sphi 0, %s198
  $region4: #{tpu_custom_call.1} parent=0 // loop_header_branch
    %16 = sbr.rel (%p14) target = $region8
  $region5: #{tpu_custom_call.1} parent=0 // loop_body
    %s18 = ssub.s32 %s13, 1
    %s19 = ssub.s32 %s13, 2
    %s26 = sadd.s32 1, %s21
    %p27 = scmp.ge.s32.totalorder %s26, 2
    %s28 = scalar_select %p27, 0, %s26
    %s29 = sadd.s32 1, %s20
    %s30 = scalar_select %p27, %s29, %s20
    %p31 = scmp.ge.s32.totalorder %s30, 2
    %s32 = scalar_select %p31, 0, %s30
    %s33 = ssub.s32 %s20, %s32
    %p34 = scmp.eq.s32.totalorder %s33, 0
    %s36 = sadd.s32 %s35, 1
    %s37 = scalar_select %p34, %s35, %s36
    %p40 = pneg %p34
    %p41 = scmp.eq.s32.totalorder %s13, 3
    %p42 = por %p40, %p41
    %p43 = scmp.ne.s32.totalorder %s35, %s38
    %p44 = scmp.eq.s32.totalorder %s13, 0
    %p45 = por %p43, %p44
    %p46 = scmp.ne.s32.totalorder %s35, %s38
    %p47 = scmp.eq.s32.totalorder %s18, 3
    %p48 = por %p46, %p47
    %p49 = scmp.ne.s32.totalorder %s38, %s39
    %p50 = scmp.eq.s32.totalorder %s18, 0
    %p51 = por %p49, %p50
    %p52 = scmp.ne.s32.totalorder %s38, %s39
    %p53 = scmp.eq.s32.totalorder %s19, 3
    %p54 = por %p52, %p53
    %p56 = scmp.ne.s32.totalorder %s39, %s55
    %p57 = scmp.eq.s32.totalorder %s19, 0
    %p58 = por %p56, %p57
    %s60 = sadd.s32 %s59, 1
    %p63 = scmp.eq.s32.totalorder %s13, 3
    %p64 = scmp.ne.s32.totalorder %s59, %s61
    %p65 = scmp.eq.s32.totalorder %s13, 0
    %p66 = por %p64, %p65
    %p67 = scmp.ne.s32.totalorder %s59, %s61
    %p68 = scmp.eq.s32.totalorder %s18, 3
    %p69 = por %p67, %p68
    %p70 = scmp.ne.s32.totalorder %s61, %s62
    %p71 = scmp.eq.s32.totalorder %s18, 0
    %p72 = por %p70, %p71
    %p73 = scmp.ne.s32.totalorder %s61, %s62
    %p74 = scmp.eq.s32.totalorder %s19, 3
    %p75 = por %p73, %p74
    %p77 = scmp.ne.s32.totalorder %s62, %s76
    %p78 = scmp.eq.s32.totalorder %s19, 0
    %p79 = por %p77, %p78
    %s81 = sadd.s32 %s80, 1
    %p84 = scmp.eq.s32.totalorder %s13, 3
    %p85 = scmp.ne.s32.totalorder %s80, %s82
    %p86 = scmp.eq.s32.totalorder %s13, 0
    %p87 = por %p85, %p86
    %p88 = scmp.ne.s32.totalorder %s80, %s82
    %p89 = scmp.eq.s32.totalorder %s18, 3
    %p90 = por %p88, %p89
    %p91 = scmp.ne.s32.totalorder %s82, %s83
    %p92 = scmp.eq.s32.totalorder %s18, 0
    %p93 = por %p91, %p92
    %p94 = scmp.ne.s32.totalorder %s82, %s83
    %p95 = scmp.eq.s32.totalorder %s19, 3
    %p96 = por %p94, %p95
    %p98 = scmp.ne.s32.totalorder %s83, %s97
    %p99 = scmp.eq.s32.totalorder %s19, 0
    %p100 = por %p98, %p99
    %s102 = sadd.s32 %s101, 1
    %p105 = scmp.eq.s32.totalorder %s13, 3
    %p106 = scmp.ne.s32.totalorder %s101, %s103
    %p107 = scmp.eq.s32.totalorder %s13, 0
    %p108 = por %p106, %p107
    %p109 = scmp.ne.s32.totalorder %s101, %s103
    %p110 = scmp.eq.s32.totalorder %s18, 3
    %p111 = por %p109, %p110
    %p112 = scmp.ne.s32.totalorder %s103, %s104
    %p113 = scmp.eq.s32.totalorder %s18, 0
    %p114 = por %p112, %p113
    %p115 = scmp.ne.s32.totalorder %s103, %s104
    %p116 = scmp.eq.s32.totalorder %s19, 3
    %p117 = por %p115, %p116
    %p119 = scmp.ne.s32.totalorder %s104, %s118
    %p120 = scmp.eq.s32.totalorder %s19, 0
    %p121 = por %p119, %p120
    %s123 = sadd.s32 %s122, 1
    %p126 = scmp.eq.s32.totalorder %s13, 3
    %p127 = scmp.ne.s32.totalorder %s122, %s124
    %p128 = scmp.eq.s32.totalorder %s13, 0
    %p129 = por %p127, %p128
    %p130 = scmp.ne.s32.totalorder %s122, %s124
    %p131 = scmp.eq.s32.totalorder %s18, 3
    %p132 = por %p130, %p131
    %p133 = scmp.ne.s32.totalorder %s124, %s125
    %p134 = scmp.eq.s32.totalorder %s18, 0
    %p135 = por %p133, %p134
    %p136 = scmp.ne.s32.totalorder %s124, %s125
    %p137 = scmp.eq.s32.totalorder %s19, 3
    %p138 = por %p136, %p137
    %p140 = scmp.ne.s32.totalorder %s125, %s139
    %p141 = scmp.eq.s32.totalorder %s19, 0
    %p142 = por %p140, %p141
    %s144 = sadd.s32 %s143, 1
    %p147 = scmp.eq.s32.totalorder %s13, 3
    %p148 = scmp.ne.s32.totalorder %s143, %s145
    %p149 = scmp.eq.s32.totalorder %s13, 0
    %p150 = por %p148, %p149
    %p151 = scmp.ne.s32.totalorder %s143, %s145
    %p152 = scmp.eq.s32.totalorder %s18, 3
    %p153 = por %p151, %p152
    %p154 = scmp.ne.s32.totalorder %s145, %s146
    %p155 = scmp.eq.s32.totalorder %s18, 0
    %p156 = por %p154, %p155
    %p157 = scmp.ne.s32.totalorder %s145, %s146
    %p158 = scmp.eq.s32.totalorder %s19, 3
    %p159 = por %p157, %p158
    %p161 = scmp.ne.s32.totalorder %s146, %s160
    %p162 = scmp.eq.s32.totalorder %s19, 0
    %p163 = por %p161, %p162
    %s164 = ssub.s32 %s20, %s32
    %p165 = scmp.eq.s32.totalorder %s164, 0
    %s167 = sadd.s32 %s166, 1
    %s168 = scalar_select %p165, %s166, %s167
    %p171 = pneg %p165
    %p172 = scmp.eq.s32.totalorder %s13, 3
    %p173 = por %p171, %p172
    %p174 = scmp.ne.s32.totalorder %s166, %s169
    %p175 = scmp.eq.s32.totalorder %s13, 0
    %p176 = por %p174, %p175
    %p177 = scmp.ne.s32.totalorder %s166, %s169
    %p178 = scmp.eq.s32.totalorder %s18, 3
    %p179 = por %p177, %p178
    %p180 = scmp.ne.s32.totalorder %s169, %s170
    %p181 = scmp.eq.s32.totalorder %s18, 0
    %p182 = por %p180, %p181
    %p183 = scmp.ne.s32.totalorder %s169, %s170
    %p184 = scmp.eq.s32.totalorder %s19, 3
    %p185 = por %p183, %p184
    %p187 = scmp.ne.s32.totalorder %s170, %s186
    %p188 = scmp.eq.s32.totalorder %s19, 0
    %p189 = por %p187, %p188
    %s190 = ssub.s32 %s20, %s32
    %s191 = ssub.s32 %s21, %s28
    %s192 = sor.u32 %s190, %s191
    %p193 = scmp.eq.s32.totalorder %s192, 0
    %s195 = sadd.s32 %s194, 1
    %s196 = scalar_select %p193, %s194, %s195
    %p199 = pneg %p193
    %p200 = scmp.eq.s32.totalorder %s13, 3
    %p201 = por %p199, %p200
    %p202 = scmp.ne.s32.totalorder %s194, %s197
    %p203 = scmp.eq.s32.totalorder %s13, 0
    %p204 = por %p202, %p203
    %p205 = scmp.ne.s32.totalorder %s194, %s197
    %p206 = scmp.eq.s32.totalorder %s18, 3
    %p207 = por %p205, %p206
    %p208 = scmp.ne.s32.totalorder %s197, %s198
    %p209 = scmp.eq.s32.totalorder %s18, 0
    %p210 = por %p208, %p209
    %p211 = scmp.ne.s32.totalorder %s197, %s198
    %p212 = scmp.eq.s32.totalorder %s19, 3
    %p213 = por %p211, %p212
    %p215 = scmp.ne.s32.totalorder %s198, %s214
    %p216 = scmp.eq.s32.totalorder %s19, 0
    %p217 = por %p215, %p216
    %p218 = scmp.le.s32.totalorder 1, %s13
    %p219 = scmp.lt.s32.totalorder %s13, 5
    %p220 = pnand %p218, %p219
    %p221 = pneg %p220
    // Predicated region
    $region9: #{tpu_custom_call.1} parent=5 // pred_check
      _
    $region10: #{tpu_custom_call.1} parent=5 // pred_check_branch
      %223 = sbr.rel (%p220) target = $region12
    $region11: #{tpu_custom_call.1} parent=5 // pred_region
      %s224 = ssub.s32 %s13, 1
      // Predicated region
      $region13: #{tpu_custom_call.1} parent=11 // pred_check
        %p225 = pneg %p72
      $region14: #{tpu_custom_call.1} parent=11 // pred_check_branch
        %227 = sbr.rel (%p225) target = $region16
      $region15: #{tpu_custom_call.1} parent=11 // pred_region
        _
      $region16: #{tpu_custom_call.1} parent=11 // pred_fallthru
        _
      // Predicated region
      $region17: #{tpu_custom_call.1} parent=11 // pred_check
        %p228 = pneg %p93
      $region18: #{tpu_custom_call.1} parent=11 // pred_check_branch
        %230 = sbr.rel (%p228) target = $region20
      $region19: #{tpu_custom_call.1} parent=11 // pred_region
        _
      $region20: #{tpu_custom_call.1} parent=11 // pred_fallthru
        _
      // Predicated region
      $region21: #{tpu_custom_call.1} parent=11 // pred_check
        %p231 = pneg %p114
      $region22: #{tpu_custom_call.1} parent=11 // pred_check_branch
        %233 = sbr.rel (%p231) target = $region24
      $region23: #{tpu_custom_call.1} parent=11 // pred_region
        _
      $region24: #{tpu_custom_call.1} parent=11 // pred_fallthru
        _
      // Predicated region
      $region25: #{tpu_custom_call.1} parent=11 // pred_check
        %p234 = pneg %p135
      $region26: #{tpu_custom_call.1} parent=11 // pred_check_branch
        %236 = sbr.rel (%p234) target = $region28
      $region27: #{tpu_custom_call.1} parent=11 // pred_region
        _
      $region28: #{tpu_custom_call.1} parent=11 // pred_fallthru
        _
      // Predicated region
      $region29: #{tpu_custom_call.1} parent=11 // pred_check
        %p237 = pneg %p156
      $region30: #{tpu_custom_call.1} parent=11 // pred_check_branch
        %239 = sbr.rel (%p237) target = $region32
      $region31: #{tpu_custom_call.1} parent=11 // pred_region
        _
      $region32: #{tpu_custom_call.1} parent=11 // pred_fallthru
        _
    $region12: #{tpu_custom_call.1} parent=5 // pred_fallthru
      _
    %p240 = scmp.lt.s32.totalorder %s13, 4
    // Predicated region
    $region33: #{tpu_custom_call.1} parent=5 // pred_check
      %p241 = pneg %p240
    $region34: #{tpu_custom_call.1} parent=5 // pred_check_branch
      %243 = sbr.rel (%p241) target = $region36
    $region35: #{tpu_custom_call.1} parent=5 // pred_region
      // Predicated region
      $region37: #{tpu_custom_call.1} parent=35 // pred_check
        %p244 = pneg %p45
      $region38: #{tpu_custom_call.1} parent=35 // pred_check_branch
        %246 = sbr.rel (%p244) target = $region40
      $region39: #{tpu_custom_call.1} parent=35 // pred_region
        %p247 = scmp.lt.s32.totalorder %s20, 1
        %s248 = scalar_select %p247, %s20, 1
        %s249 = smul.addr %s248, 72
        %s250 = smul.addr %s249, 4
        %s251 = scalar_lea.vmem %s0, %s250
      $region40: #{tpu_custom_call.1} parent=35 // pred_fallthru
        _
      // Predicated region
      $region41: #{tpu_custom_call.1} parent=35 // pred_check
        %p252 = pneg %p176
      $region42: #{tpu_custom_call.1} parent=35 // pred_check_branch
        %254 = sbr.rel (%p252) target = $region44
      $region43: #{tpu_custom_call.1} parent=35 // pred_region
        %p255 = scmp.lt.s32.totalorder %s20, 1
        %s256 = scalar_select %p255, %s20, 1
        %s257 = scalar_lea.vmem %s6, %s256
      $region44: #{tpu_custom_call.1} parent=35 // pred_fallthru
        _
    $region36: #{tpu_custom_call.1} parent=5 // pred_fallthru
      _
    %p258 = scmp.le.s32.totalorder 1, %s13
    %p259 = scmp.lt.s32.totalorder %s13, 5
    %p260 = pnand %p258, %p259
    %p261 = pneg %p260
    // Predicated region
    $region45: #{tpu_custom_call.1} parent=5 // pred_check
      _
    $region46: #{tpu_custom_call.1} parent=5 // pred_check_branch
      %263 = sbr.rel (%p260) target = $region48
    $region47: #{tpu_custom_call.1} parent=5 // pred_region
      %s264 = ssub.s32 %s13, 1
      %p265 = scmp.lt.s32.totalorder %s22, 1
      %s266 = scalar_select %p265, %s22, 1
      %s267 = smul.addr %s266, 72
      %s268 = smul.addr %s267, 4
      %s269 = scalar_lea.vmem %s0, %s268
      %p270 = pneg %p51
      %p271 = pneg %p48
      %p272 = pneg %p72
      %p273 = pneg %p69
      %p274 = pneg %p93
      %p275 = pneg %p90
      %p276 = pneg %p114
      %p277 = pneg %p111
      %p278 = pneg %p135
      %p279 = pneg %p132
      %p280 = pneg %p156
      %p281 = pneg %p153
      %p282 = scmp.lt.s32.totalorder %s22, 1
      %s283 = scalar_select %p282, %s22, 1
      %s284 = scalar_lea.vmem %s6, %s283
      %p285 = pneg %p182
      %p286 = pneg %p179
      %p287 = pneg %p210
      %p288 = pneg %p207
      %s289 = smul.u32 8, %s23
      %p290 = scmp.lt.s32.totalorder %s22, 1
      %s291 = scalar_select %p290, %s22, 1
      %p292 = scmp.lt.s32.totalorder %s289, 15
      %s293 = scalar_select %p292, %s289, 15
      %s294 = smul.addr %s293, 2
      %s295 = smul.addr %s291, 32
      %s296 = sadd.s32 %s294, %s295
      %s297 = smul.addr %s296, 8
      %s298 = scalar_lea.vmem %s7, %s297
      %p299 = scmp.lt.s32.totalorder %s22, 1
      %s300 = scalar_select %p299, %s22, 1
      %s301 = smul.addr %s300, 72
      %s302 = smul.addr %s301, 4
      %s303 = scalar_lea.vmem %s0, %s302
      %p304 = scmp.lt.s32.totalorder %s22, 1
      %s305 = scalar_select %p304, %s22, 1
      %s306 = scalar_lea.vmem %s6, %s305
      %s307 = smul.u32 8, %s23
      %p308 = scmp.lt.s32.totalorder %s22, 1
      %s309 = scalar_select %p308, %s22, 1
      %p310 = scmp.lt.s32.totalorder %s307, 15
      %s311 = scalar_select %p310, %s307, 15
      %s312 = smul.addr %s311, 2
      %s313 = smul.addr %s309, 32
      %s314 = sadd.s32 %s312, %s313
      %s315 = smul.addr %s314, 8
      %s316 = scalar_lea.vmem %s7, %s315
      %s317 = smul.u32 8, %s23
      %s319 = smul.u32 %s23, 8
      %v320 = vld [vmem:[%s4] sm:$0x7]
      %s321 = sadd.s32 %s319, 4
      %s322 = smul.u32 %s321, 3
      %s323 = smul.addr %s322, 4
      %s324 = scalar_lea.vmem %s303, %s323
      %v325 = vld [vmem:[%s324] sm:$0xc]
      %v326 = vld [vmem:[%s324 + $0x4] sm:$0xf]
      %v327 = vld [vmem:[%s324 + $0x8] sm:$0x3]
      %v328 = vld [vmem:[%s324 + $0xc] sm:$0xc]
      %v329 = vld [vmem:[%s324 + $0x10] sm:$0xf]
      %v330 = vld [vmem:[%s324 + $0x14] sm:$0x3]
      %v331 = vld [vmem:[%s324 + $0x18] sm:$0xc]
      %v332 = vld [vmem:[%s324 + $0x1c] sm:$0xf]
      %v333 = vld [vmem:[%s324 + $0x20] sm:$0x3]
      %v334 = vld [vmem:[%s324 + $0x24] sm:$0xc]
      %v335 = vld [vmem:[%s324 + $0x28] sm:$0xf]
      %v336 = vld [vmem:[%s324 + $0x2c] sm:$0x3]
      %v337 = vld [vmem:[%s324 + $0x30] sm:$0xc]
      %v338 = vld [vmem:[%s324 + $0x34] sm:$0xf]
      %v339 = vld [vmem:[%s324 + $0x38] sm:$0x3]
      %v340 = vld [vmem:[%s324 + $0x3c] sm:$0xc]
      %v341 = vld [vmem:[%s324 + $0x40] sm:$0xf]
      %v342 = vld [vmem:[%s324 + $0x44] sm:$0x3]
      %v343 = vld [vmem:[%s324 + $0x48] sm:$0xc]
      %v344 = vld [vmem:[%s324 + $0x4c] sm:$0xf]
      %v345 = vld [vmem:[%s324 + $0x50] sm:$0x3]
      %v346 = vld [vmem:[%s324 + $0x54] sm:$0xc]
      %v347 = vld [vmem:[%s324 + $0x58] sm:$0xf]
      %v348 = vld [vmem:[%s324 + $0x5c] sm:$0x3]
      %vm373 = vcmask 1041408
      %vm374 = vcmask 1045508
      %vm375 = vmor %vm373, %vm374
      %v376 = vrot.slane %v325, 6
      %v377 = vrot.slane %v376, 4
      %v378 = vrot.slane %v326, 6
      %v379 = vsel %vm375, %v377, %v378
      %v380 = vrot.slane %v378, 4
      %v381 = vrot.slane %v327, 6
      %v382 = vsel %vm375, %v380, %v381
      %v383 = vrot.slane %v328, 6
      %v384 = vrot.slane %v383, 4
      %v385 = vrot.slane %v329, 6
      %v386 = vsel %vm375, %v384, %v385
      %v387 = vrot.slane %v385, 4
      %v388 = vrot.slane %v330, 6
      %v389 = vsel %vm375, %v387, %v388
      %v390 = vrot.slane %v331, 6
      %v391 = vrot.slane %v390, 4
      %v392 = vrot.slane %v332, 6
      %v393 = vsel %vm375, %v391, %v392
      %v394 = vrot.slane %v392, 4
      %v395 = vrot.slane %v333, 6
      %v396 = vsel %vm375, %v394, %v395
      %v397 = vrot.slane %v334, 6
      %v398 = vrot.slane %v397, 4
      %v399 = vrot.slane %v335, 6
      %v400 = vsel %vm375, %v398, %v399
      %v401 = vrot.slane %v399, 4
      %v402 = vrot.slane %v336, 6
      %v403 = vsel %vm375, %v401, %v402
      %v404 = vrot.slane %v337, 6
      %v405 = vrot.slane %v404, 4
      %v406 = vrot.slane %v338, 6
      %v407 = vsel %vm375, %v405, %v406
      %v408 = vrot.slane %v406, 4
      %v409 = vrot.slane %v339, 6
      %v410 = vsel %vm375, %v408, %v409
      %v411 = vrot.slane %v340, 6
      %v412 = vrot.slane %v411, 4
      %v413 = vrot.slane %v341, 6
      %v414 = vsel %vm375, %v412, %v413
      %v415 = vrot.slane %v413, 4
      %v416 = vrot.slane %v342, 6
      %v417 = vsel %vm375, %v415, %v416
      %v418 = vrot.slane %v343, 6
      %v419 = vrot.slane %v418, 4
      %v420 = vrot.slane %v344, 6
      %v421 = vsel %vm375, %v419, %v420
      %v422 = vrot.slane %v420, 4
      %v423 = vrot.slane %v345, 6
      %v424 = vsel %vm375, %v422, %v423
      %v425 = vrot.slane %v346, 6
      %v426 = vrot.slane %v425, 4
      %v427 = vrot.slane %v347, 6
      %v428 = vsel %vm375, %v426, %v427
      %v429 = vrot.slane %v427, 4
      %v430 = vrot.slane %v348, 6
      %v431 = vsel %vm375, %v429, %v430
      %v432 = vld [vmem:[%s1] sm:$0x3]
      %v433 = vlaneseq
      %v434 = vshrl.u32 %v433, 7
      %v435 = vsub.s32 0, %v434
      %v436 = vrot.slane %v320, %v435
      %v437 = vunpack.c.l.b16 %v379
      %v438 = vunpack.c.l.b16 %v382
      %v439 = vunpack.c.l.b16 %v386
      %v440 = vunpack.c.l.b16 %v389
      %v441 = vunpack.c.l.b16 %v393
      %v442 = vunpack.c.l.b16 %v396
      %v443 = vunpack.c.l.b16 %v400
      %v444 = vunpack.c.l.b16 %v403
      %v445 = vunpack.c.l.b16 %v407
      %v446 = vunpack.c.l.b16 %v410
      %v447 = vunpack.c.l.b16 %v414
      %v448 = vunpack.c.l.b16 %v417
      %v449 = vunpack.c.l.b16 %v421
      %v450 = vunpack.c.l.b16 %v424
      %v451 = vunpack.c.l.b16 %v428
      %v452 = vunpack.c.l.b16 %v431
      %v453 = vpack.c.b16 %v438, %v437
      %v454 = vpack.c.b16 %v440, %v439
      %v455 = vpack.c.b16 %v442, %v441
      %v456 = vpack.c.b16 %v444, %v443
      %v457 = vpack.c.b16 %v446, %v445
      %v458 = vpack.c.b16 %v448, %v447
      %v459 = vpack.c.b16 %v450, %v449
      %v460 = vpack.c.b16 %v452, %v451
      %vm461 = vcmask 31744
      %v463 = vsel %vm461, %v453, 0
      %v466 = vsel %vm461, %v454, 0
      %v469 = vsel %vm461, %v455, 0
      %v472 = vsel %vm461, %v456, 0
      %v475 = vsel %vm461, %v457, 0
      %v478 = vsel %vm461, %v458, 0
      %v481 = vsel %vm461, %v459, 0
      %v484 = vsel %vm461, %v460, 0
      %vm486 = vcmask 1041408
      %v488 = vsel %vm486, %v432, 0
      %490 = vmatprep.subr.bf16.mxu0 0
      %491 = vmatpush1.bf16.msra.mxu0 %v488
      %492 = vmatprep.subr.bf16.mxu0 0
      %493 = vmatpush1.bf16.msra.mxu0 0
      %494 = vmatprep.subr.bf16.mxu0 0
      %495 = vmatpush1.bf16.msra.mxu0 0
      %496 = vmatprep.subr.bf16.mxu0 0
      %497 = vmatpush1.bf16.msra.mxu0 0
      %498 = vmatprep.subr.bf16.mxu0 0
      %499 = vmatpush1.bf16.msra.mxu0 0
      %500 = vmatprep.subr.bf16.mxu0 0
      %501 = vmatpush1.bf16.msra.mxu0 0
      %502 = vmatprep.subr.bf16.mxu0 0
      %503 = vmatpush1.bf16.msra.mxu0 0
      %504 = vmatprep.subr.bf16.mxu0 0
      %505 = vmatpush1.bf16.msra.mxu0 0
      %506 = vmatprep.subr.bf16.mxu0 0
      %507 = vmatpush1.bf16.msra.mxu0 0
      %508 = vmatprep.subr.bf16.mxu0 0
      %509 = vmatpush1.bf16.msra.mxu0 0
      %510 = vmatprep.subr.bf16.mxu0 0
      %511 = vmatpush1.bf16.msra.mxu0 0
      %512 = vmatprep.subr.bf16.mxu0 0
      %513 = vmatpush1.bf16.msra.mxu0 0
      %514 = vmatprep.subr.bf16.mxu0 0
      %515 = vmatpush1.bf16.msra.mxu0 0
      %516 = vmatprep.subr.bf16.mxu0 0
      %517 = vmatpush1.bf16.msra.mxu0 0
      %518 = vmatprep.subr.bf16.mxu0 0
      %519 = vmatpush1.bf16.msra.mxu0 0
      %520 = vmatprep.subr.bf16.mxu0 0
      %521 = vmatpush1.bf16.msra.mxu0 0
      %522 = vmatprep.mubr.bf16.mxu0 0
      %523 = vmatmul.mubr.bf16.gmra.mrb[0].mxu0 %v463
      %v524 = vpop.f32.mrb[0].mxu0
      %v525 = vadd.f32 %v436, %v524
      %v526 = vpop.f32.mrb[0].mxu0
      %v527 = vpop.f32.mrb[0].mxu0
      %v528 = vadd.f32 %v436, %v527
      %v529 = vpop.f32.mrb[0].mxu0
      %530 = vmatprep.mubr.bf16.mxu0 0
      %531 = vmatmul.mubr.bf16.gmra.mrb[0].mxu0 %v466
      %v532 = vpop.f32.mrb[0].mxu0
      %v533 = vadd.f32 %v436, %v532
      %v534 = vpop.f32.mrb[0].mxu0
      %v535 = vpop.f32.mrb[0].mxu0
      %v536 = vadd.f32 %v436, %v535
      %v537 = vpop.f32.mrb[0].mxu0
      %538 = vmatprep.mubr.bf16.mxu0 0
      %539 = vmatmul.mubr.bf16.gmra.mrb[0].mxu0 %v469
      %v540 = vpop.f32.mrb[0].mxu0
      %v541 = vadd.f32 %v436, %v540
      %v542 = vpop.f32.mrb[0].mxu0
      %v543 = vpop.f32.mrb[0].mxu0
      %v544 = vadd.f32 %v436, %v543
      %v545 = vpop.f32.mrb[0].mxu0
      %546 = vmatprep.mubr.bf16.mxu0 0
      %547 = vmatmul.mubr.bf16.gmra.mrb[0].mxu0 %v472
      %v548 = vpop.f32.mrb[0].mxu0
      %v549 = vadd.f32 %v436, %v548
      %v550 = vpop.f32.mrb[0].mxu0
      %v551 = vpop.f32.mrb[0].mxu0
      %v552 = vadd.f32 %v436, %v551
      %v553 = vpop.f32.mrb[0].mxu0
      %554 = vmatprep.mubr.bf16.mxu0 0
      %555 = vmatmul.mubr.bf16.gmra.mrb[0].mxu0 %v475
      %v556 = vpop.f32.mrb[0].mxu0
      %v557 = vadd.f32 %v436, %v556
      %v558 = vpop.f32.mrb[0].mxu0
      %v559 = vpop.f32.mrb[0].mxu0
      %v560 = vadd.f32 %v436, %v559
      %v561 = vpop.f32.mrb[0].mxu0
      %562 = vmatprep.mubr.bf16.mxu0 0
      %563 = vmatmul.mubr.bf16.gmra.mrb[0].mxu0 %v478
      %v564 = vpop.f32.mrb[0].mxu0
      %v565 = vadd.f32 %v436, %v564
      %v566 = vpop.f32.mrb[0].mxu0
      %v567 = vpop.f32.mrb[0].mxu0
      %v568 = vadd.f32 %v436, %v567
      %v569 = vpop.f32.mrb[0].mxu0
      %570 = vmatprep.mubr.bf16.mxu0 0
      %571 = vmatmul.mubr.bf16.gmra.mrb[0].mxu0 %v481
      %v572 = vpop.f32.mrb[0].mxu0
      %v573 = vadd.f32 %v436, %v572
      %v574 = vpop.f32.mrb[0].mxu0
      %v575 = vpop.f32.mrb[0].mxu0
      %v576 = vadd.f32 %v436, %v575
      %v577 = vpop.f32.mrb[0].mxu0
      %578 = vmatprep.mubr.bf16.mxu0 0
      %579 = vmatmul.mubr.bf16.gmra.mrb[0].mxu0 %v484
      %v580 = vpop.f32.mrb[0].mxu0
      %v581 = vadd.f32 %v436, %v580
      %v582 = vpop.f32.mrb[0].mxu0
      %v583 = vpop.f32.mrb[0].mxu0
      %v584 = vadd.f32 %v436, %v583
      %v585 = vpop.f32.mrb[0].mxu0
      %586 = vdwg.mxu0
      %v587 = vmax.f32 %v525, 0.0
      %v588 = vmax.f32 %v528, 0.0
      %v589 = vmax.f32 %v533, 0.0
      %v590 = vmax.f32 %v536, 0.0
      %v591 = vmax.f32 %v541, 0.0
      %v592 = vmax.f32 %v544, 0.0
      %v593 = vmax.f32 %v549, 0.0
      %v594 = vmax.f32 %v552, 0.0
      %v595 = vmax.f32 %v557, 0.0
      %v596 = vmax.f32 %v560, 0.0
      %v597 = vmax.f32 %v565, 0.0
      %v598 = vmax.f32 %v568, 0.0
      %v599 = vmax.f32 %v573, 0.0
      %v600 = vmax.f32 %v576, 0.0
      %v601 = vmax.f32 %v581, 0.0
      %v602 = vmax.f32 %v584, 0.0
      %v603 = vpack.c.bf16 %v588, %v587
      %v604 = vpack.c.bf16 %v590, %v589
      %v605 = vpack.c.bf16 %v592, %v591
      %v606 = vpack.c.bf16 %v594, %v593
      %v607 = vpack.c.bf16 %v596, %v595
      %v608 = vpack.c.bf16 %v598, %v597
      %v609 = vpack.c.bf16 %v600, %v599
      %v610 = vpack.c.bf16 %v602, %v601
      %v611 = vld [vmem:[%s3] sm:$0xf]
      %s612 = sadd.s32 %s319, 2
      %s613 = smul.u32 %s612, 3
      %s614 = smul.addr %s613, 4
      %s615 = scalar_lea.vmem %s303, %s614
      %v616 = vld [vmem:[%s615] sm:$0xe]
      %v617 = vld [vmem:[%s615 + $0x4] sm:$0xf]
      %v618 = vld [vmem:[%s615 + $0x8] sm:$0x1]
      %v619 = vld [vmem:[%s615 + $0xc] sm:$0xe]
      %v620 = vld [vmem:[%s615 + $0x10] sm:$0xf]
      %v621 = vld [vmem:[%s615 + $0x14] sm:$0x1]
      %v622 = vld [vmem:[%s615 + $0x18] sm:$0xe]
      %v623 = vld [vmem:[%s615 + $0x1c] sm:$0xf]
      %v624 = vld [vmem:[%s615 + $0x20] sm:$0x1]
      %v625 = vld [vmem:[%s615 + $0x24] sm:$0xe]
      %v626 = vld [vmem:[%s615 + $0x28] sm:$0xf]
      %v627 = vld [vmem:[%s615 + $0x2c] sm:$0x1]
      %v628 = vld [vmem:[%s615 + $0x30] sm:$0xe]
      %v629 = vld [vmem:[%s615 + $0x34] sm:$0xf]
      %v630 = vld [vmem:[%s615 + $0x38] sm:$0x1]
      %v631 = vld [vmem:[%s615 + $0x3c] sm:$0xe]
      %v632 = vld [vmem:[%s615 + $0x40] sm:$0xf]
      %v633 = vld [vmem:[%s615 + $0x44] sm:$0x1]
      %v634 = vld [vmem:[%s615 + $0x48] sm:$0xe]
      %v635 = vld [vmem:[%s615 + $0x4c] sm:$0xf]
      %v636 = vld [vmem:[%s615 + $0x50] sm:$0x1]
      %v637 = vld [vmem:[%s615 + $0x54] sm:$0xe]
      %v638 = vld [vmem:[%s615 + $0x58] sm:$0xf]
      %v639 = vld [vmem:[%s615 + $0x5c] sm:$0x1]
      %vm664 = vcmask 1042432
      %vm665 = vcmask 1046532
      %vm666 = vmor %vm664, %vm665
      %v667 = vrot.slane %v616, 5
      %v668 = vrot.slane %v667, 4
      %v669 = vrot.slane %v617, 5
      %v670 = vsel %vm666, %v668, %v669
      %v671 = vrot.slane %v669, 4
      %v672 = vrot.slane %v618, 5
      %v673 = vsel %vm666, %v671, %v672
      %v674 = vrot.slane %v619, 5
      %v675 = vrot.slane %v674, 4
      %v676 = vrot.slane %v620, 5
      %v677 = vsel %vm666, %v675, %v676
      %v678 = vrot.slane %v676, 4
      %v679 = vrot.slane %v621, 5
      %v680 = vsel %vm666, %v678, %v679
      %v681 = vrot.slane %v622, 5
      %v682 = vrot.slane %v681, 4
      %v683 = vrot.slane %v623, 5
      %v684 = vsel %vm666, %v682, %v683
      %v685 = vrot.slane %v683, 4
      %v686 = vrot.slane %v624, 5
      %v687 = vsel %vm666, %v685, %v686
      %v688 = vrot.slane %v625, 5
      %v689 = vrot.slane %v688, 4
      %v690 = vrot.slane %v626, 5
      %v691 = vsel %vm666, %v689, %v690
      %v692 = vrot.slane %v690, 4
      %v693 = vrot.slane %v627, 5
      %v694 = vsel %vm666, %v692, %v693
      %v695 = vrot.slane %v628, 5
      %v696 = vrot.slane %v695, 4
      %v697 = vrot.slane %v629, 5
      %v698 = vsel %vm666, %v696, %v697
      %v699 = vrot.slane %v697, 4
      %v700 = vrot.slane %v630, 5
      %v701 = vsel %vm666, %v699, %v700
      %v702 = vrot.slane %v631, 5
      %v703 = vrot.slane %v702, 4
      %v704 = vrot.slane %v632, 5
      %v705 = vsel %vm666, %v703, %v704
      %v706 = vrot.slane %v704, 4
      %v707 = vrot.slane %v633, 5
      %v708 = vsel %vm666, %v706, %v707
      %v709 = vrot.slane %v634, 5
      %v710 = vrot.slane %v709, 4
      %v711 = vrot.slane %v635, 5
      %v712 = vsel %vm666, %v710, %v711
      %v713 = vrot.slane %v711, 4
      %v714 = vrot.slane %v636, 5
      %v715 = vsel %vm666, %v713, %v714
      %v716 = vrot.slane %v637, 5
      %v717 = vrot.slane %v716, 4
      %v718 = vrot.slane %v638, 5
      %v719 = vsel %vm666, %v717, %v718
      %v720 = vrot.slane %v718, 4
      %v721 = vrot.slane %v639, 5
      %v722 = vsel %vm666, %v720, %v721
      %v723 = vunpack.c.l.b16 %v670
      %v724 = vunpack.c.l.b16 %v673
      %v725 = vunpack.c.l.b16 %v677
      %v726 = vunpack.c.l.b16 %v680
      %v727 = vunpack.c.l.b16 %v684
      %v728 = vunpack.c.l.b16 %v687
      %v729 = vunpack.c.l.b16 %v691
      %v730 = vunpack.c.l.b16 %v694
      %v731 = vunpack.c.l.b16 %v698
      %v732 = vunpack.c.l.b16 %v701
      %v733 = vunpack.c.l.b16 %v705
      %v734 = vunpack.c.l.b16 %v708
      %v735 = vunpack.c.l.b16 %v712
      %v736 = vunpack.c.l.b16 %v715
      %v737 = vunpack.c.l.b16 %v719
      %v738 = vunpack.c.l.b16 %v722
      %v739 = vpack.c.b16 %v724, %v723
      %v740 = vpack.c.b16 %v726, %v725
      %v741 = vpack.c.b16 %v728, %v727
      %v742 = vpack.c.b16 %v730, %v729
      %v743 = vpack.c.b16 %v732, %v731
      %v744 = vpack.c.b16 %v734, %v733
      %v745 = vpack.c.b16 %v736, %v735
      %v746 = vpack.c.b16 %v738, %v737
      %755 = vst.msk [vmem:[#allocation2] sm:$0xff] %vm461, %v739
      %756 = vst.msk [vmem:[#allocation2 + $0x8] sm:$0xff] %vm461, %v740
      %757 = vst.msk [vmem:[#allocation2 + $0x10] sm:$0xff] %vm461, %v741
      %758 = vst.msk [vmem:[#allocation2 + $0x18] sm:$0xff] %vm461, %v742
      %759 = vst.msk [vmem:[#allocation2 + $0x20] sm:$0xff] %vm461, %v743
      %760 = vst.msk [vmem:[#allocation2 + $0x28] sm:$0xff] %vm461, %v744
      %761 = vst.msk [vmem:[#allocation2 + $0x30] sm:$0xff] %vm461, %v745
      %762 = vst.msk [vmem:[#allocation2 + $0x38] sm:$0xff] %vm461, %v746
      %v763 = vld [vmem:[%s615] sm:$0xc]
      %v764 = vld [vmem:[%s615 + $0x4] sm:$0xf]
      %v765 = vld [vmem:[%s615 + $0x8] sm:$0x3]
      %v766 = vld [vmem:[%s615 + $0xc] sm:$0xc]
      %v767 = vld [vmem:[%s615 + $0x10] sm:$0xf]
      %v768 = vld [vmem:[%s615 + $0x14] sm:$0x3]
      %v769 = vld [vmem:[%s615 + $0x18] sm:$0xc]
      %v770 = vld [vmem:[%s615 + $0x1c] sm:$0xf]
      %v771 = vld [vmem:[%s615 + $0x20] sm:$0x3]
      %v772 = vld [vmem:[%s615 + $0x24] sm:$0xc]
      %v773 = vld [vmem:[%s615 + $0x28] sm:$0xf]
      %v774 = vld [vmem:[%s615 + $0x2c] sm:$0x3]
      %v775 = vld [vmem:[%s615 + $0x30] sm:$0xc]
      %v776 = vld [vmem:[%s615 + $0x34] sm:$0xf]
      %v777 = vld [vmem:[%s615 + $0x38] sm:$0x3]
      %v778 = vld [vmem:[%s615 + $0x3c] sm:$0xc]
      %v779 = vld [vmem:[%s615 + $0x40] sm:$0xf]
      %v780 = vld [vmem:[%s615 + $0x44] sm:$0x3]
      %v781 = vld [vmem:[%s615 + $0x48] sm:$0xc]
      %v782 = vld [vmem:[%s615 + $0x4c] sm:$0xf]
      %v783 = vld [vmem:[%s615 + $0x50] sm:$0x3]
      %v784 = vld [vmem:[%s615 + $0x54] sm:$0xc]
      %v785 = vld [vmem:[%s615 + $0x58] sm:$0xf]
      %v786 = vld [vmem:[%s615 + $0x5c] sm:$0x3]
      %v811 = vrot.slane %v763, 6
      %v812 = vrot.slane %v811, 4
      %v813 = vrot.slane %v764, 6
      %v814 = vsel %vm375, %v812, %v813
      %v815 = vrot.slane %v813, 4
      %v816 = vrot.slane %v765, 6
      %v817 = vsel %vm375, %v815, %v816
      %v818 = vrot.slane %v766, 6
      %v819 = vrot.slane %v818, 4
      %v820 = vrot.slane %v767, 6
      %v821 = vsel %vm375, %v819, %v820
      %v822 = vrot.slane %v820, 4
      %v823 = vrot.slane %v768, 6
      %v824 = vsel %vm375, %v822, %v823
      %v825 = vrot.slane %v769, 6
      %v826 = vrot.slane %v825, 4
      %v827 = vrot.slane %v770, 6
      %v828 = vsel %vm375, %v826, %v827
      %v829 = vrot.slane %v827, 4
      %v830 = vrot.slane %v771, 6
      %v831 = vsel %vm375, %v829, %v830
      %v832 = vrot.slane %v772, 6
      %v833 = vrot.slane %v832, 4
      %v834 = vrot.slane %v773, 6
      %v835 = vsel %vm375, %v833, %v834
      %v836 = vrot.slane %v834, 4
      %v837 = vrot.slane %v774, 6
      %v838 = vsel %vm375, %v836, %v837
      %v839 = vrot.slane %v775, 6
      %v840 = vrot.slane %v839, 4
      %v841 = vrot.slane %v776, 6
      %v842 = vsel %vm375, %v840, %v841
      %v843 = vrot.slane %v841, 4
      %v844 = vrot.slane %v777, 6
      %v845 = vsel %vm375, %v843, %v844
      %v846 = vrot.slane %v778, 6
      %v847 = vrot.slane %v846, 4
      %v848 = vrot.slane %v779, 6
      %v849 = vsel %vm375, %v847, %v848
      %v850 = vrot.slane %v848, 4
      %v851 = vrot.slane %v780, 6
      %v852 = vsel %vm375, %v850, %v851
      %v853 = vrot.slane %v781, 6
      %v854 = vrot.slane %v853, 4
      %v855 = vrot.slane %v782, 6
      %v856 = vsel %vm375, %v854, %v855
      %v857 = vrot.slane %v855, 4
      %v858 = vrot.slane %v783, 6
      %v859 = vsel %vm375, %v857, %v858
      %v860 = vrot.slane %v784, 6
      %v861 = vrot.slane %v860, 4
      %v862 = vrot.slane %v785, 6
      %v863 = vsel %vm375, %v861, %v862
      %v864 = vrot.slane %v862, 4
      %v865 = vrot.slane %v786, 6
      %v866 = vsel %vm375, %v864, %v865
      %v867 = vunpack.c.l.b16 %v814
      %v868 = vunpack.c.l.b16 %v817
      %v869 = vunpack.c.l.b16 %v821
      %v870 = vunpack.c.l.b16 %v824
      %v871 = vunpack.c.l.b16 %v828
      %v872 = vunpack.c.l.b16 %v831
      %v873 = vunpack.c.l.b16 %v835
      %v874 = vunpack.c.l.b16 %v838
      %v875 = vunpack.c.l.b16 %v842
      %v876 = vunpack.c.l.b16 %v845
      %v877 = vunpack.c.l.b16 %v849
      %v878 = vunpack.c.l.b16 %v852
      %v879 = vunpack.c.l.b16 %v856
      %v880 = vunpack.c.l.b16 %v859
      %v881 = vunpack.c.l.b16 %v863
      %v882 = vunpack.c.l.b16 %v866
      %v883 = vpack.c.b16 %v868, %v867
      %v884 = vpack.c.b16 %v870, %v869
      %v885 = vpack.c.b16 %v872, %v871
      %v886 = vpack.c.b16 %v874, %v873
      %v887 = vpack.c.b16 %v876, %v875
      %v888 = vpack.c.b16 %v878, %v877
      %v889 = vpack.c.b16 %v880, %v879
      %v890 = vpack.c.b16 %v882, %v881
      %891 = vrot.lane.b32.xlu0 %v883, 4
      %v892 = vpop.permute.xlu0 %891
      %893 = vrot.lane.b32.xlu0 %v884, 4
      %v894 = vpop.permute.xlu0 %893
      %895 = vrot.lane.b32.xlu0 %v885, 4
      %v896 = vpop.permute.xlu0 %895
      %897 = vrot.lane.b32.xlu0 %v886, 4
      %v898 = vpop.permute.xlu0 %897
      %899 = vrot.lane.b32.xlu0 %v887, 4
      %v900 = vpop.permute.xlu0 %899
      %901 = vrot.lane.b32.xlu0 %v888, 4
      %v902 = vpop.permute.xlu0 %901
      %903 = vrot.lane.b32.xlu0 %v889, 4
      %v904 = vpop.permute.xlu0 %903
      %905 = vrot.lane.b32.xlu0 %v890, 4
      %v906 = vpop.permute.xlu0 %905
      %vm915 = vcmask 64544
      %916 = vst.msk [vmem:[#allocation2] sm:$0xff] %vm915, %v892
      %917 = vst.msk [vmem:[#allocation2 + $0x8] sm:$0xff] %vm915, %v894
      %918 = vst.msk [vmem:[#allocation2 + $0x10] sm:$0xff] %vm915, %v896
      %919 = vst.msk [vmem:[#allocation2 + $0x18] sm:$0xff] %vm915, %v898
      %920 = vst.msk [vmem:[#allocation2 + $0x20] sm:$0xff] %vm915, %v900
      %921 = vst.msk [vmem:[#allocation2 + $0x28] sm:$0xff] %vm915, %v902
      %922 = vst.msk [vmem:[#allocation2 + $0x30] sm:$0xff] %vm915, %v904
      %923 = vst.msk [vmem:[#allocation2 + $0x38] sm:$0xff] %vm915, %v906
      %v924 = vld [vmem:[%s615] sm:$0x8]
      %v925 = vld [vmem:[%s615 + $0x4] sm:$0xf]
      %v926 = vld [vmem:[%s615 + $0x8] sm:$0x7]
      %v927 = vld [vmem:[%s615 + $0xc] sm:$0x8]
      %v928 = vld [vmem:[%s615 + $0x10] sm:$0xf]
      %v929 = vld [vmem:[%s615 + $0x14] sm:$0x7]
      %v930 = vld [vmem:[%s615 + $0x18] sm:$0x8]
      %v931 = vld [vmem:[%s615 + $0x1c] sm:$0xf]
      %v932 = vld [vmem:[%s615 + $0x20] sm:$0x7]
      %v933 = vld [vmem:[%s615 + $0x24] sm:$0x8]
      %v934 = vld [vmem:[%s615 + $0x28] sm:$0xf]
      %v935 = vld [vmem:[%s615 + $0x2c] sm:$0x7]
      %v936 = vld [vmem:[%s615 + $0x30] sm:$0x8]
      %v937 = vld [vmem:[%s615 + $0x34] sm:$0xf]
      %v938 = vld [vmem:[%s615 + $0x38] sm:$0x7]
      %v939 = vld [vmem:[%s615 + $0x3c] sm:$0x8]
      %v940 = vld [vmem:[%s615 + $0x40] sm:$0xf]
      %v941 = vld [vmem:[%s615 + $0x44] sm:$0x7]
      %v942 = vld [vmem:[%s615 + $0x48] sm:$0x8]
      %v943 = vld [vmem:[%s615 + $0x4c] sm:$0xf]
      %v944 = vld [vmem:[%s615 + $0x50] sm:$0x7]
      %v945 = vld [vmem:[%s615 + $0x54] sm:$0x8]
      %v946 = vld [vmem:[%s615 + $0x58] sm:$0xf]
      %v947 = vld [vmem:[%s615 + $0x5c] sm:$0x7]
      %vm972 = vcmask 1040384
      %vm973 = vcmask 1044484
      %vm974 = vmor %vm972, %vm973
      %v975 = vrot.slane %v924, 7
      %v976 = vrot.slane %v975, 4
      %v977 = vrot.slane %v925, 7
      %v978 = vsel %vm974, %v976, %v977
      %v979 = vrot.slane %v977, 4
      %v980 = vrot.slane %v926, 7
      %v981 = vsel %vm974, %v979, %v980
      %v982 = vrot.slane %v927, 7
      %v983 = vrot.slane %v982, 4
      %v984 = vrot.slane %v928, 7
      %v985 = vsel %vm974, %v983, %v984
      %v986 = vrot.slane %v984, 4
      %v987 = vrot.slane %v929, 7
      %v988 = vsel %vm974, %v986, %v987
      %v989 = vrot.slane %v930, 7
      %v990 = vrot.slane %v989, 4
      %v991 = vrot.slane %v931, 7
      %v992 = vsel %vm974, %v990, %v991
      %v993 = vrot.slane %v991, 4
      %v994 = vrot.slane %v932, 7
      %v995 = vsel %vm974, %v993, %v994
      %v996 = vrot.slane %v933, 7
      %v997 = vrot.slane %v996, 4
      %v998 = vrot.slane %v934, 7
      %v999 = vsel %vm974, %v997, %v998
      %v1000 = vrot.slane %v998, 4
      %v1001 = vrot.slane %v935, 7
      %v1002 = vsel %vm974, %v1000, %v1001
      %v1003 = vrot.slane %v936, 7
      %v1004 = vrot.slane %v1003, 4
      %v1005 = vrot.slane %v937, 7
      %v1006 = vsel %vm974, %v1004, %v1005
      %v1007 = vrot.slane %v1005, 4
      %v1008 = vrot.slane %v938, 7
      %v1009 = vsel %vm974, %v1007, %v1008
      %v1010 = vrot.slane %v939, 7
      %v1011 = vrot.slane %v1010, 4
      %v1012 = vrot.slane %v940, 7
      %v1013 = vsel %vm974, %v1011, %v1012
      %v1014 = vrot.slane %v1012, 4
      %v1015 = vrot.slane %v941, 7
      %v1016 = vsel %vm974, %v1014, %v1015
      %v1017 = vrot.slane %v942, 7
      %v1018 = vrot.slane %v1017, 4
      %v1019 = vrot.slane %v943, 7
      %v1020 = vsel %vm974, %v1018, %v1019
      %v1021 = vrot.slane %v1019, 4
      %v1022 = vrot.slane %v944, 7
      %v1023 = vsel %vm974, %v1021, %v1022
      %v1024 = vrot.slane %v945, 7
      %v1025 = vrot.slane %v1024, 4
      %v1026 = vrot.slane %v946, 7
      %v1027 = vsel %vm974, %v1025, %v1026
      %v1028 = vrot.slane %v1026, 4
      %v1029 = vrot.slane %v947, 7
      %v1030 = vsel %vm974, %v1028, %v1029
      %v1031 = vunpack.c.l.b16 %v978
      %v1032 = vunpack.c.l.b16 %v981
      %v1033 = vunpack.c.l.b16 %v985
      %v1034 = vunpack.c.l.b16 %v988
      %v1035 = vunpack.c.l.b16 %v992
      %v1036 = vunpack.c.l.b16 %v995
      %v1037 = vunpack.c.l.b16 %v999
      %v1038 = vunpack.c.l.b16 %v1002
      %v1039 = vunpack.c.l.b16 %v1006
      %v1040 = vunpack.c.l.b16 %v1009
      %v1041 = vunpack.c.l.b16 %v1013
      %v1042 = vunpack.c.l.b16 %v1016
      %v1043 = vunpack.c.l.b16 %v1020
      %v1044 = vunpack.c.l.b16 %v1023
      %v1045 = vunpack.c.l.b16 %v1027
      %v1046 = vunpack.c.l.b16 %v1030
      %v1047 = vpack.c.b16 %v1032, %v1031
      %v1048 = vpack.c.b16 %v1034, %v1033
      %v1049 = vpack.c.b16 %v1036, %v1035
      %v1050 = vpack.c.b16 %v1038, %v1037
      %v1051 = vpack.c.b16 %v1040, %v1039
      %v1052 = vpack.c.b16 %v1042, %v1041
      %v1053 = vpack.c.b16 %v1044, %v1043
      %v1054 = vpack.c.b16 %v1046, %v1045
      %1055 = vrot.lane.b32.xlu0 %v1047, 8
      %v1056 = vpop.permute.xlu0 %1055
      %1057 = vrot.lane.b32.xlu0 %v1048, 8
      %v1058 = vpop.permute.xlu0 %1057
      %1059 = vrot.lane.b32.xlu0 %v1049, 8
      %v1060 = vpop.permute.xlu0 %1059
      %1061 = vrot.lane.b32.xlu0 %v1050, 8
      %v1062 = vpop.permute.xlu0 %1061
      %1063 = vrot.lane.b32.xlu0 %v1051, 8
      %v1064 = vpop.permute.xlu0 %1063
      %1065 = vrot.lane.b32.xlu0 %v1052, 8
      %v1066 = vpop.permute.xlu0 %1065
      %1067 = vrot.lane.b32.xlu0 %v1053, 8
      %v1068 = vpop.permute.xlu0 %1067
      %1069 = vrot.lane.b32.xlu0 %v1054, 8
      %v1070 = vpop.permute.xlu0 %1069
      %vm1079 = vcmask 97344
      %1080 = vst.msk [vmem:[#allocation2] sm:$0xff] %vm1079, %v1056
      %1081 = vst.msk [vmem:[#allocation2 + $0x8] sm:$0xff] %vm1079, %v1058
      %1082 = vst.msk [vmem:[#allocation2 + $0x10] sm:$0xff] %vm1079, %v1060
      %1083 = vst.msk [vmem:[#allocation2 + $0x18] sm:$0xff] %vm1079, %v1062
      %1084 = vst.msk [vmem:[#allocation2 + $0x20] sm:$0xff] %vm1079, %v1064
      %1085 = vst.msk [vmem:[#allocation2 + $0x28] sm:$0xff] %vm1079, %v1066
      %1086 = vst.msk [vmem:[#allocation2 + $0x30] sm:$0xff] %vm1079, %v1068
      %1087 = vst.msk [vmem:[#allocation2 + $0x38] sm:$0xff] %vm1079, %v1070
      %v1088 = vld [vmem:[%s324] sm:$0xe]
      %v1089 = vld [vmem:[%s324 + $0x4] sm:$0xf]
      %v1090 = vld [vmem:[%s324 + $0x8] sm:$0x1]
      %v1091 = vld [vmem:[%s324 + $0xc] sm:$0xe]
      %v1092 = vld [vmem:[%s324 + $0x10] sm:$0xf]
      %v1093 = vld [vmem:[%s324 + $0x14] sm:$0x1]
      %v1094 = vld [vmem:[%s324 + $0x18] sm:$0xe]
      %v1095 = vld [vmem:[%s324 + $0x1c] sm:$0xf]
      %v1096 = vld [vmem:[%s324 + $0x20] sm:$0x1]
      %v1097 = vld [vmem:[%s324 + $0x24] sm:$0xe]
      %v1098 = vld [vmem:[%s324 + $0x28] sm:$0xf]
      %v1099 = vld [vmem:[%s324 + $0x2c] sm:$0x1]
      %v1100 = vld [vmem:[%s324 + $0x30] sm:$0xe]
      %v1101 = vld [vmem:[%s324 + $0x34] sm:$0xf]
      %v1102 = vld [vmem:[%s324 + $0x38] sm:$0x1]
      %v1103 = vld [vmem:[%s324 + $0x3c] sm:$0xe]
      %v1104 = vld [vmem:[%s324 + $0x40] sm:$0xf]
      %v1105 = vld [vmem:[%s324 + $0x44] sm:$0x1]
      %v1106 = vld [vmem:[%s324 + $0x48] sm:$0xe]
      %v1107 = vld [vmem:[%s324 + $0x4c] sm:$0xf]
      %v1108 = vld [vmem:[%s324 + $0x50] sm:$0x1]
      %v1109 = vld [vmem:[%s324 + $0x54] sm:$0xe]
      %v1110 = vld [vmem:[%s324 + $0x58] sm:$0xf]
      %v1111 = vld [vmem:[%s324 + $0x5c] sm:$0x1]
      %v1136 = vrot.slane %v1088, 5
      %v1137 = vrot.slane %v1136, 4
      %v1138 = vrot.slane %v1089, 5
      %v1139 = vsel %vm666, %v1137, %v1138
      %v1140 = vrot.slane %v1138, 4
      %v1141 = vrot.slane %v1090, 5
      %v1142 = vsel %vm666, %v1140, %v1141
      %v1143 = vrot.slane %v1091, 5
      %v1144 = vrot.slane %v1143, 4
      %v1145 = vrot.slane %v1092, 5
      %v1146 = vsel %vm666, %v1144, %v1145
      %v1147 = vrot.slane %v1145, 4
      %v1148 = vrot.slane %v1093, 5
      %v1149 = vsel %vm666, %v1147, %v1148
      %v1150 = vrot.slane %v1094, 5
      %v1151 = vrot.slane %v1150, 4
      %v1152 = vrot.slane %v1095, 5
      %v1153 = vsel %vm666, %v1151, %v1152
      %v1154 = vrot.slane %v1152, 4
      %v1155 = vrot.slane %v1096, 5
      %v1156 = vsel %vm666, %v1154, %v1155
      %v1157 = vrot.slane %v1097, 5
      %v1158 = vrot.slane %v1157, 4
      %v1159 = vrot.slane %v1098, 5
      %v1160 = vsel %vm666, %v1158, %v1159
      %v1161 = vrot.slane %v1159, 4
      %v1162 = vrot.slane %v1099, 5
      %v1163 = vsel %vm666, %v1161, %v1162
      %v1164 = vrot.slane %v1100, 5
      %v1165 = vrot.slane %v1164, 4
      %v1166 = vrot.slane %v1101, 5
      %v1167 = vsel %vm666, %v1165, %v1166
      %v1168 = vrot.slane %v1166, 4
      %v1169 = vrot.slane %v1102, 5
      %v1170 = vsel %vm666, %v1168, %v1169
      %v1171 = vrot.slane %v1103, 5
      %v1172 = vrot.slane %v1171, 4
      %v1173 = vrot.slane %v1104, 5
      %v1174 = vsel %vm666, %v1172, %v1173
      %v1175 = vrot.slane %v1173, 4
      %v1176 = vrot.slane %v1105, 5
      %v1177 = vsel %vm666, %v1175, %v1176
      %v1178 = vrot.slane %v1106, 5
      %v1179 = vrot.slane %v1178, 4
      %v1180 = vrot.slane %v1107, 5
      %v1181 = vsel %vm666, %v1179, %v1180
      %v1182 = vrot.slane %v1180, 4
      %v1183 = vrot.slane %v1108, 5
      %v1184 = vsel %vm666, %v1182, %v1183
      %v1185 = vrot.slane %v1109, 5
      %v1186 = vrot.slane %v1185, 4
      %v1187 = vrot.slane %v1110, 5
      %v1188 = vsel %vm666, %v1186, %v1187
      %v1189 = vrot.slane %v1187, 4
      %v1190 = vrot.slane %v1111, 5
      %v1191 = vsel %vm666, %v1189, %v1190
      %v1192 = vunpack.c.l.b16 %v1139
      %v1193 = vunpack.c.l.b16 %v1142
      %v1194 = vunpack.c.l.b16 %v1146
      %v1195 = vunpack.c.l.b16 %v1149
      %v1196 = vunpack.c.l.b16 %v1153
      %v1197 = vunpack.c.l.b16 %v1156
      %v1198 = vunpack.c.l.b16 %v1160
      %v1199 = vunpack.c.l.b16 %v1163
      %v1200 = vunpack.c.l.b16 %v1167
      %v1201 = vunpack.c.l.b16 %v1170
      %v1202 = vunpack.c.l.b16 %v1174
      %v1203 = vunpack.c.l.b16 %v1177
      %v1204 = vunpack.c.l.b16 %v1181
      %v1205 = vunpack.c.l.b16 %v1184
      %v1206 = vunpack.c.l.b16 %v1188
      %v1207 = vunpack.c.l.b16 %v1191
      %v1208 = vpack.c.b16 %v1193, %v1192
      %v1209 = vpack.c.b16 %v1195, %v1194
      %v1210 = vpack.c.b16 %v1197, %v1196
      %v1211 = vpack.c.b16 %v1199, %v1198
      %v1212 = vpack.c.b16 %v1201, %v1200
      %v1213 = vpack.c.b16 %v1203, %v1202
      %v1214 = vpack.c.b16 %v1205, %v1204
      %v1215 = vpack.c.b16 %v1207, %v1206
      %1216 = vrot.lane.b32.xlu0 %v1208, 12
      %v1217 = vpop.permute.xlu0 %1216
      %1218 = vrot.lane.b32.xlu0 %v1209, 12
      %v1219 = vpop.permute.xlu0 %1218
      %1220 = vrot.lane.b32.xlu0 %v1210, 12
      %v1221 = vpop.permute.xlu0 %1220
      %1222 = vrot.lane.b32.xlu0 %v1211, 12
      %v1223 = vpop.permute.xlu0 %1222
      %1224 = vrot.lane.b32.xlu0 %v1212, 12
      %v1225 = vpop.permute.xlu0 %1224
      %1226 = vrot.lane.b32.xlu0 %v1213, 12
      %v1227 = vpop.permute.xlu0 %1226
      %1228 = vrot.lane.b32.xlu0 %v1214, 12
      %v1229 = vpop.permute.xlu0 %1228
      %1230 = vrot.lane.b32.xlu0 %v1215, 12
      %v1231 = vpop.permute.xlu0 %1230
      %vm1240 = vcmask 130144
      %1241 = vst.msk [vmem:[#allocation2] sm:$0xff] %vm1240, %v1217
      %1242 = vst.msk [vmem:[#allocation2 + $0x8] sm:$0xff] %vm1240, %v1219
      %1243 = vst.msk [vmem:[#allocation2 + $0x10] sm:$0xff] %vm1240, %v1221
      %1244 = vst.msk [vmem:[#allocation2 + $0x18] sm:$0xff] %vm1240, %v1223
      %1245 = vst.msk [vmem:[#allocation2 + $0x20] sm:$0xff] %vm1240, %v1225
      %1246 = vst.msk [vmem:[#allocation2 + $0x28] sm:$0xff] %vm1240, %v1227
      %1247 = vst.msk [vmem:[#allocation2 + $0x30] sm:$0xff] %vm1240, %v1229
      %1248 = vst.msk [vmem:[#allocation2 + $0x38] sm:$0xff] %vm1240, %v1231
      %v1249 = vld [vmem:[%s324] sm:$0xc]
      %v1250 = vld [vmem:[%s324 + $0x4] sm:$0xf]
      %v1251 = vld [vmem:[%s324 + $0x8] sm:$0x3]
      %v1252 = vld [vmem:[%s324 + $0xc] sm:$0xc]
      %v1253 = vld [vmem:[%s324 + $0x10] sm:$0xf]
      %v1254 = vld [vmem:[%s324 + $0x14] sm:$0x3]
      %v1255 = vld [vmem:[%s324 + $0x18] sm:$0xc]
      %v1256 = vld [vmem:[%s324 + $0x1c] sm:$0xf]
      %v1257 = vld [vmem:[%s324 + $0x20] sm:$0x3]
      %v1258 = vld [vmem:[%s324 + $0x24] sm:$0xc]
      %v1259 = vld [vmem:[%s324 + $0x28] sm:$0xf]
      %v1260 = vld [vmem:[%s324 + $0x2c] sm:$0x3]
      %v1261 = vld [vmem:[%s324 + $0x30] sm:$0xc]
      %v1262 = vld [vmem:[%s324 + $0x34] sm:$0xf]
      %v1263 = vld [vmem:[%s324 + $0x38] sm:$0x3]
      %v1264 = vld [vmem:[%s324 + $0x3c] sm:$0xc]
      %v1265 = vld [vmem:[%s324 + $0x40] sm:$0xf]
      %v1266 = vld [vmem:[%s324 + $0x44] sm:$0x3]
      %v1267 = vld [vmem:[%s324 + $0x48] sm:$0xc]
      %v1268 = vld [vmem:[%s324 + $0x4c] sm:$0xf]
      %v1269 = vld [vmem:[%s324 + $0x50] sm:$0x3]
      %v1270 = vld [vmem:[%s324 + $0x54] sm:$0xc]
      %v1271 = vld [vmem:[%s324 + $0x58] sm:$0xf]
      %v1272 = vld [vmem:[%s324 + $0x5c] sm:$0x3]
      %v1297 = vrot.slane %v1249, 6
      %v1298 = vrot.slane %v1297, 4
      %v1299 = vrot.slane %v1250, 6
      %v1300 = vsel %vm375, %v1298, %v1299
      %v1301 = vrot.slane %v1299, 4
      %v1302 = vrot.slane %v1251, 6
      %v1303 = vsel %vm375, %v1301, %v1302
      %v1304 = vrot.slane %v1252, 6
      %v1305 = vrot.slane %v1304, 4
      %v1306 = vrot.slane %v1253, 6
      %v1307 = vsel %vm375, %v1305, %v1306
      %v1308 = vrot.slane %v1306, 4
      %v1309 = vrot.slane %v1254, 6
      %v1310 = vsel %vm375, %v1308, %v1309
      %v1311 = vrot.slane %v1255, 6
      %v1312 = vrot.slane %v1311, 4
      %v1313 = vrot.slane %v1256, 6
      %v1314 = vsel %vm375, %v1312, %v1313
      %v1315 = vrot.slane %v1313, 4
      %v1316 = vrot.slane %v1257, 6
      %v1317 = vsel %vm375, %v1315, %v1316
      %v1318 = vrot.slane %v1258, 6
      %v1319 = vrot.slane %v1318, 4
      %v1320 = vrot.slane %v1259, 6
      %v1321 = vsel %vm375, %v1319, %v1320
      %v1322 = vrot.slane %v1320, 4
      %v1323 = vrot.slane %v1260, 6
      %v1324 = vsel %vm375, %v1322, %v1323
      %v1325 = vrot.slane %v1261, 6
      %v1326 = vrot.slane %v1325, 4
      %v1327 = vrot.slane %v1262, 6
      %v1328 = vsel %vm375, %v1326, %v1327
      %v1329 = vrot.slane %v1327, 4
      %v1330 = vrot.slane %v1263, 6
      %v1331 = vsel %vm375, %v1329, %v1330
      %v1332 = vrot.slane %v1264, 6
      %v1333 = vrot.slane %v1332, 4
      %v1334 = vrot.slane %v1265, 6
      %v1335 = vsel %vm375, %v1333, %v1334
      %v1336 = vrot.slane %v1334, 4
      %v1337 = vrot.slane %v1266, 6
      %v1338 = vsel %vm375, %v1336, %v1337
      %v1339 = vrot.slane %v1267, 6
      %v1340 = vrot.slane %v1339, 4
      %v1341 = vrot.slane %v1268, 6
      %v1342 = vsel %vm375, %v1340, %v1341
      %v1343 = vrot.slane %v1341, 4
      %v1344 = vrot.slane %v1269, 6
      %v1345 = vsel %vm375, %v1343, %v1344
      %v1346 = vrot.slane %v1270, 6
      %v1347 = vrot.slane %v1346, 4
      %v1348 = vrot.slane %v1271, 6
      %v1349 = vsel %vm375, %v1347, %v1348
      %v1350 = vrot.slane %v1348, 4
      %v1351 = vrot.slane %v1272, 6
      %v1352 = vsel %vm375, %v1350, %v1351
      %v1353 = vunpack.c.l.b16 %v1300
      %v1354 = vunpack.c.l.b16 %v1303
      %v1355 = vunpack.c.l.b16 %v1307
      %v1356 = vunpack.c.l.b16 %v1310
      %v1357 = vunpack.c.l.b16 %v1314
      %v1358 = vunpack.c.l.b16 %v1317
      %v1359 = vunpack.c.l.b16 %v1321
      %v1360 = vunpack.c.l.b16 %v1324
      %v1361 = vunpack.c.l.b16 %v1328
      %v1362 = vunpack.c.l.b16 %v1331
      %v1363 = vunpack.c.l.b16 %v1335
      %v1364 = vunpack.c.l.b16 %v1338
      %v1365 = vunpack.c.l.b16 %v1342
      %v1366 = vunpack.c.l.b16 %v1345
      %v1367 = vunpack.c.l.b16 %v1349
      %v1368 = vunpack.c.l.b16 %v1352
      %v1369 = vpack.c.b16 %v1354, %v1353
      %v1370 = vpack.c.b16 %v1356, %v1355
      %v1371 = vpack.c.b16 %v1358, %v1357
      %v1372 = vpack.c.b16 %v1360, %v1359
      %v1373 = vpack.c.b16 %v1362, %v1361
      %v1374 = vpack.c.b16 %v1364, %v1363
      %v1375 = vpack.c.b16 %v1366, %v1365
      %v1376 = vpack.c.b16 %v1368, %v1367
      %1377 = vrot.lane.b32.xlu0 %v1369, 16
      %v1378 = vpop.permute.xlu0 %1377
      %1379 = vrot.lane.b32.xlu0 %v1370, 16
      %v1380 = vpop.permute.xlu0 %1379
      %1381 = vrot.lane.b32.xlu0 %v1371, 16
      %v1382 = vpop.permute.xlu0 %1381
      %1383 = vrot.lane.b32.xlu0 %v1372, 16
      %v1384 = vpop.permute.xlu0 %1383
      %1385 = vrot.lane.b32.xlu0 %v1373, 16
      %v1386 = vpop.permute.xlu0 %1385
      %1387 = vrot.lane.b32.xlu0 %v1374, 16
      %v1388 = vpop.permute.xlu0 %1387
      %1389 = vrot.lane.b32.xlu0 %v1375, 16
      %v1390 = vpop.permute.xlu0 %1389
      %1391 = vrot.lane.b32.xlu0 %v1376, 16
      %v1392 = vpop.permute.xlu0 %1391
      %vm1401 = vcmask 162944
      %1402 = vst.msk [vmem:[#allocation2] sm:$0xff] %vm1401, %v1378
      %1403 = vst.msk [vmem:[#allocation2 + $0x8] sm:$0xff] %vm1401, %v1380
      %1404 = vst.msk [vmem:[#allocation2 + $0x10] sm:$0xff] %vm1401, %v1382
      %1405 = vst.msk [vmem:[#allocation2 + $0x18] sm:$0xff] %vm1401, %v1384
      %1406 = vst.msk [vmem:[#allocation2 + $0x20] sm:$0xff] %vm1401, %v1386
      %1407 = vst.msk [vmem:[#allocation2 + $0x28] sm:$0xff] %vm1401, %v1388
      %1408 = vst.msk [vmem:[#allocation2 + $0x30] sm:$0xff] %vm1401, %v1390
      %1409 = vst.msk [vmem:[#allocation2 + $0x38] sm:$0xff] %vm1401, %v1392
      %v1410 = vld [vmem:[%s324] sm:$0x8]
      %v1411 = vld [vmem:[%s324 + $0x4] sm:$0xf]
      %v1412 = vld [vmem:[%s324 + $0x8] sm:$0x7]
      %v1413 = vld [vmem:[%s324 + $0xc] sm:$0x8]
      %v1414 = vld [vmem:[%s324 + $0x10] sm:$0xf]
      %v1415 = vld [vmem:[%s324 + $0x14] sm:$0x7]
      %v1416 = vld [vmem:[%s324 + $0x18] sm:$0x8]
      %v1417 = vld [vmem:[%s324 + $0x1c] sm:$0xf]
      %v1418 = vld [vmem:[%s324 + $0x20] sm:$0x7]
      %v1419 = vld [vmem:[%s324 + $0x24] sm:$0x8]
      %v1420 = vld [vmem:[%s324 + $0x28] sm:$0xf]
      %v1421 = vld [vmem:[%s324 + $0x2c] sm:$0x7]
      %v1422 = vld [vmem:[%s324 + $0x30] sm:$0x8]
      %v1423 = vld [vmem:[%s324 + $0x34] sm:$0xf]
      %v1424 = vld [vmem:[%s324 + $0x38] sm:$0x7]
      %v1425 = vld [vmem:[%s324 + $0x3c] sm:$0x8]
      %v1426 = vld [vmem:[%s324 + $0x40] sm:$0xf]
      %v1427 = vld [vmem:[%s324 + $0x44] sm:$0x7]
      %v1428 = vld [vmem:[%s324 + $0x48] sm:$0x8]
      %v1429 = vld [vmem:[%s324 + $0x4c] sm:$0xf]
      %v1430 = vld [vmem:[%s324 + $0x50] sm:$0x7]
      %v1431 = vld [vmem:[%s324 + $0x54] sm:$0x8]
      %v1432 = vld [vmem:[%s324 + $0x58] sm:$0xf]
      %v1433 = vld [vmem:[%s324 + $0x5c] sm:$0x7]
      %v1458 = vrot.slane %v1410, 7
      %v1459 = vrot.slane %v1458, 4
      %v1460 = vrot.slane %v1411, 7
      %v1461 = vsel %vm974, %v1459, %v1460
      %v1462 = vrot.slane %v1460, 4
      %v1463 = vrot.slane %v1412, 7
      %v1464 = vsel %vm974, %v1462, %v1463
      %v1465 = vrot.slane %v1413, 7
      %v1466 = vrot.slane %v1465, 4
      %v1467 = vrot.slane %v1414, 7
      %v1468 = vsel %vm974, %v1466, %v1467
      %v1469 = vrot.slane %v1467, 4
      %v1470 = vrot.slane %v1415, 7
      %v1471 = vsel %vm974, %v1469, %v1470
      %v1472 = vrot.slane %v1416, 7
      %v1473 = vrot.slane %v1472, 4
      %v1474 = vrot.slane %v1417, 7
      %v1475 = vsel %vm974, %v1473, %v1474
      %v1476 = vrot.slane %v1474, 4
      %v1477 = vrot.slane %v1418, 7
      %v1478 = vsel %vm974, %v1476, %v1477
      %v1479 = vrot.slane %v1419, 7
      %v1480 = vrot.slane %v1479, 4
      %v1481 = vrot.slane %v1420, 7
      %v1482 = vsel %vm974, %v1480, %v1481
      %v1483 = vrot.slane %v1481, 4
      %v1484 = vrot.slane %v1421, 7
      %v1485 = vsel %vm974, %v1483, %v1484
      %v1486 = vrot.slane %v1422, 7
      %v1487 = vrot.slane %v1486, 4
      %v1488 = vrot.slane %v1423, 7
      %v1489 = vsel %vm974, %v1487, %v1488
      %v1490 = vrot.slane %v1488, 4
      %v1491 = vrot.slane %v1424, 7
      %v1492 = vsel %vm974, %v1490, %v1491
      %v1493 = vrot.slane %v1425, 7
      %v1494 = vrot.slane %v1493, 4
      %v1495 = vrot.slane %v1426, 7
      %v1496 = vsel %vm974, %v1494, %v1495
      %v1497 = vrot.slane %v1495, 4
      %v1498 = vrot.slane %v1427, 7
      %v1499 = vsel %vm974, %v1497, %v1498
      %v1500 = vrot.slane %v1428, 7
      %v1501 = vrot.slane %v1500, 4
      %v1502 = vrot.slane %v1429, 7
      %v1503 = vsel %vm974, %v1501, %v1502
      %v1504 = vrot.slane %v1502, 4
      %v1505 = vrot.slane %v1430, 7
      %v1506 = vsel %vm974, %v1504, %v1505
      %v1507 = vrot.slane %v1431, 7
      %v1508 = vrot.slane %v1507, 4
      %v1509 = vrot.slane %v1432, 7
      %v1510 = vsel %vm974, %v1508, %v1509
      %v1511 = vrot.slane %v1509, 4
      %v1512 = vrot.slane %v1433, 7
      %v1513 = vsel %vm974, %v1511, %v1512
      %v1514 = vunpack.c.l.b16 %v1461
      %v1515 = vunpack.c.l.b16 %v1464
      %v1516 = vunpack.c.l.b16 %v1468
      %v1517 = vunpack.c.l.b16 %v1471
      %v1518 = vunpack.c.l.b16 %v1475
      %v1519 = vunpack.c.l.b16 %v1478
      %v1520 = vunpack.c.l.b16 %v1482
      %v1521 = vunpack.c.l.b16 %v1485
      %v1522 = vunpack.c.l.b16 %v1489
      %v1523 = vunpack.c.l.b16 %v1492
      %v1524 = vunpack.c.l.b16 %v1496
      %v1525 = vunpack.c.l.b16 %v1499
      %v1526 = vunpack.c.l.b16 %v1503
      %v1527 = vunpack.c.l.b16 %v1506
      %v1528 = vunpack.c.l.b16 %v1510
      %v1529 = vunpack.c.l.b16 %v1513
      %v1530 = vpack.c.b16 %v1515, %v1514
      %v1531 = vpack.c.b16 %v1517, %v1516
      %v1532 = vpack.c.b16 %v1519, %v1518
      %v1533 = vpack.c.b16 %v1521, %v1520
      %v1534 = vpack.c.b16 %v1523, %v1522
      %v1535 = vpack.c.b16 %v1525, %v1524
      %v1536 = vpack.c.b16 %v1527, %v1526
      %v1537 = vpack.c.b16 %v1529, %v1528
      %1538 = vrot.lane.b32.xlu0 %v1530, 20
      %v1539 = vpop.permute.xlu0 %1538
      %1540 = vrot.lane.b32.xlu0 %v1531, 20
      %v1541 = vpop.permute.xlu0 %1540
      %1542 = vrot.lane.b32.xlu0 %v1532, 20
      %v1543 = vpop.permute.xlu0 %1542
      %1544 = vrot.lane.b32.xlu0 %v1533, 20
      %v1545 = vpop.permute.xlu0 %1544
      %1546 = vrot.lane.b32.xlu0 %v1534, 20
      %v1547 = vpop.permute.xlu0 %1546
      %1548 = vrot.lane.b32.xlu0 %v1535, 20
      %v1549 = vpop.permute.xlu0 %1548
      %1550 = vrot.lane.b32.xlu0 %v1536, 20
      %v1551 = vpop.permute.xlu0 %1550
      %1552 = vrot.lane.b32.xlu0 %v1537, 20
      %v1553 = vpop.permute.xlu0 %1552
      %vm1562 = vcmask 195744
      %1563 = vst.msk [vmem:[#allocation2] sm:$0xff] %vm1562, %v1539
      %1564 = vst.msk [vmem:[#allocation2 + $0x8] sm:$0xff] %vm1562, %v1541
      %1565 = vst.msk [vmem:[#allocation2 + $0x10] sm:$0xff] %vm1562, %v1543
      %1566 = vst.msk [vmem:[#allocation2 + $0x18] sm:$0xff] %vm1562, %v1545
      %1567 = vst.msk [vmem:[#allocation2 + $0x20] sm:$0xff] %vm1562, %v1547
      %1568 = vst.msk [vmem:[#allocation2 + $0x28] sm:$0xff] %vm1562, %v1549
      %1569 = vst.msk [vmem:[#allocation2 + $0x30] sm:$0xff] %vm1562, %v1551
      %1570 = vst.msk [vmem:[#allocation2 + $0x38] sm:$0xff] %vm1562, %v1553
      %s1571 = sadd.s32 %s319, 6
      %s1572 = smul.u32 %s1571, 3
      %s1573 = smul.addr %s1572, 4
      %s1574 = scalar_lea.vmem %s303, %s1573
      %v1575 = vld [vmem:[%s1574] sm:$0xe]
      %v1576 = vld [vmem:[%s1574 + $0x4] sm:$0xf]
      %v1577 = vld [vmem:[%s1574 + $0x8] sm:$0x1]
      %v1578 = vld [vmem:[%s1574 + $0xc] sm:$0xe]
      %v1579 = vld [vmem:[%s1574 + $0x10] sm:$0xf]
      %v1580 = vld [vmem:[%s1574 + $0x14] sm:$0x1]
      %v1581 = vld [vmem:[%s1574 + $0x18] sm:$0xe]
      %v1582 = vld [vmem:[%s1574 + $0x1c] sm:$0xf]
      %v1583 = vld [vmem:[%s1574 + $0x20] sm:$0x1]
      %v1584 = vld [vmem:[%s1574 + $0x24] sm:$0xe]
      %v1585 = vld [vmem:[%s1574 + $0x28] sm:$0xf]
      %v1586 = vld [vmem:[%s1574 + $0x2c] sm:$0x1]
      %v1587 = vld [vmem:[%s1574 + $0x30] sm:$0xe]
      %v1588 = vld [vmem:[%s1574 + $0x34] sm:$0xf]
      %v1589 = vld [vmem:[%s1574 + $0x38] sm:$0x1]
      %v1590 = vld [vmem:[%s1574 + $0x3c] sm:$0xe]
      %v1591 = vld [vmem:[%s1574 + $0x40] sm:$0xf]
      %v1592 = vld [vmem:[%s1574 + $0x44] sm:$0x1]
      %v1593 = vld [vmem:[%s1574 + $0x48] sm:$0xe]
      %v1594 = vld [vmem:[%s1574 + $0x4c] sm:$0xf]
      %v1595 = vld [vmem:[%s1574 + $0x50] sm:$0x1]
      %v1596 = vld [vmem:[%s1574 + $0x54] sm:$0xe]
      %v1597 = vld [vmem:[%s1574 + $0x58] sm:$0xf]
      %v1598 = vld [vmem:[%s1574 + $0x5c] sm:$0x1]
      %v1623 = vrot.slane %v1575, 5
      %v1624 = vrot.slane %v1623, 4
      %v1625 = vrot.slane %v1576, 5
      %v1626 = vsel %vm666, %v1624, %v1625
      %v1627 = vrot.slane %v1625, 4
      %v1628 = vrot.slane %v1577, 5
      %v1629 = vsel %vm666, %v1627, %v1628
      %v1630 = vrot.slane %v1578, 5
      %v1631 = vrot.slane %v1630, 4
      %v1632 = vrot.slane %v1579, 5
      %v1633 = vsel %vm666, %v1631, %v1632
      %v1634 = vrot.slane %v1632, 4
      %v1635 = vrot.slane %v1580, 5
      %v1636 = vsel %vm666, %v1634, %v1635
      %v1637 = vrot.slane %v1581, 5
      %v1638 = vrot.slane %v1637, 4
      %v1639 = vrot.slane %v1582, 5
      %v1640 = vsel %vm666, %v1638, %v1639
      %v1641 = vrot.slane %v1639, 4
      %v1642 = vrot.slane %v1583, 5
      %v1643 = vsel %vm666, %v1641, %v1642
      %v1644 = vrot.slane %v1584, 5
      %v1645 = vrot.slane %v1644, 4
      %v1646 = vrot.slane %v1585, 5
      %v1647 = vsel %vm666, %v1645, %v1646
      %v1648 = vrot.slane %v1646, 4
      %v1649 = vrot.slane %v1586, 5
      %v1650 = vsel %vm666, %v1648, %v1649
      %v1651 = vrot.slane %v1587, 5
      %v1652 = vrot.slane %v1651, 4
      %v1653 = vrot.slane %v1588, 5
      %v1654 = vsel %vm666, %v1652, %v1653
      %v1655 = vrot.slane %v1653, 4
      %v1656 = vrot.slane %v1589, 5
      %v1657 = vsel %vm666, %v1655, %v1656
      %v1658 = vrot.slane %v1590, 5
      %v1659 = vrot.slane %v1658, 4
      %v1660 = vrot.slane %v1591, 5
      %v1661 = vsel %vm666, %v1659, %v1660
      %v1662 = vrot.slane %v1660, 4
      %v1663 = vrot.slane %v1592, 5
      %v1664 = vsel %vm666, %v1662, %v1663
      %v1665 = vrot.slane %v1593, 5
      %v1666 = vrot.slane %v1665, 4
      %v1667 = vrot.slane %v1594, 5
      %v1668 = vsel %vm666, %v1666, %v1667
      %v1669 = vrot.slane %v1667, 4
      %v1670 = vrot.slane %v1595, 5
      %v1671 = vsel %vm666, %v1669, %v1670
      %v1672 = vrot.slane %v1596, 5
      %v1673 = vrot.slane %v1672, 4
      %v1674 = vrot.slane %v1597, 5
      %v1675 = vsel %vm666, %v1673, %v1674
      %v1676 = vrot.slane %v1674, 4
      %v1677 = vrot.slane %v1598, 5
      %v1678 = vsel %vm666, %v1676, %v1677
      %v1679 = vunpack.c.l.b16 %v1626
      %v1680 = vunpack.c.l.b16 %v1629
      %v1681 = vunpack.c.l.b16 %v1633
      %v1682 = vunpack.c.l.b16 %v1636
      %v1683 = vunpack.c.l.b16 %v1640
      %v1684 = vunpack.c.l.b16 %v1643
      %v1685 = vunpack.c.l.b16 %v1647
      %v1686 = vunpack.c.l.b16 %v1650
      %v1687 = vunpack.c.l.b16 %v1654
      %v1688 = vunpack.c.l.b16 %v1657
      %v1689 = vunpack.c.l.b16 %v1661
      %v1690 = vunpack.c.l.b16 %v1664
      %v1691 = vunpack.c.l.b16 %v1668
      %v1692 = vunpack.c.l.b16 %v1671
      %v1693 = vunpack.c.l.b16 %v1675
      %v1694 = vunpack.c.l.b16 %v1678
      %v1695 = vpack.c.b16 %v1680, %v1679
      %v1696 = vpack.c.b16 %v1682, %v1681
      %v1697 = vpack.c.b16 %v1684, %v1683
      %v1698 = vpack.c.b16 %v1686, %v1685
      %v1699 = vpack.c.b16 %v1688, %v1687
      %v1700 = vpack.c.b16 %v1690, %v1689
      %v1701 = vpack.c.b16 %v1692, %v1691
      %v1702 = vpack.c.b16 %v1694, %v1693
      %1703 = vrot.lane.b32.xlu0 %v1695, 24
      %v1704 = vpop.permute.xlu0 %1703
      %1705 = vrot.lane.b32.xlu0 %v1696, 24
      %v1706 = vpop.permute.xlu0 %1705
      %1707 = vrot.lane.b32.xlu0 %v1697, 24
      %v1708 = vpop.permute.xlu0 %1707
      %1709 = vrot.lane.b32.xlu0 %v1698, 24
      %v1710 = vpop.permute.xlu0 %1709
      %1711 = vrot.lane.b32.xlu0 %v1699, 24
      %v1712 = vpop.permute.xlu0 %1711
      %1713 = vrot.lane.b32.xlu0 %v1700, 24
      %v1714 = vpop.permute.xlu0 %1713
      %1715 = vrot.lane.b32.xlu0 %v1701, 24
      %v1716 = vpop.permute.xlu0 %1715
      %1717 = vrot.lane.b32.xlu0 %v1702, 24
      %v1718 = vpop.permute.xlu0 %1717
      %vm1727 = vcmask 228544
      %1728 = vst.msk [vmem:[#allocation2] sm:$0xff] %vm1727, %v1704
      %1729 = vst.msk [vmem:[#allocation2 + $0x8] sm:$0xff] %vm1727, %v1706
      %1730 = vst.msk [vmem:[#allocation2 + $0x10] sm:$0xff] %vm1727, %v1708
      %1731 = vst.msk [vmem:[#allocation2 + $0x18] sm:$0xff] %vm1727, %v1710
      %1732 = vst.msk [vmem:[#allocation2 + $0x20] sm:$0xff] %vm1727, %v1712
      %1733 = vst.msk [vmem:[#allocation2 + $0x28] sm:$0xff] %vm1727, %v1714
      %1734 = vst.msk [vmem:[#allocation2 + $0x30] sm:$0xff] %vm1727, %v1716
      %1735 = vst.msk [vmem:[#allocation2 + $0x38] sm:$0xff] %vm1727, %v1718
      %v1736 = vld [vmem:[%s1574] sm:$0xc]
      %v1737 = vld [vmem:[%s1574 + $0x4] sm:$0xf]
      %v1738 = vld [vmem:[%s1574 + $0x8] sm:$0x3]
      %v1739 = vld [vmem:[%s1574 + $0xc] sm:$0xc]
      %v1740 = vld [vmem:[%s1574 + $0x10] sm:$0xf]
      %v1741 = vld [vmem:[%s1574 + $0x14] sm:$0x3]
      %v1742 = vld [vmem:[%s1574 + $0x18] sm:$0xc]
      %v1743 = vld [vmem:[%s1574 + $0x1c] sm:$0xf]
      %v1744 = vld [vmem:[%s1574 + $0x20] sm:$0x3]
      %v1745 = vld [vmem:[%s1574 + $0x24] sm:$0xc]
      %v1746 = vld [vmem:[%s1574 + $0x28] sm:$0xf]
      %v1747 = vld [vmem:[%s1574 + $0x2c] sm:$0x3]
      %v1748 = vld [vmem:[%s1574 + $0x30] sm:$0xc]
      %v1749 = vld [vmem:[%s1574 + $0x34] sm:$0xf]
      %v1750 = vld [vmem:[%s1574 + $0x38] sm:$0x3]
      %v1751 = vld [vmem:[%s1574 + $0x3c] sm:$0xc]
      %v1752 = vld [vmem:[%s1574 + $0x40] sm:$0xf]
      %v1753 = vld [vmem:[%s1574 + $0x44] sm:$0x3]
      %v1754 = vld [vmem:[%s1574 + $0x48] sm:$0xc]
      %v1755 = vld [vmem:[%s1574 + $0x4c] sm:$0xf]
      %v1756 = vld [vmem:[%s1574 + $0x50] sm:$0x3]
      %v1757 = vld [vmem:[%s1574 + $0x54] sm:$0xc]
      %v1758 = vld [vmem:[%s1574 + $0x58] sm:$0xf]
      %v1759 = vld [vmem:[%s1574 + $0x5c] sm:$0x3]
      %v1784 = vrot.slane %v1736, 6
      %v1785 = vrot.slane %v1784, 4
      %v1786 = vrot.slane %v1737, 6
      %v1787 = vsel %vm375, %v1785, %v1786
      %v1788 = vrot.slane %v1786, 4
      %v1789 = vrot.slane %v1738, 6
      %v1790 = vsel %vm375, %v1788, %v1789
      %v1791 = vrot.slane %v1739, 6
      %v1792 = vrot.slane %v1791, 4
      %v1793 = vrot.slane %v1740, 6
      %v1794 = vsel %vm375, %v1792, %v1793
      %v1795 = vrot.slane %v1793, 4
      %v1796 = vrot.slane %v1741, 6
      %v1797 = vsel %vm375, %v1795, %v1796
      %v1798 = vrot.slane %v1742, 6
      %v1799 = vrot.slane %v1798, 4
      %v1800 = vrot.slane %v1743, 6
      %v1801 = vsel %vm375, %v1799, %v1800
      %v1802 = vrot.slane %v1800, 4
      %v1803 = vrot.slane %v1744, 6
      %v1804 = vsel %vm375, %v1802, %v1803
      %v1805 = vrot.slane %v1745, 6
      %v1806 = vrot.slane %v1805, 4
      %v1807 = vrot.slane %v1746, 6
      %v1808 = vsel %vm375, %v1806, %v1807
      %v1809 = vrot.slane %v1807, 4
      %v1810 = vrot.slane %v1747, 6
      %v1811 = vsel %vm375, %v1809, %v1810
      %v1812 = vrot.slane %v1748, 6
      %v1813 = vrot.slane %v1812, 4
      %v1814 = vrot.slane %v1749, 6
      %v1815 = vsel %vm375, %v1813, %v1814
      %v1816 = vrot.slane %v1814, 4
      %v1817 = vrot.slane %v1750, 6
      %v1818 = vsel %vm375, %v1816, %v1817
      %v1819 = vrot.slane %v1751, 6
      %v1820 = vrot.slane %v1819, 4
      %v1821 = vrot.slane %v1752, 6
      %v1822 = vsel %vm375, %v1820, %v1821
      %v1823 = vrot.slane %v1821, 4
      %v1824 = vrot.slane %v1753, 6
      %v1825 = vsel %vm375, %v1823, %v1824
      %v1826 = vrot.slane %v1754, 6
      %v1827 = vrot.slane %v1826, 4
      %v1828 = vrot.slane %v1755, 6
      %v1829 = vsel %vm375, %v1827, %v1828
      %v1830 = vrot.slane %v1828, 4
      %v1831 = vrot.slane %v1756, 6
      %v1832 = vsel %vm375, %v1830, %v1831
      %v1833 = vrot.slane %v1757, 6
      %v1834 = vrot.slane %v1833, 4
      %v1835 = vrot.slane %v1758, 6
      %v1836 = vsel %vm375, %v1834, %v1835
      %v1837 = vrot.slane %v1835, 4
      %v1838 = vrot.slane %v1759, 6
      %v1839 = vsel %vm375, %v1837, %v1838
      %v1840 = vunpack.c.l.b16 %v1787
      %v1841 = vunpack.c.l.b16 %v1790
      %v1842 = vunpack.c.l.b16 %v1794
      %v1843 = vunpack.c.l.b16 %v1797
      %v1844 = vunpack.c.l.b16 %v1801
      %v1845 = vunpack.c.l.b16 %v1804
      %v1846 = vunpack.c.l.b16 %v1808
      %v1847 = vunpack.c.l.b16 %v1811
      %v1848 = vunpack.c.l.b16 %v1815
      %v1849 = vunpack.c.l.b16 %v1818
      %v1850 = vunpack.c.l.b16 %v1822
      %v1851 = vunpack.c.l.b16 %v1825
      %v1852 = vunpack.c.l.b16 %v1829
      %v1853 = vunpack.c.l.b16 %v1832
      %v1854 = vunpack.c.l.b16 %v1836
      %v1855 = vunpack.c.l.b16 %v1839
      %v1856 = vpack.c.b16 %v1841, %v1840
      %v1857 = vpack.c.b16 %v1843, %v1842
      %v1858 = vpack.c.b16 %v1845, %v1844
      %v1859 = vpack.c.b16 %v1847, %v1846
      %v1860 = vpack.c.b16 %v1849, %v1848
      %v1861 = vpack.c.b16 %v1851, %v1850
      %v1862 = vpack.c.b16 %v1853, %v1852
      %v1863 = vpack.c.b16 %v1855, %v1854
      %1864 = vrot.lane.b32.xlu0 %v1856, 28
      %v1865 = vpop.permute.xlu0 %1864
      %1866 = vrot.lane.b32.xlu0 %v1857, 28
      %v1867 = vpop.permute.xlu0 %1866
      %1868 = vrot.lane.b32.xlu0 %v1858, 28
      %v1869 = vpop.permute.xlu0 %1868
      %1870 = vrot.lane.b32.xlu0 %v1859, 28
      %v1871 = vpop.permute.xlu0 %1870
      %1872 = vrot.lane.b32.xlu0 %v1860, 28
      %v1873 = vpop.permute.xlu0 %1872
      %1874 = vrot.lane.b32.xlu0 %v1861, 28
      %v1875 = vpop.permute.xlu0 %1874
      %1876 = vrot.lane.b32.xlu0 %v1862, 28
      %v1877 = vpop.permute.xlu0 %1876
      %1878 = vrot.lane.b32.xlu0 %v1863, 28
      %v1879 = vpop.permute.xlu0 %1878
      %vm1888 = vcmask 261344
      %1889 = vst.msk [vmem:[#allocation2] sm:$0xff] %vm1888, %v1865
      %1890 = vst.msk [vmem:[#allocation2 + $0x8] sm:$0xff] %vm1888, %v1867
      %1891 = vst.msk [vmem:[#allocation2 + $0x10] sm:$0xff] %vm1888, %v1869
      %1892 = vst.msk [vmem:[#allocation2 + $0x18] sm:$0xff] %vm1888, %v1871
      %1893 = vst.msk [vmem:[#allocation2 + $0x20] sm:$0xff] %vm1888, %v1873
      %1894 = vst.msk [vmem:[#allocation2 + $0x28] sm:$0xff] %vm1888, %v1875
      %1895 = vst.msk [vmem:[#allocation2 + $0x30] sm:$0xff] %vm1888, %v1877
      %1896 = vst.msk [vmem:[#allocation2 + $0x38] sm:$0xff] %vm1888, %v1879
      %v1897 = vld [vmem:[%s1574] sm:$0x8]
      %v1898 = vld [vmem:[%s1574 + $0x4] sm:$0xf]
      %v1899 = vld [vmem:[%s1574 + $0x8] sm:$0x7]
      %v1900 = vld [vmem:[%s1574 + $0xc] sm:$0x8]
      %v1901 = vld [vmem:[%s1574 + $0x10] sm:$0xf]
      %v1902 = vld [vmem:[%s1574 + $0x14] sm:$0x7]
      %v1903 = vld [vmem:[%s1574 + $0x18] sm:$0x8]
      %v1904 = vld [vmem:[%s1574 + $0x1c] sm:$0xf]
      %v1905 = vld [vmem:[%s1574 + $0x20] sm:$0x7]
      %v1906 = vld [vmem:[%s1574 + $0x24] sm:$0x8]
      %v1907 = vld [vmem:[%s1574 + $0x28] sm:$0xf]
      %v1908 = vld [vmem:[%s1574 + $0x2c] sm:$0x7]
      %v1909 = vld [vmem:[%s1574 + $0x30] sm:$0x8]
      %v1910 = vld [vmem:[%s1574 + $0x34] sm:$0xf]
      %v1911 = vld [vmem:[%s1574 + $0x38] sm:$0x7]
      %v1912 = vld [vmem:[%s1574 + $0x3c] sm:$0x8]
      %v1913 = vld [vmem:[%s1574 + $0x40] sm:$0xf]
      %v1914 = vld [vmem:[%s1574 + $0x44] sm:$0x7]
      %v1915 = vld [vmem:[%s1574 + $0x48] sm:$0x8]
      %v1916 = vld [vmem:[%s1574 + $0x4c] sm:$0xf]
      %v1917 = vld [vmem:[%s1574 + $0x50] sm:$0x7]
      %v1918 = vld [vmem:[%s1574 + $0x54] sm:$0x8]
      %v1919 = vld [vmem:[%s1574 + $0x58] sm:$0xf]
      %v1920 = vld [vmem:[%s1574 + $0x5c] sm:$0x7]
      %v1945 = vrot.slane %v1897, 7
      %v1946 = vrot.slane %v1945, 4
      %v1947 = vrot.slane %v1898, 7
      %v1948 = vsel %vm974, %v1946, %v1947
      %v1949 = vrot.slane %v1947, 4
      %v1950 = vrot.slane %v1899, 7
      %v1951 = vsel %vm974, %v1949, %v1950
      %v1952 = vrot.slane %v1900, 7
      %v1953 = vrot.slane %v1952, 4
      %v1954 = vrot.slane %v1901, 7
      %v1955 = vsel %vm974, %v1953, %v1954
      %v1956 = vrot.slane %v1954, 4
      %v1957 = vrot.slane %v1902, 7
      %v1958 = vsel %vm974, %v1956, %v1957
      %v1959 = vrot.slane %v1903, 7
      %v1960 = vrot.slane %v1959, 4
      %v1961 = vrot.slane %v1904, 7
      %v1962 = vsel %vm974, %v1960, %v1961
      %v1963 = vrot.slane %v1961, 4
      %v1964 = vrot.slane %v1905, 7
      %v1965 = vsel %vm974, %v1963, %v1964
      %v1966 = vrot.slane %v1906, 7
      %v1967 = vrot.slane %v1966, 4
      %v1968 = vrot.slane %v1907, 7
      %v1969 = vsel %vm974, %v1967, %v1968
      %v1970 = vrot.slane %v1968, 4
      %v1971 = vrot.slane %v1908, 7
      %v1972 = vsel %vm974, %v1970, %v1971
      %v1973 = vrot.slane %v1909, 7
      %v1974 = vrot.slane %v1973, 4
      %v1975 = vrot.slane %v1910, 7
      %v1976 = vsel %vm974, %v1974, %v1975
      %v1977 = vrot.slane %v1975, 4
      %v1978 = vrot.slane %v1911, 7
      %v1979 = vsel %vm974, %v1977, %v1978
      %v1980 = vrot.slane %v1912, 7
      %v1981 = vrot.slane %v1980, 4
      %v1982 = vrot.slane %v1913, 7
      %v1983 = vsel %vm974, %v1981, %v1982
      %v1984 = vrot.slane %v1982, 4
      %v1985 = vrot.slane %v1914, 7
      %v1986 = vsel %vm974, %v1984, %v1985
      %v1987 = vrot.slane %v1915, 7
      %v1988 = vrot.slane %v1987, 4
      %v1989 = vrot.slane %v1916, 7
      %v1990 = vsel %vm974, %v1988, %v1989
      %v1991 = vrot.slane %v1989, 4
      %v1992 = vrot.slane %v1917, 7
      %v1993 = vsel %vm974, %v1991, %v1992
      %v1994 = vrot.slane %v1918, 7
      %v1995 = vrot.slane %v1994, 4
      %v1996 = vrot.slane %v1919, 7
      %v1997 = vsel %vm974, %v1995, %v1996
      %v1998 = vrot.slane %v1996, 4
      %v1999 = vrot.slane %v1920, 7
      %v2000 = vsel %vm974, %v1998, %v1999
      %v2001 = vunpack.c.l.b16 %v1948
      %v2002 = vunpack.c.l.b16 %v1951
      %v2003 = vunpack.c.l.b16 %v1955
      %v2004 = vunpack.c.l.b16 %v1958
      %v2005 = vunpack.c.l.b16 %v1962
      %v2006 = vunpack.c.l.b16 %v1965
      %v2007 = vunpack.c.l.b16 %v1969
      %v2008 = vunpack.c.l.b16 %v1972
      %v2009 = vunpack.c.l.b16 %v1976
      %v2010 = vunpack.c.l.b16 %v1979
      %v2011 = vunpack.c.l.b16 %v1983
      %v2012 = vunpack.c.l.b16 %v1986
      %v2013 = vunpack.c.l.b16 %v1990
      %v2014 = vunpack.c.l.b16 %v1993
      %v2015 = vunpack.c.l.b16 %v1997
      %v2016 = vunpack.c.l.b16 %v2000
      %v2017 = vpack.c.b16 %v2002, %v2001
      %v2018 = vpack.c.b16 %v2004, %v2003
      %v2019 = vpack.c.b16 %v2006, %v2005
      %v2020 = vpack.c.b16 %v2008, %v2007
      %v2021 = vpack.c.b16 %v2010, %v2009
      %v2022 = vpack.c.b16 %v2012, %v2011
      %v2023 = vpack.c.b16 %v2014, %v2013
      %v2024 = vpack.c.b16 %v2016, %v2015
      %2025 = vrot.lane.b32.xlu0 %v2017, 32
      %v2026 = vpop.permute.xlu0 %2025
      %2027 = vrot.lane.b32.xlu0 %v2018, 32
      %v2028 = vpop.permute.xlu0 %2027
      %2029 = vrot.lane.b32.xlu0 %v2019, 32
      %v2030 = vpop.permute.xlu0 %2029
      %2031 = vrot.lane.b32.xlu0 %v2020, 32
      %v2032 = vpop.permute.xlu0 %2031
      %2033 = vrot.lane.b32.xlu0 %v2021, 32
      %v2034 = vpop.permute.xlu0 %2033
      %2035 = vrot.lane.b32.xlu0 %v2022, 32
      %v2036 = vpop.permute.xlu0 %2035
      %2037 = vrot.lane.b32.xlu0 %v2023, 32
      %v2038 = vpop.permute.xlu0 %2037
      %2039 = vrot.lane.b32.xlu0 %v2024, 32
      %v2040 = vpop.permute.xlu0 %2039
      %vm2049 = vcmask 294144
      %2050 = vst.msk [vmem:[#allocation2] sm:$0xff] %vm2049, %v2026
      %2051 = vst.msk [vmem:[#allocation2 + $0x8] sm:$0xff] %vm2049, %v2028
      %2052 = vst.msk [vmem:[#allocation2 + $0x10] sm:$0xff] %vm2049, %v2030
      %2053 = vst.msk [vmem:[#allocation2 + $0x18] sm:$0xff] %vm2049, %v2032
      %2054 = vst.msk [vmem:[#allocation2 + $0x20] sm:$0xff] %vm2049, %v2034
      %2055 = vst.msk [vmem:[#allocation2 + $0x28] sm:$0xff] %vm2049, %v2036
      %2056 = vst.msk [vmem:[#allocation2 + $0x30] sm:$0xff] %vm2049, %v2038
      %2057 = vst.msk [vmem:[#allocation2 + $0x38] sm:$0xff] %vm2049, %v2040
      %v2058 = vld [vmem:[#allocation2] sm:$0xff]
      %v2059 = vld [vmem:[#allocation2 + $0x8] sm:$0xff]
      %v2060 = vld [vmem:[#allocation2 + $0x10] sm:$0xff]
      %v2061 = vld [vmem:[#allocation2 + $0x18] sm:$0xff]
      %v2062 = vld [vmem:[#allocation2 + $0x20] sm:$0xff]
      %v2063 = vld [vmem:[#allocation2 + $0x28] sm:$0xff]
      %v2064 = vld [vmem:[#allocation2 + $0x30] sm:$0xff]
      %v2065 = vld [vmem:[#allocation2 + $0x38] sm:$0xff]
      %v2066 = vld [vmem:[%s2] sm:$0xf]
      %v2067 = vld [vmem:[%s2 + $0x4] sm:$0xf]
      %v2068 = vld [vmem:[%s2 + $0x8] sm:$0xf]
      %v2069 = vld [vmem:[%s2 + $0xc] sm:$0xf]
      %v2070 = vld [vmem:[%s2 + $0x10] sm:$0x3]
      %v2071 = vlaneseq
      %v2072 = vshrl.u32 %v2071, 7
      %v2073 = vsub.s32 1, %v2072
      %v2074 = vrot.slane %v320, %v2073
      %v2080 = vunpack.c.l.b16 %v2066
      %v2081 = vunpack.c.l.b16 %v2067
      %v2082 = vunpack.c.l.b16 %v2068
      %v2083 = vunpack.c.l.b16 %v2069
      %v2084 = vunpack.c.l.b16 %v2070
      %v2085 = vpack.c.b16 %v2081, %v2080
      %v2086 = vpack.c.b16 %v2083, %v2082
      %v2087 = vpack.c.b16 %v2084, %v2084
      %vm2090 = vcmask 293888
      %v2092 = vsel %vm2090, %v2058, 0
      %v2095 = vsel %vm2090, %v2059, 0
      %v2098 = vsel %vm2090, %v2060, 0
      %v2101 = vsel %vm2090, %v2061, 0
      %v2104 = vsel %vm2090, %v2062, 0
      %v2107 = vsel %vm2090, %v2063, 0
      %v2110 = vsel %vm2090, %v2064, 0
      %v2113 = vsel %vm2090, %v2065, 0
      %v2116 = vsel %vm486, %v2087, 0
      %2118 = vmatprep.subr.bf16.mxu0 0
      %2119 = vmatpush1.bf16.msra.mxu0 %v2085
      %2120 = vmatprep.subr.bf16.mxu0 0
      %2121 = vmatpush1.bf16.msra.mxu0 %v2086
      %2122 = vmatprep.subr.bf16.mxu0 0
      %2123 = vmatpush1.bf16.msra.mxu0 %v2116
      %2124 = vmatprep.subr.bf16.mxu0 0
      %2125 = vmatpush1.bf16.msra.mxu0 0
      %2126 = vmatprep.subr.bf16.mxu0 0
      %2127 = vmatpush1.bf16.msra.mxu0 0
      %2128 = vmatprep.subr.bf16.mxu0 0
      %2129 = vmatpush1.bf16.msra.mxu0 0
      %2130 = vmatprep.subr.bf16.mxu0 0
      %2131 = vmatpush1.bf16.msra.mxu0 0
      %2132 = vmatprep.subr.bf16.mxu0 0
      %2133 = vmatpush1.bf16.msra.mxu0 0
      %2134 = vmatprep.subr.bf16.mxu0 0
      %2135 = vmatpush1.bf16.msra.mxu0 0
      %2136 = vmatprep.subr.bf16.mxu0 0
      %2137 = vmatpush1.bf16.msra.mxu0 0
      %2138 = vmatprep.subr.bf16.mxu0 0
      %2139 = vmatpush1.bf16.msra.mxu0 0
      %2140 = vmatprep.subr.bf16.mxu0 0
      %2141 = vmatpush1.bf16.msra.mxu0 0
      %2142 = vmatprep.subr.bf16.mxu0 0
      %2143 = vmatpush1.bf16.msra.mxu0 0
      %2144 = vmatprep.subr.bf16.mxu0 0
      %2145 = vmatpush1.bf16.msra.mxu0 0
      %2146 = vmatprep.subr.bf16.mxu0 0
      %2147 = vmatpush1.bf16.msra.mxu0 0
      %2148 = vmatprep.subr.bf16.mxu0 0
      %2149 = vmatpush1.bf16.msra.mxu0 0
      %2150 = vmatprep.mubr.bf16.mxu0 0
      %2151 = vmatmul.mubr.bf16.gmra.mrb[0].mxu0 %v2092
      %v2152 = vpop.f32.mrb[0].mxu0
      %v2153 = vadd.f32 %v2074, %v2152
      %v2154 = vpop.f32.mrb[0].mxu0
      %v2155 = vpop.f32.mrb[0].mxu0
      %v2156 = vadd.f32 %v2074, %v2155
      %v2157 = vpop.f32.mrb[0].mxu0
      %2158 = vmatprep.mubr.bf16.mxu0 0
      %2159 = vmatmul.mubr.bf16.gmra.mrb[0].mxu0 %v2095
      %v2160 = vpop.f32.mrb[0].mxu0
      %v2161 = vadd.f32 %v2074, %v2160
      %v2162 = vpop.f32.mrb[0].mxu0
      %v2163 = vpop.f32.mrb[0].mxu0
      %v2164 = vadd.f32 %v2074, %v2163
      %v2165 = vpop.f32.mrb[0].mxu0
      %2166 = vmatprep.mubr.bf16.mxu0 0
      %2167 = vmatmul.mubr.bf16.gmra.mrb[0].mxu0 %v2098
      %v2168 = vpop.f32.mrb[0].mxu0
      %v2169 = vadd.f32 %v2074, %v2168
      %v2170 = vpop.f32.mrb[0].mxu0
      %v2171 = vpop.f32.mrb[0].mxu0
      %v2172 = vadd.f32 %v2074, %v2171
      %v2173 = vpop.f32.mrb[0].mxu0
      %2174 = vmatprep.mubr.bf16.mxu0 0
      %2175 = vmatmul.mubr.bf16.gmra.mrb[0].mxu0 %v2101
      %v2176 = vpop.f32.mrb[0].mxu0
      %v2177 = vadd.f32 %v2074, %v2176
      %v2178 = vpop.f32.mrb[0].mxu0
      %v2179 = vpop.f32.mrb[0].mxu0
      %v2180 = vadd.f32 %v2074, %v2179
      %v2181 = vpop.f32.mrb[0].mxu0
      %2182 = vmatprep.mubr.bf16.mxu0 0
      %2183 = vmatmul.mubr.bf16.gmra.mrb[0].mxu0 %v2104
      %v2184 = vpop.f32.mrb[0].mxu0
      %v2185 = vadd.f32 %v2074, %v2184
      %v2186 = vpop.f32.mrb[0].mxu0
      %v2187 = vpop.f32.mrb[0].mxu0
      %v2188 = vadd.f32 %v2074, %v2187
      %v2189 = vpop.f32.mrb[0].mxu0
      %2190 = vmatprep.mubr.bf16.mxu0 0
      %2191 = vmatmul.mubr.bf16.gmra.mrb[0].mxu0 %v2107
      %v2192 = vpop.f32.mrb[0].mxu0
      %v2193 = vadd.f32 %v2074, %v2192
      %v2194 = vpop.f32.mrb[0].mxu0
      %v2195 = vpop.f32.mrb[0].mxu0
      %v2196 = vadd.f32 %v2074, %v2195
      %v2197 = vpop.f32.mrb[0].mxu0
      %2198 = vmatprep.mubr.bf16.mxu0 0
      %2199 = vmatmul.mubr.bf16.gmra.mrb[0].mxu0 %v2110
      %v2200 = vpop.f32.mrb[0].mxu0
      %v2201 = vadd.f32 %v2074, %v2200
      %v2202 = vpop.f32.mrb[0].mxu0
      %v2203 = vpop.f32.mrb[0].mxu0
      %v2204 = vadd.f32 %v2074, %v2203
      %v2205 = vpop.f32.mrb[0].mxu0
      %2206 = vmatprep.mubr.bf16.mxu0 0
      %2207 = vmatmul.mubr.bf16.gmra.mrb[0].mxu0 %v2113
      %v2208 = vpop.f32.mrb[0].mxu0
      %v2209 = vadd.f32 %v2074, %v2208
      %v2210 = vpop.f32.mrb[0].mxu0
      %v2211 = vpop.f32.mrb[0].mxu0
      %v2212 = vadd.f32 %v2074, %v2211
      %v2213 = vpop.f32.mrb[0].mxu0
      %2214 = vdwg.mxu0
      %v2215 = vmax.f32 %v2153, 0.0
      %v2216 = vmax.f32 %v2156, 0.0
      %v2217 = vmax.f32 %v2161, 0.0
      %v2218 = vmax.f32 %v2164, 0.0
      %v2219 = vmax.f32 %v2169, 0.0
      %v2220 = vmax.f32 %v2172, 0.0
      %v2221 = vmax.f32 %v2177, 0.0
      %v2222 = vmax.f32 %v2180, 0.0
      %v2223 = vmax.f32 %v2185, 0.0
      %v2224 = vmax.f32 %v2188, 0.0
      %v2225 = vmax.f32 %v2193, 0.0
      %v2226 = vmax.f32 %v2196, 0.0
      %v2227 = vmax.f32 %v2201, 0.0
      %v2228 = vmax.f32 %v2204, 0.0
      %v2229 = vmax.f32 %v2209, 0.0
      %v2230 = vmax.f32 %v2212, 0.0
      %v2231 = vpack.c.bf16 %v2216, %v2215
      %v2232 = vpack.c.bf16 %v2218, %v2217
      %v2233 = vpack.c.bf16 %v2220, %v2219
      %v2234 = vpack.c.bf16 %v2222, %v2221
      %v2235 = vpack.c.bf16 %v2224, %v2223
      %v2236 = vpack.c.bf16 %v2226, %v2225
      %v2237 = vpack.c.bf16 %v2228, %v2227
      %v2238 = vpack.c.bf16 %v2230, %v2229
      %v2239 = vld [vmem:[%s3 + $0x4] sm:$0xf]
      %vm2240 = vcmask 64512
      %v2242 = vsel %vm2240, %v2231, 0
      %v2245 = vsel %vm2240, %v2232, 0
      %v2248 = vsel %vm2240, %v2233, 0
      %v2251 = vsel %vm2240, %v2234, 0
      %v2254 = vsel %vm2240, %v2235, 0
      %v2257 = vsel %vm2240, %v2236, 0
      %v2260 = vsel %vm2240, %v2237, 0
      %v2263 = vsel %vm2240, %v2238, 0
      %vm2265 = vcmask 1043456
      %v2267 = vsel %vm2265, %v2239, 0
      %2269 = vmatprep.subr.bf16.mxu0 0
      %2270 = vmatpush1.bf16.msra.mxu0 %v2267
      %2271 = vmatprep.subr.bf16.mxu0 0
      %2272 = vmatpush1.bf16.msra.mxu0 0
      %2273 = vmatprep.subr.bf16.mxu0 0
      %2274 = vmatpush1.bf16.msra.mxu0 0
      %2275 = vmatprep.subr.bf16.mxu0 0
      %2276 = vmatpush1.bf16.msra.mxu0 0
      %2277 = vmatprep.subr.bf16.mxu0 0
      %2278 = vmatpush1.bf16.msra.mxu0 0
      %2279 = vmatprep.subr.bf16.mxu0 0
      %2280 = vmatpush1.bf16.msra.mxu0 0
      %2281 = vmatprep.subr.bf16.mxu0 0
      %2282 = vmatpush1.bf16.msra.mxu0 0
      %2283 = vmatprep.subr.bf16.mxu0 0
      %2284 = vmatpush1.bf16.msra.mxu0 0
      %2285 = vmatprep.subr.bf16.mxu0 0
      %2286 = vmatpush1.bf16.msra.mxu0 0
      %2287 = vmatprep.subr.bf16.mxu0 0
      %2288 = vmatpush1.bf16.msra.mxu0 0
      %2289 = vmatprep.subr.bf16.mxu0 0
      %2290 = vmatpush1.bf16.msra.mxu0 0
      %2291 = vmatprep.subr.bf16.mxu0 0
      %2292 = vmatpush1.bf16.msra.mxu0 0
      %2293 = vmatprep.subr.bf16.mxu0 0
      %2294 = vmatpush1.bf16.msra.mxu0 0
      %2295 = vmatprep.subr.bf16.mxu0 0
      %2296 = vmatpush1.bf16.msra.mxu0 0
      %2297 = vmatprep.subr.bf16.mxu0 0
      %2298 = vmatpush1.bf16.msra.mxu0 0
      %2299 = vmatprep.subr.bf16.mxu0 0
      %2300 = vmatpush1.bf16.msra.mxu0 0
      %2301 = vmatprep.mubr.bf16.mxu0 0
      %2302 = vmatmul.mubr.bf16.gmra.mrb[0].mxu0 %v2242
      %v2303 = vpop.f32.mrb[0].mxu0
      %v2304 = vadd.f32 0.0, %v2303
      %v2305 = vpop.f32.mrb[0].mxu0
      %v2306 = vpop.f32.mrb[0].mxu0
      %v2307 = vadd.f32 0.0, %v2306
      %v2308 = vpop.f32.mrb[0].mxu0
      %2309 = vmatprep.mubr.bf16.mxu0 0
      %2310 = vmatmul.mubr.bf16.gmra.mrb[0].mxu0 %v2245
      %v2311 = vpop.f32.mrb[0].mxu0
      %v2312 = vadd.f32 0.0, %v2311
      %v2313 = vpop.f32.mrb[0].mxu0
      %v2314 = vpop.f32.mrb[0].mxu0
      %v2315 = vadd.f32 0.0, %v2314
      %v2316 = vpop.f32.mrb[0].mxu0
      %2317 = vmatprep.mubr.bf16.mxu0 0
      %2318 = vmatmul.mubr.bf16.gmra.mrb[0].mxu0 %v2248
      %v2319 = vpop.f32.mrb[0].mxu0
      %v2320 = vadd.f32 0.0, %v2319
      %v2321 = vpop.f32.mrb[0].mxu0
      %v2322 = vpop.f32.mrb[0].mxu0
      %v2323 = vadd.f32 0.0, %v2322
      %v2324 = vpop.f32.mrb[0].mxu0
      %2325 = vmatprep.mubr.bf16.mxu0 0
      %2326 = vmatmul.mubr.bf16.gmra.mrb[0].mxu0 %v2251
      %v2327 = vpop.f32.mrb[0].mxu0
      %v2328 = vadd.f32 0.0, %v2327
      %v2329 = vpop.f32.mrb[0].mxu0
      %v2330 = vpop.f32.mrb[0].mxu0
      %v2331 = vadd.f32 0.0, %v2330
      %v2332 = vpop.f32.mrb[0].mxu0
      %2333 = vmatprep.mubr.bf16.mxu0 0
      %2334 = vmatmul.mubr.bf16.gmra.mrb[0].mxu0 %v2254
      %v2335 = vpop.f32.mrb[0].mxu0
      %v2336 = vadd.f32 0.0, %v2335
      %v2337 = vpop.f32.mrb[0].mxu0
      %v2338 = vpop.f32.mrb[0].mxu0
      %v2339 = vadd.f32 0.0, %v2338
      %v2340 = vpop.f32.mrb[0].mxu0
      %2341 = vmatprep.mubr.bf16.mxu0 0
      %2342 = vmatmul.mubr.bf16.gmra.mrb[0].mxu0 %v2257
      %v2343 = vpop.f32.mrb[0].mxu0
      %v2344 = vadd.f32 0.0, %v2343
      %v2345 = vpop.f32.mrb[0].mxu0
      %v2346 = vpop.f32.mrb[0].mxu0
      %v2347 = vadd.f32 0.0, %v2346
      %v2348 = vpop.f32.mrb[0].mxu0
      %2349 = vmatprep.mubr.bf16.mxu0 0
      %2350 = vmatmul.mubr.bf16.gmra.mrb[0].mxu0 %v2260
      %v2351 = vpop.f32.mrb[0].mxu0
      %v2352 = vadd.f32 0.0, %v2351
      %v2353 = vpop.f32.mrb[0].mxu0
      %v2354 = vpop.f32.mrb[0].mxu0
      %v2355 = vadd.f32 0.0, %v2354
      %v2356 = vpop.f32.mrb[0].mxu0
      %2357 = vmatprep.mubr.bf16.mxu0 0
      %2358 = vmatmul.mubr.bf16.gmra.mrb[0].mxu0 %v2263
      %v2359 = vpop.f32.mrb[0].mxu0
      %v2360 = vadd.f32 0.0, %v2359
      %v2361 = vpop.f32.mrb[0].mxu0
      %v2362 = vpop.f32.mrb[0].mxu0
      %v2363 = vadd.f32 0.0, %v2362
      %v2364 = vpop.f32.mrb[0].mxu0
      %2365 = vdwg.mxu0
      %v2367 = vsel %vm2240, %v603, 0
      %v2370 = vsel %vm2240, %v604, 0
      %v2373 = vsel %vm2240, %v605, 0
      %v2376 = vsel %vm2240, %v606, 0
      %v2379 = vsel %vm2240, %v607, 0
      %v2382 = vsel %vm2240, %v608, 0
      %v2385 = vsel %vm2240, %v609, 0
      %v2388 = vsel %vm2240, %v610, 0
      %v2391 = vsel %vm2265, %v611, 0
      %2393 = vmatprep.subr.bf16.mxu0 0
      %2394 = vmatpush1.bf16.msra.mxu0 %v2391
      %2395 = vmatprep.subr.bf16.mxu0 0
      %2396 = vmatpush1.bf16.msra.mxu0 0
      %2397 = vmatprep.subr.bf16.mxu0 0
      %2398 = vmatpush1.bf16.msra.mxu0 0
      %2399 = vmatprep.subr.bf16.mxu0 0
      %2400 = vmatpush1.bf16.msra.mxu0 0
      %2401 = vmatprep.subr.bf16.mxu0 0
      %2402 = vmatpush1.bf16.msra.mxu0 0
      %2403 = vmatprep.subr.bf16.mxu0 0
      %2404 = vmatpush1.bf16.msra.mxu0 0
      %2405 = vmatprep.subr.bf16.mxu0 0
      %2406 = vmatpush1.bf16.msra.mxu0 0
      %2407 = vmatprep.subr.bf16.mxu0 0
      %2408 = vmatpush1.bf16.msra.mxu0 0
      %2409 = vmatprep.subr.bf16.mxu0 0
      %2410 = vmatpush1.bf16.msra.mxu0 0
      %2411 = vmatprep.subr.bf16.mxu0 0
      %2412 = vmatpush1.bf16.msra.mxu0 0
      %2413 = vmatprep.subr.bf16.mxu0 0
      %2414 = vmatpush1.bf16.msra.mxu0 0
      %2415 = vmatprep.subr.bf16.mxu0 0
      %2416 = vmatpush1.bf16.msra.mxu0 0
      %2417 = vmatprep.subr.bf16.mxu0 0
      %2418 = vmatpush1.bf16.msra.mxu0 0
      %2419 = vmatprep.subr.bf16.mxu0 0
      %2420 = vmatpush1.bf16.msra.mxu0 0
      %2421 = vmatprep.subr.bf16.mxu0 0
      %2422 = vmatpush1.bf16.msra.mxu0 0
      %2423 = vmatprep.subr.bf16.mxu0 0
      %2424 = vmatpush1.bf16.msra.mxu0 0
      %2425 = vmatprep.mubr.bf16.mxu0 0
      %2426 = vmatmul.mubr.bf16.gmra.mrb[0].mxu0 %v2367
      %v2427 = vpop.f32.mrb[0].mxu0
      %v2428 = vadd.f32 %v2304, %v2427
      %v2429 = vpop.f32.mrb[0].mxu0
      %v2430 = vpop.f32.mrb[0].mxu0
      %v2431 = vadd.f32 %v2307, %v2430
      %v2432 = vpop.f32.mrb[0].mxu0
      %2433 = vmatprep.mubr.bf16.mxu0 0
      %2434 = vmatmul.mubr.bf16.gmra.mrb[0].mxu0 %v2370
      %v2435 = vpop.f32.mrb[0].mxu0
      %v2436 = vadd.f32 %v2312, %v2435
      %v2437 = vpop.f32.mrb[0].mxu0
      %v2438 = vpop.f32.mrb[0].mxu0
      %v2439 = vadd.f32 %v2315, %v2438
      %v2440 = vpop.f32.mrb[0].mxu0
      %2441 = vmatprep.mubr.bf16.mxu0 0
      %2442 = vmatmul.mubr.bf16.gmra.mrb[0].mxu0 %v2373
      %v2443 = vpop.f32.mrb[0].mxu0
      %v2444 = vadd.f32 %v2320, %v2443
      %v2445 = vpop.f32.mrb[0].mxu0
      %v2446 = vpop.f32.mrb[0].mxu0
      %v2447 = vadd.f32 %v2323, %v2446
      %v2448 = vpop.f32.mrb[0].mxu0
      %2449 = vmatprep.mubr.bf16.mxu0 0
      %2450 = vmatmul.mubr.bf16.gmra.mrb[0].mxu0 %v2376
      %v2451 = vpop.f32.mrb[0].mxu0
      %v2452 = vadd.f32 %v2328, %v2451
      %v2453 = vpop.f32.mrb[0].mxu0
      %v2454 = vpop.f32.mrb[0].mxu0
      %v2455 = vadd.f32 %v2331, %v2454
      %v2456 = vpop.f32.mrb[0].mxu0
      %2457 = vmatprep.mubr.bf16.mxu0 0
      %2458 = vmatmul.mubr.bf16.gmra.mrb[0].mxu0 %v2379
      %v2459 = vpop.f32.mrb[0].mxu0
      %v2460 = vadd.f32 %v2336, %v2459
      %v2461 = vpop.f32.mrb[0].mxu0
      %v2462 = vpop.f32.mrb[0].mxu0
      %v2463 = vadd.f32 %v2339, %v2462
      %v2464 = vpop.f32.mrb[0].mxu0
      %2465 = vmatprep.mubr.bf16.mxu0 0
      %2466 = vmatmul.mubr.bf16.gmra.mrb[0].mxu0 %v2382
      %v2467 = vpop.f32.mrb[0].mxu0
      %v2468 = vadd.f32 %v2344, %v2467
      %v2469 = vpop.f32.mrb[0].mxu0
      %v2470 = vpop.f32.mrb[0].mxu0
      %v2471 = vadd.f32 %v2347, %v2470
      %v2472 = vpop.f32.mrb[0].mxu0
      %2473 = vmatprep.mubr.bf16.mxu0 0
      %2474 = vmatmul.mubr.bf16.gmra.mrb[0].mxu0 %v2385
      %v2475 = vpop.f32.mrb[0].mxu0
      %v2476 = vadd.f32 %v2352, %v2475
      %v2477 = vpop.f32.mrb[0].mxu0
      %v2478 = vpop.f32.mrb[0].mxu0
      %v2479 = vadd.f32 %v2355, %v2478
      %v2480 = vpop.f32.mrb[0].mxu0
      %2481 = vmatprep.mubr.bf16.mxu0 0
      %2482 = vmatmul.mubr.bf16.gmra.mrb[0].mxu0 %v2388
      %v2483 = vpop.f32.mrb[0].mxu0
      %v2484 = vadd.f32 %v2360, %v2483
      %v2485 = vpop.f32.mrb[0].mxu0
      %v2486 = vpop.f32.mrb[0].mxu0
      %v2487 = vadd.f32 %v2363, %v2486
      %v2488 = vpop.f32.mrb[0].mxu0
      %2489 = vdwg.mxu0
      %s2490 = smul.u32 %s319, 3
      %s2491 = smul.addr %s2490, 4
      %s2492 = scalar_lea.vmem %s303, %s2491
      %v2493 = vld [vmem:[%s2492] sm:$0xf]
      %v2494 = vld [vmem:[%s2492 + $0x4] sm:$0xf]
      %v2495 = vld [vmem:[%s2492 + $0xc] sm:$0xf]
      %v2496 = vld [vmem:[%s2492 + $0x10] sm:$0xf]
      %v2497 = vld [vmem:[%s2492 + $0x18] sm:$0xf]
      %v2498 = vld [vmem:[%s2492 + $0x1c] sm:$0xf]
      %v2499 = vld [vmem:[%s2492 + $0x24] sm:$0xf]
      %v2500 = vld [vmem:[%s2492 + $0x28] sm:$0xf]
      %v2501 = vld [vmem:[%s2492 + $0x30] sm:$0xf]
      %v2502 = vld [vmem:[%s2492 + $0x34] sm:$0xf]
      %v2503 = vld [vmem:[%s2492 + $0x3c] sm:$0xf]
      %v2504 = vld [vmem:[%s2492 + $0x40] sm:$0xf]
      %v2505 = vld [vmem:[%s2492 + $0x48] sm:$0xf]
      %v2506 = vld [vmem:[%s2492 + $0x4c] sm:$0xf]
      %v2507 = vld [vmem:[%s2492 + $0x54] sm:$0xf]
      %v2508 = vld [vmem:[%s2492 + $0x58] sm:$0xf]
      %v2525 = vunpack.c.l.b16 %v2493
      %v2526 = vunpack.c.l.b16 %v2494
      %v2527 = vunpack.c.l.b16 %v2495
      %v2528 = vunpack.c.l.b16 %v2496
      %v2529 = vunpack.c.l.b16 %v2497
      %v2530 = vunpack.c.l.b16 %v2498
      %v2531 = vunpack.c.l.b16 %v2499
      %v2532 = vunpack.c.l.b16 %v2500
      %v2533 = vunpack.c.l.b16 %v2501
      %v2534 = vunpack.c.l.b16 %v2502
      %v2535 = vunpack.c.l.b16 %v2503
      %v2536 = vunpack.c.l.b16 %v2504
      %v2537 = vunpack.c.l.b16 %v2505
      %v2538 = vunpack.c.l.b16 %v2506
      %v2539 = vunpack.c.l.b16 %v2507
      %v2540 = vunpack.c.l.b16 %v2508
      %v2541 = vpack.c.b16 %v2526, %v2525
      %v2542 = vpack.c.b16 %v2528, %v2527
      %v2543 = vpack.c.b16 %v2530, %v2529
      %v2544 = vpack.c.b16 %v2532, %v2531
      %v2545 = vpack.c.b16 %v2534, %v2533
      %v2546 = vpack.c.b16 %v2536, %v2535
      %v2547 = vpack.c.b16 %v2538, %v2537
      %v2548 = vpack.c.b16 %v2540, %v2539
      %2557 = vst.msk [vmem:[#allocation2] sm:$0xff] %vm461, %v2541
      %2558 = vst.msk [vmem:[#allocation2 + $0x8] sm:$0xff] %vm461, %v2542
      %2559 = vst.msk [vmem:[#allocation2 + $0x10] sm:$0xff] %vm461, %v2543
      %2560 = vst.msk [vmem:[#allocation2 + $0x18] sm:$0xff] %vm461, %v2544
      %2561 = vst.msk [vmem:[#allocation2 + $0x20] sm:$0xff] %vm461, %v2545
      %2562 = vst.msk [vmem:[#allocation2 + $0x28] sm:$0xff] %vm461, %v2546
      %2563 = vst.msk [vmem:[#allocation2 + $0x30] sm:$0xff] %vm461, %v2547
      %2564 = vst.msk [vmem:[#allocation2 + $0x38] sm:$0xff] %vm461, %v2548
      %v2565 = vld [vmem:[%s2492] sm:$0xc]
      %v2566 = vld [vmem:[%s2492 + $0x4] sm:$0xf]
      %v2567 = vld [vmem:[%s2492 + $0x8] sm:$0x3]
      %v2568 = vld [vmem:[%s2492 + $0xc] sm:$0xc]
      %v2569 = vld [vmem:[%s2492 + $0x10] sm:$0xf]
      %v2570 = vld [vmem:[%s2492 + $0x14] sm:$0x3]
      %v2571 = vld [vmem:[%s2492 + $0x18] sm:$0xc]
      %v2572 = vld [vmem:[%s2492 + $0x1c] sm:$0xf]
      %v2573 = vld [vmem:[%s2492 + $0x20] sm:$0x3]
      %v2574 = vld [vmem:[%s2492 + $0x24] sm:$0xc]
      %v2575 = vld [vmem:[%s2492 + $0x28] sm:$0xf]
      %v2576 = vld [vmem:[%s2492 + $0x2c] sm:$0x3]
      %v2577 = vld [vmem:[%s2492 + $0x30] sm:$0xc]
      %v2578 = vld [vmem:[%s2492 + $0x34] sm:$0xf]
      %v2579 = vld [vmem:[%s2492 + $0x38] sm:$0x3]
      %v2580 = vld [vmem:[%s2492 + $0x3c] sm:$0xc]
      %v2581 = vld [vmem:[%s2492 + $0x40] sm:$0xf]
      %v2582 = vld [vmem:[%s2492 + $0x44] sm:$0x3]
      %v2583 = vld [vmem:[%s2492 + $0x48] sm:$0xc]
      %v2584 = vld [vmem:[%s2492 + $0x4c] sm:$0xf]
      %v2585 = vld [vmem:[%s2492 + $0x50] sm:$0x3]
      %v2586 = vld [vmem:[%s2492 + $0x54] sm:$0xc]
      %v2587 = vld [vmem:[%s2492 + $0x58] sm:$0xf]
      %v2588 = vld [vmem:[%s2492 + $0x5c] sm:$0x3]
      %v2613 = vrot.slane %v2565, 6
      %v2614 = vrot.slane %v2613, 4
      %v2615 = vrot.slane %v2566, 6
      %v2616 = vsel %vm375, %v2614, %v2615
      %v2617 = vrot.slane %v2615, 4
      %v2618 = vrot.slane %v2567, 6
      %v2619 = vsel %vm375, %v2617, %v2618
      %v2620 = vrot.slane %v2568, 6
      %v2621 = vrot.slane %v2620, 4
      %v2622 = vrot.slane %v2569, 6
      %v2623 = vsel %vm375, %v2621, %v2622
      %v2624 = vrot.slane %v2622, 4
      %v2625 = vrot.slane %v2570, 6
      %v2626 = vsel %vm375, %v2624, %v2625
      %v2627 = vrot.slane %v2571, 6
      %v2628 = vrot.slane %v2627, 4
      %v2629 = vrot.slane %v2572, 6
      %v2630 = vsel %vm375, %v2628, %v2629
      %v2631 = vrot.slane %v2629, 4
      %v2632 = vrot.slane %v2573, 6
      %v2633 = vsel %vm375, %v2631, %v2632
      %v2634 = vrot.slane %v2574, 6
      %v2635 = vrot.slane %v2634, 4
      %v2636 = vrot.slane %v2575, 6
      %v2637 = vsel %vm375, %v2635, %v2636
      %v2638 = vrot.slane %v2636, 4
      %v2639 = vrot.slane %v2576, 6
      %v2640 = vsel %vm375, %v2638, %v2639
      %v2641 = vrot.slane %v2577, 6
      %v2642 = vrot.slane %v2641, 4
      %v2643 = vrot.slane %v2578, 6
      %v2644 = vsel %vm375, %v2642, %v2643
      %v2645 = vrot.slane %v2643, 4
      %v2646 = vrot.slane %v2579, 6
      %v2647 = vsel %vm375, %v2645, %v2646
      %v2648 = vrot.slane %v2580, 6
      %v2649 = vrot.slane %v2648, 4
      %v2650 = vrot.slane %v2581, 6
      %v2651 = vsel %vm375, %v2649, %v2650
      %v2652 = vrot.slane %v2650, 4
      %v2653 = vrot.slane %v2582, 6
      %v2654 = vsel %vm375, %v2652, %v2653
      %v2655 = vrot.slane %v2583, 6
      %v2656 = vrot.slane %v2655, 4
      %v2657 = vrot.slane %v2584, 6
      %v2658 = vsel %vm375, %v2656, %v2657
      %v2659 = vrot.slane %v2657, 4
      %v2660 = vrot.slane %v2585, 6
      %v2661 = vsel %vm375, %v2659, %v2660
      %v2662 = vrot.slane %v2586, 6
      %v2663 = vrot.slane %v2662, 4
      %v2664 = vrot.slane %v2587, 6
      %v2665 = vsel %vm375, %v2663, %v2664
      %v2666 = vrot.slane %v2664, 4
      %v2667 = vrot.slane %v2588, 6
      %v2668 = vsel %vm375, %v2666, %v2667
      %v2669 = vunpack.c.l.b16 %v2616
      %v2670 = vunpack.c.l.b16 %v2619
      %v2671 = vunpack.c.l.b16 %v2623
      %v2672 = vunpack.c.l.b16 %v2626
      %v2673 = vunpack.c.l.b16 %v2630
      %v2674 = vunpack.c.l.b16 %v2633
      %v2675 = vunpack.c.l.b16 %v2637
      %v2676 = vunpack.c.l.b16 %v2640
      %v2677 = vunpack.c.l.b16 %v2644
      %v2678 = vunpack.c.l.b16 %v2647
      %v2679 = vunpack.c.l.b16 %v2651
      %v2680 = vunpack.c.l.b16 %v2654
      %v2681 = vunpack.c.l.b16 %v2658
      %v2682 = vunpack.c.l.b16 %v2661
      %v2683 = vunpack.c.l.b16 %v2665
      %v2684 = vunpack.c.l.b16 %v2668
      %v2685 = vpack.c.b16 %v2670, %v2669
      %v2686 = vpack.c.b16 %v2672, %v2671
      %v2687 = vpack.c.b16 %v2674, %v2673
      %v2688 = vpack.c.b16 %v2676, %v2675
      %v2689 = vpack.c.b16 %v2678, %v2677
      %v2690 = vpack.c.b16 %v2680, %v2679
      %v2691 = vpack.c.b16 %v2682, %v2681
      %v2692 = vpack.c.b16 %v2684, %v2683
      %2693 = vrot.lane.b32.xlu0 %v2685, 4
      %v2694 = vpop.permute.xlu0 %2693
      %2695 = vrot.lane.b32.xlu0 %v2686, 4
      %v2696 = vpop.permute.xlu0 %2695
      %2697 = vrot.lane.b32.xlu0 %v2687, 4
      %v2698 = vpop.permute.xlu0 %2697
      %2699 = vrot.lane.b32.xlu0 %v2688, 4
      %v2700 = vpop.permute.xlu0 %2699
      %2701 = vrot.lane.b32.xlu0 %v2689, 4
      %v2702 = vpop.permute.xlu0 %2701
      %2703 = vrot.lane.b32.xlu0 %v2690, 4
      %v2704 = vpop.permute.xlu0 %2703
      %2705 = vrot.lane.b32.xlu0 %v2691, 4
      %v2706 = vpop.permute.xlu0 %2705
      %2707 = vrot.lane.b32.xlu0 %v2692, 4
      %v2708 = vpop.permute.xlu0 %2707
      %2717 = vst.msk [vmem:[#allocation2] sm:$0xff] %vm915, %v2694
      %2718 = vst.msk [vmem:[#allocation2 + $0x8] sm:$0xff] %vm915, %v2696
      %2719 = vst.msk [vmem:[#allocation2 + $0x10] sm:$0xff] %vm915, %v2698
      %2720 = vst.msk [vmem:[#allocation2 + $0x18] sm:$0xff] %vm915, %v2700
      %2721 = vst.msk [vmem:[#allocation2 + $0x20] sm:$0xff] %vm915, %v2702
      %2722 = vst.msk [vmem:[#allocation2 + $0x28] sm:$0xff] %vm915, %v2704
      %2723 = vst.msk [vmem:[#allocation2 + $0x30] sm:$0xff] %vm915, %v2706
      %2724 = vst.msk [vmem:[#allocation2 + $0x38] sm:$0xff] %vm915, %v2708
      %v2725 = vld [vmem:[%s2492 + $0x4] sm:$0xf]
      %v2726 = vld [vmem:[%s2492 + $0x8] sm:$0xf]
      %v2727 = vld [vmem:[%s2492 + $0x10] sm:$0xf]
      %v2728 = vld [vmem:[%s2492 + $0x14] sm:$0xf]
      %v2729 = vld [vmem:[%s2492 + $0x1c] sm:$0xf]
      %v2730 = vld [vmem:[%s2492 + $0x20] sm:$0xf]
      %v2731 = vld [vmem:[%s2492 + $0x28] sm:$0xf]
      %v2732 = vld [vmem:[%s2492 + $0x2c] sm:$0xf]
      %v2733 = vld [vmem:[%s2492 + $0x34] sm:$0xf]
      %v2734 = vld [vmem:[%s2492 + $0x38] sm:$0xf]
      %v2735 = vld [vmem:[%s2492 + $0x40] sm:$0xf]
      %v2736 = vld [vmem:[%s2492 + $0x44] sm:$0xf]
      %v2737 = vld [vmem:[%s2492 + $0x4c] sm:$0xf]
      %v2738 = vld [vmem:[%s2492 + $0x50] sm:$0xf]
      %v2739 = vld [vmem:[%s2492 + $0x58] sm:$0xf]
      %v2740 = vld [vmem:[%s2492 + $0x5c] sm:$0xf]
      %v2757 = vunpack.c.l.b16 %v2725
      %v2758 = vunpack.c.l.b16 %v2726
      %v2759 = vunpack.c.l.b16 %v2727
      %v2760 = vunpack.c.l.b16 %v2728
      %v2761 = vunpack.c.l.b16 %v2729
      %v2762 = vunpack.c.l.b16 %v2730
      %v2763 = vunpack.c.l.b16 %v2731
      %v2764 = vunpack.c.l.b16 %v2732
      %v2765 = vunpack.c.l.b16 %v2733
      %v2766 = vunpack.c.l.b16 %v2734
      %v2767 = vunpack.c.l.b16 %v2735
      %v2768 = vunpack.c.l.b16 %v2736
      %v2769 = vunpack.c.l.b16 %v2737
      %v2770 = vunpack.c.l.b16 %v2738
      %v2771 = vunpack.c.l.b16 %v2739
      %v2772 = vunpack.c.l.b16 %v2740
      %v2773 = vpack.c.b16 %v2758, %v2757
      %v2774 = vpack.c.b16 %v2760, %v2759
      %v2775 = vpack.c.b16 %v2762, %v2761
      %v2776 = vpack.c.b16 %v2764, %v2763
      %v2777 = vpack.c.b16 %v2766, %v2765
      %v2778 = vpack.c.b16 %v2768, %v2767
      %v2779 = vpack.c.b16 %v2770, %v2769
      %v2780 = vpack.c.b16 %v2772, %v2771
      %2781 = vrot.lane.b32.xlu0 %v2773, 8
      %v2782 = vpop.permute.xlu0 %2781
      %2783 = vrot.lane.b32.xlu0 %v2774, 8
      %v2784 = vpop.permute.xlu0 %2783
      %2785 = vrot.lane.b32.xlu0 %v2775, 8
      %v2786 = vpop.permute.xlu0 %2785
      %2787 = vrot.lane.b32.xlu0 %v2776, 8
      %v2788 = vpop.permute.xlu0 %2787
      %2789 = vrot.lane.b32.xlu0 %v2777, 8
      %v2790 = vpop.permute.xlu0 %2789
      %2791 = vrot.lane.b32.xlu0 %v2778, 8
      %v2792 = vpop.permute.xlu0 %2791
      %2793 = vrot.lane.b32.xlu0 %v2779, 8
      %v2794 = vpop.permute.xlu0 %2793
      %2795 = vrot.lane.b32.xlu0 %v2780, 8
      %v2796 = vpop.permute.xlu0 %2795
      %2805 = vst.msk [vmem:[#allocation2] sm:$0xff] %vm1079, %v2782
      %2806 = vst.msk [vmem:[#allocation2 + $0x8] sm:$0xff] %vm1079, %v2784
      %2807 = vst.msk [vmem:[#allocation2 + $0x10] sm:$0xff] %vm1079, %v2786
      %2808 = vst.msk [vmem:[#allocation2 + $0x18] sm:$0xff] %vm1079, %v2788
      %2809 = vst.msk [vmem:[#allocation2 + $0x20] sm:$0xff] %vm1079, %v2790
      %2810 = vst.msk [vmem:[#allocation2 + $0x28] sm:$0xff] %vm1079, %v2792
      %2811 = vst.msk [vmem:[#allocation2 + $0x30] sm:$0xff] %vm1079, %v2794
      %2812 = vst.msk [vmem:[#allocation2 + $0x38] sm:$0xff] %vm1079, %v2796
      %v2813 = vld [vmem:[%s324] sm:$0xf]
      %v2814 = vld [vmem:[%s324 + $0x4] sm:$0xf]
      %v2815 = vld [vmem:[%s324 + $0xc] sm:$0xf]
      %v2816 = vld [vmem:[%s324 + $0x10] sm:$0xf]
      %v2817 = vld [vmem:[%s324 + $0x18] sm:$0xf]
      %v2818 = vld [vmem:[%s324 + $0x1c] sm:$0xf]
      %v2819 = vld [vmem:[%s324 + $0x24] sm:$0xf]
      %v2820 = vld [vmem:[%s324 + $0x28] sm:$0xf]
      %v2821 = vld [vmem:[%s324 + $0x30] sm:$0xf]
      %v2822 = vld [vmem:[%s324 + $0x34] sm:$0xf]
      %v2823 = vld [vmem:[%s324 + $0x3c] sm:$0xf]
      %v2824 = vld [vmem:[%s324 + $0x40] sm:$0xf]
      %v2825 = vld [vmem:[%s324 + $0x48] sm:$0xf]
      %v2826 = vld [vmem:[%s324 + $0x4c] sm:$0xf]
      %v2827 = vld [vmem:[%s324 + $0x54] sm:$0xf]
      %v2828 = vld [vmem:[%s324 + $0x58] sm:$0xf]
      %v2845 = vunpack.c.l.b16 %v2813
      %v2846 = vunpack.c.l.b16 %v2814
      %v2847 = vunpack.c.l.b16 %v2815
      %v2848 = vunpack.c.l.b16 %v2816
      %v2849 = vunpack.c.l.b16 %v2817
      %v2850 = vunpack.c.l.b16 %v2818
      %v2851 = vunpack.c.l.b16 %v2819
      %v2852 = vunpack.c.l.b16 %v2820
      %v2853 = vunpack.c.l.b16 %v2821
      %v2854 = vunpack.c.l.b16 %v2822
      %v2855 = vunpack.c.l.b16 %v2823
      %v2856 = vunpack.c.l.b16 %v2824
      %v2857 = vunpack.c.l.b16 %v2825
      %v2858 = vunpack.c.l.b16 %v2826
      %v2859 = vunpack.c.l.b16 %v2827
      %v2860 = vunpack.c.l.b16 %v2828
      %v2861 = vpack.c.b16 %v2846, %v2845
      %v2862 = vpack.c.b16 %v2848, %v2847
      %v2863 = vpack.c.b16 %v2850, %v2849
      %v2864 = vpack.c.b16 %v2852, %v2851
      %v2865 = vpack.c.b16 %v2854, %v2853
      %v2866 = vpack.c.b16 %v2856, %v2855
      %v2867 = vpack.c.b16 %v2858, %v2857
      %v2868 = vpack.c.b16 %v2860, %v2859
      %2869 = vrot.lane.b32.xlu0 %v2861, 12
      %v2870 = vpop.permute.xlu0 %2869
      %2871 = vrot.lane.b32.xlu0 %v2862, 12
      %v2872 = vpop.permute.xlu0 %2871
      %2873 = vrot.lane.b32.xlu0 %v2863, 12
      %v2874 = vpop.permute.xlu0 %2873
      %2875 = vrot.lane.b32.xlu0 %v2864, 12
      %v2876 = vpop.permute.xlu0 %2875
      %2877 = vrot.lane.b32.xlu0 %v2865, 12
      %v2878 = vpop.permute.xlu0 %2877
      %2879 = vrot.lane.b32.xlu0 %v2866, 12
      %v2880 = vpop.permute.xlu0 %2879
      %2881 = vrot.lane.b32.xlu0 %v2867, 12
      %v2882 = vpop.permute.xlu0 %2881
      %2883 = vrot.lane.b32.xlu0 %v2868, 12
      %v2884 = vpop.permute.xlu0 %2883
      %2893 = vst.msk [vmem:[#allocation2] sm:$0xff] %vm1240, %v2870
      %2894 = vst.msk [vmem:[#allocation2 + $0x8] sm:$0xff] %vm1240, %v2872
      %2895 = vst.msk [vmem:[#allocation2 + $0x10] sm:$0xff] %vm1240, %v2874
      %2896 = vst.msk [vmem:[#allocation2 + $0x18] sm:$0xff] %vm1240, %v2876
      %2897 = vst.msk [vmem:[#allocation2 + $0x20] sm:$0xff] %vm1240, %v2878
      %2898 = vst.msk [vmem:[#allocation2 + $0x28] sm:$0xff] %vm1240, %v2880
      %2899 = vst.msk [vmem:[#allocation2 + $0x30] sm:$0xff] %vm1240, %v2882
      %2900 = vst.msk [vmem:[#allocation2 + $0x38] sm:$0xff] %vm1240, %v2884
      %v2901 = vld [vmem:[%s324] sm:$0xc]
      %v2902 = vld [vmem:[%s324 + $0x4] sm:$0xf]
      %v2903 = vld [vmem:[%s324 + $0x8] sm:$0x3]
      %v2904 = vld [vmem:[%s324 + $0xc] sm:$0xc]
      %v2905 = vld [vmem:[%s324 + $0x10] sm:$0xf]
      %v2906 = vld [vmem:[%s324 + $0x14] sm:$0x3]
      %v2907 = vld [vmem:[%s324 + $0x18] sm:$0xc]
      %v2908 = vld [vmem:[%s324 + $0x1c] sm:$0xf]
      %v2909 = vld [vmem:[%s324 + $0x20] sm:$0x3]
      %v2910 = vld [vmem:[%s324 + $0x24] sm:$0xc]
      %v2911 = vld [vmem:[%s324 + $0x28] sm:$0xf]
      %v2912 = vld [vmem:[%s324 + $0x2c] sm:$0x3]
      %v2913 = vld [vmem:[%s324 + $0x30] sm:$0xc]
      %v2914 = vld [vmem:[%s324 + $0x34] sm:$0xf]
      %v2915 = vld [vmem:[%s324 + $0x38] sm:$0x3]
      %v2916 = vld [vmem:[%s324 + $0x3c] sm:$0xc]
      %v2917 = vld [vmem:[%s324 + $0x40] sm:$0xf]
      %v2918 = vld [vmem:[%s324 + $0x44] sm:$0x3]
      %v2919 = vld [vmem:[%s324 + $0x48] sm:$0xc]
      %v2920 = vld [vmem:[%s324 + $0x4c] sm:$0xf]
      %v2921 = vld [vmem:[%s324 + $0x50] sm:$0x3]
      %v2922 = vld [vmem:[%s324 + $0x54] sm:$0xc]
      %v2923 = vld [vmem:[%s324 + $0x58] sm:$0xf]
      %v2924 = vld [vmem:[%s324 + $0x5c] sm:$0x3]
      %v2949 = vrot.slane %v2901, 6
      %v2950 = vrot.slane %v2949, 4
      %v2951 = vrot.slane %v2902, 6
      %v2952 = vsel %vm375, %v2950, %v2951
      %v2953 = vrot.slane %v2951, 4
      %v2954 = vrot.slane %v2903, 6
      %v2955 = vsel %vm375, %v2953, %v2954
      %v2956 = vrot.slane %v2904, 6
      %v2957 = vrot.slane %v2956, 4
      %v2958 = vrot.slane %v2905, 6
      %v2959 = vsel %vm375, %v2957, %v2958
      %v2960 = vrot.slane %v2958, 4
      %v2961 = vrot.slane %v2906, 6
      %v2962 = vsel %vm375, %v2960, %v2961
      %v2963 = vrot.slane %v2907, 6
      %v2964 = vrot.slane %v2963, 4
      %v2965 = vrot.slane %v2908, 6
      %v2966 = vsel %vm375, %v2964, %v2965
      %v2967 = vrot.slane %v2965, 4
      %v2968 = vrot.slane %v2909, 6
      %v2969 = vsel %vm375, %v2967, %v2968
      %v2970 = vrot.slane %v2910, 6
      %v2971 = vrot.slane %v2970, 4
      %v2972 = vrot.slane %v2911, 6
      %v2973 = vsel %vm375, %v2971, %v2972
      %v2974 = vrot.slane %v2972, 4
      %v2975 = vrot.slane %v2912, 6
      %v2976 = vsel %vm375, %v2974, %v2975
      %v2977 = vrot.slane %v2913, 6
      %v2978 = vrot.slane %v2977, 4
      %v2979 = vrot.slane %v2914, 6
      %v2980 = vsel %vm375, %v2978, %v2979
      %v2981 = vrot.slane %v2979, 4
      %v2982 = vrot.slane %v2915, 6
      %v2983 = vsel %vm375, %v2981, %v2982
      %v2984 = vrot.slane %v2916, 6
      %v2985 = vrot.slane %v2984, 4
      %v2986 = vrot.slane %v2917, 6
      %v2987 = vsel %vm375, %v2985, %v2986
      %v2988 = vrot.slane %v2986, 4
      %v2989 = vrot.slane %v2918, 6
      %v2990 = vsel %vm375, %v2988, %v2989
      %v2991 = vrot.slane %v2919, 6
      %v2992 = vrot.slane %v2991, 4
      %v2993 = vrot.slane %v2920, 6
      %v2994 = vsel %vm375, %v2992, %v2993
      %v2995 = vrot.slane %v2993, 4
      %v2996 = vrot.slane %v2921, 6
      %v2997 = vsel %vm375, %v2995, %v2996
      %v2998 = vrot.slane %v2922, 6
      %v2999 = vrot.slane %v2998, 4
      %v3000 = vrot.slane %v2923, 6
      %v3001 = vsel %vm375, %v2999, %v3000
      %v3002 = vrot.slane %v3000, 4
      %v3003 = vrot.slane %v2924, 6
      %v3004 = vsel %vm375, %v3002, %v3003
      %v3005 = vunpack.c.l.b16 %v2952
      %v3006 = vunpack.c.l.b16 %v2955
      %v3007 = vunpack.c.l.b16 %v2959
      %v3008 = vunpack.c.l.b16 %v2962
      %v3009 = vunpack.c.l.b16 %v2966
      %v3010 = vunpack.c.l.b16 %v2969
      %v3011 = vunpack.c.l.b16 %v2973
      %v3012 = vunpack.c.l.b16 %v2976
      %v3013 = vunpack.c.l.b16 %v2980
      %v3014 = vunpack.c.l.b16 %v2983
      %v3015 = vunpack.c.l.b16 %v2987
      %v3016 = vunpack.c.l.b16 %v2990
      %v3017 = vunpack.c.l.b16 %v2994
      %v3018 = vunpack.c.l.b16 %v2997
      %v3019 = vunpack.c.l.b16 %v3001
      %v3020 = vunpack.c.l.b16 %v3004
      %v3021 = vpack.c.b16 %v3006, %v3005
      %v3022 = vpack.c.b16 %v3008, %v3007
      %v3023 = vpack.c.b16 %v3010, %v3009
      %v3024 = vpack.c.b16 %v3012, %v3011
      %v3025 = vpack.c.b16 %v3014, %v3013
      %v3026 = vpack.c.b16 %v3016, %v3015
      %v3027 = vpack.c.b16 %v3018, %v3017
      %v3028 = vpack.c.b16 %v3020, %v3019
      %3029 = vrot.lane.b32.xlu0 %v3021, 16
      %v3030 = vpop.permute.xlu0 %3029
      %3031 = vrot.lane.b32.xlu0 %v3022, 16
      %v3032 = vpop.permute.xlu0 %3031
      %3033 = vrot.lane.b32.xlu0 %v3023, 16
      %v3034 = vpop.permute.xlu0 %3033
      %3035 = vrot.lane.b32.xlu0 %v3024, 16
      %v3036 = vpop.permute.xlu0 %3035
      %3037 = vrot.lane.b32.xlu0 %v3025, 16
      %v3038 = vpop.permute.xlu0 %3037
      %3039 = vrot.lane.b32.xlu0 %v3026, 16
      %v3040 = vpop.permute.xlu0 %3039
      %3041 = vrot.lane.b32.xlu0 %v3027, 16
      %v3042 = vpop.permute.xlu0 %3041
      %3043 = vrot.lane.b32.xlu0 %v3028, 16
      %v3044 = vpop.permute.xlu0 %3043
      %3053 = vst.msk [vmem:[#allocation2] sm:$0xff] %vm1401, %v3030
      %3054 = vst.msk [vmem:[#allocation2 + $0x8] sm:$0xff] %vm1401, %v3032
      %3055 = vst.msk [vmem:[#allocation2 + $0x10] sm:$0xff] %vm1401, %v3034
      %3056 = vst.msk [vmem:[#allocation2 + $0x18] sm:$0xff] %vm1401, %v3036
      %3057 = vst.msk [vmem:[#allocation2 + $0x20] sm:$0xff] %vm1401, %v3038
      %3058 = vst.msk [vmem:[#allocation2 + $0x28] sm:$0xff] %vm1401, %v3040
      %3059 = vst.msk [vmem:[#allocation2 + $0x30] sm:$0xff] %vm1401, %v3042
      %3060 = vst.msk [vmem:[#allocation2 + $0x38] sm:$0xff] %vm1401, %v3044
      %v3061 = vld [vmem:[%s324 + $0x4] sm:$0xf]
      %v3062 = vld [vmem:[%s324 + $0x8] sm:$0xf]
      %v3063 = vld [vmem:[%s324 + $0x10] sm:$0xf]
      %v3064 = vld [vmem:[%s324 + $0x14] sm:$0xf]
      %v3065 = vld [vmem:[%s324 + $0x1c] sm:$0xf]
      %v3066 = vld [vmem:[%s324 + $0x20] sm:$0xf]
      %v3067 = vld [vmem:[%s324 + $0x28] sm:$0xf]
      %v3068 = vld [vmem:[%s324 + $0x2c] sm:$0xf]
      %v3069 = vld [vmem:[%s324 + $0x34] sm:$0xf]
      %v3070 = vld [vmem:[%s324 + $0x38] sm:$0xf]
      %v3071 = vld [vmem:[%s324 + $0x40] sm:$0xf]
      %v3072 = vld [vmem:[%s324 + $0x44] sm:$0xf]
      %v3073 = vld [vmem:[%s324 + $0x4c] sm:$0xf]
      %v3074 = vld [vmem:[%s324 + $0x50] sm:$0xf]
      %v3075 = vld [vmem:[%s324 + $0x58] sm:$0xf]
      %v3076 = vld [vmem:[%s324 + $0x5c] sm:$0xf]
      %v3093 = vunpack.c.l.b16 %v3061
      %v3094 = vunpack.c.l.b16 %v3062
      %v3095 = vunpack.c.l.b16 %v3063
      %v3096 = vunpack.c.l.b16 %v3064
      %v3097 = vunpack.c.l.b16 %v3065
      %v3098 = vunpack.c.l.b16 %v3066
      %v3099 = vunpack.c.l.b16 %v3067
      %v3100 = vunpack.c.l.b16 %v3068
      %v3101 = vunpack.c.l.b16 %v3069
      %v3102 = vunpack.c.l.b16 %v3070
      %v3103 = vunpack.c.l.b16 %v3071
      %v3104 = vunpack.c.l.b16 %v3072
      %v3105 = vunpack.c.l.b16 %v3073
      %v3106 = vunpack.c.l.b16 %v3074
      %v3107 = vunpack.c.l.b16 %v3075
      %v3108 = vunpack.c.l.b16 %v3076
      %v3109 = vpack.c.b16 %v3094, %v3093
      %v3110 = vpack.c.b16 %v3096, %v3095
      %v3111 = vpack.c.b16 %v3098, %v3097
      %v3112 = vpack.c.b16 %v3100, %v3099
      %v3113 = vpack.c.b16 %v3102, %v3101
      %v3114 = vpack.c.b16 %v3104, %v3103
      %v3115 = vpack.c.b16 %v3106, %v3105
      %v3116 = vpack.c.b16 %v3108, %v3107
      %3117 = vrot.lane.b32.xlu0 %v3109, 20
      %v3118 = vpop.permute.xlu0 %3117
      %3119 = vrot.lane.b32.xlu0 %v3110, 20
      %v3120 = vpop.permute.xlu0 %3119
      %3121 = vrot.lane.b32.xlu0 %v3111, 20
      %v3122 = vpop.permute.xlu0 %3121
      %3123 = vrot.lane.b32.xlu0 %v3112, 20
      %v3124 = vpop.permute.xlu0 %3123
      %3125 = vrot.lane.b32.xlu0 %v3113, 20
      %v3126 = vpop.permute.xlu0 %3125
      %3127 = vrot.lane.b32.xlu0 %v3114, 20
      %v3128 = vpop.permute.xlu0 %3127
      %3129 = vrot.lane.b32.xlu0 %v3115, 20
      %v3130 = vpop.permute.xlu0 %3129
      %3131 = vrot.lane.b32.xlu0 %v3116, 20
      %v3132 = vpop.permute.xlu0 %3131
      %3141 = vst.msk [vmem:[#allocation2] sm:$0xff] %vm1562, %v3118
      %3142 = vst.msk [vmem:[#allocation2 + $0x8] sm:$0xff] %vm1562, %v3120
      %3143 = vst.msk [vmem:[#allocation2 + $0x10] sm:$0xff] %vm1562, %v3122
      %3144 = vst.msk [vmem:[#allocation2 + $0x18] sm:$0xff] %vm1562, %v3124
      %3145 = vst.msk [vmem:[#allocation2 + $0x20] sm:$0xff] %vm1562, %v3126
      %3146 = vst.msk [vmem:[#allocation2 + $0x28] sm:$0xff] %vm1562, %v3128
      %3147 = vst.msk [vmem:[#allocation2 + $0x30] sm:$0xff] %vm1562, %v3130
      %3148 = vst.msk [vmem:[#allocation2 + $0x38] sm:$0xff] %vm1562, %v3132
      %s3149 = sadd.s32 %s319, 8
      %s3150 = smul.u32 %s3149, 3
      %s3151 = smul.addr %s3150, 4
      %s3152 = scalar_lea.vmem %s303, %s3151
      %v3153 = vld [vmem:[%s3152] sm:$0xf]
      %v3154 = vld [vmem:[%s3152 + $0x4] sm:$0xf]
      %v3155 = vld [vmem:[%s3152 + $0xc] sm:$0xf]
      %v3156 = vld [vmem:[%s3152 + $0x10] sm:$0xf]
      %v3157 = vld [vmem:[%s3152 + $0x18] sm:$0xf]
      %v3158 = vld [vmem:[%s3152 + $0x1c] sm:$0xf]
      %v3159 = vld [vmem:[%s3152 + $0x24] sm:$0xf]
      %v3160 = vld [vmem:[%s3152 + $0x28] sm:$0xf]
      %v3161 = vld [vmem:[%s3152 + $0x30] sm:$0xf]
      %v3162 = vld [vmem:[%s3152 + $0x34] sm:$0xf]
      %v3163 = vld [vmem:[%s3152 + $0x3c] sm:$0xf]
      %v3164 = vld [vmem:[%s3152 + $0x40] sm:$0xf]
      %v3165 = vld [vmem:[%s3152 + $0x48] sm:$0xf]
      %v3166 = vld [vmem:[%s3152 + $0x4c] sm:$0xf]
      %v3167 = vld [vmem:[%s3152 + $0x54] sm:$0xf]
      %v3168 = vld [vmem:[%s3152 + $0x58] sm:$0xf]
      %v3185 = vunpack.c.l.b16 %v3153
      %v3186 = vunpack.c.l.b16 %v3154
      %v3187 = vunpack.c.l.b16 %v3155
      %v3188 = vunpack.c.l.b16 %v3156
      %v3189 = vunpack.c.l.b16 %v3157
      %v3190 = vunpack.c.l.b16 %v3158
      %v3191 = vunpack.c.l.b16 %v3159
      %v3192 = vunpack.c.l.b16 %v3160
      %v3193 = vunpack.c.l.b16 %v3161
      %v3194 = vunpack.c.l.b16 %v3162
      %v3195 = vunpack.c.l.b16 %v3163
      %v3196 = vunpack.c.l.b16 %v3164
      %v3197 = vunpack.c.l.b16 %v3165
      %v3198 = vunpack.c.l.b16 %v3166
      %v3199 = vunpack.c.l.b16 %v3167
      %v3200 = vunpack.c.l.b16 %v3168
      %v3201 = vpack.c.b16 %v3186, %v3185
      %v3202 = vpack.c.b16 %v3188, %v3187
      %v3203 = vpack.c.b16 %v3190, %v3189
      %v3204 = vpack.c.b16 %v3192, %v3191
      %v3205 = vpack.c.b16 %v3194, %v3193
      %v3206 = vpack.c.b16 %v3196, %v3195
      %v3207 = vpack.c.b16 %v3198, %v3197
      %v3208 = vpack.c.b16 %v3200, %v3199
      %3209 = vrot.lane.b32.xlu0 %v3201, 24
      %v3210 = vpop.permute.xlu0 %3209
      %3211 = vrot.lane.b32.xlu0 %v3202, 24
      %v3212 = vpop.permute.xlu0 %3211
      %3213 = vrot.lane.b32.xlu0 %v3203, 24
      %v3214 = vpop.permute.xlu0 %3213
      %3215 = vrot.lane.b32.xlu0 %v3204, 24
      %v3216 = vpop.permute.xlu0 %3215
      %3217 = vrot.lane.b32.xlu0 %v3205, 24
      %v3218 = vpop.permute.xlu0 %3217
      %3219 = vrot.lane.b32.xlu0 %v3206, 24
      %v3220 = vpop.permute.xlu0 %3219
      %3221 = vrot.lane.b32.xlu0 %v3207, 24
      %v3222 = vpop.permute.xlu0 %3221
      %3223 = vrot.lane.b32.xlu0 %v3208, 24
      %v3224 = vpop.permute.xlu0 %3223
      %3233 = vst.msk [vmem:[#allocation2] sm:$0xff] %vm1727, %v3210
      %3234 = vst.msk [vmem:[#allocation2 + $0x8] sm:$0xff] %vm1727, %v3212
      %3235 = vst.msk [vmem:[#allocation2 + $0x10] sm:$0xff] %vm1727, %v3214
      %3236 = vst.msk [vmem:[#allocation2 + $0x18] sm:$0xff] %vm1727, %v3216
      %3237 = vst.msk [vmem:[#allocation2 + $0x20] sm:$0xff] %vm1727, %v3218
      %3238 = vst.msk [vmem:[#allocation2 + $0x28] sm:$0xff] %vm1727, %v3220
      %3239 = vst.msk [vmem:[#allocation2 + $0x30] sm:$0xff] %vm1727, %v3222
      %3240 = vst.msk [vmem:[#allocation2 + $0x38] sm:$0xff] %vm1727, %v3224
      %v3241 = vld [vmem:[%s3152] sm:$0xc]
      %v3242 = vld [vmem:[%s3152 + $0x4] sm:$0xf]
      %v3243 = vld [vmem:[%s3152 + $0x8] sm:$0x3]
      %v3244 = vld [vmem:[%s3152 + $0xc] sm:$0xc]
      %v3245 = vld [vmem:[%s3152 + $0x10] sm:$0xf]
      %v3246 = vld [vmem:[%s3152 + $0x14] sm:$0x3]
      %v3247 = vld [vmem:[%s3152 + $0x18] sm:$0xc]
      %v3248 = vld [vmem:[%s3152 + $0x1c] sm:$0xf]
      %v3249 = vld [vmem:[%s3152 + $0x20] sm:$0x3]
      %v3250 = vld [vmem:[%s3152 + $0x24] sm:$0xc]
      %v3251 = vld [vmem:[%s3152 + $0x28] sm:$0xf]
      %v3252 = vld [vmem:[%s3152 + $0x2c] sm:$0x3]
      %v3253 = vld [vmem:[%s3152 + $0x30] sm:$0xc]
      %v3254 = vld [vmem:[%s3152 + $0x34] sm:$0xf]
      %v3255 = vld [vmem:[%s3152 + $0x38] sm:$0x3]
      %v3256 = vld [vmem:[%s3152 + $0x3c] sm:$0xc]
      %v3257 = vld [vmem:[%s3152 + $0x40] sm:$0xf]
      %v3258 = vld [vmem:[%s3152 + $0x44] sm:$0x3]
      %v3259 = vld [vmem:[%s3152 + $0x48] sm:$0xc]
      %v3260 = vld [vmem:[%s3152 + $0x4c] sm:$0xf]
      %v3261 = vld [vmem:[%s3152 + $0x50] sm:$0x3]
      %v3262 = vld [vmem:[%s3152 + $0x54] sm:$0xc]
      %v3263 = vld [vmem:[%s3152 + $0x58] sm:$0xf]
      %v3264 = vld [vmem:[%s3152 + $0x5c] sm:$0x3]
      %v3289 = vrot.slane %v3241, 6
      %v3290 = vrot.slane %v3289, 4
      %v3291 = vrot.slane %v3242, 6
      %v3292 = vsel %vm375, %v3290, %v3291
      %v3293 = vrot.slane %v3291, 4
      %v3294 = vrot.slane %v3243, 6
      %v3295 = vsel %vm375, %v3293, %v3294
      %v3296 = vrot.slane %v3244, 6
      %v3297 = vrot.slane %v3296, 4
      %v3298 = vrot.slane %v3245, 6
      %v3299 = vsel %vm375, %v3297, %v3298
      %v3300 = vrot.slane %v3298, 4
      %v3301 = vrot.slane %v3246, 6
      %v3302 = vsel %vm375, %v3300, %v3301
      %v3303 = vrot.slane %v3247, 6
      %v3304 = vrot.slane %v3303, 4
      %v3305 = vrot.slane %v3248, 6
      %v3306 = vsel %vm375, %v3304, %v3305
      %v3307 = vrot.slane %v3305, 4
      %v3308 = vrot.slane %v3249, 6
      %v3309 = vsel %vm375, %v3307, %v3308
      %v3310 = vrot.slane %v3250, 6
      %v3311 = vrot.slane %v3310, 4
      %v3312 = vrot.slane %v3251, 6
      %v3313 = vsel %vm375, %v3311, %v3312
      %v3314 = vrot.slane %v3312, 4
      %v3315 = vrot.slane %v3252, 6
      %v3316 = vsel %vm375, %v3314, %v3315
      %v3317 = vrot.slane %v3253, 6
      %v3318 = vrot.slane %v3317, 4
      %v3319 = vrot.slane %v3254, 6
      %v3320 = vsel %vm375, %v3318, %v3319
      %v3321 = vrot.slane %v3319, 4
      %v3322 = vrot.slane %v3255, 6
      %v3323 = vsel %vm375, %v3321, %v3322
      %v3324 = vrot.slane %v3256, 6
      %v3325 = vrot.slane %v3324, 4
      %v3326 = vrot.slane %v3257, 6
      %v3327 = vsel %vm375, %v3325, %v3326
      %v3328 = vrot.slane %v3326, 4
      %v3329 = vrot.slane %v3258, 6
      %v3330 = vsel %vm375, %v3328, %v3329
      %v3331 = vrot.slane %v3259, 6
      %v3332 = vrot.slane %v3331, 4
      %v3333 = vrot.slane %v3260, 6
      %v3334 = vsel %vm375, %v3332, %v3333
      %v3335 = vrot.slane %v3333, 4
      %v3336 = vrot.slane %v3261, 6
      %v3337 = vsel %vm375, %v3335, %v3336
      %v3338 = vrot.slane %v3262, 6
      %v3339 = vrot.slane %v3338, 4
      %v3340 = vrot.slane %v3263, 6
      %v3341 = vsel %vm375, %v3339, %v3340
      %v3342 = vrot.slane %v3340, 4
      %v3343 = vrot.slane %v3264, 6
      %v3344 = vsel %vm375, %v3342, %v3343
      %v3345 = vunpack.c.l.b16 %v3292
      %v3346 = vunpack.c.l.b16 %v3295
      %v3347 = vunpack.c.l.b16 %v3299
      %v3348 = vunpack.c.l.b16 %v3302
      %v3349 = vunpack.c.l.b16 %v3306
      %v3350 = vunpack.c.l.b16 %v3309
      %v3351 = vunpack.c.l.b16 %v3313
      %v3352 = vunpack.c.l.b16 %v3316
      %v3353 = vunpack.c.l.b16 %v3320
      %v3354 = vunpack.c.l.b16 %v3323
      %v3355 = vunpack.c.l.b16 %v3327
      %v3356 = vunpack.c.l.b16 %v3330
      %v3357 = vunpack.c.l.b16 %v3334
      %v3358 = vunpack.c.l.b16 %v3337
      %v3359 = vunpack.c.l.b16 %v3341
      %v3360 = vunpack.c.l.b16 %v3344
      %v3361 = vpack.c.b16 %v3346, %v3345
      %v3362 = vpack.c.b16 %v3348, %v3347
      %v3363 = vpack.c.b16 %v3350, %v3349
      %v3364 = vpack.c.b16 %v3352, %v3351
      %v3365 = vpack.c.b16 %v3354, %v3353
      %v3366 = vpack.c.b16 %v3356, %v3355
      %v3367 = vpack.c.b16 %v3358, %v3357
      %v3368 = vpack.c.b16 %v3360, %v3359
      %3369 = vrot.lane.b32.xlu0 %v3361, 28
      %v3370 = vpop.permute.xlu0 %3369
      %3371 = vrot.lane.b32.xlu0 %v3362, 28
      %v3372 = vpop.permute.xlu0 %3371
      %3373 = vrot.lane.b32.xlu0 %v3363, 28
      %v3374 = vpop.permute.xlu0 %3373
      %3375 = vrot.lane.b32.xlu0 %v3364, 28
      %v3376 = vpop.permute.xlu0 %3375
      %3377 = vrot.lane.b32.xlu0 %v3365, 28
      %v3378 = vpop.permute.xlu0 %3377
      %3379 = vrot.lane.b32.xlu0 %v3366, 28
      %v3380 = vpop.permute.xlu0 %3379
      %3381 = vrot.lane.b32.xlu0 %v3367, 28
      %v3382 = vpop.permute.xlu0 %3381
      %3383 = vrot.lane.b32.xlu0 %v3368, 28
      %v3384 = vpop.permute.xlu0 %3383
      %3393 = vst.msk [vmem:[#allocation2] sm:$0xff] %vm1888, %v3370
      %3394 = vst.msk [vmem:[#allocation2 + $0x8] sm:$0xff] %vm1888, %v3372
      %3395 = vst.msk [vmem:[#allocation2 + $0x10] sm:$0xff] %vm1888, %v3374
      %3396 = vst.msk [vmem:[#allocation2 + $0x18] sm:$0xff] %vm1888, %v3376
      %3397 = vst.msk [vmem:[#allocation2 + $0x20] sm:$0xff] %vm1888, %v3378
      %3398 = vst.msk [vmem:[#allocation2 + $0x28] sm:$0xff] %vm1888, %v3380
      %3399 = vst.msk [vmem:[#allocation2 + $0x30] sm:$0xff] %vm1888, %v3382
      %3400 = vst.msk [vmem:[#allocation2 + $0x38] sm:$0xff] %vm1888, %v3384
      %v3401 = vld [vmem:[%s3152 + $0x4] sm:$0xf]
      %v3402 = vld [vmem:[%s3152 + $0x8] sm:$0xf]
      %v3403 = vld [vmem:[%s3152 + $0x10] sm:$0xf]
      %v3404 = vld [vmem:[%s3152 + $0x14] sm:$0xf]
      %v3405 = vld [vmem:[%s3152 + $0x1c] sm:$0xf]
      %v3406 = vld [vmem:[%s3152 + $0x20] sm:$0xf]
      %v3407 = vld [vmem:[%s3152 + $0x28] sm:$0xf]
      %v3408 = vld [vmem:[%s3152 + $0x2c] sm:$0xf]
      %v3409 = vld [vmem:[%s3152 + $0x34] sm:$0xf]
      %v3410 = vld [vmem:[%s3152 + $0x38] sm:$0xf]
      %v3411 = vld [vmem:[%s3152 + $0x40] sm:$0xf]
      %v3412 = vld [vmem:[%s3152 + $0x44] sm:$0xf]
      %v3413 = vld [vmem:[%s3152 + $0x4c] sm:$0xf]
      %v3414 = vld [vmem:[%s3152 + $0x50] sm:$0xf]
      %v3415 = vld [vmem:[%s3152 + $0x58] sm:$0xf]
      %v3416 = vld [vmem:[%s3152 + $0x5c] sm:$0xf]
      %v3433 = vunpack.c.l.b16 %v3401
      %v3434 = vunpack.c.l.b16 %v3402
      %v3435 = vunpack.c.l.b16 %v3403
      %v3436 = vunpack.c.l.b16 %v3404
      %v3437 = vunpack.c.l.b16 %v3405
      %v3438 = vunpack.c.l.b16 %v3406
      %v3439 = vunpack.c.l.b16 %v3407
      %v3440 = vunpack.c.l.b16 %v3408
      %v3441 = vunpack.c.l.b16 %v3409
      %v3442 = vunpack.c.l.b16 %v3410
      %v3443 = vunpack.c.l.b16 %v3411
      %v3444 = vunpack.c.l.b16 %v3412
      %v3445 = vunpack.c.l.b16 %v3413
      %v3446 = vunpack.c.l.b16 %v3414
      %v3447 = vunpack.c.l.b16 %v3415
      %v3448 = vunpack.c.l.b16 %v3416
      %v3449 = vpack.c.b16 %v3434, %v3433
      %v3450 = vpack.c.b16 %v3436, %v3435
      %v3451 = vpack.c.b16 %v3438, %v3437
      %v3452 = vpack.c.b16 %v3440, %v3439
      %v3453 = vpack.c.b16 %v3442, %v3441
      %v3454 = vpack.c.b16 %v3444, %v3443
      %v3455 = vpack.c.b16 %v3446, %v3445
      %v3456 = vpack.c.b16 %v3448, %v3447
      %3457 = vrot.lane.b32.xlu0 %v3449, 32
      %v3458 = vpop.permute.xlu0 %3457
      %3459 = vrot.lane.b32.xlu0 %v3450, 32
      %v3460 = vpop.permute.xlu0 %3459
      %3461 = vrot.lane.b32.xlu0 %v3451, 32
      %v3462 = vpop.permute.xlu0 %3461
      %3463 = vrot.lane.b32.xlu0 %v3452, 32
      %v3464 = vpop.permute.xlu0 %3463
      %3465 = vrot.lane.b32.xlu0 %v3453, 32
      %v3466 = vpop.permute.xlu0 %3465
      %3467 = vrot.lane.b32.xlu0 %v3454, 32
      %v3468 = vpop.permute.xlu0 %3467
      %3469 = vrot.lane.b32.xlu0 %v3455, 32
      %v3470 = vpop.permute.xlu0 %3469
      %3471 = vrot.lane.b32.xlu0 %v3456, 32
      %v3472 = vpop.permute.xlu0 %3471
      %3481 = vst.msk [vmem:[#allocation2] sm:$0xff] %vm2049, %v3458
      %3482 = vst.msk [vmem:[#allocation2 + $0x8] sm:$0xff] %vm2049, %v3460
      %3483 = vst.msk [vmem:[#allocation2 + $0x10] sm:$0xff] %vm2049, %v3462
      %3484 = vst.msk [vmem:[#allocation2 + $0x18] sm:$0xff] %vm2049, %v3464
      %3485 = vst.msk [vmem:[#allocation2 + $0x20] sm:$0xff] %vm2049, %v3466
      %3486 = vst.msk [vmem:[#allocation2 + $0x28] sm:$0xff] %vm2049, %v3468
      %3487 = vst.msk [vmem:[#allocation2 + $0x30] sm:$0xff] %vm2049, %v3470
      %3488 = vst.msk [vmem:[#allocation2 + $0x38] sm:$0xff] %vm2049, %v3472
      %v3489 = vld [vmem:[#allocation2] sm:$0xff]
      %v3490 = vld [vmem:[#allocation2 + $0x8] sm:$0xff]
      %v3491 = vld [vmem:[#allocation2 + $0x10] sm:$0xff]
      %v3492 = vld [vmem:[#allocation2 + $0x18] sm:$0xff]
      %v3493 = vld [vmem:[#allocation2 + $0x20] sm:$0xff]
      %v3494 = vld [vmem:[#allocation2 + $0x28] sm:$0xff]
      %v3495 = vld [vmem:[#allocation2 + $0x30] sm:$0xff]
      %v3496 = vld [vmem:[#allocation2 + $0x38] sm:$0xff]
      %s3497 = scalar_lea.vmem %s2, 20
      %v3498 = vld [vmem:[%s3497] sm:$0xf]
      %v3499 = vld [vmem:[%s3497 + $0x4] sm:$0xf]
      %v3500 = vld [vmem:[%s3497 + $0x8] sm:$0xf]
      %v3501 = vld [vmem:[%s3497 + $0xc] sm:$0xf]
      %v3502 = vld [vmem:[%s3497 + $0x10] sm:$0x3]
      %v3503 = vlaneseq
      %v3504 = vshrl.u32 %v3503, 7
      %v3505 = vsub.s32 2, %v3504
      %v3506 = vrot.slane %v320, %v3505
      %v3512 = vunpack.c.l.b16 %v3498
      %v3513 = vunpack.c.l.b16 %v3499
      %v3514 = vunpack.c.l.b16 %v3500
      %v3515 = vunpack.c.l.b16 %v3501
      %v3516 = vunpack.c.l.b16 %v3502
      %v3517 = vpack.c.b16 %v3513, %v3512
      %v3518 = vpack.c.b16 %v3515, %v3514
      %v3519 = vpack.c.b16 %v3516, %v3516
      %v3523 = vsel %vm2090, %v3489, 0
      %v3526 = vsel %vm2090, %v3490, 0
      %v3529 = vsel %vm2090, %v3491, 0
      %v3532 = vsel %vm2090, %v3492, 0
      %v3535 = vsel %vm2090, %v3493, 0
      %v3538 = vsel %vm2090, %v3494, 0
      %v3541 = vsel %vm2090, %v3495, 0
      %v3544 = vsel %vm2090, %v3496, 0
      %v3547 = vsel %vm486, %v3519, 0
      %3549 = vmatprep.subr.bf16.mxu0 0
      %3550 = vmatpush1.bf16.msra.mxu0 %v3517
      %3551 = vmatprep.subr.bf16.mxu0 0
      %3552 = vmatpush1.bf16.msra.mxu0 %v3518
      %3553 = vmatprep.subr.bf16.mxu0 0
      %3554 = vmatpush1.bf16.msra.mxu0 %v3547
      %3555 = vmatprep.subr.bf16.mxu0 0
      %3556 = vmatpush1.bf16.msra.mxu0 0
      %3557 = vmatprep.subr.bf16.mxu0 0
      %3558 = vmatpush1.bf16.msra.mxu0 0
      %3559 = vmatprep.subr.bf16.mxu0 0
      %3560 = vmatpush1.bf16.msra.mxu0 0
      %3561 = vmatprep.subr.bf16.mxu0 0
      %3562 = vmatpush1.bf16.msra.mxu0 0
      %3563 = vmatprep.subr.bf16.mxu0 0
      %3564 = vmatpush1.bf16.msra.mxu0 0
      %3565 = vmatprep.subr.bf16.mxu0 0
      %3566 = vmatpush1.bf16.msra.mxu0 0
      %3567 = vmatprep.subr.bf16.mxu0 0
      %3568 = vmatpush1.bf16.msra.mxu0 0
      %3569 = vmatprep.subr.bf16.mxu0 0
      %3570 = vmatpush1.bf16.msra.mxu0 0
      %3571 = vmatprep.subr.bf16.mxu0 0
      %3572 = vmatpush1.bf16.msra.mxu0 0
      %3573 = vmatprep.subr.bf16.mxu0 0
      %3574 = vmatpush1.bf16.msra.mxu0 0
      %3575 = vmatprep.subr.bf16.mxu0 0
      %3576 = vmatpush1.bf16.msra.mxu0 0
      %3577 = vmatprep.subr.bf16.mxu0 0
      %3578 = vmatpush1.bf16.msra.mxu0 0
      %3579 = vmatprep.subr.bf16.mxu0 0
      %3580 = vmatpush1.bf16.msra.mxu0 0
      %3581 = vmatprep.mubr.bf16.mxu0 0
      %3582 = vmatmul.mubr.bf16.gmra.mrb[0].mxu0 %v3523
      %v3583 = vpop.f32.mrb[0].mxu0
      %v3584 = vadd.f32 %v3506, %v3583
      %v3585 = vpop.f32.mrb[0].mxu0
      %v3586 = vpop.f32.mrb[0].mxu0
      %v3587 = vadd.f32 %v3506, %v3586
      %v3588 = vpop.f32.mrb[0].mxu0
      %3589 = vmatprep.mubr.bf16.mxu0 0
      %3590 = vmatmul.mubr.bf16.gmra.mrb[0].mxu0 %v3526
      %v3591 = vpop.f32.mrb[0].mxu0
      %v3592 = vadd.f32 %v3506, %v3591
      %v3593 = vpop.f32.mrb[0].mxu0
      %v3594 = vpop.f32.mrb[0].mxu0
      %v3595 = vadd.f32 %v3506, %v3594
      %v3596 = vpop.f32.mrb[0].mxu0
      %3597 = vmatprep.mubr.bf16.mxu0 0
      %3598 = vmatmul.mubr.bf16.gmra.mrb[0].mxu0 %v3529
      %v3599 = vpop.f32.mrb[0].mxu0
      %v3600 = vadd.f32 %v3506, %v3599
      %v3601 = vpop.f32.mrb[0].mxu0
      %v3602 = vpop.f32.mrb[0].mxu0
      %v3603 = vadd.f32 %v3506, %v3602
      %v3604 = vpop.f32.mrb[0].mxu0
      %3605 = vmatprep.mubr.bf16.mxu0 0
      %3606 = vmatmul.mubr.bf16.gmra.mrb[0].mxu0 %v3532
      %v3607 = vpop.f32.mrb[0].mxu0
      %v3608 = vadd.f32 %v3506, %v3607
      %v3609 = vpop.f32.mrb[0].mxu0
      %v3610 = vpop.f32.mrb[0].mxu0
      %v3611 = vadd.f32 %v3506, %v3610
      %v3612 = vpop.f32.mrb[0].mxu0
      %3613 = vmatprep.mubr.bf16.mxu0 0
      %3614 = vmatmul.mubr.bf16.gmra.mrb[0].mxu0 %v3535
      %v3615 = vpop.f32.mrb[0].mxu0
      %v3616 = vadd.f32 %v3506, %v3615
      %v3617 = vpop.f32.mrb[0].mxu0
      %v3618 = vpop.f32.mrb[0].mxu0
      %v3619 = vadd.f32 %v3506, %v3618
      %v3620 = vpop.f32.mrb[0].mxu0
      %3621 = vmatprep.mubr.bf16.mxu0 0
      %3622 = vmatmul.mubr.bf16.gmra.mrb[0].mxu0 %v3538
      %v3623 = vpop.f32.mrb[0].mxu0
      %v3624 = vadd.f32 %v3506, %v3623
      %v3625 = vpop.f32.mrb[0].mxu0
      %v3626 = vpop.f32.mrb[0].mxu0
      %v3627 = vadd.f32 %v3506, %v3626
      %v3628 = vpop.f32.mrb[0].mxu0
      %3629 = vmatprep.mubr.bf16.mxu0 0
      %3630 = vmatmul.mubr.bf16.gmra.mrb[0].mxu0 %v3541
      %v3631 = vpop.f32.mrb[0].mxu0
      %v3632 = vadd.f32 %v3506, %v3631
      %v3633 = vpop.f32.mrb[0].mxu0
      %v3634 = vpop.f32.mrb[0].mxu0
      %v3635 = vadd.f32 %v3506, %v3634
      %v3636 = vpop.f32.mrb[0].mxu0
      %3637 = vmatprep.mubr.bf16.mxu0 0
      %3638 = vmatmul.mubr.bf16.gmra.mrb[0].mxu0 %v3544
      %v3639 = vpop.f32.mrb[0].mxu0
      %v3640 = vadd.f32 %v3506, %v3639
      %v3641 = vpop.f32.mrb[0].mxu0
      %v3642 = vpop.f32.mrb[0].mxu0
      %v3643 = vadd.f32 %v3506, %v3642
      %v3644 = vpop.f32.mrb[0].mxu0
      %3645 = vdwg.mxu0
      %v3646 = vmax.f32 %v3584, 0.0
      %v3647 = vmax.f32 %v3587, 0.0
      %v3648 = vmax.f32 %v3592, 0.0
      %v3649 = vmax.f32 %v3595, 0.0
      %v3650 = vmax.f32 %v3600, 0.0
      %v3651 = vmax.f32 %v3603, 0.0
      %v3652 = vmax.f32 %v3608, 0.0
      %v3653 = vmax.f32 %v3611, 0.0
      %v3654 = vmax.f32 %v3616, 0.0
      %v3655 = vmax.f32 %v3619, 0.0
      %v3656 = vmax.f32 %v3624, 0.0
      %v3657 = vmax.f32 %v3627, 0.0
      %v3658 = vmax.f32 %v3632, 0.0
      %v3659 = vmax.f32 %v3635, 0.0
      %v3660 = vmax.f32 %v3640, 0.0
      %v3661 = vmax.f32 %v3643, 0.0
      %v3662 = vpack.c.bf16 %v3647, %v3646
      %v3663 = vpack.c.bf16 %v3649, %v3648
      %v3664 = vpack.c.bf16 %v3651, %v3650
      %v3665 = vpack.c.bf16 %v3653, %v3652
      %v3666 = vpack.c.bf16 %v3655, %v3654
      %v3667 = vpack.c.bf16 %v3657, %v3656
      %v3668 = vpack.c.bf16 %v3659, %v3658
      %v3669 = vpack.c.bf16 %v3661, %v3660
      %v3670 = vld [vmem:[%s3 + $0x8] sm:$0xf]
      %v3672 = vsel %vm2240, %v3662, 0
      %v3675 = vsel %vm2240, %v3663, 0
      %v3678 = vsel %vm2240, %v3664, 0
      %v3681 = vsel %vm2240, %v3665, 0
      %v3684 = vsel %vm2240, %v3666, 0
      %v3687 = vsel %vm2240, %v3667, 0
      %v3690 = vsel %vm2240, %v3668, 0
      %v3693 = vsel %vm2240, %v3669, 0
      %v3696 = vsel %vm2265, %v3670, 0
      %3698 = vmatprep.subr.bf16.mxu0 0
      %3699 = vmatpush1.bf16.msra.mxu0 %v3696
      %3700 = vmatprep.subr.bf16.mxu0 0
      %3701 = vmatpush1.bf16.msra.mxu0 0
      %3702 = vmatprep.subr.bf16.mxu0 0
      %3703 = vmatpush1.bf16.msra.mxu0 0
      %3704 = vmatprep.subr.bf16.mxu0 0
      %3705 = vmatpush1.bf16.msra.mxu0 0
      %3706 = vmatprep.subr.bf16.mxu0 0
      %3707 = vmatpush1.bf16.msra.mxu0 0
      %3708 = vmatprep.subr.bf16.mxu0 0
      %3709 = vmatpush1.bf16.msra.mxu0 0
      %3710 = vmatprep.subr.bf16.mxu0 0
      %3711 = vmatpush1.bf16.msra.mxu0 0
      %3712 = vmatprep.subr.bf16.mxu0 0
      %3713 = vmatpush1.bf16.msra.mxu0 0
      %3714 = vmatprep.subr.bf16.mxu0 0
      %3715 = vmatpush1.bf16.msra.mxu0 0
      %3716 = vmatprep.subr.bf16.mxu0 0
      %3717 = vmatpush1.bf16.msra.mxu0 0
      %3718 = vmatprep.subr.bf16.mxu0 0
      %3719 = vmatpush1.bf16.msra.mxu0 0
      %3720 = vmatprep.subr.bf16.mxu0 0
      %3721 = vmatpush1.bf16.msra.mxu0 0
      %3722 = vmatprep.subr.bf16.mxu0 0
      %3723 = vmatpush1.bf16.msra.mxu0 0
      %3724 = vmatprep.subr.bf16.mxu0 0
      %3725 = vmatpush1.bf16.msra.mxu0 0
      %3726 = vmatprep.subr.bf16.mxu0 0
      %3727 = vmatpush1.bf16.msra.mxu0 0
      %3728 = vmatprep.subr.bf16.mxu0 0
      %3729 = vmatpush1.bf16.msra.mxu0 0
      %3730 = vmatprep.mubr.bf16.mxu0 0
      %3731 = vmatmul.mubr.bf16.gmra.mrb[0].mxu0 %v3672
      %v3732 = vpop.f32.mrb[0].mxu0
      %v3733 = vadd.f32 0.0, %v3732
      %v3734 = vpop.f32.mrb[0].mxu0
      %v3735 = vpop.f32.mrb[0].mxu0
      %v3736 = vadd.f32 0.0, %v3735
      %v3737 = vpop.f32.mrb[0].mxu0
      %3738 = vmatprep.mubr.bf16.mxu0 0
      %3739 = vmatmul.mubr.bf16.gmra.mrb[0].mxu0 %v3675
      %v3740 = vpop.f32.mrb[0].mxu0
      %v3741 = vadd.f32 0.0, %v3740
      %v3742 = vpop.f32.mrb[0].mxu0
      %v3743 = vpop.f32.mrb[0].mxu0
      %v3744 = vadd.f32 0.0, %v3743
      %v3745 = vpop.f32.mrb[0].mxu0
      %3746 = vmatprep.mubr.bf16.mxu0 0
      %3747 = vmatmul.mubr.bf16.gmra.mrb[0].mxu0 %v3678
      %v3748 = vpop.f32.mrb[0].mxu0
      %v3749 = vadd.f32 0.0, %v3748
      %v3750 = vpop.f32.mrb[0].mxu0
      %v3751 = vpop.f32.mrb[0].mxu0
      %v3752 = vadd.f32 0.0, %v3751
      %v3753 = vpop.f32.mrb[0].mxu0
      %3754 = vmatprep.mubr.bf16.mxu0 0
      %3755 = vmatmul.mubr.bf16.gmra.mrb[0].mxu0 %v3681
      %v3756 = vpop.f32.mrb[0].mxu0
      %v3757 = vadd.f32 0.0, %v3756
      %v3758 = vpop.f32.mrb[0].mxu0
      %v3759 = vpop.f32.mrb[0].mxu0
      %v3760 = vadd.f32 0.0, %v3759
      %v3761 = vpop.f32.mrb[0].mxu0
      %3762 = vmatprep.mubr.bf16.mxu0 0
      %3763 = vmatmul.mubr.bf16.gmra.mrb[0].mxu0 %v3684
      %v3764 = vpop.f32.mrb[0].mxu0
      %v3765 = vadd.f32 0.0, %v3764
      %v3766 = vpop.f32.mrb[0].mxu0
      %v3767 = vpop.f32.mrb[0].mxu0
      %v3768 = vadd.f32 0.0, %v3767
      %v3769 = vpop.f32.mrb[0].mxu0
      %3770 = vmatprep.mubr.bf16.mxu0 0
      %3771 = vmatmul.mubr.bf16.gmra.mrb[0].mxu0 %v3687
      %v3772 = vpop.f32.mrb[0].mxu0
      %v3773 = vadd.f32 0.0, %v3772
      %v3774 = vpop.f32.mrb[0].mxu0
      %v3775 = vpop.f32.mrb[0].mxu0
      %v3776 = vadd.f32 0.0, %v3775
      %v3777 = vpop.f32.mrb[0].mxu0
      %3778 = vmatprep.mubr.bf16.mxu0 0
      %3779 = vmatmul.mubr.bf16.gmra.mrb[0].mxu0 %v3690
      %v3780 = vpop.f32.mrb[0].mxu0
      %v3781 = vadd.f32 0.0, %v3780
      %v3782 = vpop.f32.mrb[0].mxu0
      %v3783 = vpop.f32.mrb[0].mxu0
      %v3784 = vadd.f32 0.0, %v3783
      %v3785 = vpop.f32.mrb[0].mxu0
      %3786 = vmatprep.mubr.bf16.mxu0 0
      %3787 = vmatmul.mubr.bf16.gmra.mrb[0].mxu0 %v3693
      %v3788 = vpop.f32.mrb[0].mxu0
      %v3789 = vadd.f32 0.0, %v3788
      %v3790 = vpop.f32.mrb[0].mxu0
      %v3791 = vpop.f32.mrb[0].mxu0
      %v3792 = vadd.f32 0.0, %v3791
      %v3793 = vpop.f32.mrb[0].mxu0
      %3794 = vdwg.mxu0
      %v3795 = vadd.f32 %v2428, %v3733
      %v3796 = vadd.f32 %v2431, %v3736
      %v3797 = vadd.f32 %v2436, %v3741
      %v3798 = vadd.f32 %v2439, %v3744
      %v3799 = vadd.f32 %v2444, %v3749
      %v3800 = vadd.f32 %v2447, %v3752
      %v3801 = vadd.f32 %v2452, %v3757
      %v3802 = vadd.f32 %v2455, %v3760
      %v3803 = vadd.f32 %v2460, %v3765
      %v3804 = vadd.f32 %v2463, %v3768
      %v3805 = vadd.f32 %v2468, %v3773
      %v3806 = vadd.f32 %v2471, %v3776
      %v3807 = vadd.f32 %v2476, %v3781
      %v3808 = vadd.f32 %v2479, %v3784
      %v3809 = vadd.f32 %v2484, %v3789
      %v3810 = vadd.f32 %v2487, %v3792
      %v3811 = vld [vmem:[%s306] sm:$0x1]
      %v3813 = vlaneseq
      %v3814 = vshrl.u32 %v3813, 7
      %v3815 = vsub.s32 0, %v3814
      %v3816 = vrot.slane %v3811, %v3815
      %v3818 = vadd.f32 %v3795, %v3816
      %v3819 = vadd.f32 %v3796, %v3816
      %v3820 = vadd.f32 %v3797, %v3816
      %v3821 = vadd.f32 %v3798, %v3816
      %v3822 = vadd.f32 %v3799, %v3816
      %v3823 = vadd.f32 %v3800, %v3816
      %v3824 = vadd.f32 %v3801, %v3816
      %v3825 = vadd.f32 %v3802, %v3816
      %v3826 = vadd.f32 %v3803, %v3816
      %v3827 = vadd.f32 %v3804, %v3816
      %v3828 = vadd.f32 %v3805, %v3816
      %v3829 = vadd.f32 %v3806, %v3816
      %v3830 = vadd.f32 %v3807, %v3816
      %v3831 = vadd.f32 %v3808, %v3816
      %v3832 = vadd.f32 %v3809, %v3816
      %v3833 = vadd.f32 %v3810, %v3816
      %v3834 = vld [vmem:[%s5] sm:$0x1]
      %v3836 = vlaneseq
      %v3837 = vshrl.u32 %v3836, 7
      %v3838 = vsub.s32 0, %v3837
      %v3839 = vrot.slane %v3834, %v3838
      %v3841 = vadd.f32 %v3818, %v3839
      %v3842 = vadd.f32 %v3819, %v3839
      %v3843 = vadd.f32 %v3820, %v3839
      %v3844 = vadd.f32 %v3821, %v3839
      %v3845 = vadd.f32 %v3822, %v3839
      %v3846 = vadd.f32 %v3823, %v3839
      %v3847 = vadd.f32 %v3824, %v3839
      %v3848 = vadd.f32 %v3825, %v3839
      %v3849 = vadd.f32 %v3826, %v3839
      %v3850 = vadd.f32 %v3827, %v3839
      %v3851 = vadd.f32 %v3828, %v3839
      %v3852 = vadd.f32 %v3829, %v3839
      %v3853 = vadd.f32 %v3830, %v3839
      %v3854 = vadd.f32 %v3831, %v3839
      %v3855 = vadd.f32 %v3832, %v3839
      %v3856 = vadd.f32 %v3833, %v3839
      %v3857 = vmax.f32 %v3841, 0.0
      %v3858 = vmax.f32 %v3842, 0.0
      %v3859 = vmax.f32 %v3843, 0.0
      %v3860 = vmax.f32 %v3844, 0.0
      %v3861 = vmax.f32 %v3845, 0.0
      %v3862 = vmax.f32 %v3846, 0.0
      %v3863 = vmax.f32 %v3847, 0.0
      %v3864 = vmax.f32 %v3848, 0.0
      %v3865 = vmax.f32 %v3849, 0.0
      %v3866 = vmax.f32 %v3850, 0.0
      %v3867 = vmax.f32 %v3851, 0.0
      %v3868 = vmax.f32 %v3852, 0.0
      %v3869 = vmax.f32 %v3853, 0.0
      %v3870 = vmax.f32 %v3854, 0.0
      %v3871 = vmax.f32 %v3855, 0.0
      %v3872 = vmax.f32 %v3856, 0.0
      %3873 = vst.msk [vmem:[%s316] sm:$0xff] %vm2240, %v3857
      %3874 = vst.msk [vmem:[%s316 + $0x8] sm:$0xff] %vm2240, %v3858
      %3875 = vst.msk [vmem:[%s316 + $0x10] sm:$0xff] %vm2240, %v3859
      %3876 = vst.msk [vmem:[%s316 + $0x18] sm:$0xff] %vm2240, %v3860
      %3877 = vst.msk [vmem:[%s316 + $0x20] sm:$0xff] %vm2240, %v3861
      %3878 = vst.msk [vmem:[%s316 + $0x28] sm:$0xff] %vm2240, %v3862
      %3879 = vst.msk [vmem:[%s316 + $0x30] sm:$0xff] %vm2240, %v3863
      %3880 = vst.msk [vmem:[%s316 + $0x38] sm:$0xff] %vm2240, %v3864
      %3881 = vst.msk [vmem:[%s316 + $0x40] sm:$0xff] %vm2240, %v3865
      %3882 = vst.msk [vmem:[%s316 + $0x48] sm:$0xff] %vm2240, %v3866
      %3883 = vst.msk [vmem:[%s316 + $0x50] sm:$0xff] %vm2240, %v3867
      %3884 = vst.msk [vmem:[%s316 + $0x58] sm:$0xff] %vm2240, %v3868
      %3885 = vst.msk [vmem:[%s316 + $0x60] sm:$0xff] %vm2240, %v3869
      %3886 = vst.msk [vmem:[%s316 + $0x68] sm:$0xff] %vm2240, %v3870
      %3887 = vst.msk [vmem:[%s316 + $0x70] sm:$0xff] %vm2240, %v3871
      %3888 = vst.msk [vmem:[%s316 + $0x78] sm:$0xff] %vm2240, %v3872
      %s3889 = smul.u32 8, %s23
      %p3890 = scmp.lt.s32.totalorder %s22, 1
      %s3891 = scalar_select %p3890, %s22, 1
      %p3892 = scmp.lt.s32.totalorder %s3889, 15
      %s3893 = scalar_select %p3892, %s3889, 15
      %s3894 = smul.addr %s3893, 2
      %s3895 = smul.addr %s3891, 32
      %s3896 = sadd.s32 %s3894, %s3895
      %s3897 = smul.addr %s3896, 8
      %s3898 = scalar_lea.vmem %s7, %s3897
      // Predicated region
      $region49: #{tpu_custom_call.1} parent=47 // pred_check
        %p3899 = pneg %p207
      $region50: #{tpu_custom_call.1} parent=47 // pred_check_branch
        %3901 = sbr.rel (%p3899) target = $region52
      $region51: #{tpu_custom_call.1} parent=47 // pred_region
        %s3902 = smul.u32 8, %s23
      $region52: #{tpu_custom_call.1} parent=47 // pred_fallthru
        _
    $region48: #{tpu_custom_call.1} parent=5 // pred_fallthru
      _
    %p3903 = scmp.le.s32.totalorder 2, %s13
    // Predicated region
    $region53: #{tpu_custom_call.1} parent=5 // pred_check
      %p3904 = pneg %p3903
    $region54: #{tpu_custom_call.1} parent=5 // pred_check_branch
      %3906 = sbr.rel (%p3904) target = $region56
    $region55: #{tpu_custom_call.1} parent=5 // pred_region
      %s3907 = ssub.s32 %s13, 2
      // Predicated region
      $region57: #{tpu_custom_call.1} parent=55 // pred_check
        %p3908 = pneg %p213
      $region58: #{tpu_custom_call.1} parent=55 // pred_check_branch
        %3910 = sbr.rel (%p3908) target = $region60
      $region59: #{tpu_custom_call.1} parent=55 // pred_region
        %s3911 = smul.u32 8, %s25
        %p3912 = scmp.lt.s32.totalorder %s24, 1
        %s3913 = scalar_select %p3912, %s24, 1
        %p3914 = scmp.lt.s32.totalorder %s3911, 15
        %s3915 = scalar_select %p3914, %s3911, 15
        %s3916 = smul.addr %s3915, 2
        %s3917 = smul.addr %s3913, 32
        %s3918 = sadd.s32 %s3916, %s3917
        %s3919 = smul.addr %s3918, 8
        %s3920 = scalar_lea.vmem %s7, %s3919
      $region60: #{tpu_custom_call.1} parent=55 // pred_fallthru
        _
    $region56: #{tpu_custom_call.1} parent=5 // pred_fallthru
      _
  $region6: #{tpu_custom_call.1} parent=0 // loop_footer
    %s17 = sadd.s32 1, %s13
  $region7: #{tpu_custom_call.1} parent=0 // loop_footer_branch
    %12 = sbr.rel target = $region3
  $region8: #{tpu_custom_call.1} parent=0 // loop_exit
    _

// kernel: tpu_custom_call.1
$region0: #{tpu_custom_call.1}
  #allocation0 [shape = 'u32[]', space=smem, size = 0x4, offset = 0x4, fixed_abs, tag = 'smem constant byte address 0x4 - core index']
  #allocation1 [shape = 'u32[144,128]{1,0:T(1,128)}', space=vmem, size = 0x12000, scoped, tag = 'internal scratch']
  #allocation2 [shape = 'bf16[128,36]{1,0:T(16,128)(2,1)}', space=vmem, size = 0x8000, scoped, tag = 'scratch operand']
  %s0 = inlined_call_operand.vmem [shape: bf16[2,24,24,4], index: 0, kind: input, shape index: {}]
  %s1 = inlined_call_operand.vmem [shape: bf16[4,8], index: 1, kind: input, shape index: {}]
  %s2 = inlined_call_operand.vmem [shape: bf16[2,36,8], index: 2, kind: input, shape index: {}]
  %s3 = inlined_call_operand.vmem [shape: bf16[24,8], index: 3, kind: input, shape index: {}]
  %s4 = inlined_call_operand.vmem [shape: f32[3,8], index: 4, kind: input, shape index: {}]
  %s5 = inlined_call_operand.vmem [shape: f32[1,8], index: 5, kind: input, shape index: {}]
  %s6 = inlined_call_operand.vmem [shape: f32[2,1,8], index: 6, kind: input, shape index: {}]
  %s7 = inlined_call_operand.vmem [shape: f32[2,16,16,8], index: 7, kind: output, shape index: {}]
  %s8 = sld [smem:[#allocation0]]
  $region61: #{tpu_custom_call.1} parent=0
    _
  %s10 = ssub.s32 1, %s8
  %s11 = scalar_select 0, %s10, %s8
  loop: start=0, step=1, limit=6
  $region2: #{tpu_custom_call.1} parent=0 // loop_pre_header
    _
  $region3: #{tpu_custom_call.1} parent=0 // loop_header
    %s13 = sphi 0, %s17
    %p14 = scmp.ge.s32.totalorder %s13, 6
    %s20 = sphi 0, %s32
    %s21 = sphi 0, %s28
    %s22 = sphi 0, %s20
    %s23 = sphi 0, %s21
    %s24 = sphi 0, %s22
    %s25 = sphi 0, %s23
    %s35 = sphi 0, %s37
    %s38 = sphi 0, %s35
    %s39 = sphi 0, %s38
    %s55 = sphi 0, %s39
    %s59 = sphi 0, %s59
    %s61 = sphi 0, %s59
    %s62 = sphi 0, %s61
    %s76 = sphi 0, %s62
    %s80 = sphi 0, %s80
    %s82 = sphi 0, %s80
    %s83 = sphi 0, %s82
    %s97 = sphi 0, %s83
    %s101 = sphi 0, %s101
    %s103 = sphi 0, %s101
    %s104 = sphi 0, %s103
    %s118 = sphi 0, %s104
    %s122 = sphi 0, %s122
    %s124 = sphi 0, %s122
    %s125 = sphi 0, %s124
    %s139 = sphi 0, %s125
    %s143 = sphi 0, %s143
    %s145 = sphi 0, %s143
    %s146 = sphi 0, %s145
    %s160 = sphi 0, %s146
    %s166 = sphi 0, %s168
    %s169 = sphi 0, %s166
    %s170 = sphi 0, %s169
    %s186 = sphi 0, %s170
    %s194 = sphi 0, %s196
    %s197 = sphi 0, %s194
    %s198 = sphi 0, %s197
    %s214 = sphi 0, %s198
  $region4: #{tpu_custom_call.1} parent=0 // loop_header_branch
    %16 = sbr.rel (%p14) target = $region8
  $region5: #{tpu_custom_call.1} parent=0 // loop_body
    %s18 = ssub.s32 %s13, 1
    %s19 = ssub.s32 %s13, 2
    %s26 = sadd.s32 1, %s21
    %p27 = scmp.ge.s32.totalorder %s26, 2
    %s28 = scalar_select %p27, 0, %s26
    %s29 = sadd.s32 1, %s20
    %s30 = scalar_select %p27, %s29, %s20
    %p31 = scmp.ge.s32.totalorder %s30, 2
    %s32 = scalar_select %p31, 0, %s30
    %s33 = ssub.s32 %s20, %s32
    %p34 = scmp.eq.s32.totalorder %s33, 0
    %s36 = sadd.s32 %s35, 1
    %s37 = scalar_select %p34, %s35, %s36
    %p40 = pneg %p34
    %p41 = scmp.eq.s32.totalorder %s13, 3
    %p42 = por %p40, %p41
    %p43 = scmp.ne.s32.totalorder %s35, %s38
    %p44 = scmp.eq.s32.totalorder %s13, 0
    %p45 = por %p43, %p44
    %p46 = scmp.ne.s32.totalorder %s35, %s38
    %p47 = scmp.eq.s32.totalorder %s18, 3
    %p48 = por %p46, %p47
    %p49 = scmp.ne.s32.totalorder %s38, %s39
    %p50 = scmp.eq.s32.totalorder %s18, 0
    %p51 = por %p49, %p50
    %p52 = scmp.ne.s32.totalorder %s38, %s39
    %p53 = scmp.eq.s32.totalorder %s19, 3
    %p54 = por %p52, %p53
    %p56 = scmp.ne.s32.totalorder %s39, %s55
    %p57 = scmp.eq.s32.totalorder %s19, 0
    %p58 = por %p56, %p57
    %s60 = sadd.s32 %s59, 1
    %p63 = scmp.eq.s32.totalorder %s13, 3
    %p64 = scmp.ne.s32.totalorder %s59, %s61
    %p65 = scmp.eq.s32.totalorder %s13, 0
    %p66 = por %p64, %p65
    %p67 = scmp.ne.s32.totalorder %s59, %s61
    %p68 = scmp.eq.s32.totalorder %s18, 3
    %p69 = por %p67, %p68
    %p70 = scmp.ne.s32.totalorder %s61, %s62
    %p71 = scmp.eq.s32.totalorder %s18, 0
    %p72 = por %p70, %p71
    %p73 = scmp.ne.s32.totalorder %s61, %s62
    %p74 = scmp.eq.s32.totalorder %s19, 3
    %p75 = por %p73, %p74
    %p77 = scmp.ne.s32.totalorder %s62, %s76
    %p78 = scmp.eq.s32.totalorder %s19, 0
    %p79 = por %p77, %p78
    %s81 = sadd.s32 %s80, 1
    %p84 = scmp.eq.s32.totalorder %s13, 3
    %p85 = scmp.ne.s32.totalorder %s80, %s82
    %p86 = scmp.eq.s32.totalorder %s13, 0
    %p87 = por %p85, %p86
    %p88 = scmp.ne.s32.totalorder %s80, %s82
    %p89 = scmp.eq.s32.totalorder %s18, 3
    %p90 = por %p88, %p89
    %p91 = scmp.ne.s32.totalorder %s82, %s83
    %p92 = scmp.eq.s32.totalorder %s18, 0
    %p93 = por %p91, %p92
    %p94 = scmp.ne.s32.totalorder %s82, %s83
    %p95 = scmp.eq.s32.totalorder %s19, 3
    %p96 = por %p94, %p95
    %p98 = scmp.ne.s32.totalorder %s83, %s97
    %p99 = scmp.eq.s32.totalorder %s19, 0
    %p100 = por %p98, %p99
    %s102 = sadd.s32 %s101, 1
    %p105 = scmp.eq.s32.totalorder %s13, 3
    %p106 = scmp.ne.s32.totalorder %s101, %s103
    %p107 = scmp.eq.s32.totalorder %s13, 0
    %p108 = por %p106, %p107
    %p109 = scmp.ne.s32.totalorder %s101, %s103
    %p110 = scmp.eq.s32.totalorder %s18, 3
    %p111 = por %p109, %p110
    %p112 = scmp.ne.s32.totalorder %s103, %s104
    %p113 = scmp.eq.s32.totalorder %s18, 0
    %p114 = por %p112, %p113
    %p115 = scmp.ne.s32.totalorder %s103, %s104
    %p116 = scmp.eq.s32.totalorder %s19, 3
    %p117 = por %p115, %p116
    %p119 = scmp.ne.s32.totalorder %s104, %s118
    %p120 = scmp.eq.s32.totalorder %s19, 0
    %p121 = por %p119, %p120
    %s123 = sadd.s32 %s122, 1
    %p126 = scmp.eq.s32.totalorder %s13, 3
    %p127 = scmp.ne.s32.totalorder %s122, %s124
    %p128 = scmp.eq.s32.totalorder %s13, 0
    %p129 = por %p127, %p128
    %p130 = scmp.ne.s32.totalorder %s122, %s124
    %p131 = scmp.eq.s32.totalorder %s18, 3
    %p132 = por %p130, %p131
    %p133 = scmp.ne.s32.totalorder %s124, %s125
    %p134 = scmp.eq.s32.totalorder %s18, 0
    %p135 = por %p133, %p134
    %p136 = scmp.ne.s32.totalorder %s124, %s125
    %p137 = scmp.eq.s32.totalorder %s19, 3
    %p138 = por %p136, %p137
    %p140 = scmp.ne.s32.totalorder %s125, %s139
    %p141 = scmp.eq.s32.totalorder %s19, 0
    %p142 = por %p140, %p141
    %s144 = sadd.s32 %s143, 1
    %p147 = scmp.eq.s32.totalorder %s13, 3
    %p148 = scmp.ne.s32.totalorder %s143, %s145
    %p149 = scmp.eq.s32.totalorder %s13, 0
    %p150 = por %p148, %p149
    %p151 = scmp.ne.s32.totalorder %s143, %s145
    %p152 = scmp.eq.s32.totalorder %s18, 3
    %p153 = por %p151, %p152
    %p154 = scmp.ne.s32.totalorder %s145, %s146
    %p155 = scmp.eq.s32.totalorder %s18, 0
    %p156 = por %p154, %p155
    %p157 = scmp.ne.s32.totalorder %s145, %s146
    %p158 = scmp.eq.s32.totalorder %s19, 3
    %p159 = por %p157, %p158
    %p161 = scmp.ne.s32.totalorder %s146, %s160
    %p162 = scmp.eq.s32.totalorder %s19, 0
    %p163 = por %p161, %p162
    %s164 = ssub.s32 %s20, %s32
    %p165 = scmp.eq.s32.totalorder %s164, 0
    %s167 = sadd.s32 %s166, 1
    %s168 = scalar_select %p165, %s166, %s167
    %p171 = pneg %p165
    %p172 = scmp.eq.s32.totalorder %s13, 3
    %p173 = por %p171, %p172
    %p174 = scmp.ne.s32.totalorder %s166, %s169
    %p175 = scmp.eq.s32.totalorder %s13, 0
    %p176 = por %p174, %p175
    %p177 = scmp.ne.s32.totalorder %s166, %s169
    %p178 = scmp.eq.s32.totalorder %s18, 3
    %p179 = por %p177, %p178
    %p180 = scmp.ne.s32.totalorder %s169, %s170
    %p181 = scmp.eq.s32.totalorder %s18, 0
    %p182 = por %p180, %p181
    %p183 = scmp.ne.s32.totalorder %s169, %s170
    %p184 = scmp.eq.s32.totalorder %s19, 3
    %p185 = por %p183, %p184
    %p187 = scmp.ne.s32.totalorder %s170, %s186
    %p188 = scmp.eq.s32.totalorder %s19, 0
    %p189 = por %p187, %p188
    %s190 = ssub.s32 %s20, %s32
    %s191 = ssub.s32 %s21, %s28
    %s192 = sor.u32 %s190, %s191
    %p193 = scmp.eq.s32.totalorder %s192, 0
    %s195 = sadd.s32 %s194, 1
    %s196 = scalar_select %p193, %s194, %s195
    %p199 = pneg %p193
    %p200 = scmp.eq.s32.totalorder %s13, 3
    %p201 = por %p199, %p200
    %p202 = scmp.ne.s32.totalorder %s194, %s197
    %p203 = scmp.eq.s32.totalorder %s13, 0
    %p204 = por %p202, %p203
    %p205 = scmp.ne.s32.totalorder %s194, %s197
    %p206 = scmp.eq.s32.totalorder %s18, 3
    %p207 = por %p205, %p206
    %p208 = scmp.ne.s32.totalorder %s197, %s198
    %p209 = scmp.eq.s32.totalorder %s18, 0
    %p210 = por %p208, %p209
    %p211 = scmp.ne.s32.totalorder %s197, %s198
    %p212 = scmp.eq.s32.totalorder %s19, 3
    %p213 = por %p211, %p212
    %p215 = scmp.ne.s32.totalorder %s198, %s214
    %p216 = scmp.eq.s32.totalorder %s19, 0
    %p217 = por %p215, %p216
    %p218 = scmp.le.s32.totalorder 1, %s13
    %p219 = scmp.lt.s32.totalorder %s13, 5
    %p220 = pnand %p218, %p219
    %p221 = pneg %p220
    // Predicated region
    $region9: #{tpu_custom_call.1} parent=5 // pred_check
      _
    $region10: #{tpu_custom_call.1} parent=5 // pred_check_branch
      %223 = sbr.rel (%p220) target = $region12
    $region11: #{tpu_custom_call.1} parent=5 // pred_region
      %s224 = ssub.s32 %s13, 1
      // Predicated region
      $region13: #{tpu_custom_call.1} parent=11 // pred_check
        %p225 = pneg %p72
      $region14: #{tpu_custom_call.1} parent=11 // pred_check_branch
        %227 = sbr.rel (%p225) target = $region16
      $region15: #{tpu_custom_call.1} parent=11 // pred_region
        _
      $region16: #{tpu_custom_call.1} parent=11 // pred_fallthru
        _
      // Predicated region
      $region17: #{tpu_custom_call.1} parent=11 // pred_check
        %p228 = pneg %p93
      $region18: #{tpu_custom_call.1} parent=11 // pred_check_branch
        %230 = sbr.rel (%p228) target = $region20
      $region19: #{tpu_custom_call.1} parent=11 // pred_region
        _
      $region20: #{tpu_custom_call.1} parent=11 // pred_fallthru
        _
      // Predicated region
      $region21: #{tpu_custom_call.1} parent=11 // pred_check
        %p231 = pneg %p114
      $region22: #{tpu_custom_call.1} parent=11 // pred_check_branch
        %233 = sbr.rel (%p231) target = $region24
      $region23: #{tpu_custom_call.1} parent=11 // pred_region
        _
      $region24: #{tpu_custom_call.1} parent=11 // pred_fallthru
        _
      // Predicated region
      $region25: #{tpu_custom_call.1} parent=11 // pred_check
        %p234 = pneg %p135
      $region26: #{tpu_custom_call.1} parent=11 // pred_check_branch
        %236 = sbr.rel (%p234) target = $region28
      $region27: #{tpu_custom_call.1} parent=11 // pred_region
        _
      $region28: #{tpu_custom_call.1} parent=11 // pred_fallthru
        _
      // Predicated region
      $region29: #{tpu_custom_call.1} parent=11 // pred_check
        %p237 = pneg %p156
      $region30: #{tpu_custom_call.1} parent=11 // pred_check_branch
        %239 = sbr.rel (%p237) target = $region32
      $region31: #{tpu_custom_call.1} parent=11 // pred_region
        _
      $region32: #{tpu_custom_call.1} parent=11 // pred_fallthru
        _
    $region12: #{tpu_custom_call.1} parent=5 // pred_fallthru
      _
    %p240 = scmp.lt.s32.totalorder %s13, 4
    // Predicated region
    $region33: #{tpu_custom_call.1} parent=5 // pred_check
      %p241 = pneg %p240
    $region34: #{tpu_custom_call.1} parent=5 // pred_check_branch
      %243 = sbr.rel (%p241) target = $region36
    $region35: #{tpu_custom_call.1} parent=5 // pred_region
      // Predicated region
      $region37: #{tpu_custom_call.1} parent=35 // pred_check
        %p244 = pneg %p45
      $region38: #{tpu_custom_call.1} parent=35 // pred_check_branch
        %246 = sbr.rel (%p244) target = $region40
      $region39: #{tpu_custom_call.1} parent=35 // pred_region
        %p247 = scmp.lt.s32.totalorder %s20, 1
        %s248 = scalar_select %p247, %s20, 1
        %s249 = smul.addr %s248, 72
        %s250 = smul.addr %s249, 4
        %s251 = scalar_lea.vmem %s0, %s250
      $region40: #{tpu_custom_call.1} parent=35 // pred_fallthru
        _
      // Predicated region
      $region41: #{tpu_custom_call.1} parent=35 // pred_check
        %p252 = pneg %p176
      $region42: #{tpu_custom_call.1} parent=35 // pred_check_branch
        %254 = sbr.rel (%p252) target = $region44
      $region43: #{tpu_custom_call.1} parent=35 // pred_region
        %p255 = scmp.lt.s32.totalorder %s20, 1
        %s256 = scalar_select %p255, %s20, 1
        %s257 = scalar_lea.vmem %s6, %s256
      $region44: #{tpu_custom_call.1} parent=35 // pred_fallthru
        _
    $region36: #{tpu_custom_call.1} parent=5 // pred_fallthru
      _
    %p258 = scmp.le.s32.totalorder 1, %s13
    %p259 = scmp.lt.s32.totalorder %s13, 5
    %p260 = pnand %p258, %p259
    %p261 = pneg %p260
    // Predicated region
    $region45: #{tpu_custom_call.1} parent=5 // pred_check
      _
    $region46: #{tpu_custom_call.1} parent=5 // pred_check_branch
      %263 = sbr.rel (%p260) target = $region48
    $region47: #{tpu_custom_call.1} parent=5 // pred_region
      %s264 = ssub.s32 %s13, 1
      %p265 = scmp.lt.s32.totalorder %s22, 1
      %s266 = scalar_select %p265, %s22, 1
      %s267 = smul.addr %s266, 72
      %s268 = smul.addr %s267, 4
      %s269 = scalar_lea.vmem %s0, %s268
      %p270 = pneg %p51
      %p271 = pneg %p48
      %p272 = pneg %p72
      %p273 = pneg %p69
      %p274 = pneg %p93
      %p275 = pneg %p90
      %p276 = pneg %p114
      %p277 = pneg %p111
      %p278 = pneg %p135
      %p279 = pneg %p132
      %p280 = pneg %p156
      %p281 = pneg %p153
      %p282 = scmp.lt.s32.totalorder %s22, 1
      %s283 = scalar_select %p282, %s22, 1
      %s284 = scalar_lea.vmem %s6, %s283
      %p285 = pneg %p182
      %p286 = pneg %p179
      %p287 = pneg %p210
      %p288 = pneg %p207
      %s289 = smul.u32 8, %s23
      %p290 = scmp.lt.s32.totalorder %s22, 1
      %s291 = scalar_select %p290, %s22, 1
      %p292 = scmp.lt.s32.totalorder %s289, 15
      %s293 = scalar_select %p292, %s289, 15
      %s294 = smul.addr %s293, 2
      %s295 = smul.addr %s291, 32
      %s296 = sadd.s32 %s294, %s295
      %s297 = smul.addr %s296, 8
      %s298 = scalar_lea.vmem %s7, %s297
      %p299 = scmp.lt.s32.totalorder %s22, 1
      %s300 = scalar_select %p299, %s22, 1
      %s301 = smul.addr %s300, 72
      %s302 = smul.addr %s301, 4
      %s303 = scalar_lea.vmem %s0, %s302
      %p304 = scmp.lt.s32.totalorder %s22, 1
      %s305 = scalar_select %p304, %s22, 1
      %s306 = scalar_lea.vmem %s6, %s305
      %s307 = smul.u32 8, %s23
      %p308 = scmp.lt.s32.totalorder %s22, 1
      %s309 = scalar_select %p308, %s22, 1
      %p310 = scmp.lt.s32.totalorder %s307, 15
      %s311 = scalar_select %p310, %s307, 15
      %s312 = smul.addr %s311, 2
      %s313 = smul.addr %s309, 32
      %s314 = sadd.s32 %s312, %s313
      %s315 = smul.addr %s314, 8
      %s316 = scalar_lea.vmem %s7, %s315
      %s317 = smul.u32 8, %s23
      %s319 = smul.u32 %s23, 8
      %v320 = vld [vmem:[%s4] sm:$0x7]
      %s321 = sadd.s32 %s319, 4
      %s322 = smul.u32 %s321, 3
      %s323 = smul.addr %s322, 4
      %s324 = scalar_lea.vmem %s303, %s323
      %v325 = vld [vmem:[%s324] sm:$0xc]
      %v326 = vld [vmem:[%s324 + $0x4] sm:$0xf]
      %v327 = vld [vmem:[%s324 + $0x8] sm:$0x3]
      %v328 = vld [vmem:[%s324 + $0xc] sm:$0xc]
      %v329 = vld [vmem:[%s324 + $0x10] sm:$0xf]
      %v330 = vld [vmem:[%s324 + $0x14] sm:$0x3]
      %v331 = vld [vmem:[%s324 + $0x18] sm:$0xc]
      %v332 = vld [vmem:[%s324 + $0x1c] sm:$0xf]
      %v333 = vld [vmem:[%s324 + $0x20] sm:$0x3]
      %v334 = vld [vmem:[%s324 + $0x24] sm:$0xc]
      %v335 = vld [vmem:[%s324 + $0x28] sm:$0xf]
      %v336 = vld [vmem:[%s324 + $0x2c] sm:$0x3]
      %v337 = vld [vmem:[%s324 + $0x30] sm:$0xc]
      %v338 = vld [vmem:[%s324 + $0x34] sm:$0xf]
      %v339 = vld [vmem:[%s324 + $0x38] sm:$0x3]
      %v340 = vld [vmem:[%s324 + $0x3c] sm:$0xc]
      %v341 = vld [vmem:[%s324 + $0x40] sm:$0xf]
      %v342 = vld [vmem:[%s324 + $0x44] sm:$0x3]
      %v343 = vld [vmem:[%s324 + $0x48] sm:$0xc]
      %v344 = vld [vmem:[%s324 + $0x4c] sm:$0xf]
      %v345 = vld [vmem:[%s324 + $0x50] sm:$0x3]
      %v346 = vld [vmem:[%s324 + $0x54] sm:$0xc]
      %v347 = vld [vmem:[%s324 + $0x58] sm:$0xf]
      %v348 = vld [vmem:[%s324 + $0x5c] sm:$0x3]
      %vm373 = vcmask 1041408
      %vm374 = vcmask 1045508
      %vm375 = vmor %vm373, %vm374
      %v376 = vrot.slane %v325, 6
      %v377 = vrot.slane %v376, 4
      %v378 = vrot.slane %v326, 6
      %v379 = vsel %vm375, %v377, %v378
      %v380 = vrot.slane %v378, 4
      %v381 = vrot.slane %v327, 6
      %v382 = vsel %vm375, %v380, %v381
      %v383 = vrot.slane %v328, 6
      %v384 = vrot.slane %v383, 4
      %v385 = vrot.slane %v329, 6
      %v386 = vsel %vm375, %v384, %v385
      %v387 = vrot.slane %v385, 4
      %v388 = vrot.slane %v330, 6
      %v389 = vsel %vm375, %v387, %v388
      %v390 = vrot.slane %v331, 6
      %v391 = vrot.slane %v390, 4
      %v392 = vrot.slane %v332, 6
      %v393 = vsel %vm375, %v391, %v392
      %v394 = vrot.slane %v392, 4
      %v395 = vrot.slane %v333, 6
      %v396 = vsel %vm375, %v394, %v395
      %v397 = vrot.slane %v334, 6
      %v398 = vrot.slane %v397, 4
      %v399 = vrot.slane %v335, 6
      %v400 = vsel %vm375, %v398, %v399
      %v401 = vrot.slane %v399, 4
      %v402 = vrot.slane %v336, 6
      %v403 = vsel %vm375, %v401, %v402
      %v404 = vrot.slane %v337, 6
      %v405 = vrot.slane %v404, 4
      %v406 = vrot.slane %v338, 6
      %v407 = vsel %vm375, %v405, %v406
      %v408 = vrot.slane %v406, 4
      %v409 = vrot.slane %v339, 6
      %v410 = vsel %vm375, %v408, %v409
      %v411 = vrot.slane %v340, 6
      %v412 = vrot.slane %v411, 4
      %v413 = vrot.slane %v341, 6
      %v414 = vsel %vm375, %v412, %v413
      %v415 = vrot.slane %v413, 4
      %v416 = vrot.slane %v342, 6
      %v417 = vsel %vm375, %v415, %v416
      %v418 = vrot.slane %v343, 6
      %v419 = vrot.slane %v418, 4
      %v420 = vrot.slane %v344, 6
      %v421 = vsel %vm375, %v419, %v420
      %v422 = vrot.slane %v420, 4
      %v423 = vrot.slane %v345, 6
      %v424 = vsel %vm375, %v422, %v423
      %v425 = vrot.slane %v346, 6
      %v426 = vrot.slane %v425, 4
      %v427 = vrot.slane %v347, 6
      %v428 = vsel %vm375, %v426, %v427
      %v429 = vrot.slane %v427, 4
      %v430 = vrot.slane %v348, 6
      %v431 = vsel %vm375, %v429, %v430
      %v432 = vld [vmem:[%s1] sm:$0x3]
      %v433 = vlaneseq
      %v434 = vshrl.u32 %v433, 7
      %v435 = vsub.s32 0, %v434
      %v436 = vrot.slane %v320, %v435
      %v437 = vunpack.c.l.b16 %v379
      %v438 = vunpack.c.l.b16 %v382
      %v439 = vunpack.c.l.b16 %v386
      %v440 = vunpack.c.l.b16 %v389
      %v441 = vunpack.c.l.b16 %v393
      %v442 = vunpack.c.l.b16 %v396
      %v443 = vunpack.c.l.b16 %v400
      %v444 = vunpack.c.l.b16 %v403
      %v445 = vunpack.c.l.b16 %v407
      %v446 = vunpack.c.l.b16 %v410
      %v447 = vunpack.c.l.b16 %v414
      %v448 = vunpack.c.l.b16 %v417
      %v449 = vunpack.c.l.b16 %v421
      %v450 = vunpack.c.l.b16 %v424
      %v451 = vunpack.c.l.b16 %v428
      %v452 = vunpack.c.l.b16 %v431
      %v453 = vpack.c.b16 %v438, %v437
      %v454 = vpack.c.b16 %v440, %v439
      %v455 = vpack.c.b16 %v442, %v441
      %v456 = vpack.c.b16 %v444, %v443
      %v457 = vpack.c.b16 %v446, %v445
      %v458 = vpack.c.b16 %v448, %v447
      %v459 = vpack.c.b16 %v450, %v449
      %v460 = vpack.c.b16 %v452, %v451
      %vm461 = vcmask 31744
      %v463 = vsel %vm461, %v453, 0
      %v466 = vsel %vm461, %v454, 0
      %v469 = vsel %vm461, %v455, 0
      %v472 = vsel %vm461, %v456, 0
      %v475 = vsel %vm461, %v457, 0
      %v478 = vsel %vm461, %v458, 0
      %v481 = vsel %vm461, %v459, 0
      %v484 = vsel %vm461, %v460, 0
      %vm486 = vcmask 1041408
      %v488 = vsel %vm486, %v432, 0
      %490 = vmatprep.subr.bf16.mxu0 0
      %491 = vmatpush1.bf16.msra.mxu0 %v488
      %492 = vmatprep.subr.bf16.mxu0 0
      %493 = vmatpush1.bf16.msra.mxu0 0
      %494 = vmatprep.subr.bf16.mxu0 0
      %495 = vmatpush1.bf16.msra.mxu0 0
      %496 = vmatprep.subr.bf16.mxu0 0
      %497 = vmatpush1.bf16.msra.mxu0 0
      %498 = vmatprep.subr.bf16.mxu0 0
      %499 = vmatpush1.bf16.msra.mxu0 0
      %500 = vmatprep.subr.bf16.mxu0 0
      %501 = vmatpush1.bf16.msra.mxu0 0
      %502 = vmatprep.subr.bf16.mxu0 0
      %503 = vmatpush1.bf16.msra.mxu0 0
      %504 = vmatprep.subr.bf16.mxu0 0
      %505 = vmatpush1.bf16.msra.mxu0 0
      %506 = vmatprep.subr.bf16.mxu0 0
      %507 = vmatpush1.bf16.msra.mxu0 0
      %508 = vmatprep.subr.bf16.mxu0 0
      %509 = vmatpush1.bf16.msra.mxu0 0
      %510 = vmatprep.subr.bf16.mxu0 0
      %511 = vmatpush1.bf16.msra.mxu0 0
      %512 = vmatprep.subr.bf16.mxu0 0
      %513 = vmatpush1.bf16.msra.mxu0 0
      %514 = vmatprep.subr.bf16.mxu0 0
      %515 = vmatpush1.bf16.msra.mxu0 0
      %516 = vmatprep.subr.bf16.mxu0 0
      %517 = vmatpush1.bf16.msra.mxu0 0
      %518 = vmatprep.subr.bf16.mxu0 0
      %519 = vmatpush1.bf16.msra.mxu0 0
      %520 = vmatprep.subr.bf16.mxu0 0
      %521 = vmatpush1.bf16.msra.mxu0 0
      %522 = vmatprep.mubr.bf16.mxu0 0
      %523 = vmatmul.mubr.bf16.gmra.mrb[0].mxu0 %v463
      %v524 = vpop.f32.mrb[0].mxu0
      %v525 = vadd.f32 %v436, %v524
      %v526 = vpop.f32.mrb[0].mxu0
      %v527 = vpop.f32.mrb[0].mxu0
      %v528 = vadd.f32 %v436, %v527
      %v529 = vpop.f32.mrb[0].mxu0
      %530 = vmatprep.mubr.bf16.mxu0 0
      %531 = vmatmul.mubr.bf16.gmra.mrb[0].mxu0 %v466
      %v532 = vpop.f32.mrb[0].mxu0
      %v533 = vadd.f32 %v436, %v532
      %v534 = vpop.f32.mrb[0].mxu0
      %v535 = vpop.f32.mrb[0].mxu0
      %v536 = vadd.f32 %v436, %v535
      %v537 = vpop.f32.mrb[0].mxu0
      %538 = vmatprep.mubr.bf16.mxu0 0
      %539 = vmatmul.mubr.bf16.gmra.mrb[0].mxu0 %v469
      %v540 = vpop.f32.mrb[0].mxu0
      %v541 = vadd.f32 %v436, %v540
      %v542 = vpop.f32.mrb[0].mxu0
      %v543 = vpop.f32.mrb[0].mxu0
      %v544 = vadd.f32 %v436, %v543
      %v545 = vpop.f32.mrb[0].mxu0
      %546 = vmatprep.mubr.bf16.mxu0 0
      %547 = vmatmul.mubr.bf16.gmra.mrb[0].mxu0 %v472
      %v548 = vpop.f32.mrb[0].mxu0
      %v549 = vadd.f32 %v436, %v548
      %v550 = vpop.f32.mrb[0].mxu0
      %v551 = vpop.f32.mrb[0].mxu0
      %v552 = vadd.f32 %v436, %v551
      %v553 = vpop.f32.mrb[0].mxu0
      %554 = vmatprep.mubr.bf16.mxu0 0
      %555 = vmatmul.mubr.bf16.gmra.mrb[0].mxu0 %v475
      %v556 = vpop.f32.mrb[0].mxu0
      %v557 = vadd.f32 %v436, %v556
      %v558 = vpop.f32.mrb[0].mxu0
      %v559 = vpop.f32.mrb[0].mxu0
      %v560 = vadd.f32 %v436, %v559
      %v561 = vpop.f32.mrb[0].mxu0
      %562 = vmatprep.mubr.bf16.mxu0 0
      %563 = vmatmul.mubr.bf16.gmra.mrb[0].mxu0 %v478
      %v564 = vpop.f32.mrb[0].mxu0
      %v565 = vadd.f32 %v436, %v564
      %v566 = vpop.f32.mrb[0].mxu0
      %v567 = vpop.f32.mrb[0].mxu0
      %v568 = vadd.f32 %v436, %v567
      %v569 = vpop.f32.mrb[0].mxu0
      %570 = vmatprep.mubr.bf16.mxu0 0
      %571 = vmatmul.mubr.bf16.gmra.mrb[0].mxu0 %v481
      %v572 = vpop.f32.mrb[0].mxu0
      %v573 = vadd.f32 %v436, %v572
      %v574 = vpop.f32.mrb[0].mxu0
      %v575 = vpop.f32.mrb[0].mxu0
      %v576 = vadd.f32 %v436, %v575
      %v577 = vpop.f32.mrb[0].mxu0
      %578 = vmatprep.mubr.bf16.mxu0 0
      %579 = vmatmul.mubr.bf16.gmra.mrb[0].mxu0 %v484
      %v580 = vpop.f32.mrb[0].mxu0
      %v581 = vadd.f32 %v436, %v580
      %v582 = vpop.f32.mrb[0].mxu0
      %v583 = vpop.f32.mrb[0].mxu0
      %v584 = vadd.f32 %v436, %v583
      %v585 = vpop.f32.mrb[0].mxu0
      %586 = vdwg.mxu0
      %v587 = vmax.f32 %v525, 0.0
      %v588 = vmax.f32 %v528, 0.0
      %v589 = vmax.f32 %v533, 0.0
      %v590 = vmax.f32 %v536, 0.0
      %v591 = vmax.f32 %v541, 0.0
      %v592 = vmax.f32 %v544, 0.0
      %v593 = vmax.f32 %v549, 0.0
      %v594 = vmax.f32 %v552, 0.0
      %v595 = vmax.f32 %v557, 0.0
      %v596 = vmax.f32 %v560, 0.0
      %v597 = vmax.f32 %v565, 0.0
      %v598 = vmax.f32 %v568, 0.0
      %v599 = vmax.f32 %v573, 0.0
      %v600 = vmax.f32 %v576, 0.0
      %v601 = vmax.f32 %v581, 0.0
      %v602 = vmax.f32 %v584, 0.0
      %v603 = vpack.c.bf16 %v588, %v587
      %v604 = vpack.c.bf16 %v590, %v589
      %v605 = vpack.c.bf16 %v592, %v591
      %v606 = vpack.c.bf16 %v594, %v593
      %v607 = vpack.c.bf16 %v596, %v595
      %v608 = vpack.c.bf16 %v598, %v597
      %v609 = vpack.c.bf16 %v600, %v599
      %v610 = vpack.c.bf16 %v602, %v601
      %v611 = vld [vmem:[%s3] sm:$0xf]
      %s612 = sadd.s32 %s319, 2
      %s613 = smul.u32 %s612, 3
      %s614 = smul.addr %s613, 4
      %s615 = scalar_lea.vmem %s303, %s614
      %v616 = vld [vmem:[%s615] sm:$0xe]
      %v617 = vld [vmem:[%s615 + $0x4] sm:$0xf]
      %v618 = vld [vmem:[%s615 + $0x8] sm:$0x1]
      %v619 = vld [vmem:[%s615 + $0xc] sm:$0xe]
      %v620 = vld [vmem:[%s615 + $0x10] sm:$0xf]
      %v621 = vld [vmem:[%s615 + $0x14] sm:$0x1]
      %v622 = vld [vmem:[%s615 + $0x18] sm:$0xe]
      %v623 = vld [vmem:[%s615 + $0x1c] sm:$0xf]
      %v624 = vld [vmem:[%s615 + $0x20] sm:$0x1]
      %v625 = vld [vmem:[%s615 + $0x24] sm:$0xe]
      %v626 = vld [vmem:[%s615 + $0x28] sm:$0xf]
      %v627 = vld [vmem:[%s615 + $0x2c] sm:$0x1]
      %v628 = vld [vmem:[%s615 + $0x30] sm:$0xe]
      %v629 = vld [vmem:[%s615 + $0x34] sm:$0xf]
      %v630 = vld [vmem:[%s615 + $0x38] sm:$0x1]
      %v631 = vld [vmem:[%s615 + $0x3c] sm:$0xe]
      %v632 = vld [vmem:[%s615 + $0x40] sm:$0xf]
      %v633 = vld [vmem:[%s615 + $0x44] sm:$0x1]
      %v634 = vld [vmem:[%s615 + $0x48] sm:$0xe]
      %v635 = vld [vmem:[%s615 + $0x4c] sm:$0xf]
      %v636 = vld [vmem:[%s615 + $0x50] sm:$0x1]
      %v637 = vld [vmem:[%s615 + $0x54] sm:$0xe]
      %v638 = vld [vmem:[%s615 + $0x58] sm:$0xf]
      %v639 = vld [vmem:[%s615 + $0x5c] sm:$0x1]
      %vm664 = vcmask 1042432
      %vm665 = vcmask 1046532
      %vm666 = vmor %vm664, %vm665
      %v667 = vrot.slane %v616, 5
      %v668 = vrot.slane %v667, 4
      %v669 = vrot.slane %v617, 5
      %v670 = vsel %vm666, %v668, %v669
      %v671 = vrot.slane %v669, 4
      %v672 = vrot.slane %v618, 5
      %v673 = vsel %vm666, %v671, %v672
      %v674 = vrot.slane %v619, 5
      %v675 = vrot.slane %v674, 4
      %v676 = vrot.slane %v620, 5
      %v677 = vsel %vm666, %v675, %v676
      %v678 = vrot.slane %v676, 4
      %v679 = vrot.slane %v621, 5
      %v680 = vsel %vm666, %v678, %v679
      %v681 = vrot.slane %v622, 5
      %v682 = vrot.slane %v681, 4
      %v683 = vrot.slane %v623, 5
      %v684 = vsel %vm666, %v682, %v683
      %v685 = vrot.slane %v683, 4
      %v686 = vrot.slane %v624, 5
      %v687 = vsel %vm666, %v685, %v686
      %v688 = vrot.slane %v625, 5
      %v689 = vrot.slane %v688, 4
      %v690 = vrot.slane %v626, 5
      %v691 = vsel %vm666, %v689, %v690
      %v692 = vrot.slane %v690, 4
      %v693 = vrot.slane %v627, 5
      %v694 = vsel %vm666, %v692, %v693
      %v695 = vrot.slane %v628, 5
      %v696 = vrot.slane %v695, 4
      %v697 = vrot.slane %v629, 5
      %v698 = vsel %vm666, %v696, %v697
      %v699 = vrot.slane %v697, 4
      %v700 = vrot.slane %v630, 5
      %v701 = vsel %vm666, %v699, %v700
      %v702 = vrot.slane %v631, 5
      %v703 = vrot.slane %v702, 4
      %v704 = vrot.slane %v632, 5
      %v705 = vsel %vm666, %v703, %v704
      %v706 = vrot.slane %v704, 4
      %v707 = vrot.slane %v633, 5
      %v708 = vsel %vm666, %v706, %v707
      %v709 = vrot.slane %v634, 5
      %v710 = vrot.slane %v709, 4
      %v711 = vrot.slane %v635, 5
      %v712 = vsel %vm666, %v710, %v711
      %v713 = vrot.slane %v711, 4
      %v714 = vrot.slane %v636, 5
      %v715 = vsel %vm666, %v713, %v714
      %v716 = vrot.slane %v637, 5
      %v717 = vrot.slane %v716, 4
      %v718 = vrot.slane %v638, 5
      %v719 = vsel %vm666, %v717, %v718
      %v720 = vrot.slane %v718, 4
      %v721 = vrot.slane %v639, 5
      %v722 = vsel %vm666, %v720, %v721
      %v723 = vunpack.c.l.b16 %v670
      %v724 = vunpack.c.l.b16 %v673
      %v725 = vunpack.c.l.b16 %v677
      %v726 = vunpack.c.l.b16 %v680
      %v727 = vunpack.c.l.b16 %v684
      %v728 = vunpack.c.l.b16 %v687
      %v729 = vunpack.c.l.b16 %v691
      %v730 = vunpack.c.l.b16 %v694
      %v731 = vunpack.c.l.b16 %v698
      %v732 = vunpack.c.l.b16 %v701
      %v733 = vunpack.c.l.b16 %v705
      %v734 = vunpack.c.l.b16 %v708
      %v735 = vunpack.c.l.b16 %v712
      %v736 = vunpack.c.l.b16 %v715
      %v737 = vunpack.c.l.b16 %v719
      %v738 = vunpack.c.l.b16 %v722
      %v739 = vpack.c.b16 %v724, %v723
      %v740 = vpack.c.b16 %v726, %v725
      %v741 = vpack.c.b16 %v728, %v727
      %v742 = vpack.c.b16 %v730, %v729
      %v743 = vpack.c.b16 %v732, %v731
      %v744 = vpack.c.b16 %v734, %v733
      %v745 = vpack.c.b16 %v736, %v735
      %v746 = vpack.c.b16 %v738, %v737
      %755 = vst.msk [vmem:[#allocation2] sm:$0xff] %vm461, %v739
      %756 = vst.msk [vmem:[#allocation2 + $0x8] sm:$0xff] %vm461, %v740
      %757 = vst.msk [vmem:[#allocation2 + $0x10] sm:$0xff] %vm461, %v741
      %758 = vst.msk [vmem:[#allocation2 + $0x18] sm:$0xff] %vm461, %v742
      %759 = vst.msk [vmem:[#allocation2 + $0x20] sm:$0xff] %vm461, %v743
      %760 = vst.msk [vmem:[#allocation2 + $0x28] sm:$0xff] %vm461, %v744
      %761 = vst.msk [vmem:[#allocation2 + $0x30] sm:$0xff] %vm461, %v745
      %762 = vst.msk [vmem:[#allocation2 + $0x38] sm:$0xff] %vm461, %v746
      %v763 = vld [vmem:[%s615] sm:$0xc]
      %v764 = vld [vmem:[%s615 + $0x4] sm:$0xf]
      %v765 = vld [vmem:[%s615 + $0x8] sm:$0x3]
      %v766 = vld [vmem:[%s615 + $0xc] sm:$0xc]
      %v767 = vld [vmem:[%s615 + $0x10] sm:$0xf]
      %v768 = vld [vmem:[%s615 + $0x14] sm:$0x3]
      %v769 = vld [vmem:[%s615 + $0x18] sm:$0xc]
      %v770 = vld [vmem:[%s615 + $0x1c] sm:$0xf]
      %v771 = vld [vmem:[%s615 + $0x20] sm:$0x3]
      %v772 = vld [vmem:[%s615 + $0x24] sm:$0xc]
      %v773 = vld [vmem:[%s615 + $0x28] sm:$0xf]
      %v774 = vld [vmem:[%s615 + $0x2c] sm:$0x3]
      %v775 = vld [vmem:[%s615 + $0x30] sm:$0xc]
      %v776 = vld [vmem:[%s615 + $0x34] sm:$0xf]
      %v777 = vld [vmem:[%s615 + $0x38] sm:$0x3]
      %v778 = vld [vmem:[%s615 + $0x3c] sm:$0xc]
      %v779 = vld [vmem:[%s615 + $0x40] sm:$0xf]
      %v780 = vld [vmem:[%s615 + $0x44] sm:$0x3]
      %v781 = vld [vmem:[%s615 + $0x48] sm:$0xc]
      %v782 = vld [vmem:[%s615 + $0x4c] sm:$0xf]
      %v783 = vld [vmem:[%s615 + $0x50] sm:$0x3]
      %v784 = vld [vmem:[%s615 + $0x54] sm:$0xc]
      %v785 = vld [vmem:[%s615 + $0x58] sm:$0xf]
      %v786 = vld [vmem:[%s615 + $0x5c] sm:$0x3]
      %v811 = vrot.slane %v763, 6
      %v812 = vrot.slane %v811, 4
      %v813 = vrot.slane %v764, 6
      %v814 = vsel %vm375, %v812, %v813
      %v815 = vrot.slane %v813, 4
      %v816 = vrot.slane %v765, 6
      %v817 = vsel %vm375, %v815, %v816
      %v818 = vrot.slane %v766, 6
      %v819 = vrot.slane %v818, 4
      %v820 = vrot.slane %v767, 6
      %v821 = vsel %vm375, %v819, %v820
      %v822 = vrot.slane %v820, 4
      %v823 = vrot.slane %v768, 6
      %v824 = vsel %vm375, %v822, %v823
      %v825 = vrot.slane %v769, 6
      %v826 = vrot.slane %v825, 4
      %v827 = vrot.slane %v770, 6
      %v828 = vsel %vm375, %v826, %v827
      %v829 = vrot.slane %v827, 4
      %v830 = vrot.slane %v771, 6
      %v831 = vsel %vm375, %v829, %v830
      %v832 = vrot.slane %v772, 6
      %v833 = vrot.slane %v832, 4
      %v834 = vrot.slane %v773, 6
      %v835 = vsel %vm375, %v833, %v834
      %v836 = vrot.slane %v834, 4
      %v837 = vrot.slane %v774, 6
      %v838 = vsel %vm375, %v836, %v837
      %v839 = vrot.slane %v775, 6
      %v840 = vrot.slane %v839, 4
      %v841 = vrot.slane %v776, 6
      %v842 = vsel %vm375, %v840, %v841
      %v843 = vrot.slane %v841, 4
      %v844 = vrot.slane %v777, 6
      %v845 = vsel %vm375, %v843, %v844
      %v846 = vrot.slane %v778, 6
      %v847 = vrot.slane %v846, 4
      %v848 = vrot.slane %v779, 6
      %v849 = vsel %vm375, %v847, %v848
      %v850 = vrot.slane %v848, 4
      %v851 = vrot.slane %v780, 6
      %v852 = vsel %vm375, %v850, %v851
      %v853 = vrot.slane %v781, 6
      %v854 = vrot.slane %v853, 4
      %v855 = vrot.slane %v782, 6
      %v856 = vsel %vm375, %v854, %v855
      %v857 = vrot.slane %v855, 4
      %v858 = vrot.slane %v783, 6
      %v859 = vsel %vm375, %v857, %v858
      %v860 = vrot.slane %v784, 6
      %v861 = vrot.slane %v860, 4
      %v862 = vrot.slane %v785, 6
      %v863 = vsel %vm375, %v861, %v862
      %v864 = vrot.slane %v862, 4
      %v865 = vrot.slane %v786, 6
      %v866 = vsel %vm375, %v864, %v865
      %v867 = vunpack.c.l.b16 %v814
      %v868 = vunpack.c.l.b16 %v817
      %v869 = vunpack.c.l.b16 %v821
      %v870 = vunpack.c.l.b16 %v824
      %v871 = vunpack.c.l.b16 %v828
      %v872 = vunpack.c.l.b16 %v831
      %v873 = vunpack.c.l.b16 %v835
      %v874 = vunpack.c.l.b16 %v838
      %v875 = vunpack.c.l.b16 %v842
      %v876 = vunpack.c.l.b16 %v845
      %v877 = vunpack.c.l.b16 %v849
      %v878 = vunpack.c.l.b16 %v852
      %v879 = vunpack.c.l.b16 %v856
      %v880 = vunpack.c.l.b16 %v859
      %v881 = vunpack.c.l.b16 %v863
      %v882 = vunpack.c.l.b16 %v866
      %v883 = vpack.c.b16 %v868, %v867
      %v884 = vpack.c.b16 %v870, %v869
      %v885 = vpack.c.b16 %v872, %v871
      %v886 = vpack.c.b16 %v874, %v873
      %v887 = vpack.c.b16 %v876, %v875
      %v888 = vpack.c.b16 %v878, %v877
      %v889 = vpack.c.b16 %v880, %v879
      %v890 = vpack.c.b16 %v882, %v881
      %891 = vrot.lane.b32.xlu0 %v883, 4
      %v892 = vpop.permute.xlu0 %891
      %893 = vrot.lane.b32.xlu0 %v884, 4
      %v894 = vpop.permute.xlu0 %893
      %895 = vrot.lane.b32.xlu0 %v885, 4
      %v896 = vpop.permute.xlu0 %895
      %897 = vrot.lane.b32.xlu0 %v886, 4
      %v898 = vpop.permute.xlu0 %897
      %899 = vrot.lane.b32.xlu0 %v887, 4
      %v900 = vpop.permute.xlu0 %899
      %901 = vrot.lane.b32.xlu0 %v888, 4
      %v902 = vpop.permute.xlu0 %901
      %903 = vrot.lane.b32.xlu0 %v889, 4
      %v904 = vpop.permute.xlu0 %903
      %905 = vrot.lane.b32.xlu0 %v890, 4
      %v906 = vpop.permute.xlu0 %905
      %vm915 = vcmask 64544
      %916 = vst.msk [vmem:[#allocation2] sm:$0xff] %vm915, %v892
      %917 = vst.msk [vmem:[#allocation2 + $0x8] sm:$0xff] %vm915, %v894
      %918 = vst.msk [vmem:[#allocation2 + $0x10] sm:$0xff] %vm915, %v896
      %919 = vst.msk [vmem:[#allocation2 + $0x18] sm:$0xff] %vm915, %v898
      %920 = vst.msk [vmem:[#allocation2 + $0x20] sm:$0xff] %vm915, %v900
      %921 = vst.msk [vmem:[#allocation2 + $0x28] sm:$0xff] %vm915, %v902
      %922 = vst.msk [vmem:[#allocation2 + $0x30] sm:$0xff] %vm915, %v904
      %923 = vst.msk [vmem:[#allocation2 + $0x38] sm:$0xff] %vm915, %v906
      %v924 = vld [vmem:[%s615] sm:$0x8]
      %v925 = vld [vmem:[%s615 + $0x4] sm:$0xf]
      %v926 = vld [vmem:[%s615 + $0x8] sm:$0x7]
      %v927 = vld [vmem:[%s615 + $0xc] sm:$0x8]
      %v928 = vld [vmem:[%s615 + $0x10] sm:$0xf]
      %v929 = vld [vmem:[%s615 + $0x14] sm:$0x7]
      %v930 = vld [vmem:[%s615 + $0x18] sm:$0x8]
      %v931 = vld [vmem:[%s615 + $0x1c] sm:$0xf]
      %v932 = vld [vmem:[%s615 + $0x20] sm:$0x7]
      %v933 = vld [vmem:[%s615 + $0x24] sm:$0x8]
      %v934 = vld [vmem:[%s615 + $0x28] sm:$0xf]
      %v935 = vld [vmem:[%s615 + $0x2c] sm:$0x7]
      %v936 = vld [vmem:[%s615 + $0x30] sm:$0x8]
      %v937 = vld [vmem:[%s615 + $0x34] sm:$0xf]
      %v938 = vld [vmem:[%s615 + $0x38] sm:$0x7]
      %v939 = vld [vmem:[%s615 + $0x3c] sm:$0x8]
      %v940 = vld [vmem:[%s615 + $0x40] sm:$0xf]
      %v941 = vld [vmem:[%s615 + $0x44] sm:$0x7]
      %v942 = vld [vmem:[%s615 + $0x48] sm:$0x8]
      %v943 = vld [vmem:[%s615 + $0x4c] sm:$0xf]
      %v944 = vld [vmem:[%s615 + $0x50] sm:$0x7]
      %v945 = vld [vmem:[%s615 + $0x54] sm:$0x8]
      %v946 = vld [vmem:[%s615 + $0x58] sm:$0xf]
      %v947 = vld [vmem:[%s615 + $0x5c] sm:$0x7]
      %vm972 = vcmask 1040384
      %vm973 = vcmask 1044484
      %vm974 = vmor %vm972, %vm973
      %v975 = vrot.slane %v924, 7
      %v976 = vrot.slane %v975, 4
      %v977 = vrot.slane %v925, 7
      %v978 = vsel %vm974, %v976, %v977
      %v979 = vrot.slane %v977, 4
      %v980 = vrot.slane %v926, 7
      %v981 = vsel %vm974, %v979, %v980
      %v982 = vrot.slane %v927, 7
      %v983 = vrot.slane %v982, 4
      %v984 = vrot.slane %v928, 7
      %v985 = vsel %vm974, %v983, %v984
      %v986 = vrot.slane %v984, 4
      %v987 = vrot.slane %v929, 7
      %v988 = vsel %vm974, %v986, %v987
      %v989 = vrot.slane %v930, 7
      %v990 = vrot.slane %v989, 4
      %v991 = vrot.slane %v931, 7
      %v992 = vsel %vm974, %v990, %v991
      %v993 = vrot.slane %v991, 4
      %v994 = vrot.slane %v932, 7
      %v995 = vsel %vm974, %v993, %v994
      %v996 = vrot.slane %v933, 7
      %v997 = vrot.slane %v996, 4
      %v998 = vrot.slane %v934, 7
      %v999 = vsel %vm974, %v997, %v998
      %v1000 = vrot.slane %v998, 4
      %v1001 = vrot.slane %v935, 7
      %v1002 = vsel %vm974, %v1000, %v1001
      %v1003 = vrot.slane %v936, 7
      %v1004 = vrot.slane %v1003, 4
      %v1005 = vrot.slane %v937, 7
      %v1006 = vsel %vm974, %v1004, %v1005
      %v1007 = vrot.slane %v1005, 4
      %v1008 = vrot.slane %v938, 7
      %v1009 = vsel %vm974, %v1007, %v1008
      %v1010 = vrot.slane %v939, 7
      %v1011 = vrot.slane %v1010, 4
      %v1012 = vrot.slane %v940, 7
      %v1013 = vsel %vm974, %v1011, %v1012
      %v1014 = vrot.slane %v1012, 4
      %v1015 = vrot.slane %v941, 7
      %v1016 = vsel %vm974, %v1014, %v1015
      %v1017 = vrot.slane %v942, 7
      %v1018 = vrot.slane %v1017, 4
      %v1019 = vrot.slane %v943, 7
      %v1020 = vsel %vm974, %v1018, %v1019
      %v1021 = vrot.slane %v1019, 4
      %v1022 = vrot.slane %v944, 7
      %v1023 = vsel %vm974, %v1021, %v1022
      %v1024 = vrot.slane %v945, 7
      %v1025 = vrot.slane %v1024, 4
      %v1026 = vrot.slane %v946, 7
      %v1027 = vsel %vm974, %v1025, %v1026
      %v1028 = vrot.slane %v1026, 4
      %v1029 = vrot.slane %v947, 7
      %v1030 = vsel %vm974, %v1028, %v1029
      %v1031 = vunpack.c.l.b16 %v978
      %v1032 = vunpack.c.l.b16 %v981
      %v1033 = vunpack.c.l.b16 %v985
      %v1034 = vunpack.c.l.b16 %v988
      %v1035 = vunpack.c.l.b16 %v992
      %v1036 = vunpack.c.l.b16 %v995
      %v1037 = vunpack.c.l.b16 %v999
      %v1038 = vunpack.c.l.b16 %v1002
      %v1039 = vunpack.c.l.b16 %v1006
      %v1040 = vunpack.c.l.b16 %v1009
      %v1041 = vunpack.c.l.b16 %v1013
      %v1042 = vunpack.c.l.b16 %v1016
      %v1043 = vunpack.c.l.b16 %v1020
      %v1044 = vunpack.c.l.b16 %v1023
      %v1045 = vunpack.c.l.b16 %v1027
      %v1046 = vunpack.c.l.b16 %v1030
      %v1047 = vpack.c.b16 %v1032, %v1031
      %v1048 = vpack.c.b16 %v1034, %v1033
      %v1049 = vpack.c.b16 %v1036, %v1035
      %v1050 = vpack.c.b16 %v1038, %v1037
      %v1051 = vpack.c.b16 %v1040, %v1039
      %v1052 = vpack.c.b16 %v1042, %v1041
      %v1053 = vpack.c.b16 %v1044, %v1043
      %v1054 = vpack.c.b16 %v1046, %v1045
      %1055 = vrot.lane.b32.xlu0 %v1047, 8
      %v1056 = vpop.permute.xlu0 %1055
      %1057 = vrot.lane.b32.xlu0 %v1048, 8
      %v1058 = vpop.permute.xlu0 %1057
      %1059 = vrot.lane.b32.xlu0 %v1049, 8
      %v1060 = vpop.permute.xlu0 %1059
      %1061 = vrot.lane.b32.xlu0 %v1050, 8
      %v1062 = vpop.permute.xlu0 %1061
      %1063 = vrot.lane.b32.xlu0 %v1051, 8
      %v1064 = vpop.permute.xlu0 %1063
      %1065 = vrot.lane.b32.xlu0 %v1052, 8
      %v1066 = vpop.permute.xlu0 %1065
      %1067 = vrot.lane.b32.xlu0 %v1053, 8
      %v1068 = vpop.permute.xlu0 %1067
      %1069 = vrot.lane.b32.xlu0 %v1054, 8
      %v1070 = vpop.permute.xlu0 %1069
      %vm1079 = vcmask 97344
      %1080 = vst.msk [vmem:[#allocation2] sm:$0xff] %vm1079, %v1056
      %1081 = vst.msk [vmem:[#allocation2 + $0x8] sm:$0xff] %vm1079, %v1058
      %1082 = vst.msk [vmem:[#allocation2 + $0x10] sm:$0xff] %vm1079, %v1060
      %1083 = vst.msk [vmem:[#allocation2 + $0x18] sm:$0xff] %vm1079, %v1062
      %1084 = vst.msk [vmem:[#allocation2 + $0x20] sm:$0xff] %vm1079, %v1064
      %1085 = vst.msk [vmem:[#allocation2 + $0x28] sm:$0xff] %vm1079, %v1066
      %1086 = vst.msk [vmem:[#allocation2 + $0x30] sm:$0xff] %vm1079, %v1068
      %1087 = vst.msk [vmem:[#allocation2 + $0x38] sm:$0xff] %vm1079, %v1070
      %v1088 = vld [vmem:[%s324] sm:$0xe]
      %v1089 = vld [vmem:[%s324 + $0x4] sm:$0xf]
      %v1090 = vld [vmem:[%s324 + $0x8] sm:$0x1]
      %v1091 = vld [vmem:[%s324 + $0xc] sm:$0xe]
      %v1092 = vld [vmem:[%s324 + $0x10] sm:$0xf]
      %v1093 = vld [vmem:[%s324 + $0x14] sm:$0x1]
      %v1094 = vld [vmem:[%s324 + $0x18] sm:$0xe]
      %v1095 = vld [vmem:[%s324 + $0x1c] sm:$0xf]
      %v1096 = vld [vmem:[%s324 + $0x20] sm:$0x1]
      %v1097 = vld [vmem:[%s324 + $0x24] sm:$0xe]
      %v1098 = vld [vmem:[%s324 + $0x28] sm:$0xf]
      %v1099 = vld [vmem:[%s324 + $0x2c] sm:$0x1]
      %v1100 = vld [vmem:[%s324 + $0x30] sm:$0xe]
      %v1101 = vld [vmem:[%s324 + $0x34] sm:$0xf]
      %v1102 = vld [vmem:[%s324 + $0x38] sm:$0x1]
      %v1103 = vld [vmem:[%s324 + $0x3c] sm:$0xe]
      %v1104 = vld [vmem:[%s324 + $0x40] sm:$0xf]
      %v1105 = vld [vmem:[%s324 + $0x44] sm:$0x1]
      %v1106 = vld [vmem:[%s324 + $0x48] sm:$0xe]
      %v1107 = vld [vmem:[%s324 + $0x4c] sm:$0xf]
      %v1108 = vld [vmem:[%s324 + $0x50] sm:$0x1]
      %v1109 = vld [vmem:[%s324 + $0x54] sm:$0xe]
      %v1110 = vld [vmem:[%s324 + $0x58] sm:$0xf]
      %v1111 = vld [vmem:[%s324 + $0x5c] sm:$0x1]
      %v1136 = vrot.slane %v1088, 5
      %v1137 = vrot.slane %v1136, 4
      %v1138 = vrot.slane %v1089, 5
      %v1139 = vsel %vm666, %v1137, %v1138
      %v1140 = vrot.slane %v1138, 4
      %v1141 = vrot.slane %v1090, 5
      %v1142 = vsel %vm666, %v1140, %v1141
      %v1143 = vrot.slane %v1091, 5
      %v1144 = vrot.slane %v1143, 4
      %v1145 = vrot.slane %v1092, 5
      %v1146 = vsel %vm666, %v1144, %v1145
      %v1147 = vrot.slane %v1145, 4
      %v1148 = vrot.slane %v1093, 5
      %v1149 = vsel %vm666, %v1147, %v1148
      %v1150 = vrot.slane %v1094, 5
      %v1151 = vrot.slane %v1150, 4
      %v1152 = vrot.slane %v1095, 5
      %v1153 = vsel %vm666, %v1151, %v1152
      %v1154 = vrot.slane %v1152, 4
      %v1155 = vrot.slane %v1096, 5
      %v1156 = vsel %vm666, %v1154, %v1155
      %v1157 = vrot.slane %v1097, 5
      %v1158 = vrot.slane %v1157, 4
      %v1159 = vrot.slane %v1098, 5
      %v1160 = vsel %vm666, %v1158, %v1159
      %v1161 = vrot.slane %v1159, 4
      %v1162 = vrot.slane %v1099, 5
      %v1163 = vsel %vm666, %v1161, %v1162
      %v1164 = vrot.slane %v1100, 5
      %v1165 = vrot.slane %v1164, 4
      %v1166 = vrot.slane %v1101, 5
      %v1167 = vsel %vm666, %v1165, %v1166
      %v1168 = vrot.slane %v1166, 4
      %v1169 = vrot.slane %v1102, 5
      %v1170 = vsel %vm666, %v1168, %v1169
      %v1171 = vrot.slane %v1103, 5
      %v1172 = vrot.slane %v1171, 4
      %v1173 = vrot.slane %v1104, 5
      %v1174 = vsel %vm666, %v1172, %v1173
      %v1175 = vrot.slane %v1173, 4
      %v1176 = vrot.slane %v1105, 5
      %v1177 = vsel %vm666, %v1175, %v1176
      %v1178 = vrot.slane %v1106, 5
      %v1179 = vrot.slane %v1178, 4
      %v1180 = vrot.slane %v1107, 5
      %v1181 = vsel %vm666, %v1179, %v1180
      %v1182 = vrot.slane %v1180, 4
      %v1183 = vrot.slane %v1108, 5
      %v1184 = vsel %vm666, %v1182, %v1183
      %v1185 = vrot.slane %v1109, 5
      %v1186 = vrot.slane %v1185, 4
      %v1187 = vrot.slane %v1110, 5
      %v1188 = vsel %vm666, %v1186, %v1187
      %v1189 = vrot.slane %v1187, 4
      %v1190 = vrot.slane %v1111, 5
      %v1191 = vsel %vm666, %v1189, %v1190
      %v1192 = vunpack.c.l.b16 %v1139
      %v1193 = vunpack.c.l.b16 %v1142
      %v1194 = vunpack.c.l.b16 %v1146
      %v1195 = vunpack.c.l.b16 %v1149
      %v1196 = vunpack.c.l.b16 %v1153
      %v1197 = vunpack.c.l.b16 %v1156
      %v1198 = vunpack.c.l.b16 %v1160
      %v1199 = vunpack.c.l.b16 %v1163
      %v1200 = vunpack.c.l.b16 %v1167
      %v1201 = vunpack.c.l.b16 %v1170
      %v1202 = vunpack.c.l.b16 %v1174
      %v1203 = vunpack.c.l.b16 %v1177
      %v1204 = vunpack.c.l.b16 %v1181
      %v1205 = vunpack.c.l.b16 %v1184
      %v1206 = vunpack.c.l.b16 %v1188
      %v1207 = vunpack.c.l.b16 %v1191
      %v1208 = vpack.c.b16 %v1193, %v1192
      %v1209 = vpack.c.b16 %v1195, %v1194
      %v1210 = vpack.c.b16 %v1197, %v1196
      %v1211 = vpack.c.b16 %v1199, %v1198
      %v1212 = vpack.c.b16 %v1201, %v1200
      %v1213 = vpack.c.b16 %v1203, %v1202
      %v1214 = vpack.c.b16 %v1205, %v1204
      %v1215 = vpack.c.b16 %v1207, %v1206
      %1216 = vrot.lane.b32.xlu0 %v1208, 12
      %v1217 = vpop.permute.xlu0 %1216
      %1218 = vrot.lane.b32.xlu0 %v1209, 12
      %v1219 = vpop.permute.xlu0 %1218
      %1220 = vrot.lane.b32.xlu0 %v1210, 12
      %v1221 = vpop.permute.xlu0 %1220
      %1222 = vrot.lane.b32.xlu0 %v1211, 12
      %v1223 = vpop.permute.xlu0 %1222
      %1224 = vrot.lane.b32.xlu0 %v1212, 12
      %v1225 = vpop.permute.xlu0 %1224
      %1226 = vrot.lane.b32.xlu0 %v1213, 12
      %v1227 = vpop.permute.xlu0 %1226
      %1228 = vrot.lane.b32.xlu0 %v1214, 12
      %v1229 = vpop.permute.xlu0 %1228
      %1230 = vrot.lane.b32.xlu0 %v1215, 12
      %v1231 = vpop.permute.xlu0 %1230
      %vm1240 = vcmask 130144
      %1241 = vst.msk [vmem:[#allocation2] sm:$0xff] %vm1240, %v1217
      %1242 = vst.msk [vmem:[#allocation2 + $0x8] sm:$0xff] %vm1240, %v1219
      %1243 = vst.msk [vmem:[#allocation2 + $0x10] sm:$0xff] %vm1240, %v1221
      %1244 = vst.msk [vmem:[#allocation2 + $0x18] sm:$0xff] %vm1240, %v1223
      %1245 = vst.msk [vmem:[#allocation2 + $0x20] sm:$0xff] %vm1240, %v1225
      %1246 = vst.msk [vmem:[#allocation2 + $0x28] sm:$0xff] %vm1240, %v1227
      %1247 = vst.msk [vmem:[#allocation2 + $0x30] sm:$0xff] %vm1240, %v1229
      %1248 = vst.msk [vmem:[#allocation2 + $0x38] sm:$0xff] %vm1240, %v1231
      %v1249 = vld [vmem:[%s324] sm:$0xc]
      %v1250 = vld [vmem:[%s324 + $0x4] sm:$0xf]
      %v1251 = vld [vmem:[%s324 + $0x8] sm:$0x3]
      %v1252 = vld [vmem:[%s324 + $0xc] sm:$0xc]
      %v1253 = vld [vmem:[%s324 + $0x10] sm:$0xf]
      %v1254 = vld [vmem:[%s324 + $0x14] sm:$0x3]
      %v1255 = vld [vmem:[%s324 + $0x18] sm:$0xc]
      %v1256 = vld [vmem:[%s324 + $0x1c] sm:$0xf]
      %v1257 = vld [vmem:[%s324 + $0x20] sm:$0x3]
      %v1258 = vld [vmem:[%s324 + $0x24] sm:$0xc]
      %v1259 = vld [vmem:[%s324 + $0x28] sm:$0xf]
      %v1260 = vld [vmem:[%s324 + $0x2c] sm:$0x3]
      %v1261 = vld [vmem:[%s324 + $0x30] sm:$0xc]
      %v1262 = vld [vmem:[%s324 + $0x34] sm:$0xf]
      %v1263 = vld [vmem:[%s324 + $0x38] sm:$0x3]
      %v1264 = vld [vmem:[%s324 + $0x3c] sm:$0xc]
      %v1265 = vld [vmem:[%s324 + $0x40] sm:$0xf]
      %v1266 = vld [vmem:[%s324 + $0x44] sm:$0x3]
      %v1267 = vld [vmem:[%s324 + $0x48] sm:$0xc]
      %v1268 = vld [vmem:[%s324 + $0x4c] sm:$0xf]
      %v1269 = vld [vmem:[%s324 + $0x50] sm:$0x3]
      %v1270 = vld [vmem:[%s324 + $0x54] sm:$0xc]
      %v1271 = vld [vmem:[%s324 + $0x58] sm:$0xf]
      %v1272 = vld [vmem:[%s324 + $0x5c] sm:$0x3]
      %v1297 = vrot.slane %v1249, 6
      %v1298 = vrot.slane %v1297, 4
      %v1299 = vrot.slane %v1250, 6
      %v1300 = vsel %vm375, %v1298, %v1299
      %v1301 = vrot.slane %v1299, 4
      %v1302 = vrot.slane %v1251, 6
      %v1303 = vsel %vm375, %v1301, %v1302
      %v1304 = vrot.slane %v1252, 6
      %v1305 = vrot.slane %v1304, 4
      %v1306 = vrot.slane %v1253, 6
      %v1307 = vsel %vm375, %v1305, %v1306
      %v1308 = vrot.slane %v1306, 4
      %v1309 = vrot.slane %v1254, 6
      %v1310 = vsel %vm375, %v1308, %v1309
      %v1311 = vrot.slane %v1255, 6
      %v1312 = vrot.slane %v1311, 4
      %v1313 = vrot.slane %v1256, 6
      %v1314 = vsel %vm375, %v1312, %v1313
      %v1315 = vrot.slane %v1313, 4
      %v1316 = vrot.slane %v1257, 6
      %v1317 = vsel %vm375, %v1315, %v1316
      %v1318 = vrot.slane %v1258, 6
      %v1319 = vrot.slane %v1318, 4
      %v1320 = vrot.slane %v1259, 6
      %v1321 = vsel %vm375, %v1319, %v1320
      %v1322 = vrot.slane %v1320, 4
      %v1323 = vrot.slane %v1260, 6
      %v1324 = vsel %vm375, %v1322, %v1323
      %v1325 = vrot.slane %v1261, 6
      %v1326 = vrot.slane %v1325, 4
      %v1327 = vrot.slane %v1262, 6
      %v1328 = vsel %vm375, %v1326, %v1327
      %v1329 = vrot.slane %v1327, 4
      %v1330 = vrot.slane %v1263, 6
      %v1331 = vsel %vm375, %v1329, %v1330
      %v1332 = vrot.slane %v1264, 6
      %v1333 = vrot.slane %v1332, 4
      %v1334 = vrot.slane %v1265, 6
      %v1335 = vsel %vm375, %v1333, %v1334
      %v1336 = vrot.slane %v1334, 4
      %v1337 = vrot.slane %v1266, 6
      %v1338 = vsel %vm375, %v1336, %v1337
      %v1339 = vrot.slane %v1267, 6
      %v1340 = vrot.slane %v1339, 4
      %v1341 = vrot.slane %v1268, 6
      %v1342 = vsel %vm375, %v1340, %v1341
      %v1343 = vrot.slane %v1341, 4
      %v1344 = vrot.slane %v1269, 6
      %v1345 = vsel %vm375, %v1343, %v1344
      %v1346 = vrot.slane %v1270, 6
      %v1347 = vrot.slane %v1346, 4
      %v1348 = vrot.slane %v1271, 6
      %v1349 = vsel %vm375, %v1347, %v1348
      %v1350 = vrot.slane %v1348, 4
      %v1351 = vrot.slane %v1272, 6
      %v1352 = vsel %vm375, %v1350, %v1351
      %v1353 = vunpack.c.l.b16 %v1300
      %v1354 = vunpack.c.l.b16 %v1303
      %v1355 = vunpack.c.l.b16 %v1307
      %v1356 = vunpack.c.l.b16 %v1310
      %v1357 = vunpack.c.l.b16 %v1314
      %v1358 = vunpack.c.l.b16 %v1317
      %v1359 = vunpack.c.l.b16 %v1321
      %v1360 = vunpack.c.l.b16 %v1324
      %v1361 = vunpack.c.l.b16 %v1328
      %v1362 = vunpack.c.l.b16 %v1331
      %v1363 = vunpack.c.l.b16 %v1335
      %v1364 = vunpack.c.l.b16 %v1338
      %v1365 = vunpack.c.l.b16 %v1342
      %v1366 = vunpack.c.l.b16 %v1345
      %v1367 = vunpack.c.l.b16 %v1349
      %v1368 = vunpack.c.l.b16 %v1352
      %v1369 = vpack.c.b16 %v1354, %v1353
      %v1370 = vpack.c.b16 %v1356, %v1355
      %v1371 = vpack.c.b16 %v1358, %v1357
      %v1372 = vpack.c.b16 %v1360, %v1359
      %v1373 = vpack.c.b16 %v1362, %v1361
      %v1374 = vpack.c.b16 %v1364, %v1363
      %v1375 = vpack.c.b16 %v1366, %v1365
      %v1376 = vpack.c.b16 %v1368, %v1367
      %1377 = vrot.lane.b32.xlu0 %v1369, 16
      %v1378 = vpop.permute.xlu0 %1377
      %1379 = vrot.lane.b32.xlu0 %v1370, 16
      %v1380 = vpop.permute.xlu0 %1379
      %1381 = vrot.lane.b32.xlu0 %v1371, 16
      %v1382 = vpop.permute.xlu0 %1381
      %1383 = vrot.lane.b32.xlu0 %v1372, 16
      %v1384 = vpop.permute.xlu0 %1383
      %1385 = vrot.lane.b32.xlu0 %v1373, 16
      %v1386 = vpop.permute.xlu0 %1385
      %1387 = vrot.lane.b32.xlu0 %v1374, 16
      %v1388 = vpop.permute.xlu0 %1387
      %1389 = vrot.lane.b32.xlu0 %v1375, 16
      %v1390 = vpop.permute.xlu0 %1389
      %1391 = vrot.lane.b32.xlu0 %v1376, 16
      %v1392 = vpop.permute.xlu0 %1391
      %vm1401 = vcmask 162944
      %1402 = vst.msk [vmem:[#allocation2] sm:$0xff] %vm1401, %v1378
      %1403 = vst.msk [vmem:[#allocation2 + $0x8] sm:$0xff] %vm1401, %v1380
      %1404 = vst.msk [vmem:[#allocation2 + $0x10] sm:$0xff] %vm1401, %v1382
      %1405 = vst.msk [vmem:[#allocation2 + $0x18] sm:$0xff] %vm1401, %v1384
      %1406 = vst.msk [vmem:[#allocation2 + $0x20] sm:$0xff] %vm1401, %v1386
      %1407 = vst.msk [vmem:[#allocation2 + $0x28] sm:$0xff] %vm1401, %v1388
      %1408 = vst.msk [vmem:[#allocation2 + $0x30] sm:$0xff] %vm1401, %v1390
      %1409 = vst.msk [vmem:[#allocation2 + $0x38] sm:$0xff] %vm1401, %v1392
      %v1410 = vld [vmem:[%s324] sm:$0x8]
      %v1411 = vld [vmem:[%s324 + $0x4] sm:$0xf]
      %v1412 = vld [vmem:[%s324 + $0x8] sm:$0x7]
      %v1413 = vld [vmem:[%s324 + $0xc] sm:$0x8]
      %v1414 = vld [vmem:[%s324 + $0x10] sm:$0xf]
      %v1415 = vld [vmem:[%s324 + $0x14] sm:$0x7]
      %v1416 = vld [vmem:[%s324 + $0x18] sm:$0x8]
      %v1417 = vld [vmem:[%s324 + $0x1c] sm:$0xf]
      %v1418 = vld [vmem:[%s324 + $0x20] sm:$0x7]
      %v1419 = vld [vmem:[%s324 + $0x24] sm:$0x8]
      %v1420 = vld [vmem:[%s324 + $0x28] sm:$0xf]
      %v1421 = vld [vmem:[%s324 + $0x2c] sm:$0x7]
      %v1422 = vld [vmem:[%s324 + $0x30] sm:$0x8]
      %v1423 = vld [vmem:[%s324 + $0x34] sm:$0xf]
      %v1424 = vld [vmem:[%s324 + $0x38] sm:$0x7]
      %v1425 = vld [vmem:[%s324 + $0x3c] sm:$0x8]
      %v1426 = vld [vmem:[%s324 + $0x40] sm:$0xf]
      %v1427 = vld [vmem:[%s324 + $0x44] sm:$0x7]
      %v1428 = vld [vmem:[%s324 + $0x48] sm:$0x8]
      %v1429 = vld [vmem:[%s324 + $0x4c] sm:$0xf]
      %v1430 = vld [vmem:[%s324 + $0x50] sm:$0x7]
      %v1431 = vld [vmem:[%s324 + $0x54] sm:$0x8]
      %v1432 = vld [vmem:[%s324 + $0x58] sm:$0xf]
      %v1433 = vld [vmem:[%s324 + $0x5c] sm:$0x7]
      %v1458 = vrot.slane %v1410, 7
      %v1459 = vrot.slane %v1458, 4
      %v1460 = vrot.slane %v1411, 7
      %v1461 = vsel %vm974, %v1459, %v1460
      %v1462 = vrot.slane %v1460, 4
      %v1463 = vrot.slane %v1412, 7
      %v1464 = vsel %vm974, %v1462, %v1463
      %v1465 = vrot.slane %v1413, 7
      %v1466 = vrot.slane %v1465, 4
      %v1467 = vrot.slane %v1414, 7
      %v1468 = vsel %vm974, %v1466, %v1467
      %v1469 = vrot.slane %v1467, 4
      %v1470 = vrot.slane %v1415, 7
      %v1471 = vsel %vm974, %v1469, %v1470
      %v1472 = vrot.slane %v1416, 7
      %v1473 = vrot.slane %v1472, 4
      %v1474 = vrot.slane %v1417, 7
      %v1475 = vsel %vm974, %v1473, %v1474
      %v1476 = vrot.slane %v1474, 4
      %v1477 = vrot.slane %v1418, 7
      %v1478 = vsel %vm974, %v1476, %v1477
      %v1479 = vrot.slane %v1419, 7
      %v1480 = vrot.slane %v1479, 4
      %v1481 = vrot.slane %v1420, 7
      %v1482 = vsel %vm974, %v1480, %v1481
      %v1483 = vrot.slane %v1481, 4
      %v1484 = vrot.slane %v1421, 7
      %v1485 = vsel %vm974, %v1483, %v1484
      %v1486 = vrot.slane %v1422, 7
      %v1487 = vrot.slane %v1486, 4
      %v1488 = vrot.slane %v1423, 7
      %v1489 = vsel %vm974, %v1487, %v1488
      %v1490 = vrot.slane %v1488, 4
      %v1491 = vrot.slane %v1424, 7
      %v1492 = vsel %vm974, %v1490, %v1491
      %v1493 = vrot.slane %v1425, 7
      %v1494 = vrot.slane %v1493, 4
      %v1495 = vrot.slane %v1426, 7
      %v1496 = vsel %vm974, %v1494, %v1495
      %v1497 = vrot.slane %v1495, 4
      %v1498 = vrot.slane %v1427, 7
      %v1499 = vsel %vm974, %v1497, %v1498
      %v1500 = vrot.slane %v1428, 7
      %v1501 = vrot.slane %v1500, 4
      %v1502 = vrot.slane %v1429, 7
      %v1503 = vsel %vm974, %v1501, %v1502
      %v1504 = vrot.slane %v1502, 4
      %v1505 = vrot.slane %v1430, 7
      %v1506 = vsel %vm974, %v1504, %v1505
      %v1507 = vrot.slane %v1431, 7
      %v1508 = vrot.slane %v1507, 4
      %v1509 = vrot.slane %v1432, 7
      %v1510 = vsel %vm974, %v1508, %v1509
      %v1511 = vrot.slane %v1509, 4
      %v1512 = vrot.slane %v1433, 7
      %v1513 = vsel %vm974, %v1511, %v1512
      %v1514 = vunpack.c.l.b16 %v1461
      %v1515 = vunpack.c.l.b16 %v1464
      %v1516 = vunpack.c.l.b16 %v1468
      %v1517 = vunpack.c.l.b16 %v1471
      %v1518 = vunpack.c.l.b16 %v1475
      %v1519 = vunpack.c.l.b16 %v1478
      %v1520 = vunpack.c.l.b16 %v1482
      %v1521 = vunpack.c.l.b16 %v1485
      %v1522 = vunpack.c.l.b16 %v1489
      %v1523 = vunpack.c.l.b16 %v1492
      %v1524 = vunpack.c.l.b16 %v1496
      %v1525 = vunpack.c.l.b16 %v1499
      %v1526 = vunpack.c.l.b16 %v1503
      %v1527 = vunpack.c.l.b16 %v1506
      %v1528 = vunpack.c.l.b16 %v1510
      %v1529 = vunpack.c.l.b16 %v1513
      %v1530 = vpack.c.b16 %v1515, %v1514
      %v1531 = vpack.c.b16 %v1517, %v1516
      %v1532 = vpack.c.b16 %v1519, %v1518
      %v1533 = vpack.c.b16 %v1521, %v1520
      %v1534 = vpack.c.b16 %v1523, %v1522
      %v1535 = vpack.c.b16 %v1525, %v1524
      %v1536 = vpack.c.b16 %v1527, %v1526
      %v1537 = vpack.c.b16 %v1529, %v1528
      %1538 = vrot.lane.b32.xlu0 %v1530, 20
      %v1539 = vpop.permute.xlu0 %1538
      %1540 = vrot.lane.b32.xlu0 %v1531, 20
      %v1541 = vpop.permute.xlu0 %1540
      %1542 = vrot.lane.b32.xlu0 %v1532, 20
      %v1543 = vpop.permute.xlu0 %1542
      %1544 = vrot.lane.b32.xlu0 %v1533, 20
      %v1545 = vpop.permute.xlu0 %1544
      %1546 = vrot.lane.b32.xlu0 %v1534, 20
      %v1547 = vpop.permute.xlu0 %1546
      %1548 = vrot.lane.b32.xlu0 %v1535, 20
      %v1549 = vpop.permute.xlu0 %1548
      %1550 = vrot.lane.b32.xlu0 %v1536, 20
      %v1551 = vpop.permute.xlu0 %1550
      %1552 = vrot.lane.b32.xlu0 %v1537, 20
      %v1553 = vpop.permute.xlu0 %1552
      %vm1562 = vcmask 195744
      %1563 = vst.msk [vmem:[#allocation2] sm:$0xff] %vm1562, %v1539
      %1564 = vst.msk [vmem:[#allocation2 + $0x8] sm:$0xff] %vm1562, %v1541
      %1565 = vst.msk [vmem:[#allocation2 + $0x10] sm:$0xff] %vm1562, %v1543
      %1566 = vst.msk [vmem:[#allocation2 + $0x18] sm:$0xff] %vm1562, %v1545
      %1567 = vst.msk [vmem:[#allocation2 + $0x20] sm:$0xff] %vm1562, %v1547
      %1568 = vst.msk [vmem:[#allocation2 + $0x28] sm:$0xff] %vm1562, %v1549
      %1569 = vst.msk [vmem:[#allocation2 + $0x30] sm:$0xff] %vm1562, %v1551
      %1570 = vst.msk [vmem:[#allocation2 + $0x38] sm:$0xff] %vm1562, %v1553
      %s1571 = sadd.s32 %s319, 6
      %s1572 = smul.u32 %s1571, 3
      %s1573 = smul.addr %s1572, 4
      %s1574 = scalar_lea.vmem %s303, %s1573
      %v1575 = vld [vmem:[%s1574] sm:$0xe]
      %v1576 = vld [vmem:[%s1574 + $0x4] sm:$0xf]
      %v1577 = vld [vmem:[%s1574 + $0x8] sm:$0x1]
      %v1578 = vld [vmem:[%s1574 + $0xc] sm:$0xe]
      %v1579 = vld [vmem:[%s1574 + $0x10] sm:$0xf]
      %v1580 = vld [vmem:[%s1574 + $0x14] sm:$0x1]
      %v1581 = vld [vmem:[%s1574 + $0x18] sm:$0xe]
      %v1582 = vld [vmem:[%s1574 + $0x1c] sm:$0xf]
      %v1583 = vld [vmem:[%s1574 + $0x20] sm:$0x1]
      %v1584 = vld [vmem:[%s1574 + $0x24] sm:$0xe]
      %v1585 = vld [vmem:[%s1574 + $0x28] sm:$0xf]
      %v1586 = vld [vmem:[%s1574 + $0x2c] sm:$0x1]
      %v1587 = vld [vmem:[%s1574 + $0x30] sm:$0xe]
      %v1588 = vld [vmem:[%s1574 + $0x34] sm:$0xf]
      %v1589 = vld [vmem:[%s1574 + $0x38] sm:$0x1]
      %v1590 = vld [vmem:[%s1574 + $0x3c] sm:$0xe]
      %v1591 = vld [vmem:[%s1574 + $0x40] sm:$0xf]
      %v1592 = vld [vmem:[%s1574 + $0x44] sm:$0x1]
      %v1593 = vld [vmem:[%s1574 + $0x48] sm:$0xe]
      %v1594 = vld [vmem:[%s1574 + $0x4c] sm:$0xf]
      %v1595 = vld [vmem:[%s1574 + $0x50] sm:$0x1]
      %v1596 = vld [vmem:[%s1574 + $0x54] sm:$0xe]
      %v1597 = vld [vmem:[%s1574 + $0x58] sm:$0xf]
      %v1598 = vld [vmem:[%s1574 + $0x5c] sm:$0x1]
      %v1623 = vrot.slane %v1575, 5
      %v1624 = vrot.slane %v1623, 4
      %v1625 = vrot.slane %v1576, 5
      %v1626 = vsel %vm666, %v1624, %v1625
      %v1627 = vrot.slane %v1625, 4
      %v1628 = vrot.slane %v1577, 5
      %v1629 = vsel %vm666, %v1627, %v1628
      %v1630 = vrot.slane %v1578, 5
      %v1631 = vrot.slane %v1630, 4
      %v1632 = vrot.slane %v1579, 5
      %v1633 = vsel %vm666, %v1631, %v1632
      %v1634 = vrot.slane %v1632, 4
      %v1635 = vrot.slane %v1580, 5
      %v1636 = vsel %vm666, %v1634, %v1635
      %v1637 = vrot.slane %v1581, 5
      %v1638 = vrot.slane %v1637, 4
      %v1639 = vrot.slane %v1582, 5
      %v1640 = vsel %vm666, %v1638, %v1639
      %v1641 = vrot.slane %v1639, 4
      %v1642 = vrot.slane %v1583, 5
      %v1643 = vsel %vm666, %v1641, %v1642
      %v1644 = vrot.slane %v1584, 5
      %v1645 = vrot.slane %v1644, 4
      %v1646 = vrot.slane %v1585, 5
      %v1647 = vsel %vm666, %v1645, %v1646
      %v1648 = vrot.slane %v1646, 4
      %v1649 = vrot.slane %v1586, 5
      %v1650 = vsel %vm666, %v1648, %v1649
      %v1651 = vrot.slane %v1587, 5
      %v1652 = vrot.slane %v1651, 4
      %v1653 = vrot.slane %v1588, 5
      %v1654 = vsel %vm666, %v1652, %v1653
      %v1655 = vrot.slane %v1653, 4
      %v1656 = vrot.slane %v1589, 5
      %v1657 = vsel %vm666, %v1655, %v1656
      %v1658 = vrot.slane %v1590, 5
      %v1659 = vrot.slane %v1658, 4
      %v1660 = vrot.slane %v1591, 5
      %v1661 = vsel %vm666, %v1659, %v1660
      %v1662 = vrot.slane %v1660, 4
      %v1663 = vrot.slane %v1592, 5
      %v1664 = vsel %vm666, %v1662, %v1663
      %v1665 = vrot.slane %v1593, 5
      %v1666 = vrot.slane %v1665, 4
      %v1667 = vrot.slane %v1594, 5
      %v1668 = vsel %vm666, %v1666, %v1667
      %v1669 = vrot.slane %v1667, 4
      %v1670 = vrot.slane %v1595, 5
      %v1671 = vsel %vm666, %v1669, %v1670
      %v1672 = vrot.slane %v1596, 5
      %v1673 = vrot.slane %v1672, 4
      %v1674 = vrot.slane %v1597, 5
      %v1675 = vsel %vm666, %v1673, %v1674
      %v1676 = vrot.slane %v1674, 4
      %v1677 = vrot.slane %v1598, 5
      %v1678 = vsel %vm666, %v1676, %v1677
      %v1679 = vunpack.c.l.b16 %v1626
      %v1680 = vunpack.c.l.b16 %v1629
      %v1681 = vunpack.c.l.b16 %v1633
      %v1682 = vunpack.c.l.b16 %v1636
      %v1683 = vunpack.c.l.b16 %v1640
      %v1684 = vunpack.c.l.b16 %v1643
      %v1685 = vunpack.c.l.b16 %v1647
      %v1686 = vunpack.c.l.b16 %v1650
      %v1687 = vunpack.c.l.b16 %v1654
      %v1688 = vunpack.c.l.b16 %v1657
      %v1689 = vunpack.c.l.b16 %v1661
      %v1690 = vunpack.c.l.b16 %v1664
      %v1691 = vunpack.c.l.b16 %v1668
      %v1692 = vunpack.c.l.b16 %v1671
      %v1693 = vunpack.c.l.b16 %v1675
      %v1694 = vunpack.c.l.b16 %v1678
      %v1695 = vpack.c.b16 %v1680, %v1679
      %v1696 = vpack.c.b16 %v1682, %v1681
      %v1697 = vpack.c.b16 %v1684, %v1683
      %v1698 = vpack.c.b16 %v1686, %v1685
      %v1699 = vpack.c.b16 %v1688, %v1687
      %v1700 = vpack.c.b16 %v1690, %v1689
      %v1701 = vpack.c.b16 %v1692, %v1691
      %v1702 = vpack.c.b16 %v1694, %v1693
      %1703 = vrot.lane.b32.xlu0 %v1695, 24
      %v1704 = vpop.permute.xlu0 %1703
      %1705 = vrot.lane.b32.xlu0 %v1696, 24
      %v1706 = vpop.permute.xlu0 %1705
      %1707 = vrot.lane.b32.xlu0 %v1697, 24
      %v1708 = vpop.permute.xlu0 %1707
      %1709 = vrot.lane.b32.xlu0 %v1698, 24
      %v1710 = vpop.permute.xlu0 %1709
      %1711 = vrot.lane.b32.xlu0 %v1699, 24
      %v1712 = vpop.permute.xlu0 %1711
      %1713 = vrot.lane.b32.xlu0 %v1700, 24
      %v1714 = vpop.permute.xlu0 %1713
      %1715 = vrot.lane.b32.xlu0 %v1701, 24
      %v1716 = vpop.permute.xlu0 %1715
      %1717 = vrot.lane.b32.xlu0 %v1702, 24
      %v1718 = vpop.permute.xlu0 %1717
      %vm1727 = vcmask 228544
      %1728 = vst.msk [vmem:[#allocation2] sm:$0xff] %vm1727, %v1704
      %1729 = vst.msk [vmem:[#allocation2 + $0x8] sm:$0xff] %vm1727, %v1706
      %1730 = vst.msk [vmem:[#allocation2 + $0x10] sm:$0xff] %vm1727, %v1708
      %1731 = vst.msk [vmem:[#allocation2 + $0x18] sm:$0xff] %vm1727, %v1710
      %1732 = vst.msk [vmem:[#allocation2 + $0x20] sm:$0xff] %vm1727, %v1712
      %1733 = vst.msk [vmem:[#allocation2 + $0x28] sm:$0xff] %vm1727, %v1714
      %1734 = vst.msk [vmem:[#allocation2 + $0x30] sm:$0xff] %vm1727, %v1716
      %1735 = vst.msk [vmem:[#allocation2 + $0x38] sm:$0xff] %vm1727, %v1718
      %v1736 = vld [vmem:[%s1574] sm:$0xc]
      %v1737 = vld [vmem:[%s1574 + $0x4] sm:$0xf]
      %v1738 = vld [vmem:[%s1574 + $0x8] sm:$0x3]
      %v1739 = vld [vmem:[%s1574 + $0xc] sm:$0xc]
      %v1740 = vld [vmem:[%s1574 + $0x10] sm:$0xf]
      %v1741 = vld [vmem:[%s1574 + $0x14] sm:$0x3]
      %v1742 = vld [vmem:[%s1574 + $0x18] sm:$0xc]
      %v1743 = vld [vmem:[%s1574 + $0x1c] sm:$0xf]
      %v1744 = vld [vmem:[%s1574 + $0x20] sm:$0x3]
      %v1745 = vld [vmem:[%s1574 + $0x24] sm:$0xc]
      %v1746 = vld [vmem:[%s1574 + $0x28] sm:$0xf]
      %v1747 = vld [vmem:[%s1574 + $0x2c] sm:$0x3]
      %v1748 = vld [vmem:[%s1574 + $0x30] sm:$0xc]
      %v1749 = vld [vmem:[%s1574 + $0x34] sm:$0xf]
      %v1750 = vld [vmem:[%s1574 + $0x38] sm:$0x3]
      %v1751 = vld [vmem:[%s1574 + $0x3c] sm:$0xc]
      %v1752 = vld [vmem:[%s1574 + $0x40] sm:$0xf]
      %v1753 = vld [vmem:[%s1574 + $0x44] sm:$0x3]
      %v1754 = vld [vmem:[%s1574 + $0x48] sm:$0xc]
      %v1755 = vld [vmem:[%s1574 + $0x4c] sm:$0xf]
      %v1756 = vld [vmem:[%s1574 + $0x50] sm:$0x3]
      %v1757 = vld [vmem:[%s1574 + $0x54] sm:$0xc]
      %v1758 = vld [vmem:[%s1574 + $0x58] sm:$0xf]
      %v1759 = vld [vmem:[%s1574 + $0x5c] sm:$0x3]
      %v1784 = vrot.slane %v1736, 6
      %v1785 = vrot.slane %v1784, 4
      %v1786 = vrot.slane %v1737, 6
      %v1787 = vsel %vm375, %v1785, %v1786
      %v1788 = vrot.slane %v1786, 4
      %v1789 = vrot.slane %v1738, 6
      %v1790 = vsel %vm375, %v1788, %v1789
      %v1791 = vrot.slane %v1739, 6
      %v1792 = vrot.slane %v1791, 4
      %v1793 = vrot.slane %v1740, 6
      %v1794 = vsel %vm375, %v1792, %v1793
      %v1795 = vrot.slane %v1793, 4
      %v1796 = vrot.slane %v1741, 6
      %v1797 = vsel %vm375, %v1795, %v1796
      %v1798 = vrot.slane %v1742, 6
      %v1799 = vrot.slane %v1798, 4
      %v1800 = vrot.slane %v1743, 6
      %v1801 = vsel %vm375, %v1799, %v1800
      %v1802 = vrot.slane %v1800, 4
      %v1803 = vrot.slane %v1744, 6
      %v1804 = vsel %vm375, %v1802, %v1803
      %v1805 = vrot.slane %v1745, 6
      %v1806 = vrot.slane %v1805, 4
      %v1807 = vrot.slane %v1746, 6
      %v1808 = vsel %vm375, %v1806, %v1807
      %v1809 = vrot.slane %v1807, 4
      %v1810 = vrot.slane %v1747, 6
      %v1811 = vsel %vm375, %v1809, %v1810
      %v1812 = vrot.slane %v1748, 6
      %v1813 = vrot.slane %v1812, 4
      %v1814 = vrot.slane %v1749, 6
      %v1815 = vsel %vm375, %v1813, %v1814
      %v1816 = vrot.slane %v1814, 4
      %v1817 = vrot.slane %v1750, 6
      %v1818 = vsel %vm375, %v1816, %v1817
      %v1819 = vrot.slane %v1751, 6
      %v1820 = vrot.slane %v1819, 4
      %v1821 = vrot.slane %v1752, 6
      %v1822 = vsel %vm375, %v1820, %v1821
      %v1823 = vrot.slane %v1821, 4
      %v1824 = vrot.slane %v1753, 6
      %v1825 = vsel %vm375, %v1823, %v1824
      %v1826 = vrot.slane %v1754, 6
      %v1827 = vrot.slane %v1826, 4
      %v1828 = vrot.slane %v1755, 6
      %v1829 = vsel %vm375, %v1827, %v1828
      %v1830 = vrot.slane %v1828, 4
      %v1831 = vrot.slane %v1756, 6
      %v1832 = vsel %vm375, %v1830, %v1831
      %v1833 = vrot.slane %v1757, 6
      %v1834 = vrot.slane %v1833, 4
      %v1835 = vrot.slane %v1758, 6
      %v1836 = vsel %vm375, %v1834, %v1835
      %v1837 = vrot.slane %v1835, 4
      %v1838 = vrot.slane %v1759, 6
      %v1839 = vsel %vm375, %v1837, %v1838
      %v1840 = vunpack.c.l.b16 %v1787
      %v1841 = vunpack.c.l.b16 %v1790
      %v1842 = vunpack.c.l.b16 %v1794
      %v1843 = vunpack.c.l.b16 %v1797
      %v1844 = vunpack.c.l.b16 %v1801
      %v1845 = vunpack.c.l.b16 %v1804
      %v1846 = vunpack.c.l.b16 %v1808
      %v1847 = vunpack.c.l.b16 %v1811
      %v1848 = vunpack.c.l.b16 %v1815
      %v1849 = vunpack.c.l.b16 %v1818
      %v1850 = vunpack.c.l.b16 %v1822
      %v1851 = vunpack.c.l.b16 %v1825
      %v1852 = vunpack.c.l.b16 %v1829
      %v1853 = vunpack.c.l.b16 %v1832
      %v1854 = vunpack.c.l.b16 %v1836
      %v1855 = vunpack.c.l.b16 %v1839
      %v1856 = vpack.c.b16 %v1841, %v1840
      %v1857 = vpack.c.b16 %v1843, %v1842
      %v1858 = vpack.c.b16 %v1845, %v1844
      %v1859 = vpack.c.b16 %v1847, %v1846
      %v1860 = vpack.c.b16 %v1849, %v1848
      %v1861 = vpack.c.b16 %v1851, %v1850
      %v1862 = vpack.c.b16 %v1853, %v1852
      %v1863 = vpack.c.b16 %v1855, %v1854
      %1864 = vrot.lane.b32.xlu0 %v1856, 28
      %v1865 = vpop.permute.xlu0 %1864
      %1866 = vrot.lane.b32.xlu0 %v1857, 28
      %v1867 = vpop.permute.xlu0 %1866
      %1868 = vrot.lane.b32.xlu0 %v1858, 28
      %v1869 = vpop.permute.xlu0 %1868
      %1870 = vrot.lane.b32.xlu0 %v1859, 28
      %v1871 = vpop.permute.xlu0 %1870
      %1872 = vrot.lane.b32.xlu0 %v1860, 28
      %v1873 = vpop.permute.xlu0 %1872
      %1874 = vrot.lane.b32.xlu0 %v1861, 28
      %v1875 = vpop.permute.xlu0 %1874
      %1876 = vrot.lane.b32.xlu0 %v1862, 28
      %v1877 = vpop.permute.xlu0 %1876
      %1878 = vrot.lane.b32.xlu0 %v1863, 28
      %v1879 = vpop.permute.xlu0 %1878
      %vm1888 = vcmask 261344
      %1889 = vst.msk [vmem:[#allocation2] sm:$0xff] %vm1888, %v1865
      %1890 = vst.msk [vmem:[#allocation2 + $0x8] sm:$0xff] %vm1888, %v1867
      %1891 = vst.msk [vmem:[#allocation2 + $0x10] sm:$0xff] %vm1888, %v1869
      %1892 = vst.msk [vmem:[#allocation2 + $0x18] sm:$0xff] %vm1888, %v1871
      %1893 = vst.msk [vmem:[#allocation2 + $0x20] sm:$0xff] %vm1888, %v1873
      %1894 = vst.msk [vmem:[#allocation2 + $0x28] sm:$0xff] %vm1888, %v1875
      %1895 = vst.msk [vmem:[#allocation2 + $0x30] sm:$0xff] %vm1888, %v1877
      %1896 = vst.msk [vmem:[#allocation2 + $0x38] sm:$0xff] %vm1888, %v1879
      %v1897 = vld [vmem:[%s1574] sm:$0x8]
      %v1898 = vld [vmem:[%s1574 + $0x4] sm:$0xf]
      %v1899 = vld [vmem:[%s1574 + $0x8] sm:$0x7]
      %v1900 = vld [vmem:[%s1574 + $0xc] sm:$0x8]
      %v1901 = vld [vmem:[%s1574 + $0x10] sm:$0xf]
      %v1902 = vld [vmem:[%s1574 + $0x14] sm:$0x7]
      %v1903 = vld [vmem:[%s1574 + $0x18] sm:$0x8]
      %v1904 = vld [vmem:[%s1574 + $0x1c] sm:$0xf]
      %v1905 = vld [vmem:[%s1574 + $0x20] sm:$0x7]
      %v1906 = vld [vmem:[%s1574 + $0x24] sm:$0x8]
      %v1907 = vld [vmem:[%s1574 + $0x28] sm:$0xf]
      %v1908 = vld [vmem:[%s1574 + $0x2c] sm:$0x7]
      %v1909 = vld [vmem:[%s1574 + $0x30] sm:$0x8]
      %v1910 = vld [vmem:[%s1574 + $0x34] sm:$0xf]
      %v1911 = vld [vmem:[%s1574 + $0x38] sm:$0x7]
      %v1912 = vld [vmem:[%s1574 + $0x3c] sm:$0x8]
      %v1913 = vld [vmem:[%s1574 + $0x40] sm:$0xf]
      %v1914 = vld [vmem:[%s1574 + $0x44] sm:$0x7]
      %v1915 = vld [vmem:[%s1574 + $0x48] sm:$0x8]
      %v1916 = vld [vmem:[%s1574 + $0x4c] sm:$0xf]
      %v1917 = vld [vmem:[%s1574 + $0x50] sm:$0x7]
      %v1918 = vld [vmem:[%s1574 + $0x54] sm:$0x8]
      %v1919 = vld [vmem:[%s1574 + $0x58] sm:$0xf]
      %v1920 = vld [vmem:[%s1574 + $0x5c] sm:$0x7]
      %v1945 = vrot.slane %v1897, 7
      %v1946 = vrot.slane %v1945, 4
      %v1947 = vrot.slane %v1898, 7
      %v1948 = vsel %vm974, %v1946, %v1947
      %v1949 = vrot.slane %v1947, 4
      %v1950 = vrot.slane %v1899, 7
      %v1951 = vsel %vm974, %v1949, %v1950
      %v1952 = vrot.slane %v1900, 7
      %v1953 = vrot.slane %v1952, 4
      %v1954 = vrot.slane %v1901, 7
      %v1955 = vsel %vm974, %v1953, %v1954
      %v1956 = vrot.slane %v1954, 4
      %v1957 = vrot.slane %v1902, 7
      %v1958 = vsel %vm974, %v1956, %v1957
      %v1959 = vrot.slane %v1903, 7
      %v1960 = vrot.slane %v1959, 4
      %v1961 = vrot.slane %v1904, 7
      %v1962 = vsel %vm974, %v1960, %v1961
      %v1963 = vrot.slane %v1961, 4
      %v1964 = vrot.slane %v1905, 7
      %v1965 = vsel %vm974, %v1963, %v1964
      %v1966 = vrot.slane %v1906, 7
      %v1967 = vrot.slane %v1966, 4
      %v1968 = vrot.slane %v1907, 7
      %v1969 = vsel %vm974, %v1967, %v1968
      %v1970 = vrot.slane %v1968, 4
      %v1971 = vrot.slane %v1908, 7
      %v1972 = vsel %vm974, %v1970, %v1971
      %v1973 = vrot.slane %v1909, 7
      %v1974 = vrot.slane %v1973, 4
      %v1975 = vrot.slane %v1910, 7
      %v1976 = vsel %vm974, %v1974, %v1975
      %v1977 = vrot.slane %v1975, 4
      %v1978 = vrot.slane %v1911, 7
      %v1979 = vsel %vm974, %v1977, %v1978
      %v1980 = vrot.slane %v1912, 7
      %v1981 = vrot.slane %v1980, 4
      %v1982 = vrot.slane %v1913, 7
      %v1983 = vsel %vm974, %v1981, %v1982
      %v1984 = vrot.slane %v1982, 4
      %v1985 = vrot.slane %v1914, 7
      %v1986 = vsel %vm974, %v1984, %v1985
      %v1987 = vrot.slane %v1915, 7
      %v1988 = vrot.slane %v1987, 4
      %v1989 = vrot.slane %v1916, 7
      %v1990 = vsel %vm974, %v1988, %v1989
      %v1991 = vrot.slane %v1989, 4
      %v1992 = vrot.slane %v1917, 7
      %v1993 = vsel %vm974, %v1991, %v1992
      %v1994 = vrot.slane %v1918, 7
      %v1995 = vrot.slane %v1994, 4
      %v1996 = vrot.slane %v1919, 7
      %v1997 = vsel %vm974, %v1995, %v1996
      %v1998 = vrot.slane %v1996, 4
      %v1999 = vrot.slane %v1920, 7
      %v2000 = vsel %vm974, %v1998, %v1999
      %v2001 = vunpack.c.l.b16 %v1948
      %v2002 = vunpack.c.l.b16 %v1951
      %v2003 = vunpack.c.l.b16 %v1955
      %v2004 = vunpack.c.l.b16 %v1958
      %v2005 = vunpack.c.l.b16 %v1962
      %v2006 = vunpack.c.l.b16 %v1965
      %v2007 = vunpack.c.l.b16 %v1969
      %v2008 = vunpack.c.l.b16 %v1972
      %v2009 = vunpack.c.l.b16 %v1976
      %v2010 = vunpack.c.l.b16 %v1979
      %v2011 = vunpack.c.l.b16 %v1983
      %v2012 = vunpack.c.l.b16 %v1986
      %v2013 = vunpack.c.l.b16 %v1990
      %v2014 = vunpack.c.l.b16 %v1993
      %v2015 = vunpack.c.l.b16 %v1997
      %v2016 = vunpack.c.l.b16 %v2000
      %v2017 = vpack.c.b16 %v2002, %v2001
      %v2018 = vpack.c.b16 %v2004, %v2003
      %v2019 = vpack.c.b16 %v2006, %v2005
      %v2020 = vpack.c.b16 %v2008, %v2007
      %v2021 = vpack.c.b16 %v2010, %v2009
      %v2022 = vpack.c.b16 %v2012, %v2011
      %v2023 = vpack.c.b16 %v2014, %v2013
      %v2024 = vpack.c.b16 %v2016, %v2015
      %2025 = vrot.lane.b32.xlu0 %v2017, 32
      %v2026 = vpop.permute.xlu0 %2025
      %2027 = vrot.lane.b32.xlu0 %v2018, 32
      %v2028 = vpop.permute.xlu0 %2027
      %2029 = vrot.lane.b32.xlu0 %v2019, 32
      %v2030 = vpop.permute.xlu0 %2029
      %2031 = vrot.lane.b32.xlu0 %v2020, 32
      %v2032 = vpop.permute.xlu0 %2031
      %2033 = vrot.lane.b32.xlu0 %v2021, 32
      %v2034 = vpop.permute.xlu0 %2033
      %2035 = vrot.lane.b32.xlu0 %v2022, 32
      %v2036 = vpop.permute.xlu0 %2035
      %2037 = vrot.lane.b32.xlu0 %v2023, 32
      %v2038 = vpop.permute.xlu0 %2037
      %2039 = vrot.lane.b32.xlu0 %v2024, 32
      %v2040 = vpop.permute.xlu0 %2039
      %vm2049 = vcmask 294144
      %2050 = vst.msk [vmem:[#allocation2] sm:$0xff] %vm2049, %v2026
      %2051 = vst.msk [vmem:[#allocation2 + $0x8] sm:$0xff] %vm2049, %v2028
      %2052 = vst.msk [vmem:[#allocation2 + $0x10] sm:$0xff] %vm2049, %v2030
      %2053 = vst.msk [vmem:[#allocation2 + $0x18] sm:$0xff] %vm2049, %v2032
      %2054 = vst.msk [vmem:[#allocation2 + $0x20] sm:$0xff] %vm2049, %v2034
      %2055 = vst.msk [vmem:[#allocation2 + $0x28] sm:$0xff] %vm2049, %v2036
      %2056 = vst.msk [vmem:[#allocation2 + $0x30] sm:$0xff] %vm2049, %v2038
      %2057 = vst.msk [vmem:[#allocation2 + $0x38] sm:$0xff] %vm2049, %v2040
      %v2058 = vld [vmem:[#allocation2] sm:$0xff]
      %v2059 = vld [vmem:[#allocation2 + $0x8] sm:$0xff]
      %v2060 = vld [vmem:[#allocation2 + $0x10] sm:$0xff]
      %v2061 = vld [vmem:[#allocation2 + $0x18] sm:$0xff]
      %v2062 = vld [vmem:[#allocation2 + $0x20] sm:$0xff]
      %v2063 = vld [vmem:[#allocation2 + $0x28] sm:$0xff]
      %v2064 = vld [vmem:[#allocation2 + $0x30] sm:$0xff]
      %v2065 = vld [vmem:[#allocation2 + $0x38] sm:$0xff]
      %v2066 = vld [vmem:[%s2] sm:$0xf]
      %v2067 = vld [vmem:[%s2 + $0x4] sm:$0xf]
      %v2068 = vld [vmem:[%s2 + $0x8] sm:$0xf]
      %v2069 = vld [vmem:[%s2 + $0xc] sm:$0xf]
      %v2070 = vld [vmem:[%s2 + $0x10] sm:$0x3]
      %v2071 = vlaneseq
      %v2072 = vshrl.u32 %v2071, 7
      %v2073 = vsub.s32 1, %v2072
      %v2074 = vrot.slane %v320, %v2073
      %v2080 = vunpack.c.l.b16 %v2066
      %v2081 = vunpack.c.l.b16 %v2067
      %v2082 = vunpack.c.l.b16 %v2068
      %v2083 = vunpack.c.l.b16 %v2069
      %v2084 = vunpack.c.l.b16 %v2070
      %v2085 = vpack.c.b16 %v2081, %v2080
      %v2086 = vpack.c.b16 %v2083, %v2082
      %v2087 = vpack.c.b16 %v2084, %v2084
      %vm2090 = vcmask 293888
      %v2092 = vsel %vm2090, %v2058, 0
      %v2095 = vsel %vm2090, %v2059, 0
      %v2098 = vsel %vm2090, %v2060, 0
      %v2101 = vsel %vm2090, %v2061, 0
      %v2104 = vsel %vm2090, %v2062, 0
      %v2107 = vsel %vm2090, %v2063, 0
      %v2110 = vsel %vm2090, %v2064, 0
      %v2113 = vsel %vm2090, %v2065, 0
      %v2116 = vsel %vm486, %v2087, 0
      %2118 = vmatprep.subr.bf16.mxu0 0
      %2119 = vmatpush1.bf16.msra.mxu0 %v2085
      %2120 = vmatprep.subr.bf16.mxu0 0
      %2121 = vmatpush1.bf16.msra.mxu0 %v2086
      %2122 = vmatprep.subr.bf16.mxu0 0
      %2123 = vmatpush1.bf16.msra.mxu0 %v2116
      %2124 = vmatprep.subr.bf16.mxu0 0
      %2125 = vmatpush1.bf16.msra.mxu0 0
      %2126 = vmatprep.subr.bf16.mxu0 0
      %2127 = vmatpush1.bf16.msra.mxu0 0
      %2128 = vmatprep.subr.bf16.mxu0 0
      %2129 = vmatpush1.bf16.msra.mxu0 0
      %2130 = vmatprep.subr.bf16.mxu0 0
      %2131 = vmatpush1.bf16.msra.mxu0 0
      %2132 = vmatprep.subr.bf16.mxu0 0
      %2133 = vmatpush1.bf16.msra.mxu0 0
      %2134 = vmatprep.subr.bf16.mxu0 0
      %2135 = vmatpush1.bf16.msra.mxu0 0
      %2136 = vmatprep.subr.bf16.mxu0 0
      %2137 = vmatpush1.bf16.msra.mxu0 0
      %2138 = vmatprep.subr.bf16.mxu0 0
      %2139 = vmatpush1.bf16.msra.mxu0 0
      %2140 = vmatprep.subr.bf16.mxu0 0
      %2141 = vmatpush1.bf16.msra.mxu0 0
      %2142 = vmatprep.subr.bf16.mxu0 0
      %2143 = vmatpush1.bf16.msra.mxu0 0
      %2144 = vmatprep.subr.bf16.mxu0 0
      %2145 = vmatpush1.bf16.msra.mxu0 0
      %2146 = vmatprep.subr.bf16.mxu0 0
      %2147 = vmatpush1.bf16.msra.mxu0 0
      %2148 = vmatprep.subr.bf16.mxu0 0
      %2149 = vmatpush1.bf16.msra.mxu0 0
      %2150 = vmatprep.mubr.bf16.mxu0 0
      %2151 = vmatmul.mubr.bf16.gmra.mrb[0].mxu0 %v2092
      %v2152 = vpop.f32.mrb[0].mxu0
      %v2153 = vadd.f32 %v2074, %v2152
      %v2154 = vpop.f32.mrb[0].mxu0
      %v2155 = vpop.f32.mrb[0].mxu0
      %v2156 = vadd.f32 %v2074, %v2155
      %v2157 = vpop.f32.mrb[0].mxu0
      %2158 = vmatprep.mubr.bf16.mxu0 0
      %2159 = vmatmul.mubr.bf16.gmra.mrb[0].mxu0 %v2095
      %v2160 = vpop.f32.mrb[0].mxu0
      %v2161 = vadd.f32 %v2074, %v2160
      %v2162 = vpop.f32.mrb[0].mxu0
      %v2163 = vpop.f32.mrb[0].mxu0
      %v2164 = vadd.f32 %v2074, %v2163
      %v2165 = vpop.f32.mrb[0].mxu0
      %2166 = vmatprep.mubr.bf16.mxu0 0
      %2167 = vmatmul.mubr.bf16.gmra.mrb[0].mxu0 %v2098
      %v2168 = vpop.f32.mrb[0].mxu0
      %v2169 = vadd.f32 %v2074, %v2168
      %v2170 = vpop.f32.mrb[0].mxu0
      %v2171 = vpop.f32.mrb[0].mxu0
      %v2172 = vadd.f32 %v2074, %v2171
      %v2173 = vpop.f32.mrb[0].mxu0
      %2174 = vmatprep.mubr.bf16.mxu0 0
      %2175 = vmatmul.mubr.bf16.gmra.mrb[0].mxu0 %v2101
      %v2176 = vpop.f32.mrb[0].mxu0
      %v2177 = vadd.f32 %v2074, %v2176
      %v2178 = vpop.f32.mrb[0].mxu0
      %v2179 = vpop.f32.mrb[0].mxu0
      %v2180 = vadd.f32 %v2074, %v2179
      %v2181 = vpop.f32.mrb[0].mxu0
      %2182 = vmatprep.mubr.bf16.mxu0 0
      %2183 = vmatmul.mubr.bf16.gmra.mrb[0].mxu0 %v2104
      %v2184 = vpop.f32.mrb[0].mxu0
      %v2185 = vadd.f32 %v2074, %v2184
      %v2186 = vpop.f32.mrb[0].mxu0
      %v2187 = vpop.f32.mrb[0].mxu0
      %v2188 = vadd.f32 %v2074, %v2187
      %v2189 = vpop.f32.mrb[0].mxu0
      %2190 = vmatprep.mubr.bf16.mxu0 0
      %2191 = vmatmul.mubr.bf16.gmra.mrb[0].mxu0 %v2107
      %v2192 = vpop.f32.mrb[0].mxu0
      %v2193 = vadd.f32 %v2074, %v2192
      %v2194 = vpop.f32.mrb[0].mxu0
      %v2195 = vpop.f32.mrb[0].mxu0
      %v2196 = vadd.f32 %v2074, %v2195
      %v2197 = vpop.f32.mrb[0].mxu0
      %2198 = vmatprep.mubr.bf16.mxu0 0
      %2199 = vmatmul.mubr.bf16.gmra.mrb[0].mxu0 %v2110
      %v2200 = vpop.f32.mrb[0].mxu0
      %v2201 = vadd.f32 %v2074, %v2200
      %v2202 = vpop.f32.mrb[0].mxu0
      %v2203 = vpop.f32.mrb[0].mxu0
      %v2204 = vadd.f32 %v2074, %v2203
      %v2205 = vpop.f32.mrb[0].mxu0
      %2206 = vmatprep.mubr.bf16.mxu0 0
      %2207 = vmatmul.mubr.bf16.gmra.mrb[0].mxu0 %v2113
      %v2208 = vpop.f32.mrb[0].mxu0
      %v2209 = vadd.f32 %v2074, %v2208
      %v2210 = vpop.f32.mrb[0].mxu0
      %v2211 = vpop.f32.mrb[0].mxu0
      %v2212 = vadd.f32 %v2074, %v2211
      %v2213 = vpop.f32.mrb[0].mxu0
      %2214 = vdwg.mxu0
      %v2215 = vmax.f32 %v2153, 0.0
      %v2216 = vmax.f32 %v2156, 0.0
      %v2217 = vmax.f32 %v2161, 0.0
      %v2218 = vmax.f32 %v2164, 0.0
      %v2219 = vmax.f32 %v2169, 0.0
      %v2220 = vmax.f32 %v2172, 0.0
      %v2221 = vmax.f32 %v2177, 0.0
      %v2222 = vmax.f32 %v2180, 0.0
      %v2223 = vmax.f32 %v2185, 0.0
      %v2224 = vmax.f32 %v2188, 0.0
      %v2225 = vmax.f32 %v2193, 0.0
      %v2226 = vmax.f32 %v2196, 0.0
      %v2227 = vmax.f32 %v2201, 0.0
      %v2228 = vmax.f32 %v2204, 0.0
      %v2229 = vmax.f32 %v2209, 0.0
      %v2230 = vmax.f32 %v2212, 0.0
      %v2231 = vpack.c.bf16 %v2216, %v2215
      %v2232 = vpack.c.bf16 %v2218, %v2217
      %v2233 = vpack.c.bf16 %v2220, %v2219
      %v2234 = vpack.c.bf16 %v2222, %v2221
      %v2235 = vpack.c.bf16 %v2224, %v2223
      %v2236 = vpack.c.bf16 %v2226, %v2225
      %v2237 = vpack.c.bf16 %v2228, %v2227
      %v2238 = vpack.c.bf16 %v2230, %v2229
      %v2239 = vld [vmem:[%s3 + $0x4] sm:$0xf]
      %vm2240 = vcmask 64512
      %v2242 = vsel %vm2240, %v2231, 0
      %v2245 = vsel %vm2240, %v2232, 0
      %v2248 = vsel %vm2240, %v2233, 0
      %v2251 = vsel %vm2240, %v2234, 0
      %v2254 = vsel %vm2240, %v2235, 0
      %v2257 = vsel %vm2240, %v2236, 0
      %v2260 = vsel %vm2240, %v2237, 0
      %v2263 = vsel %vm2240, %v2238, 0
      %vm2265 = vcmask 1043456
      %v2267 = vsel %vm2265, %v2239, 0
      %2269 = vmatprep.subr.bf16.mxu0 0
      %2270 = vmatpush1.bf16.msra.mxu0 %v2267
      %2271 = vmatprep.subr.bf16.mxu0 0
      %2272 = vmatpush1.bf16.msra.mxu0 0
      %2273 = vmatprep.subr.bf16.mxu0 0
      %2274 = vmatpush1.bf16.msra.mxu0 0
      %2275 = vmatprep.subr.bf16.mxu0 0
      %2276 = vmatpush1.bf16.msra.mxu0 0
      %2277 = vmatprep.subr.bf16.mxu0 0
      %2278 = vmatpush1.bf16.msra.mxu0 0
      %2279 = vmatprep.subr.bf16.mxu0 0
      %2280 = vmatpush1.bf16.msra.mxu0 0
      %2281 = vmatprep.subr.bf16.mxu0 0
      %2282 = vmatpush1.bf16.msra.mxu0 0
      %2283 = vmatprep.subr.bf16.mxu0 0
      %2284 = vmatpush1.bf16.msra.mxu0 0
      %2285 = vmatprep.subr.bf16.mxu0 0
      %2286 = vmatpush1.bf16.msra.mxu0 0
      %2287 = vmatprep.subr.bf16.mxu0 0
      %2288 = vmatpush1.bf16.msra.mxu0 0
      %2289 = vmatprep.subr.bf16.mxu0 0
      %2290 = vmatpush1.bf16.msra.mxu0 0
      %2291 = vmatprep.subr.bf16.mxu0 0
      %2292 = vmatpush1.bf16.msra.mxu0 0
      %2293 = vmatprep.subr.bf16.mxu0 0
      %2294 = vmatpush1.bf16.msra.mxu0 0
      %2295 = vmatprep.subr.bf16.mxu0 0
      %2296 = vmatpush1.bf16.msra.mxu0 0
      %2297 = vmatprep.subr.bf16.mxu0 0
      %2298 = vmatpush1.bf16.msra.mxu0 0
      %2299 = vmatprep.subr.bf16.mxu0 0
      %2300 = vmatpush1.bf16.msra.mxu0 0
      %2301 = vmatprep.mubr.bf16.mxu0 0
      %2302 = vmatmul.mubr.bf16.gmra.mrb[0].mxu0 %v2242
      %v2303 = vpop.f32.mrb[0].mxu0
      %v2304 = vadd.f32 0.0, %v2303
      %v2305 = vpop.f32.mrb[0].mxu0
      %v2306 = vpop.f32.mrb[0].mxu0
      %v2307 = vadd.f32 0.0, %v2306
      %v2308 = vpop.f32.mrb[0].mxu0
      %2309 = vmatprep.mubr.bf16.mxu0 0
      %2310 = vmatmul.mubr.bf16.gmra.mrb[0].mxu0 %v2245
      %v2311 = vpop.f32.mrb[0].mxu0
      %v2312 = vadd.f32 0.0, %v2311
      %v2313 = vpop.f32.mrb[0].mxu0
      %v2314 = vpop.f32.mrb[0].mxu0
      %v2315 = vadd.f32 0.0, %v2314
      %v2316 = vpop.f32.mrb[0].mxu0
      %2317 = vmatprep.mubr.bf16.mxu0 0
      %2318 = vmatmul.mubr.bf16.gmra.mrb[0].mxu0 %v2248
      %v2319 = vpop.f32.mrb[0].mxu0
      %v2320 = vadd.f32 0.0, %v2319
      %v2321 = vpop.f32.mrb[0].mxu0
      %v2322 = vpop.f32.mrb[0].mxu0
      %v2323 = vadd.f32 0.0, %v2322
      %v2324 = vpop.f32.mrb[0].mxu0
      %2325 = vmatprep.mubr.bf16.mxu0 0
      %2326 = vmatmul.mubr.bf16.gmra.mrb[0].mxu0 %v2251
      %v2327 = vpop.f32.mrb[0].mxu0
      %v2328 = vadd.f32 0.0, %v2327
      %v2329 = vpop.f32.mrb[0].mxu0
      %v2330 = vpop.f32.mrb[0].mxu0
      %v2331 = vadd.f32 0.0, %v2330
      %v2332 = vpop.f32.mrb[0].mxu0
      %2333 = vmatprep.mubr.bf16.mxu0 0
      %2334 = vmatmul.mubr.bf16.gmra.mrb[0].mxu0 %v2254
      %v2335 = vpop.f32.mrb[0].mxu0
      %v2336 = vadd.f32 0.0, %v2335
      %v2337 = vpop.f32.mrb[0].mxu0
      %v2338 = vpop.f32.mrb[0].mxu0
      %v2339 = vadd.f32 0.0, %v2338
      %v2340 = vpop.f32.mrb[0].mxu0
      %2341 = vmatprep.mubr.bf16.mxu0 0
      %2342 = vmatmul.mubr.bf16.gmra.mrb[0].mxu0 %v2257
      %v2343 = vpop.f32.mrb[0].mxu0
      %v2344 = vadd.f32 0.0, %v2343
      %v2345 = vpop.f32.mrb[0].mxu0
      %v2346 = vpop.f32.mrb[0].mxu0
      %v2347 = vadd.f32 0.0, %v2346
      %v2348 = vpop.f32.mrb[0].mxu0
      %2349 = vmatprep.mubr.bf16.mxu0 0
      %2350 = vmatmul.mubr.bf16.gmra.mrb[0].mxu0 %v2260
      %v2351 = vpop.f32.mrb[0].mxu0
      %v2352 = vadd.f32 0.0, %v2351
      %v2353 = vpop.f32.mrb[0].mxu0
      %v2354 = vpop.f32.mrb[0].mxu0
      %v2355 = vadd.f32 0.0, %v2354
      %v2356 = vpop.f32.mrb[0].mxu0
      %2357 = vmatprep.mubr.bf16.mxu0 0
      %2358 = vmatmul.mubr.bf16.gmra.mrb[0].mxu0 %v2263
      %v2359 = vpop.f32.mrb[0].mxu0
      %v2360 = vadd.f32 0.0, %v2359
      %v2361 = vpop.f32.mrb[0].mxu0
      %v2362 = vpop.f32.mrb[0].mxu0
      %v2363 = vadd.f32 0.0, %v2362
      %v2364 = vpop.f32.mrb[0].mxu0
      %2365 = vdwg.mxu0
      %v2367 = vsel %vm2240, %v603, 0
      %v2370 = vsel %vm2240, %v604, 0
      %v2373 = vsel %vm2240, %v605, 0
      %v2376 = vsel %vm2240, %v606, 0
      %v2379 = vsel %vm2240, %v607, 0
      %v2382 = vsel %vm2240, %v608, 0
      %v2385 = vsel %vm2240, %v609, 0
      %v2388 = vsel %vm2240, %v610, 0
      %v2391 = vsel %vm2265, %v611, 0
      %2393 = vmatprep.subr.bf16.mxu0 0
      %2394 = vmatpush1.bf16.msra.mxu0 %v2391
      %2395 = vmatprep.subr.bf16.mxu0 0
      %2396 = vmatpush1.bf16.msra.mxu0 0
      %2397 = vmatprep.subr.bf16.mxu0 0
      %2398 = vmatpush1.bf16.msra.mxu0 0
      %2399 = vmatprep.subr.bf16.mxu0 0
      %2400 = vmatpush1.bf16.msra.mxu0 0
      %2401 = vmatprep.subr.bf16.mxu0 0
      %2402 = vmatpush1.bf16.msra.mxu0 0
      %2403 = vmatprep.subr.bf16.mxu0 0
      %2404 = vmatpush1.bf16.msra.mxu0 0
      %2405 = vmatprep.subr.bf16.mxu0 0
      %2406 = vmatpush1.bf16.msra.mxu0 0
      %2407 = vmatprep.subr.bf16.mxu0 0
      %2408 = vmatpush1.bf16.msra.mxu0 0
      %2409 = vmatprep.subr.bf16.mxu0 0
      %2410 = vmatpush1.bf16.msra.mxu0 0
      %2411 = vmatprep.subr.bf16.mxu0 0
      %2412 = vmatpush1.bf16.msra.mxu0 0
      %2413 = vmatprep.subr.bf16.mxu0 0
      %2414 = vmatpush1.bf16.msra.mxu0 0
      %2415 = vmatprep.subr.bf16.mxu0 0
      %2416 = vmatpush1.bf16.msra.mxu0 0
      %2417 = vmatprep.subr.bf16.mxu0 0
      %2418 = vmatpush1.bf16.msra.mxu0 0
      %2419 = vmatprep.subr.bf16.mxu0 0
      %2420 = vmatpush1.bf16.msra.mxu0 0
      %2421 = vmatprep.subr.bf16.mxu0 0
      %2422 = vmatpush1.bf16.msra.mxu0 0
      %2423 = vmatprep.subr.bf16.mxu0 0
      %2424 = vmatpush1.bf16.msra.mxu0 0
      %2425 = vmatprep.mubr.bf16.mxu0 0
      %2426 = vmatmul.mubr.bf16.gmra.mrb[0].mxu0 %v2367
      %v2427 = vpop.f32.mrb[0].mxu0
      %v2428 = vadd.f32 %v2304, %v2427
      %v2429 = vpop.f32.mrb[0].mxu0
      %v2430 = vpop.f32.mrb[0].mxu0
      %v2431 = vadd.f32 %v2307, %v2430
      %v2432 = vpop.f32.mrb[0].mxu0
      %2433 = vmatprep.mubr.bf16.mxu0 0
      %2434 = vmatmul.mubr.bf16.gmra.mrb[0].mxu0 %v2370
      %v2435 = vpop.f32.mrb[0].mxu0
      %v2436 = vadd.f32 %v2312, %v2435
      %v2437 = vpop.f32.mrb[0].mxu0
      %v2438 = vpop.f32.mrb[0].mxu0
      %v2439 = vadd.f32 %v2315, %v2438
      %v2440 = vpop.f32.mrb[0].mxu0
      %2441 = vmatprep.mubr.bf16.mxu0 0
      %2442 = vmatmul.mubr.bf16.gmra.mrb[0].mxu0 %v2373
      %v2443 = vpop.f32.mrb[0].mxu0
      %v2444 = vadd.f32 %v2320, %v2443
      %v2445 = vpop.f32.mrb[0].mxu0
      %v2446 = vpop.f32.mrb[0].mxu0
      %v2447 = vadd.f32 %v2323, %v2446
      %v2448 = vpop.f32.mrb[0].mxu0
      %2449 = vmatprep.mubr.bf16.mxu0 0
      %2450 = vmatmul.mubr.bf16.gmra.mrb[0].mxu0 %v2376
      %v2451 = vpop.f32.mrb[0].mxu0
      %v2452 = vadd.f32 %v2328, %v2451
      %v2453 = vpop.f32.mrb[0].mxu0
      %v2454 = vpop.f32.mrb[0].mxu0
      %v2455 = vadd.f32 %v2331, %v2454
      %v2456 = vpop.f32.mrb[0].mxu0
      %2457 = vmatprep.mubr.bf16.mxu0 0
      %2458 = vmatmul.mubr.bf16.gmra.mrb[0].mxu0 %v2379
      %v2459 = vpop.f32.mrb[0].mxu0
      %v2460 = vadd.f32 %v2336, %v2459
      %v2461 = vpop.f32.mrb[0].mxu0
      %v2462 = vpop.f32.mrb[0].mxu0
      %v2463 = vadd.f32 %v2339, %v2462
      %v2464 = vpop.f32.mrb[0].mxu0
      %2465 = vmatprep.mubr.bf16.mxu0 0
      %2466 = vmatmul.mubr.bf16.gmra.mrb[0].mxu0 %v2382
      %v2467 = vpop.f32.mrb[0].mxu0
      %v2468 = vadd.f32 %v2344, %v2467
      %v2469 = vpop.f32.mrb[0].mxu0
      %v2470 = vpop.f32.mrb[0].mxu0
      %v2471 = vadd.f32 %v2347, %v2470
      %v2472 = vpop.f32.mrb[0].mxu0
      %2473 = vmatprep.mubr.bf16.mxu0 0
      %2474 = vmatmul.mubr.bf16.gmra.mrb[0].mxu0 %v2385
      %v2475 = vpop.f32.mrb[0].mxu0
      %v2476 = vadd.f32 %v2352, %v2475
      %v2477 = vpop.f32.mrb[0].mxu0
      %v2478 = vpop.f32.mrb[0].mxu0
      %v2479 = vadd.f32 %v2355, %v2478
      %v2480 = vpop.f32.mrb[0].mxu0
      %2481 = vmatprep.mubr.bf16.mxu0 0
      %2482 = vmatmul.mubr.bf16.gmra.mrb[0].mxu0 %v2388
      %v2483 = vpop.f32.mrb[0].mxu0
      %v2484 = vadd.f32 %v2360, %v2483
      %v2485 = vpop.f32.mrb[0].mxu0
      %v2486 = vpop.f32.mrb[0].mxu0
      %v2487 = vadd.f32 %v2363, %v2486
      %v2488 = vpop.f32.mrb[0].mxu0
      %2489 = vdwg.mxu0
      %s2490 = smul.u32 %s319, 3
      %s2491 = smul.addr %s2490, 4
      %s2492 = scalar_lea.vmem %s303, %s2491
      %v2493 = vld [vmem:[%s2492] sm:$0xf]
      %v2494 = vld [vmem:[%s2492 + $0x4] sm:$0xf]
      %v2495 = vld [vmem:[%s2492 + $0xc] sm:$0xf]
      %v2496 = vld [vmem:[%s2492 + $0x10] sm:$0xf]
      %v2497 = vld [vmem:[%s2492 + $0x18] sm:$0xf]
      %v2498 = vld [vmem:[%s2492 + $0x1c] sm:$0xf]
      %v2499 = vld [vmem:[%s2492 + $0x24] sm:$0xf]
      %v2500 = vld [vmem:[%s2492 + $0x28] sm:$0xf]
      %v2501 = vld [vmem:[%s2492 + $0x30] sm:$0xf]
      %v2502 = vld [vmem:[%s2492 + $0x34] sm:$0xf]
      %v2503 = vld [vmem:[%s2492 + $0x3c] sm:$0xf]
      %v2504 = vld [vmem:[%s2492 + $0x40] sm:$0xf]
      %v2505 = vld [vmem:[%s2492 + $0x48] sm:$0xf]
      %v2506 = vld [vmem:[%s2492 + $0x4c] sm:$0xf]
      %v2507 = vld [vmem:[%s2492 + $0x54] sm:$0xf]
      %v2508 = vld [vmem:[%s2492 + $0x58] sm:$0xf]
      %v2525 = vunpack.c.l.b16 %v2493
      %v2526 = vunpack.c.l.b16 %v2494
      %v2527 = vunpack.c.l.b16 %v2495
      %v2528 = vunpack.c.l.b16 %v2496
      %v2529 = vunpack.c.l.b16 %v2497
      %v2530 = vunpack.c.l.b16 %v2498
      %v2531 = vunpack.c.l.b16 %v2499
      %v2532 = vunpack.c.l.b16 %v2500
      %v2533 = vunpack.c.l.b16 %v2501
      %v2534 = vunpack.c.l.b16 %v2502
      %v2535 = vunpack.c.l.b16 %v2503
      %v2536 = vunpack.c.l.b16 %v2504
      %v2537 = vunpack.c.l.b16 %v2505
      %v2538 = vunpack.c.l.b16 %v2506
      %v2539 = vunpack.c.l.b16 %v2507
      %v2540 = vunpack.c.l.b16 %v2508
      %v2541 = vpack.c.b16 %v2526, %v2525
      %v2542 = vpack.c.b16 %v2528, %v2527
      %v2543 = vpack.c.b16 %v2530, %v2529
      %v2544 = vpack.c.b16 %v2532, %v2531
      %v2545 = vpack.c.b16 %v2534, %v2533
      %v2546 = vpack.c.b16 %v2536, %v2535
      %v2547 = vpack.c.b16 %v2538, %v2537
      %v2548 = vpack.c.b16 %v2540, %v2539
      %2557 = vst.msk [vmem:[#allocation2] sm:$0xff] %vm461, %v2541
      %2558 = vst.msk [vmem:[#allocation2 + $0x8] sm:$0xff] %vm461, %v2542
      %2559 = vst.msk [vmem:[#allocation2 + $0x10] sm:$0xff] %vm461, %v2543
      %2560 = vst.msk [vmem:[#allocation2 + $0x18] sm:$0xff] %vm461, %v2544
      %2561 = vst.msk [vmem:[#allocation2 + $0x20] sm:$0xff] %vm461, %v2545
      %2562 = vst.msk [vmem:[#allocation2 + $0x28] sm:$0xff] %vm461, %v2546
      %2563 = vst.msk [vmem:[#allocation2 + $0x30] sm:$0xff] %vm461, %v2547
      %2564 = vst.msk [vmem:[#allocation2 + $0x38] sm:$0xff] %vm461, %v2548
      %v2565 = vld [vmem:[%s2492] sm:$0xc]
      %v2566 = vld [vmem:[%s2492 + $0x4] sm:$0xf]
      %v2567 = vld [vmem:[%s2492 + $0x8] sm:$0x3]
      %v2568 = vld [vmem:[%s2492 + $0xc] sm:$0xc]
      %v2569 = vld [vmem:[%s2492 + $0x10] sm:$0xf]
      %v2570 = vld [vmem:[%s2492 + $0x14] sm:$0x3]
      %v2571 = vld [vmem:[%s2492 + $0x18] sm:$0xc]
      %v2572 = vld [vmem:[%s2492 + $0x1c] sm:$0xf]
      %v2573 = vld [vmem:[%s2492 + $0x20] sm:$0x3]
      %v2574 = vld [vmem:[%s2492 + $0x24] sm:$0xc]
      %v2575 = vld [vmem:[%s2492 + $0x28] sm:$0xf]
      %v2576 = vld [vmem:[%s2492 + $0x2c] sm:$0x3]
      %v2577 = vld [vmem:[%s2492 + $0x30] sm:$0xc]
      %v2578 = vld [vmem:[%s2492 + $0x34] sm:$0xf]
      %v2579 = vld [vmem:[%s2492 + $0x38] sm:$0x3]
      %v2580 = vld [vmem:[%s2492 + $0x3c] sm:$0xc]
      %v2581 = vld [vmem:[%s2492 + $0x40] sm:$0xf]
      %v2582 = vld [vmem:[%s2492 + $0x44] sm:$0x3]
      %v2583 = vld [vmem:[%s2492 + $0x48] sm:$0xc]
      %v2584 = vld [vmem:[%s2492 + $0x4c] sm:$0xf]
      %v2585 = vld [vmem:[%s2492 + $0x50] sm:$0x3]
      %v2586 = vld [vmem:[%s2492 + $0x54] sm:$0xc]
      %v2587 = vld [vmem:[%s2492 + $0x58] sm:$0xf]
      %v2588 = vld [vmem:[%s2492 + $0x5c] sm:$0x3]
      %v2613 = vrot.slane %v2565, 6
      %v2614 = vrot.slane %v2613, 4
      %v2615 = vrot.slane %v2566, 6
      %v2616 = vsel %vm375, %v2614, %v2615
      %v2617 = vrot.slane %v2615, 4
      %v2618 = vrot.slane %v2567, 6
      %v2619 = vsel %vm375, %v2617, %v2618
      %v2620 = vrot.slane %v2568, 6
      %v2621 = vrot.slane %v2620, 4
      %v2622 = vrot.slane %v2569, 6
      %v2623 = vsel %vm375, %v2621, %v2622
      %v2624 = vrot.slane %v2622, 4
      %v2625 = vrot.slane %v2570, 6
      %v2626 = vsel %vm375, %v2624, %v2625
      %v2627 = vrot.slane %v2571, 6
      %v2628 = vrot.slane %v2627, 4
      %v2629 = vrot.slane %v2572, 6
      %v2630 = vsel %vm375, %v2628, %v2629
      %v2631 = vrot.slane %v2629, 4
      %v2632 = vrot.slane %v2573, 6
      %v2633 = vsel %vm375, %v2631, %v2632
      %v2634 = vrot.slane %v2574, 6
      %v2635 = vrot.slane %v2634, 4
      %v2636 = vrot.slane %v2575, 6
      %v2637 = vsel %vm375, %v2635, %v2636
      %v2638 = vrot.slane %v2636, 4
      %v2639 = vrot.slane %v2576, 6
      %v2640 = vsel %vm375, %v2638, %v2639
      %v2641 = vrot.slane %v2577, 6
      %v2642 = vrot.slane %v2641, 4
      %v2643 = vrot.slane %v2578, 6
      %v2644 = vsel %vm375, %v2642, %v2643
      %v2645 = vrot.slane %v2643, 4
      %v2646 = vrot.slane %v2579, 6
      %v2647 = vsel %vm375, %v2645, %v2646
      %v2648 = vrot.slane %v2580, 6
      %v2649 = vrot.slane %v2648, 4
      %v2650 = vrot.slane %v2581, 6
      %v2651 = vsel %vm375, %v2649, %v2650
      %v2652 = vrot.slane %v2650, 4
      %v2653 = vrot.slane %v2582, 6
      %v2654 = vsel %vm375, %v2652, %v2653
      %v2655 = vrot.slane %v2583, 6
      %v2656 = vrot.slane %v2655, 4
      %v2657 = vrot.slane %v2584, 6
      %v2658 = vsel %vm375, %v2656, %v2657
      %v2659 = vrot.slane %v2657, 4
      %v2660 = vrot.slane %v2585, 6
      %v2661 = vsel %vm375, %v2659, %v2660
      %v2662 = vrot.slane %v2586, 6
      %v2663 = vrot.slane %v2662, 4
      %v2664 = vrot.slane %v2587, 6
      %v2665 = vsel %vm375, %v2663, %v2664
      %v2666 = vrot.slane %v2664, 4
      %v2667 = vrot.slane %v2588, 6
      %v2668 = vsel %vm375, %v2666, %v2667
      %v2669 = vunpack.c.l.b16 %v2616
      %v2670 = vunpack.c.l.b16 %v2619
      %v2671 = vunpack.c.l.b16 %v2623
      %v2672 = vunpack.c.l.b16 %v2626
      %v2673 = vunpack.c.l.b16 %v2630
      %v2674 = vunpack.c.l.b16 %v2633
      %v2675 = vunpack.c.l.b16 %v2637
      %v2676 = vunpack.c.l.b16 %v2640
      %v2677 = vunpack.c.l.b16 %v2644
      %v2678 = vunpack.c.l.b16 %v2647
      %v2679 = vunpack.c.l.b16 %v2651
      %v2680 = vunpack.c.l.b16 %v2654
      %v2681 = vunpack.c.l.b16 %v2658
      %v2682 = vunpack.c.l.b16 %v2661
      %v2683 = vunpack.c.l.b16 %v2665
      %v2684 = vunpack.c.l.b16 %v2668
      %v2685 = vpack.c.b16 %v2670, %v2669
      %v2686 = vpack.c.b16 %v2672, %v2671
      %v2687 = vpack.c.b16 %v2674, %v2673
      %v2688 = vpack.c.b16 %v2676, %v2675
      %v2689 = vpack.c.b16 %v2678, %v2677
      %v2690 = vpack.c.b16 %v2680, %v2679
      %v2691 = vpack.c.b16 %v2682, %v2681
      %v2692 = vpack.c.b16 %v2684, %v2683
      %2693 = vrot.lane.b32.xlu0 %v2685, 4
      %v2694 = vpop.permute.xlu0 %2693
      %2695 = vrot.lane.b32.xlu0 %v2686, 4
      %v2696 = vpop.permute.xlu0 %2695
      %2697 = vrot.lane.b32.xlu0 %v2687, 4
      %v2698 = vpop.permute.xlu0 %2697
      %2699 = vrot.lane.b32.xlu0 %v2688, 4
      %v2700 = vpop.permute.xlu0 %2699
      %2701 = vrot.lane.b32.xlu0 %v2689, 4
      %v2702 = vpop.permute.xlu0 %2701
      %2703 = vrot.lane.b32.xlu0 %v2690, 4
      %v2704 = vpop.permute.xlu0 %2703
      %2705 = vrot.lane.b32.xlu0 %v2691, 4
      %v2706 = vpop.permute.xlu0 %2705
      %2707 = vrot.lane.b32.xlu0 %v2692, 4
      %v2708 = vpop.permute.xlu0 %2707
      %2717 = vst.msk [vmem:[#allocation2] sm:$0xff] %vm915, %v2694
      %2718 = vst.msk [vmem:[#allocation2 + $0x8] sm:$0xff] %vm915, %v2696
      %2719 = vst.msk [vmem:[#allocation2 + $0x10] sm:$0xff] %vm915, %v2698
      %2720 = vst.msk [vmem:[#allocation2 + $0x18] sm:$0xff] %vm915, %v2700
      %2721 = vst.msk [vmem:[#allocation2 + $0x20] sm:$0xff] %vm915, %v2702
      %2722 = vst.msk [vmem:[#allocation2 + $0x28] sm:$0xff] %vm915, %v2704
      %2723 = vst.msk [vmem:[#allocation2 + $0x30] sm:$0xff] %vm915, %v2706
      %2724 = vst.msk [vmem:[#allocation2 + $0x38] sm:$0xff] %vm915, %v2708
      %v2725 = vld [vmem:[%s2492 + $0x4] sm:$0xf]
      %v2726 = vld [vmem:[%s2492 + $0x8] sm:$0xf]
      %v2727 = vld [vmem:[%s2492 + $0x10] sm:$0xf]
      %v2728 = vld [vmem:[%s2492 + $0x14] sm:$0xf]
      %v2729 = vld [vmem:[%s2492 + $0x1c] sm:$0xf]
      %v2730 = vld [vmem:[%s2492 + $0x20] sm:$0xf]
      %v2731 = vld [vmem:[%s2492 + $0x28] sm:$0xf]
      %v2732 = vld [vmem:[%s2492 + $0x2c] sm:$0xf]
      %v2733 = vld [vmem:[%s2492 + $0x34] sm:$0xf]
      %v2734 = vld [vmem:[%s2492 + $0x38] sm:$0xf]
      %v2735 = vld [vmem:[%s2492 + $0x40] sm:$0xf]
      %v2736 = vld [vmem:[%s2492 + $0x44] sm:$0xf]
      %v2737 = vld [vmem:[%s2492 + $0x4c] sm:$0xf]
      %v2738 = vld [vmem:[%s2492 + $0x50] sm:$0xf]
      %v2739 = vld [vmem:[%s2492 + $0x58] sm:$0xf]
      %v2740 = vld [vmem:[%s2492 + $0x5c] sm:$0xf]
      %v2757 = vunpack.c.l.b16 %v2725
      %v2758 = vunpack.c.l.b16 %v2726
      %v2759 = vunpack.c.l.b16 %v2727
      %v2760 = vunpack.c.l.b16 %v2728
      %v2761 = vunpack.c.l.b16 %v2729
      %v2762 = vunpack.c.l.b16 %v2730
      %v2763 = vunpack.c.l.b16 %v2731
      %v2764 = vunpack.c.l.b16 %v2732
      %v2765 = vunpack.c.l.b16 %v2733
      %v2766 = vunpack.c.l.b16 %v2734
      %v2767 = vunpack.c.l.b16 %v2735
      %v2768 = vunpack.c.l.b16 %v2736
      %v2769 = vunpack.c.l.b16 %v2737
      %v2770 = vunpack.c.l.b16 %v2738
      %v2771 = vunpack.c.l.b16 %v2739
      %v2772 = vunpack.c.l.b16 %v2740
      %v2773 = vpack.c.b16 %v2758, %v2757
      %v2774 = vpack.c.b16 %v2760, %v2759
      %v2775 = vpack.c.b16 %v2762, %v2761
      %v2776 = vpack.c.b16 %v2764, %v2763
      %v2777 = vpack.c.b16 %v2766, %v2765
      %v2778 = vpack.c.b16 %v2768, %v2767
      %v2779 = vpack.c.b16 %v2770, %v2769
      %v2780 = vpack.c.b16 %v2772, %v2771
      %2781 = vrot.lane.b32.xlu0 %v2773, 8
      %v2782 = vpop.permute.xlu0 %2781
      %2783 = vrot.lane.b32.xlu0 %v2774, 8
      %v2784 = vpop.permute.xlu0 %2783
      %2785 = vrot.lane.b32.xlu0 %v2775, 8
      %v2786 = vpop.permute.xlu0 %2785
      %2787 = vrot.lane.b32.xlu0 %v2776, 8
      %v2788 = vpop.permute.xlu0 %2787
      %2789 = vrot.lane.b32.xlu0 %v2777, 8
      %v2790 = vpop.permute.xlu0 %2789
      %2791 = vrot.lane.b32.xlu0 %v2778, 8
      %v2792 = vpop.permute.xlu0 %2791
      %2793 = vrot.lane.b32.xlu0 %v2779, 8
      %v2794 = vpop.permute.xlu0 %2793
      %2795 = vrot.lane.b32.xlu0 %v2780, 8
      %v2796 = vpop.permute.xlu0 %2795
      %2805 = vst.msk [vmem:[#allocation2] sm:$0xff] %vm1079, %v2782
      %2806 = vst.msk [vmem:[#allocation2 + $0x8] sm:$0xff] %vm1079, %v2784
      %2807 = vst.msk [vmem:[#allocation2 + $0x10] sm:$0xff] %vm1079, %v2786
      %2808 = vst.msk [vmem:[#allocation2 + $0x18] sm:$0xff] %vm1079, %v2788
      %2809 = vst.msk [vmem:[#allocation2 + $0x20] sm:$0xff] %vm1079, %v2790
      %2810 = vst.msk [vmem:[#allocation2 + $0x28] sm:$0xff] %vm1079, %v2792
      %2811 = vst.msk [vmem:[#allocation2 + $0x30] sm:$0xff] %vm1079, %v2794
      %2812 = vst.msk [vmem:[#allocation2 + $0x38] sm:$0xff] %vm1079, %v2796
      %v2813 = vld [vmem:[%s324] sm:$0xf]
      %v2814 = vld [vmem:[%s324 + $0x4] sm:$0xf]
      %v2815 = vld [vmem:[%s324 + $0xc] sm:$0xf]
      %v2816 = vld [vmem:[%s324 + $0x10] sm:$0xf]
      %v2817 = vld [vmem:[%s324 + $0x18] sm:$0xf]
      %v2818 = vld [vmem:[%s324 + $0x1c] sm:$0xf]
      %v2819 = vld [vmem:[%s324 + $0x24] sm:$0xf]
      %v2820 = vld [vmem:[%s324 + $0x28] sm:$0xf]
      %v2821 = vld [vmem:[%s324 + $0x30] sm:$0xf]
      %v2822 = vld [vmem:[%s324 + $0x34] sm:$0xf]
      %v2823 = vld [vmem:[%s324 + $0x3c] sm:$0xf]
      %v2824 = vld [vmem:[%s324 + $0x40] sm:$0xf]
      %v2825 = vld [vmem:[%s324 + $0x48] sm:$0xf]
      %v2826 = vld [vmem:[%s324 + $0x4c] sm:$0xf]
      %v2827 = vld [vmem:[%s324 + $0x54] sm:$0xf]
      %v2828 = vld [vmem:[%s324 + $0x58] sm:$0xf]
      %v2845 = vunpack.c.l.b16 %v2813
      %v2846 = vunpack.c.l.b16 %v2814
      %v2847 = vunpack.c.l.b16 %v2815
      %v2848 = vunpack.c.l.b16 %v2816
      %v2849 = vunpack.c.l.b16 %v2817
      %v2850 = vunpack.c.l.b16 %v2818
      %v2851 = vunpack.c.l.b16 %v2819
      %v2852 = vunpack.c.l.b16 %v2820
      %v2853 = vunpack.c.l.b16 %v2821
      %v2854 = vunpack.c.l.b16 %v2822
      %v2855 = vunpack.c.l.b16 %v2823
      %v2856 = vunpack.c.l.b16 %v2824
      %v2857 = vunpack.c.l.b16 %v2825
      %v2858 = vunpack.c.l.b16 %v2826
      %v2859 = vunpack.c.l.b16 %v2827
      %v2860 = vunpack.c.l.b16 %v2828
      %v2861 = vpack.c.b16 %v2846, %v2845
      %v2862 = vpack.c.b16 %v2848, %v2847
      %v2863 = vpack.c.b16 %v2850, %v2849
      %v2864 = vpack.c.b16 %v2852, %v2851
      %v2865 = vpack.c.b16 %v2854, %v2853
      %v2866 = vpack.c.b16 %v2856, %v2855
      %v2867 = vpack.c.b16 %v2858, %v2857
      %v2868 = vpack.c.b16 %v2860, %v2859
      %2869 = vrot.lane.b32.xlu0 %v2861, 12
      %v2870 = vpop.permute.xlu0 %2869
      %2871 = vrot.lane.b32.xlu0 %v2862, 12
      %v2872 = vpop.permute.xlu0 %2871
      %2873 = vrot.lane.b32.xlu0 %v2863, 12
      %v2874 = vpop.permute.xlu0 %2873
      %2875 = vrot.lane.b32.xlu0 %v2864, 12
      %v2876 = vpop.permute.xlu0 %2875
      %2877 = vrot.lane.b32.xlu0 %v2865, 12
      %v2878 = vpop.permute.xlu0 %2877
      %2879 = vrot.lane.b32.xlu0 %v2866, 12
      %v2880 = vpop.permute.xlu0 %2879
      %2881 = vrot.lane.b32.xlu0 %v2867, 12
      %v2882 = vpop.permute.xlu0 %2881
      %2883 = vrot.lane.b32.xlu0 %v2868, 12
      %v2884 = vpop.permute.xlu0 %2883
      %2893 = vst.msk [vmem:[#allocation2] sm:$0xff] %vm1240, %v2870
      %2894 = vst.msk [vmem:[#allocation2 + $0x8] sm:$0xff] %vm1240, %v2872
      %2895 = vst.msk [vmem:[#allocation2 + $0x10] sm:$0xff] %vm1240, %v2874
      %2896 = vst.msk [vmem:[#allocation2 + $0x18] sm:$0xff] %vm1240, %v2876
      %2897 = vst.msk [vmem:[#allocation2 + $0x20] sm:$0xff] %vm1240, %v2878
      %2898 = vst.msk [vmem:[#allocation2 + $0x28] sm:$0xff] %vm1240, %v2880
      %2899 = vst.msk [vmem:[#allocation2 + $0x30] sm:$0xff] %vm1240, %v2882
      %2900 = vst.msk [vmem:[#allocation2 + $0x38] sm:$0xff] %vm1240, %v2884
      %v2901 = vld [vmem:[%s324] sm:$0xc]
      %v2902 = vld [vmem:[%s324 + $0x4] sm:$0xf]
      %v2903 = vld [vmem:[%s324 + $0x8] sm:$0x3]
      %v2904 = vld [vmem:[%s324 + $0xc] sm:$0xc]
      %v2905 = vld [vmem:[%s324 + $0x10] sm:$0xf]
      %v2906 = vld [vmem:[%s324 + $0x14] sm:$0x3]
      %v2907 = vld [vmem:[%s324 + $0x18] sm:$0xc]
      %v2908 = vld [vmem:[%s324 + $0x1c] sm:$0xf]
      %v2909 = vld [vmem:[%s324 + $0x20] sm:$0x3]
      %v2910 = vld [vmem:[%s324 + $0x24] sm:$0xc]
      %v2911 = vld [vmem:[%s324 + $0x28] sm:$0xf]
      %v2912 = vld [vmem:[%s324 + $0x2c] sm:$0x3]
      %v2913 = vld [vmem:[%s324 + $0x30] sm:$0xc]
      %v2914 = vld [vmem:[%s324 + $0x34] sm:$0xf]
      %v2915 = vld [vmem:[%s324 + $0x38] sm:$0x3]
      %v2916 = vld [vmem:[%s324 + $0x3c] sm:$0xc]
      %v2917 = vld [vmem:[%s324 + $0x40] sm:$0xf]
      %v2918 = vld [vmem:[%s324 + $0x44] sm:$0x3]
      %v2919 = vld [vmem:[%s324 + $0x48] sm:$0xc]
      %v2920 = vld [vmem:[%s324 + $0x4c] sm:$0xf]
      %v2921 = vld [vmem:[%s324 + $0x50] sm:$0x3]
      %v2922 = vld [vmem:[%s324 + $0x54] sm:$0xc]
      %v2923 = vld [vmem:[%s324 + $0x58] sm:$0xf]
      %v2924 = vld [vmem:[%s324 + $0x5c] sm:$0x3]
      %v2949 = vrot.slane %v2901, 6
      %v2950 = vrot.slane %v2949, 4
      %v2951 = vrot.slane %v2902, 6
      %v2952 = vsel %vm375, %v2950, %v2951
      %v2953 = vrot.slane %v2951, 4
      %v2954 = vrot.slane %v2903, 6
      %v2955 = vsel %vm375, %v2953, %v2954
      %v2956 = vrot.slane %v2904, 6
      %v2957 = vrot.slane %v2956, 4
      %v2958 = vrot.slane %v2905, 6
      %v2959 = vsel %vm375, %v2957, %v2958
      %v2960 = vrot.slane %v2958, 4
      %v2961 = vrot.slane %v2906, 6
      %v2962 = vsel %vm375, %v2960, %v2961
      %v2963 = vrot.slane %v2907, 6
      %v2964 = vrot.slane %v2963, 4
      %v2965 = vrot.slane %v2908, 6
      %v2966 = vsel %vm375, %v2964, %v2965
      %v2967 = vrot.slane %v2965, 4
      %v2968 = vrot.slane %v2909, 6
      %v2969 = vsel %vm375, %v2967, %v2968
      %v2970 = vrot.slane %v2910, 6
      %v2971 = vrot.slane %v2970, 4
      %v2972 = vrot.slane %v2911, 6
      %v2973 = vsel %vm375, %v2971, %v2972
      %v2974 = vrot.slane %v2972, 4
      %v2975 = vrot.slane %v2912, 6
      %v2976 = vsel %vm375, %v2974, %v2975
      %v2977 = vrot.slane %v2913, 6
      %v2978 = vrot.slane %v2977, 4
      %v2979 = vrot.slane %v2914, 6
      %v2980 = vsel %vm375, %v2978, %v2979
      %v2981 = vrot.slane %v2979, 4
      %v2982 = vrot.slane %v2915, 6
      %v2983 = vsel %vm375, %v2981, %v2982
      %v2984 = vrot.slane %v2916, 6
      %v2985 = vrot.slane %v2984, 4
      %v2986 = vrot.slane %v2917, 6
      %v2987 = vsel %vm375, %v2985, %v2986
      %v2988 = vrot.slane %v2986, 4
      %v2989 = vrot.slane %v2918, 6
      %v2990 = vsel %vm375, %v2988, %v2989
      %v2991 = vrot.slane %v2919, 6
      %v2992 = vrot.slane %v2991, 4
      %v2993 = vrot.slane %v2920, 6
      %v2994 = vsel %vm375, %v2992, %v2993
      %v2995 = vrot.slane %v2993, 4
      %v2996 = vrot.slane %v2921, 6
      %v2997 = vsel %vm375, %v2995, %v2996
      %v2998 = vrot.slane %v2922, 6
      %v2999 = vrot.slane %v2998, 4
      %v3000 = vrot.slane %v2923, 6
      %v3001 = vsel %vm375, %v2999, %v3000
      %v3002 = vrot.slane %v3000, 4
      %v3003 = vrot.slane %v2924, 6
      %v3004 = vsel %vm375, %v3002, %v3003
      %v3005 = vunpack.c.l.b16 %v2952
      %v3006 = vunpack.c.l.b16 %v2955
      %v3007 = vunpack.c.l.b16 %v2959
      %v3008 = vunpack.c.l.b16 %v2962
      %v3009 = vunpack.c.l.b16 %v2966
      %v3010 = vunpack.c.l.b16 %v2969
      %v3011 = vunpack.c.l.b16 %v2973
      %v3012 = vunpack.c.l.b16 %v2976
      %v3013 = vunpack.c.l.b16 %v2980
      %v3014 = vunpack.c.l.b16 %v2983
      %v3015 = vunpack.c.l.b16 %v2987
      %v3016 = vunpack.c.l.b16 %v2990
      %v3017 = vunpack.c.l.b16 %v2994
      %v3018 = vunpack.c.l.b16 %v2997
      %v3019 = vunpack.c.l.b16 %v3001
      %v3020 = vunpack.c.l.b16 %v3004
      %v3021 = vpack.c.b16 %v3006, %v3005
      %v3022 = vpack.c.b16 %v3008, %v3007
      %v3023 = vpack.c.b16 %v3010, %v3009
      %v3024 = vpack.c.b16 %v3012, %v3011
      %v3025 = vpack.c.b16 %v3014, %v3013
      %v3026 = vpack.c.b16 %v3016, %v3015
      %v3027 = vpack.c.b16 %v3018, %v3017
      %v3028 = vpack.c.b16 %v3020, %v3019
      %3029 = vrot.lane.b32.xlu0 %v3021, 16
      %v3030 = vpop.permute.xlu0 %3029
      %3031 = vrot.lane.b32.xlu0 %v3022, 16
      %v3032 = vpop.permute.xlu0 %3031
      %3033 = vrot.lane.b32.xlu0 %v3023, 16
      %v3034 = vpop.permute.xlu0 %3033
      %3035 = vrot.lane.b32.xlu0 %v3024, 16
      %v3036 = vpop.permute.xlu0 %3035
      %3037 = vrot.lane.b32.xlu0 %v3025, 16
      %v3038 = vpop.permute.xlu0 %3037
      %3039 = vrot.lane.b32.xlu0 %v3026, 16
      %v3040 = vpop.permute.xlu0 %3039
      %3041 = vrot.lane.b32.xlu0 %v3027, 16
      %v3042 = vpop.permute.xlu0 %3041
      %3043 = vrot.lane.b32.xlu0 %v3028, 16
      %v3044 = vpop.permute.xlu0 %3043
      %3053 = vst.msk [vmem:[#allocation2] sm:$0xff] %vm1401, %v3030
      %3054 = vst.msk [vmem:[#allocation2 + $0x8] sm:$0xff] %vm1401, %v3032
      %3055 = vst.msk [vmem:[#allocation2 + $0x10] sm:$0xff] %vm1401, %v3034
      %3056 = vst.msk [vmem:[#allocation2 + $0x18] sm:$0xff] %vm1401, %v3036
      %3057 = vst.msk [vmem:[#allocation2 + $0x20] sm:$0xff] %vm1401, %v3038
      %3058 = vst.msk [vmem:[#allocation2 + $0x28] sm:$0xff] %vm1401, %v3040
      %3059 = vst.msk [vmem:[#allocation2 + $0x30] sm:$0xff] %vm1401, %v3042
      %3060 = vst.msk [vmem:[#allocation2 + $0x38] sm:$0xff] %vm1401, %v3044
      %v3061 = vld [vmem:[%s324 + $0x4] sm:$0xf]
      %v3062 = vld [vmem:[%s324 + $0x8] sm:$0xf]
      %v3063 = vld [vmem:[%s324 + $0x10] sm:$0xf]
      %v3064 = vld [vmem:[%s324 + $0x14] sm:$0xf]
      %v3065 = vld [vmem:[%s324 + $0x1c] sm:$0xf]
      %v3066 = vld [vmem:[%s324 + $0x20] sm:$0xf]
      %v3067 = vld [vmem:[%s324 + $0x28] sm:$0xf]
      %v3068 = vld [vmem:[%s324 + $0x2c] sm:$0xf]
      %v3069 = vld [vmem:[%s324 + $0x34] sm:$0xf]
      %v3070 = vld [vmem:[%s324 + $0x38] sm:$0xf]
      %v3071 = vld [vmem:[%s324 + $0x40] sm:$0xf]
      %v3072 = vld [vmem:[%s324 + $0x44] sm:$0xf]
      %v3073 = vld [vmem:[%s324 + $0x4c] sm:$0xf]
      %v3074 = vld [vmem:[%s324 + $0x50] sm:$0xf]
      %v3075 = vld [vmem:[%s324 + $0x58] sm:$0xf]
      %v3076 = vld [vmem:[%s324 + $0x5c] sm:$0xf]
      %v3093 = vunpack.c.l.b16 %v3061
      %v3094 = vunpack.c.l.b16 %v3062
      %v3095 = vunpack.c.l.b16 %v3063
      %v3096 = vunpack.c.l.b16 %v3064
      %v3097 = vunpack.c.l.b16 %v3065
      %v3098 = vunpack.c.l.b16 %v3066
      %v3099 = vunpack.c.l.b16 %v3067
      %v3100 = vunpack.c.l.b16 %v3068
      %v3101 = vunpack.c.l.b16 %v3069
      %v3102 = vunpack.c.l.b16 %v3070
      %v3103 = vunpack.c.l.b16 %v3071
      %v3104 = vunpack.c.l.b16 %v3072
      %v3105 = vunpack.c.l.b16 %v3073
      %v3106 = vunpack.c.l.b16 %v3074
      %v3107 = vunpack.c.l.b16 %v3075
      %v3108 = vunpack.c.l.b16 %v3076
      %v3109 = vpack.c.b16 %v3094, %v3093
      %v3110 = vpack.c.b16 %v3096, %v3095
      %v3111 = vpack.c.b16 %v3098, %v3097
      %v3112 = vpack.c.b16 %v3100, %v3099
      %v3113 = vpack.c.b16 %v3102, %v3101
      %v3114 = vpack.c.b16 %v3104, %v3103
      %v3115 = vpack.c.b16 %v3106, %v3105
      %v3116 = vpack.c.b16 %v3108, %v3107
      %3117 = vrot.lane.b32.xlu0 %v3109, 20
      %v3118 = vpop.permute.xlu0 %3117
      %3119 = vrot.lane.b32.xlu0 %v3110, 20
      %v3120 = vpop.permute.xlu0 %3119
      %3121 = vrot.lane.b32.xlu0 %v3111, 20
      %v3122 = vpop.permute.xlu0 %3121
      %3123 = vrot.lane.b32.xlu0 %v3112, 20
      %v3124 = vpop.permute.xlu0 %3123
      %3125 = vrot.lane.b32.xlu0 %v3113, 20
      %v3126 = vpop.permute.xlu0 %3125
      %3127 = vrot.lane.b32.xlu0 %v3114, 20
      %v3128 = vpop.permute.xlu0 %3127
      %3129 = vrot.lane.b32.xlu0 %v3115, 20
      %v3130 = vpop.permute.xlu0 %3129
      %3131 = vrot.lane.b32.xlu0 %v3116, 20
      %v3132 = vpop.permute.xlu0 %3131
      %3141 = vst.msk [vmem:[#allocation2] sm:$0xff] %vm1562, %v3118
      %3142 = vst.msk [vmem:[#allocation2 + $0x8] sm:$0xff] %vm1562, %v3120
      %3143 = vst.msk [vmem:[#allocation2 + $0x10] sm:$0xff] %vm1562, %v3122
      %3144 = vst.msk [vmem:[#allocation2 + $0x18] sm:$0xff] %vm1562, %v3124
      %3145 = vst.msk [vmem:[#allocation2 + $0x20] sm:$0xff] %vm1562, %v3126
      %3146 = vst.msk [vmem:[#allocation2 + $0x28] sm:$0xff] %vm1562, %v3128
      %3147 = vst.msk [vmem:[#allocation2 + $0x30] sm:$0xff] %vm1562, %v3130
      %3148 = vst.msk [vmem:[#allocation2 + $0x38] sm:$0xff] %vm1562, %v3132
      %s3149 = sadd.s32 %s319, 8
      %s3150 = smul.u32 %s3149, 3
      %s3151 = smul.addr %s3150, 4
      %s3152 = scalar_lea.vmem %s303, %s3151
      %v3153 = vld [vmem:[%s3152] sm:$0xf]
      %v3154 = vld [vmem:[%s3152 + $0x4] sm:$0xf]
      %v3155 = vld [vmem:[%s3152 + $0xc] sm:$0xf]
      %v3156 = vld [vmem:[%s3152 + $0x10] sm:$0xf]
      %v3157 = vld [vmem:[%s3152 + $0x18] sm:$0xf]
      %v3158 = vld [vmem:[%s3152 + $0x1c] sm:$0xf]
      %v3159 = vld [vmem:[%s3152 + $0x24] sm:$0xf]
      %v3160 = vld [vmem:[%s3152 + $0x28] sm:$0xf]
      %v3161 = vld [vmem:[%s3152 + $0x30] sm:$0xf]
      %v3162 = vld [vmem:[%s3152 + $0x34] sm:$0xf]
      %v3163 = vld [vmem:[%s3152 + $0x3c] sm:$0xf]
      %v3164 = vld [vmem:[%s3152 + $0x40] sm:$0xf]
      %v3165 = vld [vmem:[%s3152 + $0x48] sm:$0xf]
      %v3166 = vld [vmem:[%s3152 + $0x4c] sm:$0xf]
      %v3167 = vld [vmem:[%s3152 + $0x54] sm:$0xf]
      %v3168 = vld [vmem:[%s3152 + $0x58] sm:$0xf]
      %v3185 = vunpack.c.l.b16 %v3153
      %v3186 = vunpack.c.l.b16 %v3154
      %v3187 = vunpack.c.l.b16 %v3155
      %v3188 = vunpack.c.l.b16 %v3156
      %v3189 = vunpack.c.l.b16 %v3157
      %v3190 = vunpack.c.l.b16 %v3158
      %v3191 = vunpack.c.l.b16 %v3159
      %v3192 = vunpack.c.l.b16 %v3160
      %v3193 = vunpack.c.l.b16 %v3161
      %v3194 = vunpack.c.l.b16 %v3162
      %v3195 = vunpack.c.l.b16 %v3163
      %v3196 = vunpack.c.l.b16 %v3164
      %v3197 = vunpack.c.l.b16 %v3165
      %v3198 = vunpack.c.l.b16 %v3166
      %v3199 = vunpack.c.l.b16 %v3167
      %v3200 = vunpack.c.l.b16 %v3168
      %v3201 = vpack.c.b16 %v3186, %v3185
      %v3202 = vpack.c.b16 %v3188, %v3187
      %v3203 = vpack.c.b16 %v3190, %v3189
      %v3204 = vpack.c.b16 %v3192, %v3191
      %v3205 = vpack.c.b16 %v3194, %v3193
      %v3206 = vpack.c.b16 %v3196, %v3195
      %v3207 = vpack.c.b16 %v3198, %v3197
      %v3208 = vpack.c.b16 %v3200, %v3199
      %3209 = vrot.lane.b32.xlu0 %v3201, 24
      %v3210 = vpop.permute.xlu0 %3209
      %3211 = vrot.lane.b32.xlu0 %v3202, 24
      %v3212 = vpop.permute.xlu0 %3211
      %3213 = vrot.lane.b32.xlu0 %v3203, 24
      %v3214 = vpop.permute.xlu0 %3213
      %3215 = vrot.lane.b32.xlu0 %v3204, 24
      %v3216 = vpop.permute.xlu0 %3215
      %3217 = vrot.lane.b32.xlu0 %v3205, 24
      %v3218 = vpop.permute.xlu0 %3217
      %3219 = vrot.lane.b32.xlu0 %v3206, 24
      %v3220 = vpop.permute.xlu0 %3219
      %3221 = vrot.lane.b32.xlu0 %v3207, 24
      %v3222 = vpop.permute.xlu0 %3221
      %3223 = vrot.lane.b32.xlu0 %v3208, 24
      %v3224 = vpop.permute.xlu0 %3223
      %3233 = vst.msk [vmem:[#allocation2] sm:$0xff] %vm1727, %v3210
      %3234 = vst.msk [vmem:[#allocation2 + $0x8] sm:$0xff] %vm1727, %v3212
      %3235 = vst.msk [vmem:[#allocation2 + $0x10] sm:$0xff] %vm1727, %v3214
      %3236 = vst.msk [vmem:[#allocation2 + $0x18] sm:$0xff] %vm1727, %v3216
      %3237 = vst.msk [vmem:[#allocation2 + $0x20] sm:$0xff] %vm1727, %v3218
      %3238 = vst.msk [vmem:[#allocation2 + $0x28] sm:$0xff] %vm1727, %v3220
      %3239 = vst.msk [vmem:[#allocation2 + $0x30] sm:$0xff] %vm1727, %v3222
      %3240 = vst.msk [vmem:[#allocation2 + $0x38] sm:$0xff] %vm1727, %v3224
      %v3241 = vld [vmem:[%s3152] sm:$0xc]
      %v3242 = vld [vmem:[%s3152 + $0x4] sm:$0xf]
      %v3243 = vld [vmem:[%s3152 + $0x8] sm:$0x3]
      %v3244 = vld [vmem:[%s3152 + $0xc] sm:$0xc]
      %v3245 = vld [vmem:[%s3152 + $0x10] sm:$0xf]
      %v3246 = vld [vmem:[%s3152 + $0x14] sm:$0x3]
      %v3247 = vld [vmem:[%s3152 + $0x18] sm:$0xc]
      %v3248 = vld [vmem:[%s3152 + $0x1c] sm:$0xf]
      %v3249 = vld [vmem:[%s3152 + $0x20] sm:$0x3]
      %v3250 = vld [vmem:[%s3152 + $0x24] sm:$0xc]
      %v3251 = vld [vmem:[%s3152 + $0x28] sm:$0xf]
      %v3252 = vld [vmem:[%s3152 + $0x2c] sm:$0x3]
      %v3253 = vld [vmem:[%s3152 + $0x30] sm:$0xc]
      %v3254 = vld [vmem:[%s3152 + $0x34] sm:$0xf]
      %v3255 = vld [vmem:[%s3152 + $0x38] sm:$0x3]
      %v3256 = vld [vmem:[%s3152 + $0x3c] sm:$0xc]
      %v3257 = vld [vmem:[%s3152 + $0x40] sm:$0xf]
      %v3258 = vld [vmem:[%s3152 + $0x44] sm:$0x3]
      %v3259 = vld [vmem:[%s3152 + $0x48] sm:$0xc]
      %v3260 = vld [vmem:[%s3152 + $0x4c] sm:$0xf]
      %v3261 = vld [vmem:[%s3152 + $0x50] sm:$0x3]
      %v3262 = vld [vmem:[%s3152 + $0x54] sm:$0xc]
      %v3263 = vld [vmem:[%s3152 + $0x58] sm:$0xf]
      %v3264 = vld [vmem:[%s3152 + $0x5c] sm:$0x3]
      %v3289 = vrot.slane %v3241, 6
      %v3290 = vrot.slane %v3289, 4
      %v3291 = vrot.slane %v3242, 6
      %v3292 = vsel %vm375, %v3290, %v3291
      %v3293 = vrot.slane %v3291, 4
      %v3294 = vrot.slane %v3243, 6
      %v3295 = vsel %vm375, %v3293, %v3294
      %v3296 = vrot.slane %v3244, 6
      %v3297 = vrot.slane %v3296, 4
      %v3298 = vrot.slane %v3245, 6
      %v3299 = vsel %vm375, %v3297, %v3298
      %v3300 = vrot.slane %v3298, 4
      %v3301 = vrot.slane %v3246, 6
      %v3302 = vsel %vm375, %v3300, %v3301
      %v3303 = vrot.slane %v3247, 6
      %v3304 = vrot.slane %v3303, 4
      %v3305 = vrot.slane %v3248, 6
      %v3306 = vsel %vm375, %v3304, %v3305
      %v3307 = vrot.slane %v3305, 4
      %v3308 = vrot.slane %v3249, 6
      %v3309 = vsel %vm375, %v3307, %v3308
      %v3310 = vrot.slane %v3250, 6
      %v3311 = vrot.slane %v3310, 4
      %v3312 = vrot.slane %v3251, 6
      %v3313 = vsel %vm375, %v3311, %v3312
      %v3314 = vrot.slane %v3312, 4
      %v3315 = vrot.slane %v3252, 6
      %v3316 = vsel %vm375, %v3314, %v3315
      %v3317 = vrot.slane %v3253, 6
      %v3318 = vrot.slane %v3317, 4
      %v3319 = vrot.slane %v3254, 6
      %v3320 = vsel %vm375, %v3318, %v3319
      %v3321 = vrot.slane %v3319, 4
      %v3322 = vrot.slane %v3255, 6
      %v3323 = vsel %vm375, %v3321, %v3322
      %v3324 = vrot.slane %v3256, 6
      %v3325 = vrot.slane %v3324, 4
      %v3326 = vrot.slane %v3257, 6
      %v3327 = vsel %vm375, %v3325, %v3326
      %v3328 = vrot.slane %v3326, 4
      %v3329 = vrot.slane %v3258, 6
      %v3330 = vsel %vm375, %v3328, %v3329
      %v3331 = vrot.slane %v3259, 6
      %v3332 = vrot.slane %v3331, 4
      %v3333 = vrot.slane %v3260, 6
      %v3334 = vsel %vm375, %v3332, %v3333
      %v3335 = vrot.slane %v3333, 4
      %v3336 = vrot.slane %v3261, 6
      %v3337 = vsel %vm375, %v3335, %v3336
      %v3338 = vrot.slane %v3262, 6
      %v3339 = vrot.slane %v3338, 4
      %v3340 = vrot.slane %v3263, 6
      %v3341 = vsel %vm375, %v3339, %v3340
      %v3342 = vrot.slane %v3340, 4
      %v3343 = vrot.slane %v3264, 6
      %v3344 = vsel %vm375, %v3342, %v3343
      %v3345 = vunpack.c.l.b16 %v3292
      %v3346 = vunpack.c.l.b16 %v3295
      %v3347 = vunpack.c.l.b16 %v3299
      %v3348 = vunpack.c.l.b16 %v3302
      %v3349 = vunpack.c.l.b16 %v3306
      %v3350 = vunpack.c.l.b16 %v3309
      %v3351 = vunpack.c.l.b16 %v3313
      %v3352 = vunpack.c.l.b16 %v3316
      %v3353 = vunpack.c.l.b16 %v3320
      %v3354 = vunpack.c.l.b16 %v3323
      %v3355 = vunpack.c.l.b16 %v3327
      %v3356 = vunpack.c.l.b16 %v3330
      %v3357 = vunpack.c.l.b16 %v3334
      %v3358 = vunpack.c.l.b16 %v3337
      %v3359 = vunpack.c.l.b16 %v3341
      %v3360 = vunpack.c.l.b16 %v3344
      %v3361 = vpack.c.b16 %v3346, %v3345
      %v3362 = vpack.c.b16 %v3348, %v3347
      %v3363 = vpack.c.b16 %v3350, %v3349
      %v3364 = vpack.c.b16 %v3352, %v3351
      %v3365 = vpack.c.b16 %v3354, %v3353
      %v3366 = vpack.c.b16 %v3356, %v3355
      %v3367 = vpack.c.b16 %v3358, %v3357
      %v3368 = vpack.c.b16 %v3360, %v3359
      %3369 = vrot.lane.b32.xlu0 %v3361, 28
      %v3370 = vpop.permute.xlu0 %3369
      %3371 = vrot.lane.b32.xlu0 %v3362, 28
      %v3372 = vpop.permute.xlu0 %3371
      %3373 = vrot.lane.b32.xlu0 %v3363, 28
      %v3374 = vpop.permute.xlu0 %3373
      %3375 = vrot.lane.b32.xlu0 %v3364, 28
      %v3376 = vpop.permute.xlu0 %3375
      %3377 = vrot.lane.b32.xlu0 %v3365, 28
      %v3378 = vpop.permute.xlu0 %3377
      %3379 = vrot.lane.b32.xlu0 %v3366, 28
      %v3380 = vpop.permute.xlu0 %3379
      %3381 = vrot.lane.b32.xlu0 %v3367, 28
      %v3382 = vpop.permute.xlu0 %3381
      %3383 = vrot.lane.b32.xlu0 %v3368, 28
      %v3384 = vpop.permute.xlu0 %3383
      %3393 = vst.msk [vmem:[#allocation2] sm:$0xff] %vm1888, %v3370
      %3394 = vst.msk [vmem:[#allocation2 + $0x8] sm:$0xff] %vm1888, %v3372
      %3395 = vst.msk [vmem:[#allocation2 + $0x10] sm:$0xff] %vm1888, %v3374
      %3396 = vst.msk [vmem:[#allocation2 + $0x18] sm:$0xff] %vm1888, %v3376
      %3397 = vst.msk [vmem:[#allocation2 + $0x20] sm:$0xff] %vm1888, %v3378
      %3398 = vst.msk [vmem:[#allocation2 + $0x28] sm:$0xff] %vm1888, %v3380
      %3399 = vst.msk [vmem:[#allocation2 + $0x30] sm:$0xff] %vm1888, %v3382
      %3400 = vst.msk [vmem:[#allocation2 + $0x38] sm:$0xff] %vm1888, %v3384
      %v3401 = vld [vmem:[%s3152 + $0x4] sm:$0xf]
      %v3402 = vld [vmem:[%s3152 + $0x8] sm:$0xf]
      %v3403 = vld [vmem:[%s3152 + $0x10] sm:$0xf]
      %v3404 = vld [vmem:[%s3152 + $0x14] sm:$0xf]
      %v3405 = vld [vmem:[%s3152 + $0x1c] sm:$0xf]
      %v3406 = vld [vmem:[%s3152 + $0x20] sm:$0xf]
      %v3407 = vld [vmem:[%s3152 + $0x28] sm:$0xf]
      %v3408 = vld [vmem:[%s3152 + $0x2c] sm:$0xf]
      %v3409 = vld [vmem:[%s3152 + $0x34] sm:$0xf]
      %v3410 = vld [vmem:[%s3152 + $0x38] sm:$0xf]
      %v3411 = vld [vmem:[%s3152 + $0x40] sm:$0xf]
      %v3412 = vld [vmem:[%s3152 + $0x44] sm:$0xf]
      %v3413 = vld [vmem:[%s3152 + $0x4c] sm:$0xf]
      %v3414 = vld [vmem:[%s3152 + $0x50] sm:$0xf]
      %v3415 = vld [vmem:[%s3152 + $0x58] sm:$0xf]
      %v3416 = vld [vmem:[%s3152 + $0x5c] sm:$0xf]
      %v3433 = vunpack.c.l.b16 %v3401
      %v3434 = vunpack.c.l.b16 %v3402
      %v3435 = vunpack.c.l.b16 %v3403
      %v3436 = vunpack.c.l.b16 %v3404
      %v3437 = vunpack.c.l.b16 %v3405
      %v3438 = vunpack.c.l.b16 %v3406
      %v3439 = vunpack.c.l.b16 %v3407
      %v3440 = vunpack.c.l.b16 %v3408
      %v3441 = vunpack.c.l.b16 %v3409
      %v3442 = vunpack.c.l.b16 %v3410
      %v3443 = vunpack.c.l.b16 %v3411
      %v3444 = vunpack.c.l.b16 %v3412
      %v3445 = vunpack.c.l.b16 %v3413
      %v3446 = vunpack.c.l.b16 %v3414
      %v3447 = vunpack.c.l.b16 %v3415
      %v3448 = vunpack.c.l.b16 %v3416
      %v3449 = vpack.c.b16 %v3434, %v3433
      %v3450 = vpack.c.b16 %v3436, %v3435
      %v3451 = vpack.c.b16 %v3438, %v3437
      %v3452 = vpack.c.b16 %v3440, %v3439
      %v3453 = vpack.c.b16 %v3442, %v3441
      %v3454 = vpack.c.b16 %v3444, %v3443
      %v3455 = vpack.c.b16 %v3446, %v3445
      %v3456 = vpack.c.b16 %v3448, %v3447
      %3457 = vrot.lane.b32.xlu0 %v3449, 32
      %v3458 = vpop.permute.xlu0 %3457
      %3459 = vrot.lane.b32.xlu0 %v3450, 32
      %v3460 = vpop.permute.xlu0 %3459
      %3461 = vrot.lane.b32.xlu0 %v3451, 32
      %v3462 = vpop.permute.xlu0 %3461
      %3463 = vrot.lane.b32.xlu0 %v3452, 32
      %v3464 = vpop.permute.xlu0 %3463
      %3465 = vrot.lane.b32.xlu0 %v3453, 32
      %v3466 = vpop.permute.xlu0 %3465
      %3467 = vrot.lane.b32.xlu0 %v3454, 32
      %v3468 = vpop.permute.xlu0 %3467
      %3469 = vrot.lane.b32.xlu0 %v3455, 32
      %v3470 = vpop.permute.xlu0 %3469
      %3471 = vrot.lane.b32.xlu0 %v3456, 32
      %v3472 = vpop.permute.xlu0 %3471
      %3481 = vst.msk [vmem:[#allocation2] sm:$0xff] %vm2049, %v3458
      %3482 = vst.msk [vmem:[#allocation2 + $0x8] sm:$0xff] %vm2049, %v3460
      %3483 = vst.msk [vmem:[#allocation2 + $0x10] sm:$0xff] %vm2049, %v3462
      %3484 = vst.msk [vmem:[#allocation2 + $0x18] sm:$0xff] %vm2049, %v3464
      %3485 = vst.msk [vmem:[#allocation2 + $0x20] sm:$0xff] %vm2049, %v3466
      %3486 = vst.msk [vmem:[#allocation2 + $0x28] sm:$0xff] %vm2049, %v3468
      %3487 = vst.msk [vmem:[#allocation2 + $0x30] sm:$0xff] %vm2049, %v3470
      %3488 = vst.msk [vmem:[#allocation2 + $0x38] sm:$0xff] %vm2049, %v3472
      %v3489 = vld [vmem:[#allocation2] sm:$0xff]
      %v3490 = vld [vmem:[#allocation2 + $0x8] sm:$0xff]
      %v3491 = vld [vmem:[#allocation2 + $0x10] sm:$0xff]
      %v3492 = vld [vmem:[#allocation2 + $0x18] sm:$0xff]
      %v3493 = vld [vmem:[#allocation2 + $0x20] sm:$0xff]
      %v3494 = vld [vmem:[#allocation2 + $0x28] sm:$0xff]
      %v3495 = vld [vmem:[#allocation2 + $0x30] sm:$0xff]
      %v3496 = vld [vmem:[#allocation2 + $0x38] sm:$0xff]
      %s3497 = scalar_lea.vmem %s2, 20
      %v3498 = vld [vmem:[%s3497] sm:$0xf]
      %v3499 = vld [vmem:[%s3497 + $0x4] sm:$0xf]
      %v3500 = vld [vmem:[%s3497 + $0x8] sm:$0xf]
      %v3501 = vld [vmem:[%s3497 + $0xc] sm:$0xf]
      %v3502 = vld [vmem:[%s3497 + $0x10] sm:$0x3]
      %v3503 = vlaneseq
      %v3504 = vshrl.u32 %v3503, 7
      %v3505 = vsub.s32 2, %v3504
      %v3506 = vrot.slane %v320, %v3505
      %v3512 = vunpack.c.l.b16 %v3498
      %v3513 = vunpack.c.l.b16 %v3499
      %v3514 = vunpack.c.l.b16 %v3500
      %v3515 = vunpack.c.l.b16 %v3501
      %v3516 = vunpack.c.l.b16 %v3502
      %v3517 = vpack.c.b16 %v3513, %v3512
      %v3518 = vpack.c.b16 %v3515, %v3514
      %v3519 = vpack.c.b16 %v3516, %v3516
      %v3523 = vsel %vm2090, %v3489, 0
      %v3526 = vsel %vm2090, %v3490, 0
      %v3529 = vsel %vm2090, %v3491, 0
      %v3532 = vsel %vm2090, %v3492, 0
      %v3535 = vsel %vm2090, %v3493, 0
      %v3538 = vsel %vm2090, %v3494, 0
      %v3541 = vsel %vm2090, %v3495, 0
      %v3544 = vsel %vm2090, %v3496, 0
      %v3547 = vsel %vm486, %v3519, 0
      %3549 = vmatprep.subr.bf16.mxu0 0
      %3550 = vmatpush1.bf16.msra.mxu0 %v3517
      %3551 = vmatprep.subr.bf16.mxu0 0
      %3552 = vmatpush1.bf16.msra.mxu0 %v3518
      %3553 = vmatprep.subr.bf16.mxu0 0
      %3554 = vmatpush1.bf16.msra.mxu0 %v3547
      %3555 = vmatprep.subr.bf16.mxu0 0
      %3556 = vmatpush1.bf16.msra.mxu0 0
      %3557 = vmatprep.subr.bf16.mxu0 0
      %3558 = vmatpush1.bf16.msra.mxu0 0
      %3559 = vmatprep.subr.bf16.mxu0 0
      %3560 = vmatpush1.bf16.msra.mxu0 0
      %3561 = vmatprep.subr.bf16.mxu0 0
      %3562 = vmatpush1.bf16.msra.mxu0 0
      %3563 = vmatprep.subr.bf16.mxu0 0
      %3564 = vmatpush1.bf16.msra.mxu0 0
      %3565 = vmatprep.subr.bf16.mxu0 0
      %3566 = vmatpush1.bf16.msra.mxu0 0
      %3567 = vmatprep.subr.bf16.mxu0 0
      %3568 = vmatpush1.bf16.msra.mxu0 0
      %3569 = vmatprep.subr.bf16.mxu0 0
      %3570 = vmatpush1.bf16.msra.mxu0 0
      %3571 = vmatprep.subr.bf16.mxu0 0
      %3572 = vmatpush1.bf16.msra.mxu0 0
      %3573 = vmatprep.subr.bf16.mxu0 0
      %3574 = vmatpush1.bf16.msra.mxu0 0
      %3575 = vmatprep.subr.bf16.mxu0 0
      %3576 = vmatpush1.bf16.msra.mxu0 0
      %3577 = vmatprep.subr.bf16.mxu0 0
      %3578 = vmatpush1.bf16.msra.mxu0 0
      %3579 = vmatprep.subr.bf16.mxu0 0
      %3580 = vmatpush1.bf16.msra.mxu0 0
      %3581 = vmatprep.mubr.bf16.mxu0 0
      %3582 = vmatmul.mubr.bf16.gmra.mrb[0].mxu0 %v3523
      %v3583 = vpop.f32.mrb[0].mxu0
      %v3584 = vadd.f32 %v3506, %v3583
      %v3585 = vpop.f32.mrb[0].mxu0
      %v3586 = vpop.f32.mrb[0].mxu0
      %v3587 = vadd.f32 %v3506, %v3586
      %v3588 = vpop.f32.mrb[0].mxu0
      %3589 = vmatprep.mubr.bf16.mxu0 0
      %3590 = vmatmul.mubr.bf16.gmra.mrb[0].mxu0 %v3526
      %v3591 = vpop.f32.mrb[0].mxu0
      %v3592 = vadd.f32 %v3506, %v3591
      %v3593 = vpop.f32.mrb[0].mxu0
      %v3594 = vpop.f32.mrb[0].mxu0
      %v3595 = vadd.f32 %v3506, %v3594
      %v3596 = vpop.f32.mrb[0].mxu0
      %3597 = vmatprep.mubr.bf16.mxu0 0
      %3598 = vmatmul.mubr.bf16.gmra.mrb[0].mxu0 %v3529
      %v3599 = vpop.f32.mrb[0].mxu0
      %v3600 = vadd.f32 %v3506, %v3599
      %v3601 = vpop.f32.mrb[0].mxu0
      %v3602 = vpop.f32.mrb[0].mxu0
      %v3603 = vadd.f32 %v3506, %v3602
      %v3604 = vpop.f32.mrb[0].mxu0
      %3605 = vmatprep.mubr.bf16.mxu0 0
      %3606 = vmatmul.mubr.bf16.gmra.mrb[0].mxu0 %v3532
      %v3607 = vpop.f32.mrb[0].mxu0
      %v3608 = vadd.f32 %v3506, %v3607
      %v3609 = vpop.f32.mrb[0].mxu0
      %v3610 = vpop.f32.mrb[0].mxu0
      %v3611 = vadd.f32 %v3506, %v3610
      %v3612 = vpop.f32.mrb[0].mxu0
      %3613 = vmatprep.mubr.bf16.mxu0 0
      %3614 = vmatmul.mubr.bf16.gmra.mrb[0].mxu0 %v3535
      %v3615 = vpop.f32.mrb[0].mxu0
      %v3616 = vadd.f32 %v3506, %v3615
      %v3617 = vpop.f32.mrb[0].mxu0
      %v3618 = vpop.f32.mrb[0].mxu0
      %v3619 = vadd.f32 %v3506, %v3618
      %v3620 = vpop.f32.mrb[0].mxu0
      %3621 = vmatprep.mubr.bf16.mxu0 0
      %3622 = vmatmul.mubr.bf16.gmra.mrb[0].mxu0 %v3538
      %v3623 = vpop.f32.mrb[0].mxu0
      %v3624 = vadd.f32 %v3506, %v3623
      %v3625 = vpop.f32.mrb[0].mxu0
      %v3626 = vpop.f32.mrb[0].mxu0
      %v3627 = vadd.f32 %v3506, %v3626
      %v3628 = vpop.f32.mrb[0].mxu0
      %3629 = vmatprep.mubr.bf16.mxu0 0
      %3630 = vmatmul.mubr.bf16.gmra.mrb[0].mxu0 %v3541
      %v3631 = vpop.f32.mrb[0].mxu0
      %v3632 = vadd.f32 %v3506, %v3631
      %v3633 = vpop.f32.mrb[0].mxu0
      %v3634 = vpop.f32.mrb[0].mxu0
      %v3635 = vadd.f32 %v3506, %v3634
      %v3636 = vpop.f32.mrb[0].mxu0
      %3637 = vmatprep.mubr.bf16.mxu0 0
      %3638 = vmatmul.mubr.bf16.gmra.mrb[0].mxu0 %v3544
      %v3639 = vpop.f32.mrb[0].mxu0
      %v3640 = vadd.f32 %v3506, %v3639
      %v3641 = vpop.f32.mrb[0].mxu0
      %v3642 = vpop.f32.mrb[0].mxu0
      %v3643 = vadd.f32 %v3506, %v3642
      %v3644 = vpop.f32.mrb[0].mxu0
      %3645 = vdwg.mxu0
      %v3646 = vmax.f32 %v3584, 0.0
      %v3647 = vmax.f32 %v3587, 0.0
      %v3648 = vmax.f32 %v3592, 0.0
      %v3649 = vmax.f32 %v3595, 0.0
      %v3650 = vmax.f32 %v3600, 0.0
      %v3651 = vmax.f32 %v3603, 0.0
      %v3652 = vmax.f32 %v3608, 0.0
      %v3653 = vmax.f32 %v3611, 0.0
      %v3654 = vmax.f32 %v3616, 0.0
      %v3655 = vmax.f32 %v3619, 0.0
      %v3656 = vmax.f32 %v3624, 0.0
      %v3657 = vmax.f32 %v3627, 0.0
      %v3658 = vmax.f32 %v3632, 0.0
      %v3659 = vmax.f32 %v3635, 0.0
      %v3660 = vmax.f32 %v3640, 0.0
      %v3661 = vmax.f32 %v3643, 0.0
      %v3662 = vpack.c.bf16 %v3647, %v3646
      %v3663 = vpack.c.bf16 %v3649, %v3648
      %v3664 = vpack.c.bf16 %v3651, %v3650
      %v3665 = vpack.c.bf16 %v3653, %v3652
      %v3666 = vpack.c.bf16 %v3655, %v3654
      %v3667 = vpack.c.bf16 %v3657, %v3656
      %v3668 = vpack.c.bf16 %v3659, %v3658
      %v3669 = vpack.c.bf16 %v3661, %v3660
      %v3670 = vld [vmem:[%s3 + $0x8] sm:$0xf]
      %v3672 = vsel %vm2240, %v3662, 0
      %v3675 = vsel %vm2240, %v3663, 0
      %v3678 = vsel %vm2240, %v3664, 0
      %v3681 = vsel %vm2240, %v3665, 0
      %v3684 = vsel %vm2240, %v3666, 0
      %v3687 = vsel %vm2240, %v3667, 0
      %v3690 = vsel %vm2240, %v3668, 0
      %v3693 = vsel %vm2240, %v3669, 0
      %v3696 = vsel %vm2265, %v3670, 0
      %3698 = vmatprep.subr.bf16.mxu0 0
      %3699 = vmatpush1.bf16.msra.mxu0 %v3696
      %3700 = vmatprep.subr.bf16.mxu0 0
      %3701 = vmatpush1.bf16.msra.mxu0 0
      %3702 = vmatprep.subr.bf16.mxu0 0
      %3703 = vmatpush1.bf16.msra.mxu0 0
      %3704 = vmatprep.subr.bf16.mxu0 0
      %3705 = vmatpush1.bf16.msra.mxu0 0
      %3706 = vmatprep.subr.bf16.mxu0 0
      %3707 = vmatpush1.bf16.msra.mxu0 0
      %3708 = vmatprep.subr.bf16.mxu0 0
      %3709 = vmatpush1.bf16.msra.mxu0 0
      %3710 = vmatprep.subr.bf16.mxu0 0
      %3711 = vmatpush1.bf16.msra.mxu0 0
      %3712 = vmatprep.subr.bf16.mxu0 0
      %3713 = vmatpush1.bf16.msra.mxu0 0
      %3714 = vmatprep.subr.bf16.mxu0 0
      %3715 = vmatpush1.bf16.msra.mxu0 0
      %3716 = vmatprep.subr.bf16.mxu0 0
      %3717 = vmatpush1.bf16.msra.mxu0 0
      %3718 = vmatprep.subr.bf16.mxu0 0
      %3719 = vmatpush1.bf16.msra.mxu0 0
      %3720 = vmatprep.subr.bf16.mxu0 0
      %3721 = vmatpush1.bf16.msra.mxu0 0
      %3722 = vmatprep.subr.bf16.mxu0 0
      %3723 = vmatpush1.bf16.msra.mxu0 0
      %3724 = vmatprep.subr.bf16.mxu0 0
      %3725 = vmatpush1.bf16.msra.mxu0 0
      %3726 = vmatprep.subr.bf16.mxu0 0
      %3727 = vmatpush1.bf16.msra.mxu0 0
      %3728 = vmatprep.subr.bf16.mxu0 0
      %3729 = vmatpush1.bf16.msra.mxu0 0
      %3730 = vmatprep.mubr.bf16.mxu0 0
      %3731 = vmatmul.mubr.bf16.gmra.mrb[0].mxu0 %v3672
      %v3732 = vpop.f32.mrb[0].mxu0
      %v3733 = vadd.f32 0.0, %v3732
      %v3734 = vpop.f32.mrb[0].mxu0
      %v3735 = vpop.f32.mrb[0].mxu0
      %v3736 = vadd.f32 0.0, %v3735
      %v3737 = vpop.f32.mrb[0].mxu0
      %3738 = vmatprep.mubr.bf16.mxu0 0
      %3739 = vmatmul.mubr.bf16.gmra.mrb[0].mxu0 %v3675
      %v3740 = vpop.f32.mrb[0].mxu0
      %v3741 = vadd.f32 0.0, %v3740
      %v3742 = vpop.f32.mrb[0].mxu0
      %v3743 = vpop.f32.mrb[0].mxu0
      %v3744 = vadd.f32 0.0, %v3743
      %v3745 = vpop.f32.mrb[0].mxu0
      %3746 = vmatprep.mubr.bf16.mxu0 0
      %3747 = vmatmul.mubr.bf16.gmra.mrb[0].mxu0 %v3678
      %v3748 = vpop.f32.mrb[0].mxu0
      %v3749 = vadd.f32 0.0, %v3748
      %v3750 = vpop.f32.mrb[0].mxu0
      %v3751 = vpop.f32.mrb[0].mxu0
      %v3752 = vadd.f32 0.0, %v3751
      %v3753 = vpop.f32.mrb[0].mxu0
      %3754 = vmatprep.mubr.bf16.mxu0 0
      %3755 = vmatmul.mubr.bf16.gmra.mrb[0].mxu0 %v3681
      %v3756 = vpop.f32.mrb[0].mxu0
      %v3757 = vadd.f32 0.0, %v3756
      %v3758 = vpop.f32.mrb[0].mxu0
      %v3759 = vpop.f32.mrb[0].mxu0
      %v3760 = vadd.f32 0.0, %v3759
      %v3761 = vpop.f32.mrb[0].mxu0
      %3762 = vmatprep.mubr.bf16.mxu0 0
      %3763 = vmatmul.mubr.bf16.gmra.mrb[0].mxu0 %v3684
      %v3764 = vpop.f32.mrb[0].mxu0
      %v3765 = vadd.f32 0.0, %v3764
      %v3766 = vpop.f32.mrb[0].mxu0
      %v3767 = vpop.f32.mrb[0].mxu0
      %v3768 = vadd.f32 0.0, %v3767
      %v3769 = vpop.f32.mrb[0].mxu0
      %3770 = vmatprep.mubr.bf16.mxu0 0
      %3771 = vmatmul.mubr.bf16.gmra.mrb[0].mxu0 %v3687
      %v3772 = vpop.f32.mrb[0].mxu0
      %v3773 = vadd.f32 0.0, %v3772
      %v3774 = vpop.f32.mrb[0].mxu0
      %v3775 = vpop.f32.mrb[0].mxu0
      %v3776 = vadd.f32 0.0, %v3775
      %v3777 = vpop.f32.mrb[0].mxu0
      %3778 = vmatprep.mubr.bf16.mxu0 0
      %3779 = vmatmul.mubr.bf16.gmra.mrb[0].mxu0 %v3690
      %v3780 = vpop.f32.mrb[0].mxu0
      %v3781 = vadd.f32 0.0, %v3780
      %v3782 = vpop.f32.mrb[0].mxu0
      %v3783 = vpop.f32.mrb[0].mxu0
      %v3784 = vadd.f32 0.0, %v3783
      %v3785 = vpop.f32.mrb[0].mxu0
      %3786 = vmatprep.mubr.bf16.mxu0 0
      %3787 = vmatmul.mubr.bf16.gmra.mrb[0].mxu0 %v3693
      %v3788 = vpop.f32.mrb[0].mxu0
      %v3789 = vadd.f32 0.0, %v3788
      %v3790 = vpop.f32.mrb[0].mxu0
      %v3791 = vpop.f32.mrb[0].mxu0
      %v3792 = vadd.f32 0.0, %v3791
      %v3793 = vpop.f32.mrb[0].mxu0
      %3794 = vdwg.mxu0
      %v3795 = vadd.f32 %v2428, %v3733
      %v3796 = vadd.f32 %v2431, %v3736
      %v3797 = vadd.f32 %v2436, %v3741
      %v3798 = vadd.f32 %v2439, %v3744
      %v3799 = vadd.f32 %v2444, %v3749
      %v3800 = vadd.f32 %v2447, %v3752
      %v3801 = vadd.f32 %v2452, %v3757
      %v3802 = vadd.f32 %v2455, %v3760
      %v3803 = vadd.f32 %v2460, %v3765
      %v3804 = vadd.f32 %v2463, %v3768
      %v3805 = vadd.f32 %v2468, %v3773
      %v3806 = vadd.f32 %v2471, %v3776
      %v3807 = vadd.f32 %v2476, %v3781
      %v3808 = vadd.f32 %v2479, %v3784
      %v3809 = vadd.f32 %v2484, %v3789
      %v3810 = vadd.f32 %v2487, %v3792
      %v3811 = vld [vmem:[%s306] sm:$0x1]
      %v3813 = vlaneseq
      %v3814 = vshrl.u32 %v3813, 7
      %v3815 = vsub.s32 0, %v3814
      %v3816 = vrot.slane %v3811, %v3815
      %v3818 = vadd.f32 %v3795, %v3816
      %v3819 = vadd.f32 %v3796, %v3816
      %v3820 = vadd.f32 %v3797, %v3816
      %v3821 = vadd.f32 %v3798, %v3816
      %v3822 = vadd.f32 %v3799, %v3816
      %v3823 = vadd.f32 %v3800, %v3816
      %v3824 = vadd.f32 %v3801, %v3816
      %v3825 = vadd.f32 %v3802, %v3816
      %v3826 = vadd.f32 %v3803, %v3816
      %v3827 = vadd.f32 %v3804, %v3816
      %v3828 = vadd.f32 %v3805, %v3816
      %v3829 = vadd.f32 %v3806, %v3816
      %v3830 = vadd.f32 %v3807, %v3816
      %v3831 = vadd.f32 %v3808, %v3816
      %v3832 = vadd.f32 %v3809, %v3816
      %v3833 = vadd.f32 %v3810, %v3816
      %v3834 = vld [vmem:[%s5] sm:$0x1]
      %v3836 = vlaneseq
      %v3837 = vshrl.u32 %v3836, 7
      %v3838 = vsub.s32 0, %v3837
      %v3839 = vrot.slane %v3834, %v3838
      %v3841 = vadd.f32 %v3818, %v3839
      %v3842 = vadd.f32 %v3819, %v3839
      %v3843 = vadd.f32 %v3820, %v3839
      %v3844 = vadd.f32 %v3821, %v3839
      %v3845 = vadd.f32 %v3822, %v3839
      %v3846 = vadd.f32 %v3823, %v3839
      %v3847 = vadd.f32 %v3824, %v3839
      %v3848 = vadd.f32 %v3825, %v3839
      %v3849 = vadd.f32 %v3826, %v3839
      %v3850 = vadd.f32 %v3827, %v3839
      %v3851 = vadd.f32 %v3828, %v3839
      %v3852 = vadd.f32 %v3829, %v3839
      %v3853 = vadd.f32 %v3830, %v3839
      %v3854 = vadd.f32 %v3831, %v3839
      %v3855 = vadd.f32 %v3832, %v3839
      %v3856 = vadd.f32 %v3833, %v3839
      %v3857 = vmax.f32 %v3841, 0.0
      %v3858 = vmax.f32 %v3842, 0.0
      %v3859 = vmax.f32 %v3843, 0.0
      %v3860 = vmax.f32 %v3844, 0.0
      %v3861 = vmax.f32 %v3845, 0.0
      %v3862 = vmax.f32 %v3846, 0.0
      %v3863 = vmax.f32 %v3847, 0.0
      %v3864 = vmax.f32 %v3848, 0.0
      %v3865 = vmax.f32 %v3849, 0.0
      %v3866 = vmax.f32 %v3850, 0.0
      %v3867 = vmax.f32 %v3851, 0.0
      %v3868 = vmax.f32 %v3852, 0.0
      %v3869 = vmax.f32 %v3853, 0.0
      %v3870 = vmax.f32 %v3854, 0.0
      %v3871 = vmax.f32 %v3855, 0.0
      %v3872 = vmax.f32 %v3856, 0.0
      %3873 = vst.msk [vmem:[%s316] sm:$0xff] %vm2240, %v3857
      %3874 = vst.msk [vmem:[%s316 + $0x8] sm:$0xff] %vm2240, %v3858
      %3875 = vst.msk [vmem:[%s316 + $0x10] sm:$0xff] %vm2240, %v3859
      %3876 = vst.msk [vmem:[%s316 + $0x18] sm:$0xff] %vm2240, %v3860
      %3877 = vst.msk [vmem:[%s316 + $0x20] sm:$0xff] %vm2240, %v3861
      %3878 = vst.msk [vmem:[%s316 + $0x28] sm:$0xff] %vm2240, %v3862
      %3879 = vst.msk [vmem:[%s316 + $0x30] sm:$0xff] %vm2240, %v3863
      %3880 = vst.msk [vmem:[%s316 + $0x38] sm:$0xff] %vm2240, %v3864
      %3881 = vst.msk [vmem:[%s316 + $0x40] sm:$0xff] %vm2240, %v3865
      %3882 = vst.msk [vmem:[%s316 + $0x48] sm:$0xff] %vm2240, %v3866
      %3883 = vst.msk [vmem:[%s316 + $0x50] sm:$0xff] %vm2240, %v3867
      %3884 = vst.msk [vmem:[%s316 + $0x58] sm:$0xff] %vm2240, %v3868
      %3885 = vst.msk [vmem:[%s316 + $0x60] sm:$0xff] %vm2240, %v3869
      %3886 = vst.msk [vmem:[%s316 + $0x68] sm:$0xff] %vm2240, %v3870
      %3887 = vst.msk [vmem:[%s316 + $0x70] sm:$0xff] %vm2240, %v3871
      %3888 = vst.msk [vmem:[%s316 + $0x78] sm:$0xff] %vm2240, %v3872
      %s3889 = smul.u32 8, %s23
      %p3890 = scmp.lt.s32.totalorder %s22, 1
      %s3891 = scalar_select %p3890, %s22, 1
      %p3892 = scmp.lt.s32.totalorder %s3889, 15
      %s3893 = scalar_select %p3892, %s3889, 15
      %s3894 = smul.addr %s3893, 2
      %s3895 = smul.addr %s3891, 32
      %s3896 = sadd.s32 %s3894, %s3895
      %s3897 = smul.addr %s3896, 8
      %s3898 = scalar_lea.vmem %s7, %s3897
      // Predicated region
      $region49: #{tpu_custom_call.1} parent=47 // pred_check
        %p3899 = pneg %p207
      $region50: #{tpu_custom_call.1} parent=47 // pred_check_branch
        %3901 = sbr.rel (%p3899) target = $region52
      $region51: #{tpu_custom_call.1} parent=47 // pred_region
        %s3902 = smul.u32 8, %s23
      $region52: #{tpu_custom_call.1} parent=47 // pred_fallthru
        _
    $region48: #{tpu_custom_call.1} parent=5 // pred_fallthru
      _
    %p3903 = scmp.le.s32.totalorder 2, %s13
    // Predicated region
    $region53: #{tpu_custom_call.1} parent=5 // pred_check
      %p3904 = pneg %p3903
    $region54: #{tpu_custom_call.1} parent=5 // pred_check_branch
      %3906 = sbr.rel (%p3904) target = $region56
    $region55: #{tpu_custom_call.1} parent=5 // pred_region
      %s3907 = ssub.s32 %s13, 2
      // Predicated region
      $region57: #{tpu_custom_call.1} parent=55 // pred_check
        %p3908 = pneg %p213
      $region58: #{tpu_custom_call.1} parent=55 // pred_check_branch
        %3910 = sbr.rel (%p3908) target = $region60
      $region59: #{tpu_custom_call.1} parent=55 // pred_region
        %s3911 = smul.u32 8, %s25
        %p3912 = scmp.lt.s32.totalorder %s24, 1
        %s3913 = scalar_select %p3912, %s24, 1
        %p3914 = scmp.lt.s32.totalorder %s3911, 15
        %s3915 = scalar_select %p3914, %s3911, 15
        %s3916 = smul.addr %s3915, 2
        %s3917 = smul.addr %s3913, 32
        %s3918 = sadd.s32 %s3916, %s3917
        %s3919 = smul.addr %s3918, 8
        %s3920 = scalar_lea.vmem %s7, %s3919
      $region60: #{tpu_custom_call.1} parent=55 // pred_fallthru
        _
    $region56: #{tpu_custom_call.1} parent=5 // pred_fallthru
      _
  $region6: #{tpu_custom_call.1} parent=0 // loop_footer
    %s17 = sadd.s32 1, %s13
  $region7: #{tpu_custom_call.1} parent=0 // loop_footer_branch
    %12 = sbr.rel target = $region3
  $region8: #{tpu_custom_call.1} parent=0 // loop_exit
    _

</llo_original>
